<compile_context>
chip_gen: v6e
topology: v6e:2x2x1
jax: 0.10.0
libtpu: 0.0.40
codegen_flags: <defaults>
</compile_context>

<pallas_src>
import functools
import math

import jax
import jax.numpy as jnp
from jax import lax
from jax.experimental import pallas as pl
from jax.experimental.pallas import tpu as pltpu


def _triple(v):
    if isinstance(v, (tuple, list)):
        return tuple(v)
    return (v, v, v)


def _round_up(x, m):
    return ((x + m - 1) // m) * m


def _largest_divisor_leq(n, cap):
    cap = max(1, min(n, cap))
    for d in range(cap, 0, -1):
        if n % d == 0:
            return d
    return 1


def _pick_tn(np_, cap=512):
    # Full Cmid block when it is small enough, otherwise the largest 128-multiple
    # divisor <= cap (keeps the f32 accumulator tile <= ~4 MiB).
    if np_ <= cap:
        return np_
    t = (cap // 128) * 128
    while t > 128 and np_ % t:
        t -= 128
    return t


def _to_phase_space(xc, ph, pw, sh, sw, kh, kw, Ho, Wo):
    """Zero-pad and re-tile (N,T,H,W,C) so every spatial tap is a contiguous
    window regardless of stride.  For stride 1 this is just the zero-padded
    channels-last input with singleton phase dims (no data expansion)."""
    N, T, H, W, C = xc.shape
    Hp, Wp = H + 2 * ph, W + 2 * pw
    Hq = Ho + (kh - 1) // sh
    Wq = Wo + (kw - 1) // sw
    Hq2 = max(Hq, -(-Hp // sh))
    Wq2 = max(Wq, -(-Wp // sw))
    xp = jnp.pad(xc, ((0, 0), (0, 0),
                      (ph, Hq2 * sh - H - ph),
                      (pw, Wq2 * sw - W - pw),
                      (0, 0)))
    xq = xp.reshape(N, T, Hq2, sh, Wq2, sw, C)
    xq = jnp.transpose(xq, (0, 1, 3, 5, 2, 4, 6))       # (N,T,sh,sw,Hq2,Wq2,C)
    xq = xq[:, :, :, :, :Hq, :Wq, :]
    return xq.reshape(N * T, sh * sw, Hq, Wq, C)


# --------------------------------------------------------------------------
# Kernel 1: spatial implicit GEMM (bf16 MXU) + bias + fused BatchNorm stats
# --------------------------------------------------------------------------

def _spatial_kernel(*refs, kh, kw, sw, Wo):
    """One grid step = all kh*kw taps for (bt frames) x (one output row) x
    (one Cmid block).  x_refs[i] is the (bt, sw, Wq, C) bf16 row block for
    tap-row i; all kw column taps are static slices of it (no im2col)."""
    x_refs = refs[:kh]
    w_ref, b_ref, y_ref, st_ref, acc_ref = refs[kh:]

    first = True
    for i in range(kh):
        for j in range(kw):
            pj, oj = j % sw, j // sw
            a = x_refs[i][:, pj, oj:oj + Wo, :]           # (bt, Wo, C) bf16
            a = a.reshape(-1, a.shape[-1])                # (bt*Wo, C)
            d = jnp.dot(a, w_ref[i, j], preferred_element_type=jnp.float32)
            if first:
                acc_ref[...] = d
                first = False
            else:
                acc_ref[...] += d

    acc = acc_ref[...]                                    # pre-bias f32
    y_ref[...] = (acc + b_ref[...]).astype(y_ref.dtype).reshape(y_ref.shape)
    # BatchNorm partial stats: row 0 = sum, row 1 = sum of squares (2 sublanes,
    # no 8x broadcast).  Bias only shifts the mean; fixed up on the host.
    st_ref[...] = jnp.concatenate(
        [jnp.sum(acc, axis=0, keepdims=True),
         jnp.sum(acc * acc, axis=0, keepdims=True)], axis=0)


def spatial_conv_bias_stats(xq, wq, bias, *, kh, kw, sh, sw, Ho, Wo, bt, tn):
    """y[nt,ho,wo,:] = bias + sum_{i,j,c} xq_tap(i,j)[nt,ho,wo,c] * wq[i,j,c,:]
    plus per-channel partial sum / sum-of-squares for BatchNorm."""
    NT, PH, Hq, Wq, C = xq.shape
    assert wq.shape[:3] == (kh, kw, C)
    Np = wq.shape[3]
    assert Np % 128 == 0 and Np % tn == 0 and NT % bt == 0
    ntb, nb = NT // bt, Np // tn

    in_specs = []
    for i in range(kh):
        pi, oi = i % sh, i // sh                      # static per tap-row
        in_specs.append(pl.BlockSpec(
            (bt, sw, None, Wq, C),
            lambda n, m, h, _pi=pi, _oi=oi: (m, _pi, h + _oi, 0, 0)))
    in_specs += [
        # Full weight / bias blocks with constant index maps: resident, fetched
        # only when the Cmid block changes (outermost grid axis).
        pl.BlockSpec((kh, kw, C, tn), lambda n, m, h: (0, 0, 0, n)),
        pl.BlockSpec((1, tn), lambda n, m, h: (0, n)),
    ]

    kernel = functools.partial(_spatial_kernel, kh=kh, kw=kw, sw=sw, Wo=Wo)
    y, stats = pl.pallas_call(
        kernel,
        out_shape=(jax.ShapeDtypeStruct((NT, Ho, Wo, Np), jnp.bfloat16),
                   jax.ShapeDtypeStruct((ntb, Ho, 2, Np), jnp.float32)),
        grid_spec=pltpu.PrefetchScalarGridSpec(
            num_scalar_prefetch=0,
            grid=(nb, ntb, Ho),
            in_specs=in_specs,
            out_specs=(pl.BlockSpec((bt, None, Wo, tn),
                                    lambda n, m, h: (m, h, 0, n)),
                       pl.BlockSpec((None, None, 2, tn),
                                    lambda n, m, h: (m, h, 0, n))),
            scratch_shapes=[pltpu.VMEM((bt * Wo, tn), jnp.float32)],
        ),
        compiler_params=pltpu.CompilerParams(
            dimension_semantics=("parallel", "parallel", "parallel"),
            vmem_limit_bytes=48 * 1024 * 1024),
    )(*([xq] * kh), wq, bias)

    col_sum = jnp.sum(stats[:, :, 0, :], axis=(0, 1))
    col_sq = jnp.sum(stats[:, :, 1, :], axis=(0, 1))
    return y, col_sum, col_sq


# --------------------------------------------------------------------------
# Kernel 2: temporal implicit GEMM, BN scale folded into weights, bf16 ReLU
# --------------------------------------------------------------------------

def _temporal_kernel(y_ref, w_ref, shift_ref, b_ref, o_ref, acc_ref,
                     *, kt, st, pt, T):
    """One temporal tap: a = relu(y + shift') in bf16 (BN scale pre-folded into
    the weights), bf16 MXU dot into an f32 accumulator; bias added and stored
    at the last tap.  Out-of-range taps (zero padding of the post-BN/ReLU
    tensor) are skipped."""
    k = pl.program_id(3)
    to = pl.program_id(1)

    @pl.when(k == 0)
    def _():
        acc_ref[...] = jnp.zeros_like(acc_ref)

    tsrc = to * st - pt + k

    @pl.when(jnp.logical_and(tsrc >= 0, tsrc < T))
    def _():
        a = jnp.maximum(y_ref[...] + shift_ref[...], 0)        # bf16 add + relu
        acc_ref[...] += jnp.dot(a, w_ref[k], preferred_element_type=jnp.float32)

    @pl.when(k == kt - 1)
    def _():
        o_ref[...] = (acc_ref[...] + b_ref[...]).astype(o_ref.dtype)


def temporal_conv_relu(y4, w_taps, shift, bias, *, st, pt, To, tp=2048):
    """out[n,to,p,:] = bias + sum_k relu(y4[n,to*st-pt+k,p,:] + shift) @ w_taps[k]."""
    N, T, P, Np = y4.shape
    kt, Np2, Coutp = w_taps.shape
    assert Np == Np2 and Np % 128 == 0 and Coutp % 128 == 0
    tp = min(tp, _round_up(P, 8))
    pb = pl.cdiv(P, tp)

    def y_map(n, t, p, k):
        tsrc = jnp.clip(t * st - pt + k, 0, T - 1)  # clamped; invalid taps skipped
        return (n, tsrc, p, 0)

    # TODO(synk): y is still read kt times (once per tap); a window-of-`to`
    # blocking needs element-offset (overlapping) T windows.
    kernel = functools.partial(_temporal_kernel, kt=kt, st=st, pt=pt, T=T)
    return pl.pallas_call(
        kernel,
        out_shape=jax.ShapeDtypeStruct((N, To, P, Coutp), jnp.float32),
        grid_spec=pltpu.PrefetchScalarGridSpec(
            num_scalar_prefetch=0,
            grid=(N, To, pb, kt),
            in_specs=[
                pl.BlockSpec((None, None, tp, Np), y_map),
                # Full weight block, constant index map -> fetched once, indexed
                # per tap in-kernel (no per-step weight re-DMA).
                pl.BlockSpec((kt, Np, Coutp), lambda n, t, p, k: (0, 0, 0)),
                pl.BlockSpec((1, Np), lambda n, t, p, k: (0, 0)),
                pl.BlockSpec((1, Coutp), lambda n, t, p, k: (0, 0)),
            ],
            out_specs=pl.BlockSpec((None, None, tp, Coutp),
                                   lambda n, t, p, k: (n, t, p, 0)),
            scratch_shapes=[pltpu.VMEM((tp, Coutp), jnp.float32)],
        ),
        compiler_params=pltpu.CompilerParams(
            dimension_semantics=("parallel", "parallel", "parallel", "arbitrary"),
            vmem_limit_bytes=48 * 1024 * 1024),
    )(y4, w_taps, shift, bias)


# --------------------------------------------------------------------------
# SpatioTemporalConv module (forward semantics of the PyTorch reference)
# --------------------------------------------------------------------------

class SpatioTemporalConvPallas:
    def __init__(self, in_channels, out_channels, kernel_size,
                 stride=1, padding=0, bias=True, key=None):
        self.kt, self.kh, self.kw = _triple(kernel_size)
        self.st, self.sh, self.sw = _triple(stride)
        self.pt, self.ph, self.pw = _triple(padding)
        self.in_channels = in_channels
        self.out_channels = out_channels
        self.intermed = int(math.floor(
            self.kt * self.kh * self.kw * in_channels * out_channels /
            (self.kh * self.kw * in_channels + self.kt * out_channels)))

        keys = jax.random.split(key, 4)
        # PyTorch Conv3d weight layout: (out, in, kT, kH, kW); deterministic init.
        self.w_sp = 0.1 * jax.random.normal(
            keys[0], (self.intermed, in_channels, 1, self.kh, self.kw), jnp.float32)
        self.w_tm = 0.1 * jax.random.normal(
            keys[2], (out_channels, self.intermed, self.kt, 1, 1), jnp.float32)
        if bias:
            self.b_sp = 0.1 * jax.random.normal(keys[1], (self.intermed,), jnp.float32)
            self.b_tm = 0.1 * jax.random.normal(keys[3], (out_channels,), jnp.float32)
        else:
            self.b_sp = jnp.zeros((self.intermed,), jnp.float32)
            self.b_tm = jnp.zeros((out_channels,), jnp.float32)
        # BatchNorm3d default parameters (weight=1, bias=0), eps=1e-5.
        self.gamma = jnp.ones((self.intermed,), jnp.float32)
        self.beta = jnp.zeros((self.intermed,), jnp.float32)
        self.eps = 1e-5

    def __call__(self, x):
        # layout: x is (N, C, T, H, W) float32 (PyTorch NCDHW).
        N, C, T, H, W = x.shape
        kh, kw, sh, sw, ph, pw = self.kh, self.kw, self.sh, self.sw, self.ph, self.pw
        Ho = (H + 2 * ph - kh) // sh + 1
        Wo = (W + 2 * pw - kw) // sw + 1
        Cmid = self.intermed
        Np = _round_up(Cmid, 128)
        NT = N * T
        M = NT * Ho * Wo

        # ---- spatial (1,kh,kw) conv: implicit GEMM, no im2col expansion ----
        xc = jnp.transpose(x, (0, 2, 3, 4, 1)).astype(jnp.bfloat16)   # (N,T,H,W,C)
        xq = _to_phase_space(xc, ph, pw, sh, sw, kh, kw, Ho, Wo)

        w2 = jnp.transpose(self.w_sp[:, :, 0], (2, 3, 1, 0))          # (kh,kw,C,Cmid)
        wq = jnp.zeros((kh, kw, C, Np), jnp.bfloat16).at[..., :Cmid].set(
            w2.astype(jnp.bfloat16))
        b1p = jnp.zeros((1, Np), jnp.float32).at[0, :Cmid].set(self.b_sp)

        bt = _largest_divisor_leq(NT, max(1, 2048 // max(Wo, 1)))     # frames/block
        tn = _pick_tn(Np)
        y, col_sum, col_sq = spatial_conv_bias_stats(
            xq, wq, b1p, kh=kh, kw=kw, sh=sh, sw=sw, Ho=Ho, Wo=Wo, bt=bt, tn=tn)
        # y: (NT, Ho, Wo, Np) bf16

        # ---- BatchNorm3d training-mode stats from the fused partial sums ----
        mu_acc = col_sum[:Cmid] / M
        mean = mu_acc + self.b_sp                      # bias only shifts the mean
        var = jnp.maximum(col_sq[:Cmid] / M - mu_acc * mu_acc, 0.0)   # biased var
        scale = self.gamma / jnp.sqrt(var + self.eps)  # > 0 (gamma == 1 here)
        shift = self.beta - mean * scale

        # ---- temporal (kt,1,1) conv: implicit GEMM, BN scale folded into W ----
        # relu(y*scale+shift) @ w == relu(y + shift/scale) @ (scale*w)  (scale>0)
        kt, st, pt = self.kt, self.st, self.pt
        To = (T + 2 * pt - kt) // st + 1
        Coutp = _round_up(self.out_channels, 128)
        wt = jnp.transpose(self.w_tm[:, :, :, 0, 0], (2, 1, 0))       # (kt,Cmid,Cout)
        wt = wt * scale[None, :, None]
        wtp = jnp.zeros((kt, Np, Coutp), jnp.bfloat16).at[
            :, :Cmid, :self.out_channels].set(wt.astype(jnp.bfloat16))
        shiftp = jnp.zeros((1, Np), jnp.bfloat16).at[0, :Cmid].set(
            (shift / scale).astype(jnp.bfloat16))
        b2p = jnp.zeros((1, Coutp), jnp.float32).at[
            0, :self.out_channels].set(self.b_tm)

        y4 = y.reshape(N, T, Ho * Wo, Np)              # free reshape, bf16
        out = temporal_conv_relu(y4, wtp, shiftp, b2p, st=st, pt=pt, To=To)

        # TODO(synk): keep channels-last / bf16 output if the consumer allows;
        # here we match the PyTorch module's f32 NCDHW contract.
        out = out[..., :self.out_channels].reshape(N, To, Ho, Wo, self.out_channels)
        return jnp.transpose(out, (0, 4, 1, 2, 3)).astype(jnp.float32)  # NCDHW


# --------------------------------------------------------------------------
# Pure-JAX reference (XLA 3D conv, f32) for verification
# --------------------------------------------------------------------------

def reference_forward(mod, x):
    dn = lax.conv_dimension_numbers(x.shape, mod.w_sp.shape,
                                    ('NCDHW', 'OIDHW', 'NCDHW'))
    y = lax.conv_general_dilated(
        x, mod.w_sp, (1, mod.sh, mod.sw),
        [(0, 0), (mod.ph, mod.ph), (mod.pw, mod.pw)], dimension_numbers=dn)
    y = y + mod.b_sp.reshape(1, -1, 1, 1, 1)
    mean = jnp.mean(y, axis=(0, 2, 3, 4), keepdims=True)
    var = jnp.mean((y - mean) ** 2, axis=(0, 2, 3, 4), keepdims=True)
    y = (y - mean) / jnp.sqrt(var + mod.eps)
    y = y * mod.gamma.reshape(1, -1, 1, 1, 1) + mod.beta.reshape(1, -1, 1, 1, 1)
    y = jnp.maximum(y, 0.0)
    dn2 = lax.conv_dimension_numbers(y.shape, mod.w_tm.shape,
                                     ('NCDHW', 'OIDHW', 'NCDHW'))
    out = lax.conv_general_dilated(
        y, mod.w_tm, (mod.st, 1, 1),
        [(mod.pt, mod.pt), (0, 0), (0, 0)], dimension_numbers=dn2)
    return out + mod.b_tm.reshape(1, -1, 1, 1, 1)


if __name__ == "__main__":
    key = jax.random.PRNGKey(0)
    k_x, k_p = jax.random.split(key)

    N, Cin, T, H, W = 2, 4, 8, 16, 16
    Cout = 8
    x = jax.random.normal(k_x, (N, Cin, T, H, W), jnp.float32)

    mod = SpatioTemporalConvPallas(Cin, Cout, kernel_size=3,
                                   stride=1, padding=1, bias=True, key=k_p)
    out = jax.block_until_ready(mod(x))

    ref = reference_forward(mod, x)
    assert out.shape == ref.shape, (out.shape, ref.shape)
    # bf16 MXU operands + bf16 intermediate storage -> relaxed tolerance vs f32 ref.
    assert jnp.allclose(out, ref, atol=8e-2, rtol=8e-2), \
        float(jnp.max(jnp.abs(out - ref)))
    print("KERNEL_OK")
</pallas_src>

<mosaic_0001>
module attributes {stable_mosaic.version = 11 : i64} {
  func.func @_spatial_kernel(%arg0: i32, %arg1: i32, %arg2: i32, %arg3: memref<16x1x1x18x4xbf16, #tpu.memory_space<vmem>>, %arg4: memref<16x1x1x18x4xbf16, #tpu.memory_space<vmem>>, %arg5: memref<16x1x1x18x4xbf16, #tpu.memory_space<vmem>>, %arg6: memref<3x3x4x128xbf16, #tpu.memory_space<vmem>>, %arg7: memref<1x128xf32, #tpu.memory_space<vmem>>, %arg8: memref<16x1x16x128xbf16, #tpu.memory_space<vmem>>, %arg9: memref<1x1x2x128xf32, #tpu.memory_space<vmem>>, %arg10: memref<256x128xf32, #tpu.memory_space<vmem>>) attributes {dimension_semantics = [#tpu.dimension_semantics<parallel>, #tpu.dimension_semantics<parallel>, #tpu.dimension_semantics<parallel>], iteration_bounds = array<i64: 1, 1, 16>, scalar_prefetch = 0 : i64, scratch_operands = 1 : i64, tpu.core_type = #tpu.core_type<tc>, window_params = [{transform_indices = @transform_0, window_bounds = array<i64: 16, 1, 1, 18, 4>}, {transform_indices = @transform_1, window_bounds = array<i64: 16, 1, 1, 18, 4>}, {transform_indices = @transform_2, window_bounds = array<i64: 16, 1, 1, 18, 4>}, {transform_indices = @transform_3, window_bounds = array<i64: 3, 3, 4, 128>}, {transform_indices = @transform_4, window_bounds = array<i64: 1, 128>}, {transform_indices = @transform_5, window_bounds = array<i64: 16, 1, 16, 128>}, {transform_indices = @transform_6, window_bounds = array<i64: 1, 1, 2, 128>}]} {
    %c0 = arith.constant 0 : index
    %c0_0 = arith.constant 0 : index
    %c0_1 = arith.constant 0 : index
    %c0_2 = arith.constant 0 : index
    %c0_3 = arith.constant 0 : index
    %0 = vector.load %arg3[%c0, %c0_0, %c0_1, %c0_2, %c0_3] : memref<16x1x1x18x4xbf16, #tpu.memory_space<vmem>>, vector<16x1x1x16x4xbf16>
    %1 = vector.shape_cast %0 : vector<16x1x1x16x4xbf16> to vector<16x16x4xbf16>
    %2 = vector.shape_cast %1 : vector<16x16x4xbf16> to vector<256x4xbf16>
    %c0_4 = arith.constant 0 : index
    %c0_5 = arith.constant 0 : index
    %c0_6 = arith.constant 0 : index
    %c0_7 = arith.constant 0 : index
    %3 = vector.load %arg6[%c0_4, %c0_5, %c0_6, %c0_7] : memref<3x3x4x128xbf16, #tpu.memory_space<vmem>>, vector<1x1x4x128xbf16>
    %4 = vector.shape_cast %3 : vector<1x1x4x128xbf16> to vector<4x128xbf16>
    %cst = arith.constant dense<0.000000e+00> : vector<256x128xf32>
    %5 = tpu.matmul %2, %4, %cst {dimension_numbers = #tpu.dot_dimension_numbers<[1], [0], [0], [1], [0, 0, 1, 1], [], []>} : vector<256x4xbf16>, vector<4x128xbf16>, vector<256x128xf32> -> vector<256x128xf32>
    %c0_8 = arith.constant 0 : index
    %c0_9 = arith.constant 0 : index
    %6 = vector.load %arg10[%c0_8, %c0_9] : memref<256x128xf32, #tpu.memory_space<vmem>>, vector<256x128xf32>
    tpu.vector_store %arg10[%c0_8, %c0_9], %5 {strides = array<i32>} : memref<256x128xf32, #tpu.memory_space<vmem>>, vector<256x128xf32>,
    %c0_10 = arith.constant 0 : index
    %c0_11 = arith.constant 0 : index
    %c0_12 = arith.constant 0 : index
    %c1 = arith.constant 1 : index
    %c0_13 = arith.constant 0 : index
    %7 = vector.load %arg3[%c0_10, %c0_11, %c0_12, %c1, %c0_13] : memref<16x1x1x18x4xbf16, #tpu.memory_space<vmem>>, vector<16x1x1x16x4xbf16>
    %8 = vector.shape_cast %7 : vector<16x1x1x16x4xbf16> to vector<16x16x4xbf16>
    %9 = vector.shape_cast %8 : vector<16x16x4xbf16> to vector<256x4xbf16>
    %c0_14 = arith.constant 0 : index
    %c1_15 = arith.constant 1 : index
    %c0_16 = arith.constant 0 : index
    %c0_17 = arith.constant 0 : index
    %10 = vector.load %arg6[%c0_14, %c1_15, %c0_16, %c0_17] : memref<3x3x4x128xbf16, #tpu.memory_space<vmem>>, vector<1x1x4x128xbf16>
    %11 = vector.shape_cast %10 : vector<1x1x4x128xbf16> to vector<4x128xbf16>
    %cst_18 = arith.constant dense<0.000000e+00> : vector<256x128xf32>
    %12 = tpu.matmul %9, %11, %cst_18 {dimension_numbers = #tpu.dot_dimension_numbers<[1], [0], [0], [1], [0, 0, 1, 1], [], []>} : vector<256x4xbf16>, vector<4x128xbf16>, vector<256x128xf32> -> vector<256x128xf32>
    %c0_19 = arith.constant 0 : index
    %c0_20 = arith.constant 0 : index
    %13 = vector.load %arg10[%c0_19, %c0_20] : memref<256x128xf32, #tpu.memory_space<vmem>>, vector<256x128xf32>
    %14 = arith.addf %13, %12 : vector<256x128xf32>
    %c0_21 = arith.constant 0 : index
    %c0_22 = arith.constant 0 : index
    %15 = vector.load %arg10[%c0_21, %c0_22] : memref<256x128xf32, #tpu.memory_space<vmem>>, vector<256x128xf32>
    tpu.vector_store %arg10[%c0_21, %c0_22], %14 {strides = array<i32>} : memref<256x128xf32, #tpu.memory_space<vmem>>, vector<256x128xf32>,
    %c0_23 = arith.constant 0 : index
    %c0_24 = arith.constant 0 : index
    %c0_25 = arith.constant 0 : index
    %c2 = arith.constant 2 : index
    %c0_26 = arith.constant 0 : index
    %16 = vector.load %arg3[%c0_23, %c0_24, %c0_25, %c2, %c0_26] : memref<16x1x1x18x4xbf16, #tpu.memory_space<vmem>>, vector<16x1x1x16x4xbf16>
    %17 = vector.shape_cast %16 : vector<16x1x1x16x4xbf16> to vector<16x16x4xbf16>
    %18 = vector.shape_cast %17 : vector<16x16x4xbf16> to vector<256x4xbf16>
    %c0_27 = arith.constant 0 : index
    %c2_28 = arith.constant 2 : index
    %c0_29 = arith.constant 0 : index
    %c0_30 = arith.constant 0 : index
    %19 = vector.load %arg6[%c0_27, %c2_28, %c0_29, %c0_30] : memref<3x3x4x128xbf16, #tpu.memory_space<vmem>>, vector<1x1x4x128xbf16>
    %20 = vector.shape_cast %19 : vector<1x1x4x128xbf16> to vector<4x128xbf16>
    %cst_31 = arith.constant dense<0.000000e+00> : vector<256x128xf32>
    %21 = tpu.matmul %18, %20, %cst_31 {dimension_numbers = #tpu.dot_dimension_numbers<[1], [0], [0], [1], [0, 0, 1, 1], [], []>} : vector<256x4xbf16>, vector<4x128xbf16>, vector<256x128xf32> -> vector<256x128xf32>
    %c0_32 = arith.constant 0 : index
    %c0_33 = arith.constant 0 : index
    %22 = vector.load %arg10[%c0_32, %c0_33] : memref<256x128xf32, #tpu.memory_space<vmem>>, vector<256x128xf32>
    %23 = arith.addf %22, %21 : vector<256x128xf32>
    %c0_34 = arith.constant 0 : index
    %c0_35 = arith.constant 0 : index
    %24 = vector.load %arg10[%c0_34, %c0_35] : memref<256x128xf32, #tpu.memory_space<vmem>>, vector<256x128xf32>
    tpu.vector_store %arg10[%c0_34, %c0_35], %23 {strides = array<i32>} : memref<256x128xf32, #tpu.memory_space<vmem>>, vector<256x128xf32>,
    %c0_36 = arith.constant 0 : index
    %c0_37 = arith.constant 0 : index
    %c0_38 = arith.constant 0 : index
    %c0_39 = arith.constant 0 : index
    %c0_40 = arith.constant 0 : index
    %25 = vector.load %arg4[%c0_36, %c0_37, %c0_38, %c0_39, %c0_40] : memref<16x1x1x18x4xbf16, #tpu.memory_space<vmem>>, vector<16x1x1x16x4xbf16>
    %26 = vector.shape_cast %25 : vector<16x1x1x16x4xbf16> to vector<16x16x4xbf16>
    %27 = vector.shape_cast %26 : vector<16x16x4xbf16> to vector<256x4xbf16>
    %c1_41 = arith.constant 1 : index
    %c0_42 = arith.constant 0 : index
    %c0_43 = arith.constant 0 : index
    %c0_44 = arith.constant 0 : index
    %28 = vector.load %arg6[%c1_41, %c0_42, %c0_43, %c0_44] : memref<3x3x4x128xbf16, #tpu.memory_space<vmem>>, vector<1x1x4x128xbf16>
    %29 = vector.shape_cast %28 : vector<1x1x4x128xbf16> to vector<4x128xbf16>
    %cst_45 = arith.constant dense<0.000000e+00> : vector<256x128xf32>
    %30 = tpu.matmul %27, %29, %cst_45 {dimension_numbers = #tpu.dot_dimension_numbers<[1], [0], [0], [1], [0, 0, 1, 1], [], []>} : vector<256x4xbf16>, vector<4x128xbf16>, vector<256x128xf32> -> vector<256x128xf32>
    %c0_46 = arith.constant 0 : index
    %c0_47 = arith.constant 0 : index
    %31 = vector.load %arg10[%c0_46, %c0_47] : memref<256x128xf32, #tpu.memory_space<vmem>>, vector<256x128xf32>
    %32 = arith.addf %31, %30 : vector<256x128xf32>
    %c0_48 = arith.constant 0 : index
    %c0_49 = arith.constant 0 : index
    %33 = vector.load %arg10[%c0_48, %c0_49] : memref<256x128xf32, #tpu.memory_space<vmem>>, vector<256x128xf32>
    tpu.vector_store %arg10[%c0_48, %c0_49], %32 {strides = array<i32>} : memref<256x128xf32, #tpu.memory_space<vmem>>, vector<256x128xf32>,
    %c0_50 = arith.constant 0 : index
    %c0_51 = arith.constant 0 : index
    %c0_52 = arith.constant 0 : index
    %c1_53 = arith.constant 1 : index
    %c0_54 = arith.constant 0 : index
    %34 = vector.load %arg4[%c0_50, %c0_51, %c0_52, %c1_53, %c0_54] : memref<16x1x1x18x4xbf16, #tpu.memory_space<vmem>>, vector<16x1x1x16x4xbf16>
    %35 = vector.shape_cast %34 : vector<16x1x1x16x4xbf16> to vector<16x16x4xbf16>
    %36 = vector.shape_cast %35 : vector<16x16x4xbf16> to vector<256x4xbf16>
    %c1_55 = arith.constant 1 : index
    %c1_56 = arith.constant 1 : index
    %c0_57 = arith.constant 0 : index
    %c0_58 = arith.constant 0 : index
    %37 = vector.load %arg6[%c1_55, %c1_56, %c0_57, %c0_58] : memref<3x3x4x128xbf16, #tpu.memory_space<vmem>>, vector<1x1x4x128xbf16>
    %38 = vector.shape_cast %37 : vector<1x1x4x128xbf16> to vector<4x128xbf16>
    %cst_59 = arith.constant dense<0.000000e+00> : vector<256x128xf32>
    %39 = tpu.matmul %36, %38, %cst_59 {dimension_numbers = #tpu.dot_dimension_numbers<[1], [0], [0], [1], [0, 0, 1, 1], [], []>} : vector<256x4xbf16>, vector<4x128xbf16>, vector<256x128xf32> -> vector<256x128xf32>
    %c0_60 = arith.constant 0 : index
    %c0_61 = arith.constant 0 : index
    %40 = vector.load %arg10[%c0_60, %c0_61] : memref<256x128xf32, #tpu.memory_space<vmem>>, vector<256x128xf32>
    %41 = arith.addf %40, %39 : vector<256x128xf32>
    %c0_62 = arith.constant 0 : index
    %c0_63 = arith.constant 0 : index
    %42 = vector.load %arg10[%c0_62, %c0_63] : memref<256x128xf32, #tpu.memory_space<vmem>>, vector<256x128xf32>
    tpu.vector_store %arg10[%c0_62, %c0_63], %41 {strides = array<i32>} : memref<256x128xf32, #tpu.memory_space<vmem>>, vector<256x128xf32>,
    %c0_64 = arith.constant 0 : index
    %c0_65 = arith.constant 0 : index
    %c0_66 = arith.constant 0 : index
    %c2_67 = arith.constant 2 : index
    %c0_68 = arith.constant 0 : index
    %43 = vector.load %arg4[%c0_64, %c0_65, %c0_66, %c2_67, %c0_68] : memref<16x1x1x18x4xbf16, #tpu.memory_space<vmem>>, vector<16x1x1x16x4xbf16>
    %44 = vector.shape_cast %43 : vector<16x1x1x16x4xbf16> to vector<16x16x4xbf16>
    %45 = vector.shape_cast %44 : vector<16x16x4xbf16> to vector<256x4xbf16>
    %c1_69 = arith.constant 1 : index
    %c2_70 = arith.constant 2 : index
    %c0_71 = arith.constant 0 : index
    %c0_72 = arith.constant 0 : index
    %46 = vector.load %arg6[%c1_69, %c2_70, %c0_71, %c0_72] : memref<3x3x4x128xbf16, #tpu.memory_space<vmem>>, vector<1x1x4x128xbf16>
    %47 = vector.shape_cast %46 : vector<1x1x4x128xbf16> to vector<4x128xbf16>
    %cst_73 = arith.constant dense<0.000000e+00> : vector<256x128xf32>
    %48 = tpu.matmul %45, %47, %cst_73 {dimension_numbers = #tpu.dot_dimension_numbers<[1], [0], [0], [1], [0, 0, 1, 1], [], []>} : vector<256x4xbf16>, vector<4x128xbf16>, vector<256x128xf32> -> vector<256x128xf32>
    %c0_74 = arith.constant 0 : index
    %c0_75 = arith.constant 0 : index
    %49 = vector.load %arg10[%c0_74, %c0_75] : memref<256x128xf32, #tpu.memory_space<vmem>>, vector<256x128xf32>
    %50 = arith.addf %49, %48 : vector<256x128xf32>
    %c0_76 = arith.constant 0 : index
    %c0_77 = arith.constant 0 : index
    %51 = vector.load %arg10[%c0_76, %c0_77] : memref<256x128xf32, #tpu.memory_space<vmem>>, vector<256x128xf32>
    tpu.vector_store %arg10[%c0_76, %c0_77], %50 {strides = array<i32>} : memref<256x128xf32, #tpu.memory_space<vmem>>, vector<256x128xf32>,
    %c0_78 = arith.constant 0 : index
    %c0_79 = arith.constant 0 : index
    %c0_80 = arith.constant 0 : index
    %c0_81 = arith.constant 0 : index
    %c0_82 = arith.constant 0 : index
    %52 = vector.load %arg5[%c0_78, %c0_79, %c0_80, %c0_81, %c0_82] : memref<16x1x1x18x4xbf16, #tpu.memory_space<vmem>>, vector<16x1x1x16x4xbf16>
    %53 = vector.shape_cast %52 : vector<16x1x1x16x4xbf16> to vector<16x16x4xbf16>
    %54 = vector.shape_cast %53 : vector<16x16x4xbf16> to vector<256x4xbf16>
    %c2_83 = arith.constant 2 : index
    %c0_84 = arith.constant 0 : index
    %c0_85 = arith.constant 0 : index
    %c0_86 = arith.constant 0 : index
    %55 = vector.load %arg6[%c2_83, %c0_84, %c0_85, %c0_86] : memref<3x3x4x128xbf16, #tpu.memory_space<vmem>>, vector<1x1x4x128xbf16>
    %56 = vector.shape_cast %55 : vector<1x1x4x128xbf16> to vector<4x128xbf16>
    %cst_87 = arith.constant dense<0.000000e+00> : vector<256x128xf32>
    %57 = tpu.matmul %54, %56, %cst_87 {dimension_numbers = #tpu.dot_dimension_numbers<[1], [0], [0], [1], [0, 0, 1, 1], [], []>} : vector<256x4xbf16>, vector<4x128xbf16>, vector<256x128xf32> -> vector<256x128xf32>
    %c0_88 = arith.constant 0 : index
    %c0_89 = arith.constant 0 : index
    %58 = vector.load %arg10[%c0_88, %c0_89] : memref<256x128xf32, #tpu.memory_space<vmem>>, vector<256x128xf32>
    %59 = arith.addf %58, %57 : vector<256x128xf32>
    %c0_90 = arith.constant 0 : index
    %c0_91 = arith.constant 0 : index
    %60 = vector.load %arg10[%c0_90, %c0_91] : memref<256x128xf32, #tpu.memory_space<vmem>>, vector<256x128xf32>
    tpu.vector_store %arg10[%c0_90, %c0_91], %59 {strides = array<i32>} : memref<256x128xf32, #tpu.memory_space<vmem>>, vector<256x128xf32>,
    %c0_92 = arith.constant 0 : index
    %c0_93 = arith.constant 0 : index
    %c0_94 = arith.constant 0 : index
    %c1_95 = arith.constant 1 : index
    %c0_96 = arith.constant 0 : index
    %61 = vector.load %arg5[%c0_92, %c0_93, %c0_94, %c1_95, %c0_96] : memref<16x1x1x18x4xbf16, #tpu.memory_space<vmem>>, vector<16x1x1x16x4xbf16>
    %62 = vector.shape_cast %61 : vector<16x1x1x16x4xbf16> to vector<16x16x4xbf16>
    %63 = vector.shape_cast %62 : vector<16x16x4xbf16> to vector<256x4xbf16>
    %c2_97 = arith.constant 2 : index
    %c1_98 = arith.constant 1 : index
    %c0_99 = arith.constant 0 : index
    %c0_100 = arith.constant 0 : index
    %64 = vector.load %arg6[%c2_97, %c1_98, %c0_99, %c0_100] : memref<3x3x4x128xbf16, #tpu.memory_space<vmem>>, vector<1x1x4x128xbf16>
    %65 = vector.shape_cast %64 : vector<1x1x4x128xbf16> to vector<4x128xbf16>
    %cst_101 = arith.constant dense<0.000000e+00> : vector<256x128xf32>
    %66 = tpu.matmul %63, %65, %cst_101 {dimension_numbers = #tpu.dot_dimension_numbers<[1], [0], [0], [1], [0, 0, 1, 1], [], []>} : vector<256x4xbf16>, vector<4x128xbf16>, vector<256x128xf32> -> vector<256x128xf32>
    %c0_102 = arith.constant 0 : index
    %c0_103 = arith.constant 0 : index
    %67 = vector.load %arg10[%c0_102, %c0_103] : memref<256x128xf32, #tpu.memory_space<vmem>>, vector<256x128xf32>
    %68 = arith.addf %67, %66 : vector<256x128xf32>
    %c0_104 = arith.constant 0 : index
    %c0_105 = arith.constant 0 : index
    %69 = vector.load %arg10[%c0_104, %c0_105] : memref<256x128xf32, #tpu.memory_space<vmem>>, vector<256x128xf32>
    tpu.vector_store %arg10[%c0_104, %c0_105], %68 {strides = array<i32>} : memref<256x128xf32, #tpu.memory_space<vmem>>, vector<256x128xf32>,
    %c0_106 = arith.constant 0 : index
    %c0_107 = arith.constant 0 : index
    %c0_108 = arith.constant 0 : index
    %c2_109 = arith.constant 2 : index
    %c0_110 = arith.constant 0 : index
    %70 = vector.load %arg5[%c0_106, %c0_107, %c0_108, %c2_109, %c0_110] : memref<16x1x1x18x4xbf16, #tpu.memory_space<vmem>>, vector<16x1x1x16x4xbf16>
    %71 = vector.shape_cast %70 : vector<16x1x1x16x4xbf16> to vector<16x16x4xbf16>
    %72 = vector.shape_cast %71 : vector<16x16x4xbf16> to vector<256x4xbf16>
    %c2_111 = arith.constant 2 : index
    %c2_112 = arith.constant 2 : index
    %c0_113 = arith.constant 0 : index
    %c0_114 = arith.constant 0 : index
    %73 = vector.load %arg6[%c2_111, %c2_112, %c0_113, %c0_114] : memref<3x3x4x128xbf16, #tpu.memory_space<vmem>>, vector<1x1x4x128xbf16>
    %74 = vector.shape_cast %73 : vector<1x1x4x128xbf16> to vector<4x128xbf16>
    %cst_115 = arith.constant dense<0.000000e+00> : vector<256x128xf32>
    %75 = tpu.matmul %72, %74, %cst_115 {dimension_numbers = #tpu.dot_dimension_numbers<[1], [0], [0], [1], [0, 0, 1, 1], [], []>} : vector<256x4xbf16>, vector<4x128xbf16>, vector<256x128xf32> -> vector<256x128xf32>
    %c0_116 = arith.constant 0 : index
    %c0_117 = arith.constant 0 : index
    %76 = vector.load %arg10[%c0_116, %c0_117] : memref<256x128xf32, #tpu.memory_space<vmem>>, vector<256x128xf32>
    %77 = arith.addf %76, %75 : vector<256x128xf32>
    %c0_118 = arith.constant 0 : index
    %c0_119 = arith.constant 0 : index
    %78 = vector.load %arg10[%c0_118, %c0_119] : memref<256x128xf32, #tpu.memory_space<vmem>>, vector<256x128xf32>
    tpu.vector_store %arg10[%c0_118, %c0_119], %77 {strides = array<i32>} : memref<256x128xf32, #tpu.memory_space<vmem>>, vector<256x128xf32>,
    %c0_120 = arith.constant 0 : index
    %c0_121 = arith.constant 0 : index
    %79 = vector.load %arg10[%c0_120, %c0_121] : memref<256x128xf32, #tpu.memory_space<vmem>>, vector<256x128xf32>
    %c0_122 = arith.constant 0 : index
    %c0_123 = arith.constant 0 : index
    %80 = vector.load %arg7[%c0_122, %c0_123] : memref<1x128xf32, #tpu.memory_space<vmem>>, vector<1x128xf32>
    %81 = vector.broadcast %80 : vector<1x128xf32> to vector<256x128xf32>
    %82 = arith.addf %79, %81 : vector<256x128xf32>
    %83 = arith.truncf %82 : vector<256x128xf32> to vector<256x128xbf16>
    %84 = vector.shape_cast %83 : vector<256x128xbf16> to vector<16x16x128xbf16>
    %c0_124 = arith.constant 0 : index
    %c0_125 = arith.constant 0 : index
    %c0_126 = arith.constant 0 : index
    %c0_127 = arith.constant 0 : index
    %85 = vector.load %arg8[%c0_124, %c0_125, %c0_126, %c0_127] : memref<16x1x16x128xbf16, #tpu.memory_space<vmem>>, vector<16x1x16x128xbf16>
    %86 = vector.shape_cast %85 : vector<16x1x16x128xbf16> to vector<16x16x128xbf16>
    %87 = vector.shape_cast %84 : vector<16x16x128xbf16> to vector<16x1x16x128xbf16>
    tpu.vector_store %arg8[%c0_124, %c0_125, %c0_126, %c0_127], %87 {strides = array<i32>} : memref<16x1x16x128xbf16, #tpu.memory_space<vmem>>, vector<16x1x16x128xbf16>,
    %cst_128 = arith.constant dense<0.000000e+00> : vector<128xf32>
    %88 = vector.multi_reduction <add>, %79, %cst_128 [0] : vector<256x128xf32> to vector<128xf32>
    %89 = vector.shape_cast %88 : vector<128xf32> to vector<1x128xf32>
    %90 = arith.mulf %79, %79 : vector<256x128xf32>
    %cst_129 = arith.constant dense<0.000000e+00> : vector<128xf32>
    %91 = vector.multi_reduction <add>, %90, %cst_129 [0] : vector<256x128xf32> to vector<128xf32>
    %92 = vector.shape_cast %91 : vector<128xf32> to vector<1x128xf32>
    %93 = tpu.concatenate %89, %92 in 0 : vector<1x128xf32>, vector<1x128xf32> -> vector<2x128xf32>
    %c0_130 = arith.constant 0 : index
    %c0_131 = arith.constant 0 : index
    %c0_132 = arith.constant 0 : index
    %c0_133 = arith.constant 0 : index
    %94 = vector.load %arg9[%c0_130, %c0_131, %c0_132, %c0_133] : memref<1x1x2x128xf32, #tpu.memory_space<vmem>>, vector<1x1x2x128xf32>
    %95 = vector.shape_cast %94 : vector<1x1x2x128xf32> to vector<2x128xf32>
    %96 = vector.shape_cast %93 : vector<2x128xf32> to vector<1x1x2x128xf32>
    tpu.vector_store %arg9[%c0_130, %c0_131, %c0_132, %c0_133], %96 {strides = array<i32>} : memref<1x1x2x128xf32, #tpu.memory_space<vmem>>, vector<1x1x2x128xf32>,
    return
  }
  func.func @transform_0(%arg0: i32, %arg1: i32, %arg2: i32) -> (i32, i32, i32, i32, i32) {
    %c0_i32 = arith.constant 0 : i32
    %0 = arith.addi %arg2, %c0_i32 : i32
    %c0_i32_0 = arith.constant 0 : i32
    %c0_i32_1 = arith.constant 0 : i32
    %c0_i32_2 = arith.constant 0 : i32
    %c0_i32_3 = arith.constant 0 : i32
    return %arg1, %c0_i32_0, %0, %c0_i32_1, %c0_i32_2 : i32, i32, i32, i32, i32
  }
  func.func @transform_1(%arg0: i32, %arg1: i32, %arg2: i32) -> (i32, i32, i32, i32, i32) {
    %c1_i32 = arith.constant 1 : i32
    %0 = arith.addi %arg2, %c1_i32 : i32
    %c0_i32 = arith.constant 0 : i32
    %c0_i32_0 = arith.constant 0 : i32
    %c0_i32_1 = arith.constant 0 : i32
    %c0_i32_2 = arith.constant 0 : i32
    return %arg1, %c0_i32, %0, %c0_i32_0, %c0_i32_1 : i32, i32, i32, i32, i32
  }
  func.func @transform_2(%arg0: i32, %arg1: i32, %arg2: i32) -> (i32, i32, i32, i32, i32) {
    %c2_i32 = arith.constant 2 : i32
    %0 = arith.addi %arg2, %c2_i32 : i32
    %c0_i32 = arith.constant 0 : i32
    %c0_i32_0 = arith.constant 0 : i32
    %c0_i32_1 = arith.constant 0 : i32
    %c0_i32_2 = arith.constant 0 : i32
    return %arg1, %c0_i32, %0, %c0_i32_0, %c0_i32_1 : i32, i32, i32, i32, i32
  }
  func.func @transform_3(%arg0: i32, %arg1: i32, %arg2: i32) -> (i32, i32, i32, i32) {
    %c0_i32 = arith.constant 0 : i32
    %c0_i32_0 = arith.constant 0 : i32
    %c0_i32_1 = arith.constant 0 : i32
    %c0_i32_2 = arith.constant 0 : i32
    return %c0_i32, %c0_i32_0, %c0_i32_1, %arg0 : i32, i32, i32, i32
  }
  func.func @transform_4(%arg0: i32, %arg1: i32, %arg2: i32) -> (i32, i32) {
    %c0_i32 = arith.constant 0 : i32
    %c0_i32_0 = arith.constant 0 : i32
    return %c0_i32, %arg0 : i32, i32
  }
  func.func @transform_5(%arg0: i32, %arg1: i32, %arg2: i32) -> (i32, i32, i32, i32) {
    %c0_i32 = arith.constant 0 : i32
    %c0_i32_0 = arith.constant 0 : i32
    return %arg1, %arg2, %c0_i32, %arg0 : i32, i32, i32, i32
  }
  func.func @transform_6(%arg0: i32, %arg1: i32, %arg2: i32) -> (i32, i32, i32, i32) {
    %c0_i32 = arith.constant 0 : i32
    %c0_i32_0 = arith.constant 0 : i32
    return %arg1, %arg2, %c0_i32, %arg0 : i32, i32, i32, i32
  }
}

</mosaic_0001>

<llo_original>
// kernel: tpu_custom_call.1
$region0: #{tpu_custom_call.1}
  #allocation0 [shape = 'u32[]', space=smem, size = 0x4, offset = 0x4, fixed_abs, tag = 'smem constant byte address 0x4 - core index']
  #allocation1 [shape = 'u32[144,128]{1,0:T(1,128)}', space=vmem, size = 0x12000, scoped, tag = 'internal scratch']
  #allocation2 [shape = 'f32[256,128]{1,0:T(8,128)}', space=vmem, size = 0x20000, scoped, tag = 'scratch operand']
  #allocation10 [shape = 's32[]', space=sflag, size = 0x4, offset = 0, fixed_abs, tag = 'sflag constant byte address 0x0 - dummy sync flag']
  %s0 = inlined_call_operand.vmem [shape: bf16[16,1,18,18,4], index: 0, kind: input, shape index: {}]
  %s1 = inlined_call_operand.vmem [shape: bf16[16,1,18,18,4], index: 1, kind: input, shape index: {}]
  %s2 = inlined_call_operand.vmem [shape: bf16[16,1,18,18,4], index: 2, kind: input, shape index: {}]
  %s3 = inlined_call_operand.vmem [shape: bf16[3,3,4,128], index: 3, kind: input, shape index: {}]
  %s4 = inlined_call_operand.vmem [shape: f32[1,128], index: 4, kind: input, shape index: {}]
  %s5 = inlined_call_operand.hbm [shape: bf16[16,16,16,128], index: 5, kind: output, shape index: {0}]
  %s6 = inlined_call_operand.hbm [shape: f32[1,16,2,128], index: 6, kind: output, shape index: {1}]
  %7 = xla_tuple %s5, %s6
  %s8 = sld [smem:[#allocation0]]
  $region184: #{tpu_custom_call.1} parent=0
    _
  %s10 = ssub.s32 1, %s8
  %s11 = scalar_select 0, %s10, %s8
  $region1: #{tpu_custom_call.1} parent=0
    #allocation3 [shape = 'u8[196608]{0}', space=vmem, size = 0x30000, scoped, tag = 'input window, operand 0']
    #allocation4 [shape = 'u8[196608]{0}', space=vmem, size = 0x30000, scoped, tag = 'input window, operand 1']
    #allocation5 [shape = 'u8[196608]{0}', space=vmem, size = 0x30000, scoped, tag = 'input window, operand 2']
    #allocation6 [shape = 'u8[131072]{0}', space=vmem, size = 0x20000, scoped, tag = 'output window, operand 0']
    #allocation7 [shape = 's32[2]{0}', space=sflag, size = 0x8, scoped, tag = 'scoped memory for tpu_custom_call.1']
    #allocation8 [shape = 'u8[2048]{0}', space=vmem, size = 0x800, scoped, tag = 'output window, operand 1']
    #allocation9 [shape = 's32[2]{0}', space=sflag, size = 0x8, scoped, tag = 'scoped memory for tpu_custom_call.1']
    %12 = vsyncpa [#allocation7], 0
    %s13 = scalar_lea.sflag [#allocation7], 1
    %14 = vsyncpa %s13, 0
    %15 = vsyncpa [#allocation9], 0
    %s16 = scalar_lea.sflag [#allocation9], 1
    %17 = vsyncpa %s16, 0
    loop: start=0, step=1, limit=18
    $region2: #{tpu_custom_call.1} parent=1 // loop_pre_header
      _
    $region3: #{tpu_custom_call.1} parent=1 // loop_header
      %s19 = sphi 0, %s23
      %p20 = scmp.ge.s32.totalorder %s19, 18
      %s26 = sphi 0, %s45
      %s27 = sphi 0, %s41
      %s28 = sphi 0, %s37
      %s29 = sphi 0, %s26
      %s30 = sphi 0, %s27
      %s31 = sphi 0, %s28
      %s32 = sphi 0, %s29
      %s33 = sphi 0, %s30
      %s34 = sphi 0, %s31
      %s50 = sphi 0, %s52
      %s53 = sphi 0, %s50
      %s54 = sphi 0, %s53
      %s70 = sphi 0, %s54
      %s80 = sphi 0, %s82
      %s83 = sphi 0, %s80
      %s84 = sphi 0, %s83
      %s100 = sphi 0, %s84
      %s110 = sphi 0, %s112
      %s113 = sphi 0, %s110
      %s114 = sphi 0, %s113
      %s130 = sphi 0, %s114
      %s136 = sphi 0, %s138
      %s139 = sphi 0, %s136
      %s140 = sphi 0, %s139
      %s156 = sphi 0, %s140
      %s162 = sphi 0, %s164
      %s165 = sphi 0, %s162
      %s166 = sphi 0, %s165
      %s182 = sphi 0, %s166
      %s192 = sphi 0, %s194
      %s195 = sphi 0, %s192
      %s196 = sphi 0, %s195
      %s212 = sphi 0, %s196
      %s222 = sphi 0, %s224
      %s225 = sphi 0, %s222
      %s226 = sphi 0, %s225
      %s242 = sphi 0, %s226
    $region4: #{tpu_custom_call.1} parent=1 // loop_header_branch
      %22 = sbr.rel (%p20) target = $region8
    $region5: #{tpu_custom_call.1} parent=1 // loop_body
      %s24 = ssub.s32 %s19, 1
      %s25 = ssub.s32 %s19, 2
      %s35 = sadd.s32 1, %s28
      %p36 = scmp.ge.s32.totalorder %s35, 16
      %s37 = scalar_select %p36, 0, %s35
      %s38 = sadd.s32 1, %s27
      %s39 = scalar_select %p36, %s38, %s27
      %p40 = scmp.ge.s32.totalorder %s39, 1
      %s41 = scalar_select %p40, 0, %s39
      %s42 = sadd.s32 1, %s26
      %s43 = scalar_select %p40, %s42, %s26
      %p44 = scmp.ge.s32.totalorder %s43, 1
      %s45 = scalar_select %p44, 0, %s43
      %s46 = ssub.s32 %s27, %s41
      %s47 = ssub.s32 %s28, %s37
      %s48 = sor.u32 %s46, %s47
      %p49 = scmp.eq.s32.totalorder %s48, 0
      %s51 = sadd.s32 %s50, 1
      %s52 = scalar_select %p49, %s50, %s51
      %p55 = pneg %p49
      %p56 = scmp.eq.s32.totalorder %s19, 15
      %p57 = por %p55, %p56
      %p58 = scmp.ne.s32.totalorder %s50, %s53
      %p59 = scmp.eq.s32.totalorder %s19, 0
      %p60 = por %p58, %p59
      %p61 = scmp.ne.s32.totalorder %s50, %s53
      %p62 = scmp.eq.s32.totalorder %s24, 15
      %p63 = por %p61, %p62
      %p64 = scmp.ne.s32.totalorder %s53, %s54
      %p65 = scmp.eq.s32.totalorder %s24, 0
      %p66 = por %p64, %p65
      %p67 = scmp.ne.s32.totalorder %s53, %s54
      %p68 = scmp.eq.s32.totalorder %s25, 15
      %p69 = por %p67, %p68
      %p71 = scmp.ne.s32.totalorder %s54, %s70
      %p72 = scmp.eq.s32.totalorder %s25, 0
      %p73 = por %p71, %p72
      %s74 = sadd.s32 %s28, 1
      %s75 = sadd.s32 %s37, 1
      %s76 = ssub.s32 %s27, %s41
      %s77 = ssub.s32 %s74, %s75
      %s78 = sor.u32 %s76, %s77
      %p79 = scmp.eq.s32.totalorder %s78, 0
      %s81 = sadd.s32 %s80, 1
      %s82 = scalar_select %p79, %s80, %s81
      %p85 = pneg %p79
      %p86 = scmp.eq.s32.totalorder %s19, 15
      %p87 = por %p85, %p86
      %p88 = scmp.ne.s32.totalorder %s80, %s83
      %p89 = scmp.eq.s32.totalorder %s19, 0
      %p90 = por %p88, %p89
      %p91 = scmp.ne.s32.totalorder %s80, %s83
      %p92 = scmp.eq.s32.totalorder %s24, 15
      %p93 = por %p91, %p92
      %p94 = scmp.ne.s32.totalorder %s83, %s84
      %p95 = scmp.eq.s32.totalorder %s24, 0
      %p96 = por %p94, %p95
      %p97 = scmp.ne.s32.totalorder %s83, %s84
      %p98 = scmp.eq.s32.totalorder %s25, 15
      %p99 = por %p97, %p98
      %p101 = scmp.ne.s32.totalorder %s84, %s100
      %p102 = scmp.eq.s32.totalorder %s25, 0
      %p103 = por %p101, %p102
      %s104 = sadd.s32 %s28, 2
      %s105 = sadd.s32 %s37, 2
      %s106 = ssub.s32 %s27, %s41
      %s107 = ssub.s32 %s104, %s105
      %s108 = sor.u32 %s106, %s107
      %p109 = scmp.eq.s32.totalorder %s108, 0
      %s111 = sadd.s32 %s110, 1
      %s112 = scalar_select %p109, %s110, %s111
      %p115 = pneg %p109
      %p116 = scmp.eq.s32.totalorder %s19, 15
      %p117 = por %p115, %p116
      %p118 = scmp.ne.s32.totalorder %s110, %s113
      %p119 = scmp.eq.s32.totalorder %s19, 0
      %p120 = por %p118, %p119
      %p121 = scmp.ne.s32.totalorder %s110, %s113
      %p122 = scmp.eq.s32.totalorder %s24, 15
      %p123 = por %p121, %p122
      %p124 = scmp.ne.s32.totalorder %s113, %s114
      %p125 = scmp.eq.s32.totalorder %s24, 0
      %p126 = por %p124, %p125
      %p127 = scmp.ne.s32.totalorder %s113, %s114
      %p128 = scmp.eq.s32.totalorder %s25, 15
      %p129 = por %p127, %p128
      %p131 = scmp.ne.s32.totalorder %s114, %s130
      %p132 = scmp.eq.s32.totalorder %s25, 0
      %p133 = por %p131, %p132
      %s134 = ssub.s32 %s26, %s45
      %p135 = scmp.eq.s32.totalorder %s134, 0
      %s137 = sadd.s32 %s136, 1
      %s138 = scalar_select %p135, %s136, %s137
      %p141 = pneg %p135
      %p142 = scmp.eq.s32.totalorder %s19, 15
      %p143 = por %p141, %p142
      %p144 = scmp.ne.s32.totalorder %s136, %s139
      %p145 = scmp.eq.s32.totalorder %s19, 0
      %p146 = por %p144, %p145
      %p147 = scmp.ne.s32.totalorder %s136, %s139
      %p148 = scmp.eq.s32.totalorder %s24, 15
      %p149 = por %p147, %p148
      %p150 = scmp.ne.s32.totalorder %s139, %s140
      %p151 = scmp.eq.s32.totalorder %s24, 0
      %p152 = por %p150, %p151
      %p153 = scmp.ne.s32.totalorder %s139, %s140
      %p154 = scmp.eq.s32.totalorder %s25, 15
      %p155 = por %p153, %p154
      %p157 = scmp.ne.s32.totalorder %s140, %s156
      %p158 = scmp.eq.s32.totalorder %s25, 0
      %p159 = por %p157, %p158
      %s160 = ssub.s32 %s26, %s45
      %p161 = scmp.eq.s32.totalorder %s160, 0
      %s163 = sadd.s32 %s162, 1
      %s164 = scalar_select %p161, %s162, %s163
      %p167 = pneg %p161
      %p168 = scmp.eq.s32.totalorder %s19, 15
      %p169 = por %p167, %p168
      %p170 = scmp.ne.s32.totalorder %s162, %s165
      %p171 = scmp.eq.s32.totalorder %s19, 0
      %p172 = por %p170, %p171
      %p173 = scmp.ne.s32.totalorder %s162, %s165
      %p174 = scmp.eq.s32.totalorder %s24, 15
      %p175 = por %p173, %p174
      %p176 = scmp.ne.s32.totalorder %s165, %s166
      %p177 = scmp.eq.s32.totalorder %s24, 0
      %p178 = por %p176, %p177
      %p179 = scmp.ne.s32.totalorder %s165, %s166
      %p180 = scmp.eq.s32.totalorder %s25, 15
      %p181 = por %p179, %p180
      %p183 = scmp.ne.s32.totalorder %s166, %s182
      %p184 = scmp.eq.s32.totalorder %s25, 0
      %p185 = por %p183, %p184
      %s186 = ssub.s32 %s27, %s41
      %s187 = ssub.s32 %s28, %s37
      %s188 = sor.u32 %s186, %s187
      %s189 = ssub.s32 %s26, %s45
      %s190 = sor.u32 %s188, %s189
      %p191 = scmp.eq.s32.totalorder %s190, 0
      %s193 = sadd.s32 %s192, 1
      %s194 = scalar_select %p191, %s192, %s193
      %p197 = pneg %p191
      %p198 = scmp.eq.s32.totalorder %s19, 15
      %p199 = por %p197, %p198
      %p200 = scmp.ne.s32.totalorder %s192, %s195
      %p201 = scmp.eq.s32.totalorder %s19, 0
      %p202 = por %p200, %p201
      %p203 = scmp.ne.s32.totalorder %s192, %s195
      %p204 = scmp.eq.s32.totalorder %s24, 15
      %p205 = por %p203, %p204
      %p206 = scmp.ne.s32.totalorder %s195, %s196
      %p207 = scmp.eq.s32.totalorder %s24, 0
      %p208 = por %p206, %p207
      %p209 = scmp.ne.s32.totalorder %s195, %s196
      %p210 = scmp.eq.s32.totalorder %s25, 15
      %p211 = por %p209, %p210
      %p213 = scmp.ne.s32.totalorder %s196, %s212
      %p214 = scmp.eq.s32.totalorder %s25, 0
      %p215 = por %p213, %p214
      %s216 = ssub.s32 %s27, %s41
      %s217 = ssub.s32 %s28, %s37
      %s218 = sor.u32 %s216, %s217
      %s219 = ssub.s32 %s26, %s45
      %s220 = sor.u32 %s218, %s219
      %p221 = scmp.eq.s32.totalorder %s220, 0
      %s223 = sadd.s32 %s222, 1
      %s224 = scalar_select %p221, %s222, %s223
      %p227 = pneg %p221
      %p228 = scmp.eq.s32.totalorder %s19, 15
      %p229 = por %p227, %p228
      %p230 = scmp.ne.s32.totalorder %s222, %s225
      %p231 = scmp.eq.s32.totalorder %s19, 0
      %p232 = por %p230, %p231
      %p233 = scmp.ne.s32.totalorder %s222, %s225
      %p234 = scmp.eq.s32.totalorder %s24, 15
      %p235 = por %p233, %p234
      %p236 = scmp.ne.s32.totalorder %s225, %s226
      %p237 = scmp.eq.s32.totalorder %s24, 0
      %p238 = por %p236, %p237
      %p239 = scmp.ne.s32.totalorder %s225, %s226
      %p240 = scmp.eq.s32.totalorder %s25, 15
      %p241 = por %p239, %p240
      %p243 = scmp.ne.s32.totalorder %s226, %s242
      %p244 = scmp.eq.s32.totalorder %s25, 0
      %p245 = por %p243, %p244
      %p246 = scmp.le.s32.totalorder 1, %s19
      %p247 = scmp.lt.s32.totalorder %s19, 17
      %p248 = pnand %p246, %p247
      %p249 = pneg %p248
      // Predicated region
      $region9: #{tpu_custom_call.1} parent=5 // pred_check
        _
      $region10: #{tpu_custom_call.1} parent=5 // pred_check_branch
        %251 = sbr.rel (%p248) target = $region12
      $region11: #{tpu_custom_call.1} parent=5 // pred_region
        %s252 = ssub.s32 %s19, 1
        // Predicated region
        $region13: #{tpu_custom_call.1} parent=11 // pred_check
          %p253 = pneg %p152
        $region14: #{tpu_custom_call.1} parent=11 // pred_check_branch
          %255 = sbr.rel (%p253) target = $region16
        $region15: #{tpu_custom_call.1} parent=11 // pred_region
          %p256 = scmp.lt.s32.totalorder %s29, 0
          %s257 = scalar_select %p256, %s29, 0
          %s258 = smul.addr %s257, 2
          %s259 = scalar_lea.vmem %s3, %s258
        $region16: #{tpu_custom_call.1} parent=11 // pred_fallthru
          _
        // Predicated region
        $region17: #{tpu_custom_call.1} parent=11 // pred_check
          %p260 = pneg %p178
        $region18: #{tpu_custom_call.1} parent=11 // pred_check_branch
          %262 = sbr.rel (%p260) target = $region20
        $region19: #{tpu_custom_call.1} parent=11 // pred_region
          %p263 = scmp.lt.s32.totalorder %s29, 0
          %s264 = scalar_select %p263, %s29, 0
          %s265 = scalar_lea.vmem %s4, %s264
        $region20: #{tpu_custom_call.1} parent=11 // pred_fallthru
          _
      $region12: #{tpu_custom_call.1} parent=5 // pred_fallthru
        _
      %p266 = scmp.lt.s32.totalorder %s19, 16
      // Predicated region
      $region21: #{tpu_custom_call.1} parent=5 // pred_check
        %p267 = pneg %p266
      $region22: #{tpu_custom_call.1} parent=5 // pred_check_branch
        %269 = sbr.rel (%p267) target = $region24
      $region23: #{tpu_custom_call.1} parent=5 // pred_region
        // Predicated region
        $region25: #{tpu_custom_call.1} parent=23 // pred_check
          %p270 = pneg %p60
        $region26: #{tpu_custom_call.1} parent=23 // pred_check_branch
          %272 = sbr.rel (%p270) target = $region28
        $region27: #{tpu_custom_call.1} parent=23 // pred_region
          %s273 = sand.u32 %s50, 1
          %s274 = sand.u32 %s50, 1
          %s275 = smul.addr %s274, 192
          %s276 = scalar_lea.vmem [#allocation3], %s275
          %s277 = smul.u32 16, %s27
          %s278 = smul.addr %s28, 3
          %s279 = smul.addr %s277, 54
          %s280 = sadd.s32 %s278, %s279
          %s281 = smul.addr %s280, 4
          %s282 = scalar_lea.vmem %s0, %s281
          // Predicated region
          $region29: #{tpu_custom_call.1} parent=27 // pred_check
            _
          $region30: #{tpu_custom_call.1} parent=27 // pred_check_branch
            %284 = sbr.rel (0) target = $region32
          $region31: #{tpu_custom_call.1} parent=27 // pred_region
            // Predicated region
            $region33: #{tpu_custom_call.1} parent=31 // pred_check
              _
            $region34: #{tpu_custom_call.1} parent=31 // pred_check_branch
              %286 = sbr.rel target = $region36
            $region35: #{tpu_custom_call.1} parent=31 // pred_region
              // Predicated region
              $region48: #{tpu_custom_call.1} parent=35 // pred_check
                _
              $region49: #{tpu_custom_call.1} parent=35 // pred_check_branch
                %396 = sbr.rel (0) target = $region51
              $region50: #{tpu_custom_call.1} parent=35 // pred_region
                loop: start=0, step=1, limit=1
                $region52: #{tpu_custom_call.1} parent=50 // loop_pre_header
                  _
                $region53: #{tpu_custom_call.1} parent=50 // loop_header
                  %s398 = sphi 0, %s402
                  %p399 = scmp.ge.s32.totalorder %s398, 1
                  %s403 = sphi %s282, %s282
                  %s404 = sphi %s276, %s276
                $region54: #{tpu_custom_call.1} parent=50 // loop_header_branch
                  %401 = sbr.rel (%p399) target = $region58
                $region55: #{tpu_custom_call.1} parent=50 // loop_body
                  _
                $region56: #{tpu_custom_call.1} parent=50 // loop_footer
                  %s402 = sadd.s32 1, %s398
                $region57: #{tpu_custom_call.1} parent=50 // loop_footer_branch
                  %397 = sbr.rel target = $region53
                $region58: #{tpu_custom_call.1} parent=50 // loop_exit
                  _
                %s406 = ssub.s32 16, 1
                loop: start=0, step=1, limit=1
                $region59: #{tpu_custom_call.1} parent=50 // loop_pre_header
                  _
                $region60: #{tpu_custom_call.1} parent=50 // loop_header
                  %s408 = sphi 0, %s412
                  %p409 = scmp.ge.s32.totalorder %s408, 1
                  %s413 = sphi %s282, %s282
                  %s414 = sphi %s276, %s276
                $region61: #{tpu_custom_call.1} parent=50 // loop_header_branch
                  %411 = sbr.rel (%p409) target = $region65
                $region62: #{tpu_custom_call.1} parent=50 // loop_body
                  %v415 = vld [vmem:[%s413] sm:%s406]
                  %416 = vst [vmem:[%s414] sm:%s406] %v415
                  %v417 = vld [vmem:[%s413 + $0x4] sm:%s406]
                  %418 = vst [vmem:[%s414 + $0x4] sm:%s406] %v417
                  %v419 = vld [vmem:[%s413 + $0x8] sm:%s406]
                  %420 = vst [vmem:[%s414 + $0x8] sm:%s406] %v419
                  %v421 = vld [vmem:[%s413 + $0xd8] sm:%s406]
                  %422 = vst [vmem:[%s414 + $0xc] sm:%s406] %v421
                  %v423 = vld [vmem:[%s413 + $0xdc] sm:%s406]
                  %424 = vst [vmem:[%s414 + $0x10] sm:%s406] %v423
                  %v425 = vld [vmem:[%s413 + $0xe0] sm:%s406]
                  %426 = vst [vmem:[%s414 + $0x14] sm:%s406] %v425
                  %v427 = vld [vmem:[%s413 + $0x1b0] sm:%s406]
                  %428 = vst [vmem:[%s414 + $0x18] sm:%s406] %v427
                  %v429 = vld [vmem:[%s413 + $0x1b4] sm:%s406]
                  %430 = vst [vmem:[%s414 + $0x1c] sm:%s406] %v429
                  %v431 = vld [vmem:[%s413 + $0x1b8] sm:%s406]
                  %432 = vst [vmem:[%s414 + $0x20] sm:%s406] %v431
                  %v433 = vld [vmem:[%s413 + $0x288] sm:%s406]
                  %434 = vst [vmem:[%s414 + $0x24] sm:%s406] %v433
                  %v435 = vld [vmem:[%s413 + $0x28c] sm:%s406]
                  %436 = vst [vmem:[%s414 + $0x28] sm:%s406] %v435
                  %v437 = vld [vmem:[%s413 + $0x290] sm:%s406]
                  %438 = vst [vmem:[%s414 + $0x2c] sm:%s406] %v437
                  %v439 = vld [vmem:[%s413 + $0x360] sm:%s406]
                  %440 = vst [vmem:[%s414 + $0x30] sm:%s406] %v439
                  %v441 = vld [vmem:[%s413 + $0x364] sm:%s406]
                  %442 = vst [vmem:[%s414 + $0x34] sm:%s406] %v441
                  %v443 = vld [vmem:[%s413 + $0x368] sm:%s406]
                  %444 = vst [vmem:[%s414 + $0x38] sm:%s406] %v443
                  %v445 = vld [vmem:[%s413 + $0x438] sm:%s406]
                  %446 = vst [vmem:[%s414 + $0x3c] sm:%s406] %v445
                  %v447 = vld [vmem:[%s413 + $0x43c] sm:%s406]
                  %448 = vst [vmem:[%s414 + $0x40] sm:%s406] %v447
                  %v449 = vld [vmem:[%s413 + $0x440] sm:%s406]
                  %450 = vst [vmem:[%s414 + $0x44] sm:%s406] %v449
                  %v451 = vld [vmem:[%s413 + $0x510] sm:%s406]
                  %452 = vst [vmem:[%s414 + $0x48] sm:%s406] %v451
                  %v453 = vld [vmem:[%s413 + $0x514] sm:%s406]
                  %454 = vst [vmem:[%s414 + $0x4c] sm:%s406] %v453
                  %v455 = vld [vmem:[%s413 + $0x518] sm:%s406]
                  %456 = vst [vmem:[%s414 + $0x50] sm:%s406] %v455
                  %v457 = vld [vmem:[%s413 + $0x5e8] sm:%s406]
                  %458 = vst [vmem:[%s414 + $0x54] sm:%s406] %v457
                  %v459 = vld [vmem:[%s413 + $0x5ec] sm:%s406]
                  %460 = vst [vmem:[%s414 + $0x58] sm:%s406] %v459
                  %v461 = vld [vmem:[%s413 + $0x5f0] sm:%s406]
                  %462 = vst [vmem:[%s414 + $0x5c] sm:%s406] %v461
                  %v463 = vld [vmem:[%s413 + $0x6c0] sm:%s406]
                  %464 = vst [vmem:[%s414 + $0x60] sm:%s406] %v463
                  %v465 = vld [vmem:[%s413 + $0x6c4] sm:%s406]
                  %466 = vst [vmem:[%s414 + $0x64] sm:%s406] %v465
                  %v467 = vld [vmem:[%s413 + $0x6c8] sm:%s406]
                  %468 = vst [vmem:[%s414 + $0x68] sm:%s406] %v467
                  %v469 = vld [vmem:[%s413 + $0x798] sm:%s406]
                  %470 = vst [vmem:[%s414 + $0x6c] sm:%s406] %v469
                  %v471 = vld [vmem:[%s413 + $0x79c] sm:%s406]
                  %472 = vst [vmem:[%s414 + $0x70] sm:%s406] %v471
                  %v473 = vld [vmem:[%s413 + $0x7a0] sm:%s406]
                  %474 = vst [vmem:[%s414 + $0x74] sm:%s406] %v473
                  %v475 = vld [vmem:[%s413 + $0x870] sm:%s406]
                  %476 = vst [vmem:[%s414 + $0x78] sm:%s406] %v475
                  %v477 = vld [vmem:[%s413 + $0x874] sm:%s406]
                  %478 = vst [vmem:[%s414 + $0x7c] sm:%s406] %v477
                  %v479 = vld [vmem:[%s413 + $0x878] sm:%s406]
                  %480 = vst [vmem:[%s414 + $0x80] sm:%s406] %v479
                  %v481 = vld [vmem:[%s413 + $0x948] sm:%s406]
                  %482 = vst [vmem:[%s414 + $0x84] sm:%s406] %v481
                  %v483 = vld [vmem:[%s413 + $0x94c] sm:%s406]
                  %484 = vst [vmem:[%s414 + $0x88] sm:%s406] %v483
                  %v485 = vld [vmem:[%s413 + $0x950] sm:%s406]
                  %486 = vst [vmem:[%s414 + $0x8c] sm:%s406] %v485
                  %v487 = vld [vmem:[%s413 + $0xa20] sm:%s406]
                  %488 = vst [vmem:[%s414 + $0x90] sm:%s406] %v487
                  %v489 = vld [vmem:[%s413 + $0xa24] sm:%s406]
                  %490 = vst [vmem:[%s414 + $0x94] sm:%s406] %v489
                  %v491 = vld [vmem:[%s413 + $0xa28] sm:%s406]
                  %492 = vst [vmem:[%s414 + $0x98] sm:%s406] %v491
                  %v493 = vld [vmem:[%s413 + $0xaf8] sm:%s406]
                  %494 = vst [vmem:[%s414 + $0x9c] sm:%s406] %v493
                  %v495 = vld [vmem:[%s413 + $0xafc] sm:%s406]
                  %496 = vst [vmem:[%s414 + $0xa0] sm:%s406] %v495
                  %v497 = vld [vmem:[%s413 + $0xb00] sm:%s406]
                  %498 = vst [vmem:[%s414 + $0xa4] sm:%s406] %v497
                  %v499 = vld [vmem:[%s413 + $0xbd0] sm:%s406]
                  %500 = vst [vmem:[%s414 + $0xa8] sm:%s406] %v499
                  %v501 = vld [vmem:[%s413 + $0xbd4] sm:%s406]
                  %502 = vst [vmem:[%s414 + $0xac] sm:%s406] %v501
                  %v503 = vld [vmem:[%s413 + $0xbd8] sm:%s406]
                  %504 = vst [vmem:[%s414 + $0xb0] sm:%s406] %v503
                  %v505 = vld [vmem:[%s413 + $0xca8] sm:%s406]
                  %506 = vst [vmem:[%s414 + $0xb4] sm:%s406] %v505
                  %v507 = vld [vmem:[%s413 + $0xcac] sm:%s406]
                  %508 = vst [vmem:[%s414 + $0xb8] sm:%s406] %v507
                  %v509 = vld [vmem:[%s413 + $0xcb0] sm:%s406]
                  %510 = vst [vmem:[%s414 + $0xbc] sm:%s406] %v509
                $region63: #{tpu_custom_call.1} parent=50 // loop_footer
                  %s412 = sadd.s32 1, %s408
                $region64: #{tpu_custom_call.1} parent=50 // loop_footer_branch
                  %407 = sbr.rel target = $region60
                $region65: #{tpu_custom_call.1} parent=50 // loop_exit
                  _
              $region51: #{tpu_custom_call.1} parent=35 // pred_fallthru
                _
            $region36: #{tpu_custom_call.1} parent=31 // pred_fallthru
              _
            // Predicated region
            $region37: #{tpu_custom_call.1} parent=31 // pred_check
              _
            $region38: #{tpu_custom_call.1} parent=31 // pred_check_branch
              %288 = sbr.rel (0) target = $region40
            $region39: #{tpu_custom_call.1} parent=31 // pred_region
              %s290 = ssub.s32 16, 1
              loop: start=0, step=1, limit=1
              $region41: #{tpu_custom_call.1} parent=39 // loop_pre_header
                _
              $region42: #{tpu_custom_call.1} parent=39 // loop_header
                %s292 = sphi 0, %s296
                %p293 = scmp.ge.s32.totalorder %s292, 1
                %s297 = sphi %s282, %s282
                %s298 = sphi %s276, %s276
              $region43: #{tpu_custom_call.1} parent=39 // loop_header_branch
                %295 = sbr.rel (%p293) target = $region47
              $region44: #{tpu_custom_call.1} parent=39 // loop_body
                %v299 = vld [vmem:[%s297] sm:%s290]
                %300 = vst [vmem:[%s298] sm:%s290] %v299
                %v301 = vld [vmem:[%s297 + $0x4] sm:%s290]
                %302 = vst [vmem:[%s298 + $0x4] sm:%s290] %v301
                %v303 = vld [vmem:[%s297 + $0x8] sm:%s290]
                %304 = vst [vmem:[%s298 + $0x8] sm:%s290] %v303
                %v305 = vld [vmem:[%s297 + $0xd8] sm:%s290]
                %306 = vst [vmem:[%s298 + $0xc] sm:%s290] %v305
                %v307 = vld [vmem:[%s297 + $0xdc] sm:%s290]
                %308 = vst [vmem:[%s298 + $0x10] sm:%s290] %v307
                %v309 = vld [vmem:[%s297 + $0xe0] sm:%s290]
                %310 = vst [vmem:[%s298 + $0x14] sm:%s290] %v309
                %v311 = vld [vmem:[%s297 + $0x1b0] sm:%s290]
                %312 = vst [vmem:[%s298 + $0x18] sm:%s290] %v311
                %v313 = vld [vmem:[%s297 + $0x1b4] sm:%s290]
                %314 = vst [vmem:[%s298 + $0x1c] sm:%s290] %v313
                %v315 = vld [vmem:[%s297 + $0x1b8] sm:%s290]
                %316 = vst [vmem:[%s298 + $0x20] sm:%s290] %v315
                %v317 = vld [vmem:[%s297 + $0x288] sm:%s290]
                %318 = vst [vmem:[%s298 + $0x24] sm:%s290] %v317
                %v319 = vld [vmem:[%s297 + $0x28c] sm:%s290]
                %320 = vst [vmem:[%s298 + $0x28] sm:%s290] %v319
                %v321 = vld [vmem:[%s297 + $0x290] sm:%s290]
                %322 = vst [vmem:[%s298 + $0x2c] sm:%s290] %v321
                %v323 = vld [vmem:[%s297 + $0x360] sm:%s290]
                %324 = vst [vmem:[%s298 + $0x30] sm:%s290] %v323
                %v325 = vld [vmem:[%s297 + $0x364] sm:%s290]
                %326 = vst [vmem:[%s298 + $0x34] sm:%s290] %v325
                %v327 = vld [vmem:[%s297 + $0x368] sm:%s290]
                %328 = vst [vmem:[%s298 + $0x38] sm:%s290] %v327
                %v329 = vld [vmem:[%s297 + $0x438] sm:%s290]
                %330 = vst [vmem:[%s298 + $0x3c] sm:%s290] %v329
                %v331 = vld [vmem:[%s297 + $0x43c] sm:%s290]
                %332 = vst [vmem:[%s298 + $0x40] sm:%s290] %v331
                %v333 = vld [vmem:[%s297 + $0x440] sm:%s290]
                %334 = vst [vmem:[%s298 + $0x44] sm:%s290] %v333
                %v335 = vld [vmem:[%s297 + $0x510] sm:%s290]
                %336 = vst [vmem:[%s298 + $0x48] sm:%s290] %v335
                %v337 = vld [vmem:[%s297 + $0x514] sm:%s290]
                %338 = vst [vmem:[%s298 + $0x4c] sm:%s290] %v337
                %v339 = vld [vmem:[%s297 + $0x518] sm:%s290]
                %340 = vst [vmem:[%s298 + $0x50] sm:%s290] %v339
                %v341 = vld [vmem:[%s297 + $0x5e8] sm:%s290]
                %342 = vst [vmem:[%s298 + $0x54] sm:%s290] %v341
                %v343 = vld [vmem:[%s297 + $0x5ec] sm:%s290]
                %344 = vst [vmem:[%s298 + $0x58] sm:%s290] %v343
                %v345 = vld [vmem:[%s297 + $0x5f0] sm:%s290]
                %346 = vst [vmem:[%s298 + $0x5c] sm:%s290] %v345
                %v347 = vld [vmem:[%s297 + $0x6c0] sm:%s290]
                %348 = vst [vmem:[%s298 + $0x60] sm:%s290] %v347
                %v349 = vld [vmem:[%s297 + $0x6c4] sm:%s290]
                %350 = vst [vmem:[%s298 + $0x64] sm:%s290] %v349
                %v351 = vld [vmem:[%s297 + $0x6c8] sm:%s290]
                %352 = vst [vmem:[%s298 + $0x68] sm:%s290] %v351
                %v353 = vld [vmem:[%s297 + $0x798] sm:%s290]
                %354 = vst [vmem:[%s298 + $0x6c] sm:%s290] %v353
                %v355 = vld [vmem:[%s297 + $0x79c] sm:%s290]
                %356 = vst [vmem:[%s298 + $0x70] sm:%s290] %v355
                %v357 = vld [vmem:[%s297 + $0x7a0] sm:%s290]
                %358 = vst [vmem:[%s298 + $0x74] sm:%s290] %v357
                %v359 = vld [vmem:[%s297 + $0x870] sm:%s290]
                %360 = vst [vmem:[%s298 + $0x78] sm:%s290] %v359
                %v361 = vld [vmem:[%s297 + $0x874] sm:%s290]
                %362 = vst [vmem:[%s298 + $0x7c] sm:%s290] %v361
                %v363 = vld [vmem:[%s297 + $0x878] sm:%s290]
                %364 = vst [vmem:[%s298 + $0x80] sm:%s290] %v363
                %v365 = vld [vmem:[%s297 + $0x948] sm:%s290]
                %366 = vst [vmem:[%s298 + $0x84] sm:%s290] %v365
                %v367 = vld [vmem:[%s297 + $0x94c] sm:%s290]
                %368 = vst [vmem:[%s298 + $0x88] sm:%s290] %v367
                %v369 = vld [vmem:[%s297 + $0x950] sm:%s290]
                %370 = vst [vmem:[%s298 + $0x8c] sm:%s290] %v369
                %v371 = vld [vmem:[%s297 + $0xa20] sm:%s290]
                %372 = vst [vmem:[%s298 + $0x90] sm:%s290] %v371
                %v373 = vld [vmem:[%s297 + $0xa24] sm:%s290]
                %374 = vst [vmem:[%s298 + $0x94] sm:%s290] %v373
                %v375 = vld [vmem:[%s297 + $0xa28] sm:%s290]
                %376 = vst [vmem:[%s298 + $0x98] sm:%s290] %v375
                %v377 = vld [vmem:[%s297 + $0xaf8] sm:%s290]
                %378 = vst [vmem:[%s298 + $0x9c] sm:%s290] %v377
                %v379 = vld [vmem:[%s297 + $0xafc] sm:%s290]
                %380 = vst [vmem:[%s298 + $0xa0] sm:%s290] %v379
                %v381 = vld [vmem:[%s297 + $0xb00] sm:%s290]
                %382 = vst [vmem:[%s298 + $0xa4] sm:%s290] %v381
                %v383 = vld [vmem:[%s297 + $0xbd0] sm:%s290]
                %384 = vst [vmem:[%s298 + $0xa8] sm:%s290] %v383
                %v385 = vld [vmem:[%s297 + $0xbd4] sm:%s290]
                %386 = vst [vmem:[%s298 + $0xac] sm:%s290] %v385
                %v387 = vld [vmem:[%s297 + $0xbd8] sm:%s290]
                %388 = vst [vmem:[%s298 + $0xb0] sm:%s290] %v387
                %v389 = vld [vmem:[%s297 + $0xca8] sm:%s290]
                %390 = vst [vmem:[%s298 + $0xb4] sm:%s290] %v389
                %v391 = vld [vmem:[%s297 + $0xcac] sm:%s290]
                %392 = vst [vmem:[%s298 + $0xb8] sm:%s290] %v391
                %v393 = vld [vmem:[%s297 + $0xcb0] sm:%s290]
                %394 = vst [vmem:[%s298 + $0xbc] sm:%s290] %v393
              $region45: #{tpu_custom_call.1} parent=39 // loop_footer
                %s296 = sadd.s32 1, %s292
              $region46: #{tpu_custom_call.1} parent=39 // loop_footer_branch
                %291 = sbr.rel target = $region42
              $region47: #{tpu_custom_call.1} parent=39 // loop_exit
                _
            $region40: #{tpu_custom_call.1} parent=31 // pred_fallthru
              _
          $region32: #{tpu_custom_call.1} parent=27 // pred_fallthru
            _
          %511 = vnop
        $region28: #{tpu_custom_call.1} parent=23 // pred_fallthru
          _
        // Predicated region
        $region66: #{tpu_custom_call.1} parent=23 // pred_check
          %p512 = pneg %p90
        $region67: #{tpu_custom_call.1} parent=23 // pred_check_branch
          %514 = sbr.rel (%p512) target = $region69
        $region68: #{tpu_custom_call.1} parent=23 // pred_region
          %s515 = sand.u32 %s80, 1
          %s516 = sand.u32 %s80, 1
          %s517 = smul.addr %s516, 192
          %s518 = scalar_lea.vmem [#allocation4], %s517
          %s519 = sadd.s32 %s28, 1
          %s520 = smul.u32 16, %s27
          %s521 = smul.addr %s519, 3
          %s522 = smul.addr %s520, 54
          %s523 = sadd.s32 %s521, %s522
          %s524 = smul.addr %s523, 4
          %s525 = scalar_lea.vmem %s1, %s524
          // Predicated region
          $region70: #{tpu_custom_call.1} parent=68 // pred_check
            _
          $region71: #{tpu_custom_call.1} parent=68 // pred_check_branch
            %527 = sbr.rel (0) target = $region73
          $region72: #{tpu_custom_call.1} parent=68 // pred_region
            // Predicated region
            $region74: #{tpu_custom_call.1} parent=72 // pred_check
              _
            $region75: #{tpu_custom_call.1} parent=72 // pred_check_branch
              %529 = sbr.rel target = $region77
            $region76: #{tpu_custom_call.1} parent=72 // pred_region
              // Predicated region
              $region89: #{tpu_custom_call.1} parent=76 // pred_check
                _
              $region90: #{tpu_custom_call.1} parent=76 // pred_check_branch
                %639 = sbr.rel (0) target = $region92
              $region91: #{tpu_custom_call.1} parent=76 // pred_region
                loop: start=0, step=1, limit=1
                $region93: #{tpu_custom_call.1} parent=91 // loop_pre_header
                  _
                $region94: #{tpu_custom_call.1} parent=91 // loop_header
                  %s641 = sphi 0, %s645
                  %p642 = scmp.ge.s32.totalorder %s641, 1
                  %s646 = sphi %s525, %s525
                  %s647 = sphi %s518, %s518
                $region95: #{tpu_custom_call.1} parent=91 // loop_header_branch
                  %644 = sbr.rel (%p642) target = $region99
                $region96: #{tpu_custom_call.1} parent=91 // loop_body
                  _
                $region97: #{tpu_custom_call.1} parent=91 // loop_footer
                  %s645 = sadd.s32 1, %s641
                $region98: #{tpu_custom_call.1} parent=91 // loop_footer_branch
                  %640 = sbr.rel target = $region94
                $region99: #{tpu_custom_call.1} parent=91 // loop_exit
                  _
                %s649 = ssub.s32 16, 1
                loop: start=0, step=1, limit=1
                $region100: #{tpu_custom_call.1} parent=91 // loop_pre_header
                  _
                $region101: #{tpu_custom_call.1} parent=91 // loop_header
                  %s651 = sphi 0, %s655
                  %p652 = scmp.ge.s32.totalorder %s651, 1
                  %s656 = sphi %s525, %s525
                  %s657 = sphi %s518, %s518
                $region102: #{tpu_custom_call.1} parent=91 // loop_header_branch
                  %654 = sbr.rel (%p652) target = $region106
                $region103: #{tpu_custom_call.1} parent=91 // loop_body
                  %v658 = vld [vmem:[%s656] sm:%s649]
                  %659 = vst [vmem:[%s657] sm:%s649] %v658
                  %v660 = vld [vmem:[%s656 + $0x4] sm:%s649]
                  %661 = vst [vmem:[%s657 + $0x4] sm:%s649] %v660
                  %v662 = vld [vmem:[%s656 + $0x8] sm:%s649]
                  %663 = vst [vmem:[%s657 + $0x8] sm:%s649] %v662
                  %v664 = vld [vmem:[%s656 + $0xd8] sm:%s649]
                  %665 = vst [vmem:[%s657 + $0xc] sm:%s649] %v664
                  %v666 = vld [vmem:[%s656 + $0xdc] sm:%s649]
                  %667 = vst [vmem:[%s657 + $0x10] sm:%s649] %v666
                  %v668 = vld [vmem:[%s656 + $0xe0] sm:%s649]
                  %669 = vst [vmem:[%s657 + $0x14] sm:%s649] %v668
                  %v670 = vld [vmem:[%s656 + $0x1b0] sm:%s649]
                  %671 = vst [vmem:[%s657 + $0x18] sm:%s649] %v670
                  %v672 = vld [vmem:[%s656 + $0x1b4] sm:%s649]
                  %673 = vst [vmem:[%s657 + $0x1c] sm:%s649] %v672
                  %v674 = vld [vmem:[%s656 + $0x1b8] sm:%s649]
                  %675 = vst [vmem:[%s657 + $0x20] sm:%s649] %v674
                  %v676 = vld [vmem:[%s656 + $0x288] sm:%s649]
                  %677 = vst [vmem:[%s657 + $0x24] sm:%s649] %v676
                  %v678 = vld [vmem:[%s656 + $0x28c] sm:%s649]
                  %679 = vst [vmem:[%s657 + $0x28] sm:%s649] %v678
                  %v680 = vld [vmem:[%s656 + $0x290] sm:%s649]
                  %681 = vst [vmem:[%s657 + $0x2c] sm:%s649] %v680
                  %v682 = vld [vmem:[%s656 + $0x360] sm:%s649]
                  %683 = vst [vmem:[%s657 + $0x30] sm:%s649] %v682
                  %v684 = vld [vmem:[%s656 + $0x364] sm:%s649]
                  %685 = vst [vmem:[%s657 + $0x34] sm:%s649] %v684
                  %v686 = vld [vmem:[%s656 + $0x368] sm:%s649]
                  %687 = vst [vmem:[%s657 + $0x38] sm:%s649] %v686
                  %v688 = vld [vmem:[%s656 + $0x438] sm:%s649]
                  %689 = vst [vmem:[%s657 + $0x3c] sm:%s649] %v688
                  %v690 = vld [vmem:[%s656 + $0x43c] sm:%s649]
                  %691 = vst [vmem:[%s657 + $0x40] sm:%s649] %v690
                  %v692 = vld [vmem:[%s656 + $0x440] sm:%s649]
                  %693 = vst [vmem:[%s657 + $0x44] sm:%s649] %v692
                  %v694 = vld [vmem:[%s656 + $0x510] sm:%s649]
                  %695 = vst [vmem:[%s657 + $0x48] sm:%s649] %v694
                  %v696 = vld [vmem:[%s656 + $0x514] sm:%s649]
                  %697 = vst [vmem:[%s657 + $0x4c] sm:%s649] %v696
                  %v698 = vld [vmem:[%s656 + $0x518] sm:%s649]
                  %699 = vst [vmem:[%s657 + $0x50] sm:%s649] %v698
                  %v700 = vld [vmem:[%s656 + $0x5e8] sm:%s649]
                  %701 = vst [vmem:[%s657 + $0x54] sm:%s649] %v700
                  %v702 = vld [vmem:[%s656 + $0x5ec] sm:%s649]
                  %703 = vst [vmem:[%s657 + $0x58] sm:%s649] %v702
                  %v704 = vld [vmem:[%s656 + $0x5f0] sm:%s649]
                  %705 = vst [vmem:[%s657 + $0x5c] sm:%s649] %v704
                  %v706 = vld [vmem:[%s656 + $0x6c0] sm:%s649]
                  %707 = vst [vmem:[%s657 + $0x60] sm:%s649] %v706
                  %v708 = vld [vmem:[%s656 + $0x6c4] sm:%s649]
                  %709 = vst [vmem:[%s657 + $0x64] sm:%s649] %v708
                  %v710 = vld [vmem:[%s656 + $0x6c8] sm:%s649]
                  %711 = vst [vmem:[%s657 + $0x68] sm:%s649] %v710
                  %v712 = vld [vmem:[%s656 + $0x798] sm:%s649]
                  %713 = vst [vmem:[%s657 + $0x6c] sm:%s649] %v712
                  %v714 = vld [vmem:[%s656 + $0x79c] sm:%s649]
                  %715 = vst [vmem:[%s657 + $0x70] sm:%s649] %v714
                  %v716 = vld [vmem:[%s656 + $0x7a0] sm:%s649]
                  %717 = vst [vmem:[%s657 + $0x74] sm:%s649] %v716
                  %v718 = vld [vmem:[%s656 + $0x870] sm:%s649]
                  %719 = vst [vmem:[%s657 + $0x78] sm:%s649] %v718
                  %v720 = vld [vmem:[%s656 + $0x874] sm:%s649]
                  %721 = vst [vmem:[%s657 + $0x7c] sm:%s649] %v720
                  %v722 = vld [vmem:[%s656 + $0x878] sm:%s649]
                  %723 = vst [vmem:[%s657 + $0x80] sm:%s649] %v722
                  %v724 = vld [vmem:[%s656 + $0x948] sm:%s649]
                  %725 = vst [vmem:[%s657 + $0x84] sm:%s649] %v724
                  %v726 = vld [vmem:[%s656 + $0x94c] sm:%s649]
                  %727 = vst [vmem:[%s657 + $0x88] sm:%s649] %v726
                  %v728 = vld [vmem:[%s656 + $0x950] sm:%s649]
                  %729 = vst [vmem:[%s657 + $0x8c] sm:%s649] %v728
                  %v730 = vld [vmem:[%s656 + $0xa20] sm:%s649]
                  %731 = vst [vmem:[%s657 + $0x90] sm:%s649] %v730
                  %v732 = vld [vmem:[%s656 + $0xa24] sm:%s649]
                  %733 = vst [vmem:[%s657 + $0x94] sm:%s649] %v732
                  %v734 = vld [vmem:[%s656 + $0xa28] sm:%s649]
                  %735 = vst [vmem:[%s657 + $0x98] sm:%s649] %v734
                  %v736 = vld [vmem:[%s656 + $0xaf8] sm:%s649]
                  %737 = vst [vmem:[%s657 + $0x9c] sm:%s649] %v736
                  %v738 = vld [vmem:[%s656 + $0xafc] sm:%s649]
                  %739 = vst [vmem:[%s657 + $0xa0] sm:%s649] %v738
                  %v740 = vld [vmem:[%s656 + $0xb00] sm:%s649]
                  %741 = vst [vmem:[%s657 + $0xa4] sm:%s649] %v740
                  %v742 = vld [vmem:[%s656 + $0xbd0] sm:%s649]
                  %743 = vst [vmem:[%s657 + $0xa8] sm:%s649] %v742
                  %v744 = vld [vmem:[%s656 + $0xbd4] sm:%s649]
                  %745 = vst [vmem:[%s657 + $0xac] sm:%s649] %v744
                  %v746 = vld [vmem:[%s656 + $0xbd8] sm:%s649]
                  %747 = vst [vmem:[%s657 + $0xb0] sm:%s649] %v746
                  %v748 = vld [vmem:[%s656 + $0xca8] sm:%s649]
                  %749 = vst [vmem:[%s657 + $0xb4] sm:%s649] %v748
                  %v750 = vld [vmem:[%s656 + $0xcac] sm:%s649]
                  %751 = vst [vmem:[%s657 + $0xb8] sm:%s649] %v750
                  %v752 = vld [vmem:[%s656 + $0xcb0] sm:%s649]
                  %753 = vst [vmem:[%s657 + $0xbc] sm:%s649] %v752
                $region104: #{tpu_custom_call.1} parent=91 // loop_footer
                  %s655 = sadd.s32 1, %s651
                $region105: #{tpu_custom_call.1} parent=91 // loop_footer_branch
                  %650 = sbr.rel target = $region101
                $region106: #{tpu_custom_call.1} parent=91 // loop_exit
                  _
              $region92: #{tpu_custom_call.1} parent=76 // pred_fallthru
                _
            $region77: #{tpu_custom_call.1} parent=72 // pred_fallthru
              _
            // Predicated region
            $region78: #{tpu_custom_call.1} parent=72 // pred_check
              _
            $region79: #{tpu_custom_call.1} parent=72 // pred_check_branch
              %531 = sbr.rel (0) target = $region81
            $region80: #{tpu_custom_call.1} parent=72 // pred_region
              %s533 = ssub.s32 16, 1
              loop: start=0, step=1, limit=1
              $region82: #{tpu_custom_call.1} parent=80 // loop_pre_header
                _
              $region83: #{tpu_custom_call.1} parent=80 // loop_header
                %s535 = sphi 0, %s539
                %p536 = scmp.ge.s32.totalorder %s535, 1
                %s540 = sphi %s525, %s525
                %s541 = sphi %s518, %s518
              $region84: #{tpu_custom_call.1} parent=80 // loop_header_branch
                %538 = sbr.rel (%p536) target = $region88
              $region85: #{tpu_custom_call.1} parent=80 // loop_body
                %v542 = vld [vmem:[%s540] sm:%s533]
                %543 = vst [vmem:[%s541] sm:%s533] %v542
                %v544 = vld [vmem:[%s540 + $0x4] sm:%s533]
                %545 = vst [vmem:[%s541 + $0x4] sm:%s533] %v544
                %v546 = vld [vmem:[%s540 + $0x8] sm:%s533]
                %547 = vst [vmem:[%s541 + $0x8] sm:%s533] %v546
                %v548 = vld [vmem:[%s540 + $0xd8] sm:%s533]
                %549 = vst [vmem:[%s541 + $0xc] sm:%s533] %v548
                %v550 = vld [vmem:[%s540 + $0xdc] sm:%s533]
                %551 = vst [vmem:[%s541 + $0x10] sm:%s533] %v550
                %v552 = vld [vmem:[%s540 + $0xe0] sm:%s533]
                %553 = vst [vmem:[%s541 + $0x14] sm:%s533] %v552
                %v554 = vld [vmem:[%s540 + $0x1b0] sm:%s533]
                %555 = vst [vmem:[%s541 + $0x18] sm:%s533] %v554
                %v556 = vld [vmem:[%s540 + $0x1b4] sm:%s533]
                %557 = vst [vmem:[%s541 + $0x1c] sm:%s533] %v556
                %v558 = vld [vmem:[%s540 + $0x1b8] sm:%s533]
                %559 = vst [vmem:[%s541 + $0x20] sm:%s533] %v558
                %v560 = vld [vmem:[%s540 + $0x288] sm:%s533]
                %561 = vst [vmem:[%s541 + $0x24] sm:%s533] %v560
                %v562 = vld [vmem:[%s540 + $0x28c] sm:%s533]
                %563 = vst [vmem:[%s541 + $0x28] sm:%s533] %v562
                %v564 = vld [vmem:[%s540 + $0x290] sm:%s533]
                %565 = vst [vmem:[%s541 + $0x2c] sm:%s533] %v564
                %v566 = vld [vmem:[%s540 + $0x360] sm:%s533]
                %567 = vst [vmem:[%s541 + $0x30] sm:%s533] %v566
                %v568 = vld [vmem:[%s540 + $0x364] sm:%s533]
                %569 = vst [vmem:[%s541 + $0x34] sm:%s533] %v568
                %v570 = vld [vmem:[%s540 + $0x368] sm:%s533]
                %571 = vst [vmem:[%s541 + $0x38] sm:%s533] %v570
                %v572 = vld [vmem:[%s540 + $0x438] sm:%s533]
                %573 = vst [vmem:[%s541 + $0x3c] sm:%s533] %v572
                %v574 = vld [vmem:[%s540 + $0x43c] sm:%s533]
                %575 = vst [vmem:[%s541 + $0x40] sm:%s533] %v574
                %v576 = vld [vmem:[%s540 + $0x440] sm:%s533]
                %577 = vst [vmem:[%s541 + $0x44] sm:%s533] %v576
                %v578 = vld [vmem:[%s540 + $0x510] sm:%s533]
                %579 = vst [vmem:[%s541 + $0x48] sm:%s533] %v578
                %v580 = vld [vmem:[%s540 + $0x514] sm:%s533]
                %581 = vst [vmem:[%s541 + $0x4c] sm:%s533] %v580
                %v582 = vld [vmem:[%s540 + $0x518] sm:%s533]
                %583 = vst [vmem:[%s541 + $0x50] sm:%s533] %v582
                %v584 = vld [vmem:[%s540 + $0x5e8] sm:%s533]
                %585 = vst [vmem:[%s541 + $0x54] sm:%s533] %v584
                %v586 = vld [vmem:[%s540 + $0x5ec] sm:%s533]
                %587 = vst [vmem:[%s541 + $0x58] sm:%s533] %v586
                %v588 = vld [vmem:[%s540 + $0x5f0] sm:%s533]
                %589 = vst [vmem:[%s541 + $0x5c] sm:%s533] %v588
                %v590 = vld [vmem:[%s540 + $0x6c0] sm:%s533]
                %591 = vst [vmem:[%s541 + $0x60] sm:%s533] %v590
                %v592 = vld [vmem:[%s540 + $0x6c4] sm:%s533]
                %593 = vst [vmem:[%s541 + $0x64] sm:%s533] %v592
                %v594 = vld [vmem:[%s540 + $0x6c8] sm:%s533]
                %595 = vst [vmem:[%s541 + $0x68] sm:%s533] %v594
                %v596 = vld [vmem:[%s540 + $0x798] sm:%s533]
                %597 = vst [vmem:[%s541 + $0x6c] sm:%s533] %v596
                %v598 = vld [vmem:[%s540 + $0x79c] sm:%s533]
                %599 = vst [vmem:[%s541 + $0x70] sm:%s533] %v598
                %v600 = vld [vmem:[%s540 + $0x7a0] sm:%s533]
                %601 = vst [vmem:[%s541 + $0x74] sm:%s533] %v600
                %v602 = vld [vmem:[%s540 + $0x870] sm:%s533]
                %603 = vst [vmem:[%s541 + $0x78] sm:%s533] %v602
                %v604 = vld [vmem:[%s540 + $0x874] sm:%s533]
                %605 = vst [vmem:[%s541 + $0x7c] sm:%s533] %v604
                %v606 = vld [vmem:[%s540 + $0x878] sm:%s533]
                %607 = vst [vmem:[%s541 + $0x80] sm:%s533] %v606
                %v608 = vld [vmem:[%s540 + $0x948] sm:%s533]
                %609 = vst [vmem:[%s541 + $0x84] sm:%s533] %v608
                %v610 = vld [vmem:[%s540 + $0x94c] sm:%s533]
                %611 = vst [vmem:[%s541 + $0x88] sm:%s533] %v610
                %v612 = vld [vmem:[%s540 + $0x950] sm:%s533]
                %613 = vst [vmem:[%s541 + $0x8c] sm:%s533] %v612
                %v614 = vld [vmem:[%s540 + $0xa20] sm:%s533]
                %615 = vst [vmem:[%s541 + $0x90] sm:%s533] %v614
                %v616 = vld [vmem:[%s540 + $0xa24] sm:%s533]
                %617 = vst [vmem:[%s541 + $0x94] sm:%s533] %v616
                %v618 = vld [vmem:[%s540 + $0xa28] sm:%s533]
                %619 = vst [vmem:[%s541 + $0x98] sm:%s533] %v618
                %v620 = vld [vmem:[%s540 + $0xaf8] sm:%s533]
                %621 = vst [vmem:[%s541 + $0x9c] sm:%s533] %v620
                %v622 = vld [vmem:[%s540 + $0xafc] sm:%s533]
                %623 = vst [vmem:[%s541 + $0xa0] sm:%s533] %v622
                %v624 = vld [vmem:[%s540 + $0xb00] sm:%s533]
                %625 = vst [vmem:[%s541 + $0xa4] sm:%s533] %v624
                %v626 = vld [vmem:[%s540 + $0xbd0] sm:%s533]
                %627 = vst [vmem:[%s541 + $0xa8] sm:%s533] %v626
                %v628 = vld [vmem:[%s540 + $0xbd4] sm:%s533]
                %629 = vst [vmem:[%s541 + $0xac] sm:%s533] %v628
                %v630 = vld [vmem:[%s540 + $0xbd8] sm:%s533]
                %631 = vst [vmem:[%s541 + $0xb0] sm:%s533] %v630
                %v632 = vld [vmem:[%s540 + $0xca8] sm:%s533]
                %633 = vst [vmem:[%s541 + $0xb4] sm:%s533] %v632
                %v634 = vld [vmem:[%s540 + $0xcac] sm:%s533]
                %635 = vst [vmem:[%s541 + $0xb8] sm:%s533] %v634
                %v636 = vld [vmem:[%s540 + $0xcb0] sm:%s533]
                %637 = vst [vmem:[%s541 + $0xbc] sm:%s533] %v636
              $region86: #{tpu_custom_call.1} parent=80 // loop_footer
                %s539 = sadd.s32 1, %s535
              $region87: #{tpu_custom_call.1} parent=80 // loop_footer_branch
                %534 = sbr.rel target = $region83
              $region88: #{tpu_custom_call.1} parent=80 // loop_exit
                _
            $region81: #{tpu_custom_call.1} parent=72 // pred_fallthru
              _
          $region73: #{tpu_custom_call.1} parent=68 // pred_fallthru
            _
          %754 = vnop
        $region69: #{tpu_custom_call.1} parent=23 // pred_fallthru
          _
        // Predicated region
        $region107: #{tpu_custom_call.1} parent=23 // pred_check
          %p755 = pneg %p120
        $region108: #{tpu_custom_call.1} parent=23 // pred_check_branch
          %757 = sbr.rel (%p755) target = $region110
        $region109: #{tpu_custom_call.1} parent=23 // pred_region
          %s758 = sand.u32 %s110, 1
          %s759 = sand.u32 %s110, 1
          %s760 = smul.addr %s759, 192
          %s761 = scalar_lea.vmem [#allocation5], %s760
          %s762 = sadd.s32 %s28, 2
          %s763 = smul.u32 16, %s27
          %s764 = smul.addr %s762, 3
          %s765 = smul.addr %s763, 54
          %s766 = sadd.s32 %s764, %s765
          %s767 = smul.addr %s766, 4
          %s768 = scalar_lea.vmem %s2, %s767
          // Predicated region
          $region111: #{tpu_custom_call.1} parent=109 // pred_check
            _
          $region112: #{tpu_custom_call.1} parent=109 // pred_check_branch
            %770 = sbr.rel (0) target = $region114
          $region113: #{tpu_custom_call.1} parent=109 // pred_region
            // Predicated region
            $region115: #{tpu_custom_call.1} parent=113 // pred_check
              _
            $region116: #{tpu_custom_call.1} parent=113 // pred_check_branch
              %772 = sbr.rel target = $region118
            $region117: #{tpu_custom_call.1} parent=113 // pred_region
              // Predicated region
              $region130: #{tpu_custom_call.1} parent=117 // pred_check
                _
              $region131: #{tpu_custom_call.1} parent=117 // pred_check_branch
                %882 = sbr.rel (0) target = $region133
              $region132: #{tpu_custom_call.1} parent=117 // pred_region
                loop: start=0, step=1, limit=1
                $region134: #{tpu_custom_call.1} parent=132 // loop_pre_header
                  _
                $region135: #{tpu_custom_call.1} parent=132 // loop_header
                  %s884 = sphi 0, %s888
                  %p885 = scmp.ge.s32.totalorder %s884, 1
                  %s889 = sphi %s768, %s768
                  %s890 = sphi %s761, %s761
                $region136: #{tpu_custom_call.1} parent=132 // loop_header_branch
                  %887 = sbr.rel (%p885) target = $region140
                $region137: #{tpu_custom_call.1} parent=132 // loop_body
                  _
                $region138: #{tpu_custom_call.1} parent=132 // loop_footer
                  %s888 = sadd.s32 1, %s884
                $region139: #{tpu_custom_call.1} parent=132 // loop_footer_branch
                  %883 = sbr.rel target = $region135
                $region140: #{tpu_custom_call.1} parent=132 // loop_exit
                  _
                %s892 = ssub.s32 16, 1
                loop: start=0, step=1, limit=1
                $region141: #{tpu_custom_call.1} parent=132 // loop_pre_header
                  _
                $region142: #{tpu_custom_call.1} parent=132 // loop_header
                  %s894 = sphi 0, %s898
                  %p895 = scmp.ge.s32.totalorder %s894, 1
                  %s899 = sphi %s768, %s768
                  %s900 = sphi %s761, %s761
                $region143: #{tpu_custom_call.1} parent=132 // loop_header_branch
                  %897 = sbr.rel (%p895) target = $region147
                $region144: #{tpu_custom_call.1} parent=132 // loop_body
                  %v901 = vld [vmem:[%s899] sm:%s892]
                  %902 = vst [vmem:[%s900] sm:%s892] %v901
                  %v903 = vld [vmem:[%s899 + $0x4] sm:%s892]
                  %904 = vst [vmem:[%s900 + $0x4] sm:%s892] %v903
                  %v905 = vld [vmem:[%s899 + $0x8] sm:%s892]
                  %906 = vst [vmem:[%s900 + $0x8] sm:%s892] %v905
                  %v907 = vld [vmem:[%s899 + $0xd8] sm:%s892]
                  %908 = vst [vmem:[%s900 + $0xc] sm:%s892] %v907
                  %v909 = vld [vmem:[%s899 + $0xdc] sm:%s892]
                  %910 = vst [vmem:[%s900 + $0x10] sm:%s892] %v909
                  %v911 = vld [vmem:[%s899 + $0xe0] sm:%s892]
                  %912 = vst [vmem:[%s900 + $0x14] sm:%s892] %v911
                  %v913 = vld [vmem:[%s899 + $0x1b0] sm:%s892]
                  %914 = vst [vmem:[%s900 + $0x18] sm:%s892] %v913
                  %v915 = vld [vmem:[%s899 + $0x1b4] sm:%s892]
                  %916 = vst [vmem:[%s900 + $0x1c] sm:%s892] %v915
                  %v917 = vld [vmem:[%s899 + $0x1b8] sm:%s892]
                  %918 = vst [vmem:[%s900 + $0x20] sm:%s892] %v917
                  %v919 = vld [vmem:[%s899 + $0x288] sm:%s892]
                  %920 = vst [vmem:[%s900 + $0x24] sm:%s892] %v919
                  %v921 = vld [vmem:[%s899 + $0x28c] sm:%s892]
                  %922 = vst [vmem:[%s900 + $0x28] sm:%s892] %v921
                  %v923 = vld [vmem:[%s899 + $0x290] sm:%s892]
                  %924 = vst [vmem:[%s900 + $0x2c] sm:%s892] %v923
                  %v925 = vld [vmem:[%s899 + $0x360] sm:%s892]
                  %926 = vst [vmem:[%s900 + $0x30] sm:%s892] %v925
                  %v927 = vld [vmem:[%s899 + $0x364] sm:%s892]
                  %928 = vst [vmem:[%s900 + $0x34] sm:%s892] %v927
                  %v929 = vld [vmem:[%s899 + $0x368] sm:%s892]
                  %930 = vst [vmem:[%s900 + $0x38] sm:%s892] %v929
                  %v931 = vld [vmem:[%s899 + $0x438] sm:%s892]
                  %932 = vst [vmem:[%s900 + $0x3c] sm:%s892] %v931
                  %v933 = vld [vmem:[%s899 + $0x43c] sm:%s892]
                  %934 = vst [vmem:[%s900 + $0x40] sm:%s892] %v933
                  %v935 = vld [vmem:[%s899 + $0x440] sm:%s892]
                  %936 = vst [vmem:[%s900 + $0x44] sm:%s892] %v935
                  %v937 = vld [vmem:[%s899 + $0x510] sm:%s892]
                  %938 = vst [vmem:[%s900 + $0x48] sm:%s892] %v937
                  %v939 = vld [vmem:[%s899 + $0x514] sm:%s892]
                  %940 = vst [vmem:[%s900 + $0x4c] sm:%s892] %v939
                  %v941 = vld [vmem:[%s899 + $0x518] sm:%s892]
                  %942 = vst [vmem:[%s900 + $0x50] sm:%s892] %v941
                  %v943 = vld [vmem:[%s899 + $0x5e8] sm:%s892]
                  %944 = vst [vmem:[%s900 + $0x54] sm:%s892] %v943
                  %v945 = vld [vmem:[%s899 + $0x5ec] sm:%s892]
                  %946 = vst [vmem:[%s900 + $0x58] sm:%s892] %v945
                  %v947 = vld [vmem:[%s899 + $0x5f0] sm:%s892]
                  %948 = vst [vmem:[%s900 + $0x5c] sm:%s892] %v947
                  %v949 = vld [vmem:[%s899 + $0x6c0] sm:%s892]
                  %950 = vst [vmem:[%s900 + $0x60] sm:%s892] %v949
                  %v951 = vld [vmem:[%s899 + $0x6c4] sm:%s892]
                  %952 = vst [vmem:[%s900 + $0x64] sm:%s892] %v951
                  %v953 = vld [vmem:[%s899 + $0x6c8] sm:%s892]
                  %954 = vst [vmem:[%s900 + $0x68] sm:%s892] %v953
                  %v955 = vld [vmem:[%s899 + $0x798] sm:%s892]
                  %956 = vst [vmem:[%s900 + $0x6c] sm:%s892] %v955
                  %v957 = vld [vmem:[%s899 + $0x79c] sm:%s892]
                  %958 = vst [vmem:[%s900 + $0x70] sm:%s892] %v957
                  %v959 = vld [vmem:[%s899 + $0x7a0] sm:%s892]
                  %960 = vst [vmem:[%s900 + $0x74] sm:%s892] %v959
                  %v961 = vld [vmem:[%s899 + $0x870] sm:%s892]
                  %962 = vst [vmem:[%s900 + $0x78] sm:%s892] %v961
                  %v963 = vld [vmem:[%s899 + $0x874] sm:%s892]
                  %964 = vst [vmem:[%s900 + $0x7c] sm:%s892] %v963
                  %v965 = vld [vmem:[%s899 + $0x878] sm:%s892]
                  %966 = vst [vmem:[%s900 + $0x80] sm:%s892] %v965
                  %v967 = vld [vmem:[%s899 + $0x948] sm:%s892]
                  %968 = vst [vmem:[%s900 + $0x84] sm:%s892] %v967
                  %v969 = vld [vmem:[%s899 + $0x94c] sm:%s892]
                  %970 = vst [vmem:[%s900 + $0x88] sm:%s892] %v969
                  %v971 = vld [vmem:[%s899 + $0x950] sm:%s892]
                  %972 = vst [vmem:[%s900 + $0x8c] sm:%s892] %v971
                  %v973 = vld [vmem:[%s899 + $0xa20] sm:%s892]
                  %974 = vst [vmem:[%s900 + $0x90] sm:%s892] %v973
                  %v975 = vld [vmem:[%s899 + $0xa24] sm:%s892]
                  %976 = vst [vmem:[%s900 + $0x94] sm:%s892] %v975
                  %v977 = vld [vmem:[%s899 + $0xa28] sm:%s892]
                  %978 = vst [vmem:[%s900 + $0x98] sm:%s892] %v977
                  %v979 = vld [vmem:[%s899 + $0xaf8] sm:%s892]
                  %980 = vst [vmem:[%s900 + $0x9c] sm:%s892] %v979
                  %v981 = vld [vmem:[%s899 + $0xafc] sm:%s892]
                  %982 = vst [vmem:[%s900 + $0xa0] sm:%s892] %v981
                  %v983 = vld [vmem:[%s899 + $0xb00] sm:%s892]
                  %984 = vst [vmem:[%s900 + $0xa4] sm:%s892] %v983
                  %v985 = vld [vmem:[%s899 + $0xbd0] sm:%s892]
                  %986 = vst [vmem:[%s900 + $0xa8] sm:%s892] %v985
                  %v987 = vld [vmem:[%s899 + $0xbd4] sm:%s892]
                  %988 = vst [vmem:[%s900 + $0xac] sm:%s892] %v987
                  %v989 = vld [vmem:[%s899 + $0xbd8] sm:%s892]
                  %990 = vst [vmem:[%s900 + $0xb0] sm:%s892] %v989
                  %v991 = vld [vmem:[%s899 + $0xca8] sm:%s892]
                  %992 = vst [vmem:[%s900 + $0xb4] sm:%s892] %v991
                  %v993 = vld [vmem:[%s899 + $0xcac] sm:%s892]
                  %994 = vst [vmem:[%s900 + $0xb8] sm:%s892] %v993
                  %v995 = vld [vmem:[%s899 + $0xcb0] sm:%s892]
                  %996 = vst [vmem:[%s900 + $0xbc] sm:%s892] %v995
                $region145: #{tpu_custom_call.1} parent=132 // loop_footer
                  %s898 = sadd.s32 1, %s894
                $region146: #{tpu_custom_call.1} parent=132 // loop_footer_branch
                  %893 = sbr.rel target = $region142
                $region147: #{tpu_custom_call.1} parent=132 // loop_exit
                  _
              $region133: #{tpu_custom_call.1} parent=117 // pred_fallthru
                _
            $region118: #{tpu_custom_call.1} parent=113 // pred_fallthru
              _
            // Predicated region
            $region119: #{tpu_custom_call.1} parent=113 // pred_check
              _
            $region120: #{tpu_custom_call.1} parent=113 // pred_check_branch
              %774 = sbr.rel (0) target = $region122
            $region121: #{tpu_custom_call.1} parent=113 // pred_region
              %s776 = ssub.s32 16, 1
              loop: start=0, step=1, limit=1
              $region123: #{tpu_custom_call.1} parent=121 // loop_pre_header
                _
              $region124: #{tpu_custom_call.1} parent=121 // loop_header
                %s778 = sphi 0, %s782
                %p779 = scmp.ge.s32.totalorder %s778, 1
                %s783 = sphi %s768, %s768
                %s784 = sphi %s761, %s761
              $region125: #{tpu_custom_call.1} parent=121 // loop_header_branch
                %781 = sbr.rel (%p779) target = $region129
              $region126: #{tpu_custom_call.1} parent=121 // loop_body
                %v785 = vld [vmem:[%s783] sm:%s776]
                %786 = vst [vmem:[%s784] sm:%s776] %v785
                %v787 = vld [vmem:[%s783 + $0x4] sm:%s776]
                %788 = vst [vmem:[%s784 + $0x4] sm:%s776] %v787
                %v789 = vld [vmem:[%s783 + $0x8] sm:%s776]
                %790 = vst [vmem:[%s784 + $0x8] sm:%s776] %v789
                %v791 = vld [vmem:[%s783 + $0xd8] sm:%s776]
                %792 = vst [vmem:[%s784 + $0xc] sm:%s776] %v791
                %v793 = vld [vmem:[%s783 + $0xdc] sm:%s776]
                %794 = vst [vmem:[%s784 + $0x10] sm:%s776] %v793
                %v795 = vld [vmem:[%s783 + $0xe0] sm:%s776]
                %796 = vst [vmem:[%s784 + $0x14] sm:%s776] %v795
                %v797 = vld [vmem:[%s783 + $0x1b0] sm:%s776]
                %798 = vst [vmem:[%s784 + $0x18] sm:%s776] %v797
                %v799 = vld [vmem:[%s783 + $0x1b4] sm:%s776]
                %800 = vst [vmem:[%s784 + $0x1c] sm:%s776] %v799
                %v801 = vld [vmem:[%s783 + $0x1b8] sm:%s776]
                %802 = vst [vmem:[%s784 + $0x20] sm:%s776] %v801
                %v803 = vld [vmem:[%s783 + $0x288] sm:%s776]
                %804 = vst [vmem:[%s784 + $0x24] sm:%s776] %v803
                %v805 = vld [vmem:[%s783 + $0x28c] sm:%s776]
                %806 = vst [vmem:[%s784 + $0x28] sm:%s776] %v805
                %v807 = vld [vmem:[%s783 + $0x290] sm:%s776]
                %808 = vst [vmem:[%s784 + $0x2c] sm:%s776] %v807
                %v809 = vld [vmem:[%s783 + $0x360] sm:%s776]
                %810 = vst [vmem:[%s784 + $0x30] sm:%s776] %v809
                %v811 = vld [vmem:[%s783 + $0x364] sm:%s776]
                %812 = vst [vmem:[%s784 + $0x34] sm:%s776] %v811
                %v813 = vld [vmem:[%s783 + $0x368] sm:%s776]
                %814 = vst [vmem:[%s784 + $0x38] sm:%s776] %v813
                %v815 = vld [vmem:[%s783 + $0x438] sm:%s776]
                %816 = vst [vmem:[%s784 + $0x3c] sm:%s776] %v815
                %v817 = vld [vmem:[%s783 + $0x43c] sm:%s776]
                %818 = vst [vmem:[%s784 + $0x40] sm:%s776] %v817
                %v819 = vld [vmem:[%s783 + $0x440] sm:%s776]
                %820 = vst [vmem:[%s784 + $0x44] sm:%s776] %v819
                %v821 = vld [vmem:[%s783 + $0x510] sm:%s776]
                %822 = vst [vmem:[%s784 + $0x48] sm:%s776] %v821
                %v823 = vld [vmem:[%s783 + $0x514] sm:%s776]
                %824 = vst [vmem:[%s784 + $0x4c] sm:%s776] %v823
                %v825 = vld [vmem:[%s783 + $0x518] sm:%s776]
                %826 = vst [vmem:[%s784 + $0x50] sm:%s776] %v825
                %v827 = vld [vmem:[%s783 + $0x5e8] sm:%s776]
                %828 = vst [vmem:[%s784 + $0x54] sm:%s776] %v827
                %v829 = vld [vmem:[%s783 + $0x5ec] sm:%s776]
                %830 = vst [vmem:[%s784 + $0x58] sm:%s776] %v829
                %v831 = vld [vmem:[%s783 + $0x5f0] sm:%s776]
                %832 = vst [vmem:[%s784 + $0x5c] sm:%s776] %v831
                %v833 = vld [vmem:[%s783 + $0x6c0] sm:%s776]
                %834 = vst [vmem:[%s784 + $0x60] sm:%s776] %v833
                %v835 = vld [vmem:[%s783 + $0x6c4] sm:%s776]
                %836 = vst [vmem:[%s784 + $0x64] sm:%s776] %v835
                %v837 = vld [vmem:[%s783 + $0x6c8] sm:%s776]
                %838 = vst [vmem:[%s784 + $0x68] sm:%s776] %v837
                %v839 = vld [vmem:[%s783 + $0x798] sm:%s776]
                %840 = vst [vmem:[%s784 + $0x6c] sm:%s776] %v839
                %v841 = vld [vmem:[%s783 + $0x79c] sm:%s776]
                %842 = vst [vmem:[%s784 + $0x70] sm:%s776] %v841
                %v843 = vld [vmem:[%s783 + $0x7a0] sm:%s776]
                %844 = vst [vmem:[%s784 + $0x74] sm:%s776] %v843
                %v845 = vld [vmem:[%s783 + $0x870] sm:%s776]
                %846 = vst [vmem:[%s784 + $0x78] sm:%s776] %v845
                %v847 = vld [vmem:[%s783 + $0x874] sm:%s776]
                %848 = vst [vmem:[%s784 + $0x7c] sm:%s776] %v847
                %v849 = vld [vmem:[%s783 + $0x878] sm:%s776]
                %850 = vst [vmem:[%s784 + $0x80] sm:%s776] %v849
                %v851 = vld [vmem:[%s783 + $0x948] sm:%s776]
                %852 = vst [vmem:[%s784 + $0x84] sm:%s776] %v851
                %v853 = vld [vmem:[%s783 + $0x94c] sm:%s776]
                %854 = vst [vmem:[%s784 + $0x88] sm:%s776] %v853
                %v855 = vld [vmem:[%s783 + $0x950] sm:%s776]
                %856 = vst [vmem:[%s784 + $0x8c] sm:%s776] %v855
                %v857 = vld [vmem:[%s783 + $0xa20] sm:%s776]
                %858 = vst [vmem:[%s784 + $0x90] sm:%s776] %v857
                %v859 = vld [vmem:[%s783 + $0xa24] sm:%s776]
                %860 = vst [vmem:[%s784 + $0x94] sm:%s776] %v859
                %v861 = vld [vmem:[%s783 + $0xa28] sm:%s776]
                %862 = vst [vmem:[%s784 + $0x98] sm:%s776] %v861
                %v863 = vld [vmem:[%s783 + $0xaf8] sm:%s776]
                %864 = vst [vmem:[%s784 + $0x9c] sm:%s776] %v863
                %v865 = vld [vmem:[%s783 + $0xafc] sm:%s776]
                %866 = vst [vmem:[%s784 + $0xa0] sm:%s776] %v865
                %v867 = vld [vmem:[%s783 + $0xb00] sm:%s776]
                %868 = vst [vmem:[%s784 + $0xa4] sm:%s776] %v867
                %v869 = vld [vmem:[%s783 + $0xbd0] sm:%s776]
                %870 = vst [vmem:[%s784 + $0xa8] sm:%s776] %v869
                %v871 = vld [vmem:[%s783 + $0xbd4] sm:%s776]
                %872 = vst [vmem:[%s784 + $0xac] sm:%s776] %v871
                %v873 = vld [vmem:[%s783 + $0xbd8] sm:%s776]
                %874 = vst [vmem:[%s784 + $0xb0] sm:%s776] %v873
                %v875 = vld [vmem:[%s783 + $0xca8] sm:%s776]
                %876 = vst [vmem:[%s784 + $0xb4] sm:%s776] %v875
                %v877 = vld [vmem:[%s783 + $0xcac] sm:%s776]
                %878 = vst [vmem:[%s784 + $0xb8] sm:%s776] %v877
                %v879 = vld [vmem:[%s783 + $0xcb0] sm:%s776]
                %880 = vst [vmem:[%s784 + $0xbc] sm:%s776] %v879
              $region127: #{tpu_custom_call.1} parent=121 // loop_footer
                %s782 = sadd.s32 1, %s778
              $region128: #{tpu_custom_call.1} parent=121 // loop_footer_branch
                %777 = sbr.rel target = $region124
              $region129: #{tpu_custom_call.1} parent=121 // loop_exit
                _
            $region122: #{tpu_custom_call.1} parent=113 // pred_fallthru
              _
          $region114: #{tpu_custom_call.1} parent=109 // pred_fallthru
            _
          %997 = vnop
        $region110: #{tpu_custom_call.1} parent=23 // pred_fallthru
          _
      $region24: #{tpu_custom_call.1} parent=5 // pred_fallthru
        _
      %p998 = scmp.le.s32.totalorder 1, %s19
      %p999 = scmp.lt.s32.totalorder %s19, 17
      %p1000 = pnand %p998, %p999
      %p1001 = pneg %p1000
      // Predicated region
      $region148: #{tpu_custom_call.1} parent=5 // pred_check
        _
      $region149: #{tpu_custom_call.1} parent=5 // pred_check_branch
        %1003 = sbr.rel (%p1000) target = $region151
      $region150: #{tpu_custom_call.1} parent=5 // pred_region
        %s1004 = ssub.s32 %s19, 1
        %s1005 = sand.u32 %s53, 1
        %s1006 = sand.u32 %s53, 1
        %s1007 = smul.addr %s1006, 192
        %s1008 = scalar_lea.vmem [#allocation3], %s1007
        // Predicated region
        $region152: #{tpu_custom_call.1} parent=150 // pred_check
          %p1009 = pneg %p66
        $region153: #{tpu_custom_call.1} parent=150 // pred_check_branch
          %1011 = sbr.rel (%p1009) target = $region155
        $region154: #{tpu_custom_call.1} parent=150 // pred_region
          _
        $region155: #{tpu_custom_call.1} parent=150 // pred_fallthru
          _
        %s1012 = sand.u32 %s83, 1
        %s1013 = sand.u32 %s83, 1
        %s1014 = smul.addr %s1013, 192
        %s1015 = scalar_lea.vmem [#allocation4], %s1014
        // Predicated region
        $region156: #{tpu_custom_call.1} parent=150 // pred_check
          %p1016 = pneg %p96
        $region157: #{tpu_custom_call.1} parent=150 // pred_check_branch
          %1018 = sbr.rel (%p1016) target = $region159
        $region158: #{tpu_custom_call.1} parent=150 // pred_region
          _
        $region159: #{tpu_custom_call.1} parent=150 // pred_fallthru
          _
        %s1019 = sand.u32 %s113, 1
        %s1020 = sand.u32 %s113, 1
        %s1021 = smul.addr %s1020, 192
        %s1022 = scalar_lea.vmem [#allocation5], %s1021
        // Predicated region
        $region160: #{tpu_custom_call.1} parent=150 // pred_check
          %p1023 = pneg %p126
        $region161: #{tpu_custom_call.1} parent=150 // pred_check_branch
          %1025 = sbr.rel (%p1023) target = $region163
        $region162: #{tpu_custom_call.1} parent=150 // pred_region
          _
        $region163: #{tpu_custom_call.1} parent=150 // pred_fallthru
          _
        %s1026 = sand.u32 %s53, 1
        %s1027 = sand.u32 %s53, 1
        %s1028 = smul.addr %s1027, 192
        %s1029 = scalar_lea.vmem [#allocation3], %s1028
        %p1030 = pneg %p66
        %p1031 = pneg %p63
        %s1032 = sand.u32 %s83, 1
        %s1033 = sand.u32 %s83, 1
        %s1034 = smul.addr %s1033, 192
        %s1035 = scalar_lea.vmem [#allocation4], %s1034
        %p1036 = pneg %p96
        %p1037 = pneg %p93
        %s1038 = sand.u32 %s113, 1
        %s1039 = sand.u32 %s113, 1
        %s1040 = smul.addr %s1039, 192
        %s1041 = scalar_lea.vmem [#allocation5], %s1040
        %p1042 = pneg %p126
        %p1043 = pneg %p123
        %p1044 = scmp.lt.s32.totalorder %s29, 0
        %s1045 = scalar_select %p1044, %s29, 0
        %s1046 = smul.addr %s1045, 2
        %s1047 = scalar_lea.vmem %s3, %s1046
        %p1048 = pneg %p152
        %p1049 = pneg %p149
        %p1050 = scmp.lt.s32.totalorder %s29, 0
        %s1051 = scalar_select %p1050, %s29, 0
        %s1052 = scalar_lea.vmem %s4, %s1051
        %p1053 = pneg %p178
        %p1054 = pneg %p175
        %p1055 = pneg %p208
        %p1056 = pneg %p205
        %s1057 = sand.u32 %s195, 1
        %s1058 = scalar_lea.sflag [#allocation7], %s1057
        %s1059 = sand.u32 %s195, 1
        %s1060 = smul.addr %s1059, 128
        %s1061 = scalar_lea.vmem [#allocation6], %s1060
        %p1062 = pneg %p238
        %p1063 = pneg %p235
        %s1064 = sand.u32 %s225, 1
        %s1065 = scalar_lea.sflag [#allocation9], %s1064
        %s1066 = sand.u32 %s225, 1
        %s1067 = smul.addr %s1066, 2
        %s1068 = scalar_lea.vmem [#allocation8], %s1067
        %s1069 = smul.u32 16, %s30
        %s1070 = sadd.s32 %s31, 1
        %s1071 = smul.u32 16, %s30
        %s1072 = sadd.s32 %s31, 2
        %s1073 = smul.u32 16, %s30
        %p1074 = scmp.lt.s32.totalorder %s29, 0
        %s1075 = scalar_select %p1074, %s29, 0
        %s1076 = smul.addr %s1075, 2
        %s1077 = scalar_lea.vmem %s3, %s1076
        %p1078 = scmp.lt.s32.totalorder %s29, 0
        %s1079 = scalar_select %p1078, %s29, 0
        %s1080 = scalar_lea.vmem %s4, %s1079
        %s1081 = smul.u32 16, %s30
        %v1083 = vld [vmem:[%s1008] sm:$0xf]
        %v1084 = vld [vmem:[%s1008 + $0x4] sm:$0xf]
        %v1085 = vld [vmem:[%s1008 + $0xc] sm:$0xf]
        %v1086 = vld [vmem:[%s1008 + $0x10] sm:$0xf]
        %v1087 = vld [vmem:[%s1008 + $0x18] sm:$0xf]
        %v1088 = vld [vmem:[%s1008 + $0x1c] sm:$0xf]
        %v1089 = vld [vmem:[%s1008 + $0x24] sm:$0xf]
        %v1090 = vld [vmem:[%s1008 + $0x28] sm:$0xf]
        %v1091 = vld [vmem:[%s1008 + $0x30] sm:$0xf]
        %v1092 = vld [vmem:[%s1008 + $0x34] sm:$0xf]
        %v1093 = vld [vmem:[%s1008 + $0x3c] sm:$0xf]
        %v1094 = vld [vmem:[%s1008 + $0x40] sm:$0xf]
        %v1095 = vld [vmem:[%s1008 + $0x48] sm:$0xf]
        %v1096 = vld [vmem:[%s1008 + $0x4c] sm:$0xf]
        %v1097 = vld [vmem:[%s1008 + $0x54] sm:$0xf]
        %v1098 = vld [vmem:[%s1008 + $0x58] sm:$0xf]
        %v1099 = vld [vmem:[%s1008 + $0x60] sm:$0xf]
        %v1100 = vld [vmem:[%s1008 + $0x64] sm:$0xf]
        %v1101 = vld [vmem:[%s1008 + $0x6c] sm:$0xf]
        %v1102 = vld [vmem:[%s1008 + $0x70] sm:$0xf]
        %v1103 = vld [vmem:[%s1008 + $0x78] sm:$0xf]
        %v1104 = vld [vmem:[%s1008 + $0x7c] sm:$0xf]
        %v1105 = vld [vmem:[%s1008 + $0x84] sm:$0xf]
        %v1106 = vld [vmem:[%s1008 + $0x88] sm:$0xf]
        %v1107 = vld [vmem:[%s1008 + $0x90] sm:$0xf]
        %v1108 = vld [vmem:[%s1008 + $0x94] sm:$0xf]
        %v1109 = vld [vmem:[%s1008 + $0x9c] sm:$0xf]
        %v1110 = vld [vmem:[%s1008 + $0xa0] sm:$0xf]
        %v1111 = vld [vmem:[%s1008 + $0xa8] sm:$0xf]
        %v1112 = vld [vmem:[%s1008 + $0xac] sm:$0xf]
        %v1113 = vld [vmem:[%s1008 + $0xb4] sm:$0xf]
        %v1114 = vld [vmem:[%s1008 + $0xb8] sm:$0xf]
        %v1115 = vld [vmem:[%s1077] sm:$0x3]
        %v1148 = vunpack.c.l.b16 %v1083
        %v1149 = vunpack.c.l.b16 %v1084
        %v1150 = vunpack.c.l.b16 %v1085
        %v1151 = vunpack.c.l.b16 %v1086
        %v1152 = vunpack.c.l.b16 %v1087
        %v1153 = vunpack.c.l.b16 %v1088
        %v1154 = vunpack.c.l.b16 %v1089
        %v1155 = vunpack.c.l.b16 %v1090
        %v1156 = vunpack.c.l.b16 %v1091
        %v1157 = vunpack.c.l.b16 %v1092
        %v1158 = vunpack.c.l.b16 %v1093
        %v1159 = vunpack.c.l.b16 %v1094
        %v1160 = vunpack.c.l.b16 %v1095
        %v1161 = vunpack.c.l.b16 %v1096
        %v1162 = vunpack.c.l.b16 %v1097
        %v1163 = vunpack.c.l.b16 %v1098
        %v1164 = vunpack.c.l.b16 %v1099
        %v1165 = vunpack.c.l.b16 %v1100
        %v1166 = vunpack.c.l.b16 %v1101
        %v1167 = vunpack.c.l.b16 %v1102
        %v1168 = vunpack.c.l.b16 %v1103
        %v1169 = vunpack.c.l.b16 %v1104
        %v1170 = vunpack.c.l.b16 %v1105
        %v1171 = vunpack.c.l.b16 %v1106
        %v1172 = vunpack.c.l.b16 %v1107
        %v1173 = vunpack.c.l.b16 %v1108
        %v1174 = vunpack.c.l.b16 %v1109
        %v1175 = vunpack.c.l.b16 %v1110
        %v1176 = vunpack.c.l.b16 %v1111
        %v1177 = vunpack.c.l.b16 %v1112
        %v1178 = vunpack.c.l.b16 %v1113
        %v1179 = vunpack.c.l.b16 %v1114
        %v1180 = vpack.c.b16 %v1149, %v1148
        %v1181 = vpack.c.b16 %v1151, %v1150
        %v1182 = vpack.c.b16 %v1153, %v1152
        %v1183 = vpack.c.b16 %v1155, %v1154
        %v1184 = vpack.c.b16 %v1157, %v1156
        %v1185 = vpack.c.b16 %v1159, %v1158
        %v1186 = vpack.c.b16 %v1161, %v1160
        %v1187 = vpack.c.b16 %v1163, %v1162
        %v1188 = vpack.c.b16 %v1165, %v1164
        %v1189 = vpack.c.b16 %v1167, %v1166
        %v1190 = vpack.c.b16 %v1169, %v1168
        %v1191 = vpack.c.b16 %v1171, %v1170
        %v1192 = vpack.c.b16 %v1173, %v1172
        %v1193 = vpack.c.b16 %v1175, %v1174
        %v1194 = vpack.c.b16 %v1177, %v1176
        %v1195 = vpack.c.b16 %v1179, %v1178
        %vm1196 = vcmask 31744
        %v1198 = vsel %vm1196, %v1180, 0
        %v1201 = vsel %vm1196, %v1181, 0
        %v1204 = vsel %vm1196, %v1182, 0
        %v1207 = vsel %vm1196, %v1183, 0
        %v1210 = vsel %vm1196, %v1184, 0
        %v1213 = vsel %vm1196, %v1185, 0
        %v1216 = vsel %vm1196, %v1186, 0
        %v1219 = vsel %vm1196, %v1187, 0
        %v1222 = vsel %vm1196, %v1188, 0
        %v1225 = vsel %vm1196, %v1189, 0
        %v1228 = vsel %vm1196, %v1190, 0
        %v1231 = vsel %vm1196, %v1191, 0
        %v1234 = vsel %vm1196, %v1192, 0
        %v1237 = vsel %vm1196, %v1193, 0
        %v1240 = vsel %vm1196, %v1194, 0
        %v1243 = vsel %vm1196, %v1195, 0
        %vm1245 = vcmask 1041408
        %v1247 = vsel %vm1245, %v1115, 0
        %1249 = vmatprep.subr.bf16.mxu0 0
        %1250 = vmatpush1.bf16.msra.mxu0 0
        %1251 = vmatprep.subr.bf16.mxu0 0
        %1252 = vmatpush1.bf16.msra.mxu0 0
        %1253 = vmatprep.subr.bf16.mxu0 0
        %1254 = vmatpush1.bf16.msra.mxu0 0
        %1255 = vmatprep.subr.bf16.mxu0 0
        %1256 = vmatpush1.bf16.msra.mxu0 0
        %1257 = vmatprep.subr.bf16.mxu0 0
        %1258 = vmatpush1.bf16.msra.mxu0 0
        %1259 = vmatprep.subr.bf16.mxu0 0
        %1260 = vmatpush1.bf16.msra.mxu0 0
        %1261 = vmatprep.subr.bf16.mxu0 0
        %1262 = vmatpush1.bf16.msra.mxu0 0
        %1263 = vmatprep.subr.bf16.mxu0 0
        %1264 = vmatpush1.bf16.msra.mxu0 %v1247
        %1265 = vmatprep.subr.bf16.mxu0 0
        %1266 = vmatpush2.bf16.msra.mxu0 0
        %1267 = vmatprep.subr.bf16.mxu0 0
        %1268 = vmatpush2.bf16.msra.mxu0 0
        %1269 = vmatprep.subr.bf16.mxu0 0
        %1270 = vmatpush2.bf16.msra.mxu0 0
        %1271 = vmatprep.subr.bf16.mxu0 0
        %1272 = vmatpush2.bf16.msra.mxu0 0
        %1273 = vmatprep.subr.bf16.mxu0 0
        %1274 = vmatpush2.bf16.msra.mxu0 0
        %1275 = vmatprep.subr.bf16.mxu0 0
        %1276 = vmatpush2.bf16.msra.mxu0 0
        %1277 = vmatprep.subr.bf16.mxu0 0
        %1278 = vmatpush2.bf16.msra.mxu0 0
        %1279 = vmatprep.subr.bf16.mxu0 0
        %1280 = vmatpush2.bf16.msra.mxu0 0
        %1281 = vmatprep.mubr.bf16.mxu0 0
        %1282 = vmatmul.mubr.bf16.gmra.mxu0 %v1198
        %v1283 = vpop.f32.mrf.mxu0
        %v1284 = vadd.f32 0.0, %v1283
        %v1285 = vpop.f32.mrf.mxu0
        %v1286 = vpop.f32.mrf.mxu0
        %v1287 = vadd.f32 0.0, %v1286
        %v1288 = vpop.f32.mrf.mxu0
        %1289 = vmatprep.mubr.bf16.mxu0 0
        %1290 = vmatmul.mubr.bf16.gmra.mxu0 %v1201
        %v1291 = vpop.f32.mrf.mxu0
        %v1292 = vadd.f32 0.0, %v1291
        %v1293 = vpop.f32.mrf.mxu0
        %v1294 = vpop.f32.mrf.mxu0
        %v1295 = vadd.f32 0.0, %v1294
        %v1296 = vpop.f32.mrf.mxu0
        %1297 = vmatprep.mubr.bf16.mxu0 0
        %1298 = vmatmul.mubr.bf16.gmra.mxu0 %v1204
        %v1299 = vpop.f32.mrf.mxu0
        %v1300 = vadd.f32 0.0, %v1299
        %v1301 = vpop.f32.mrf.mxu0
        %v1302 = vpop.f32.mrf.mxu0
        %v1303 = vadd.f32 0.0, %v1302
        %v1304 = vpop.f32.mrf.mxu0
        %1305 = vmatprep.mubr.bf16.mxu0 0
        %1306 = vmatmul.mubr.bf16.gmra.mxu0 %v1207
        %v1307 = vpop.f32.mrf.mxu0
        %v1308 = vadd.f32 0.0, %v1307
        %v1309 = vpop.f32.mrf.mxu0
        %v1310 = vpop.f32.mrf.mxu0
        %v1311 = vadd.f32 0.0, %v1310
        %v1312 = vpop.f32.mrf.mxu0
        %1313 = vmatprep.mubr.bf16.mxu0 0
        %1314 = vmatmul.mubr.bf16.gmra.mxu0 %v1210
        %v1315 = vpop.f32.mrf.mxu0
        %v1316 = vadd.f32 0.0, %v1315
        %v1317 = vpop.f32.mrf.mxu0
        %v1318 = vpop.f32.mrf.mxu0
        %v1319 = vadd.f32 0.0, %v1318
        %v1320 = vpop.f32.mrf.mxu0
        %1321 = vmatprep.mubr.bf16.mxu0 0
        %1322 = vmatmul.mubr.bf16.gmra.mxu0 %v1213
        %v1323 = vpop.f32.mrf.mxu0
        %v1324 = vadd.f32 0.0, %v1323
        %v1325 = vpop.f32.mrf.mxu0
        %v1326 = vpop.f32.mrf.mxu0
        %v1327 = vadd.f32 0.0, %v1326
        %v1328 = vpop.f32.mrf.mxu0
        %1329 = vmatprep.mubr.bf16.mxu0 0
        %1330 = vmatmul.mubr.bf16.gmra.mxu0 %v1216
        %v1331 = vpop.f32.mrf.mxu0
        %v1332 = vadd.f32 0.0, %v1331
        %v1333 = vpop.f32.mrf.mxu0
        %v1334 = vpop.f32.mrf.mxu0
        %v1335 = vadd.f32 0.0, %v1334
        %v1336 = vpop.f32.mrf.mxu0
        %1337 = vmatprep.mubr.bf16.mxu0 0
        %1338 = vmatmul.mubr.bf16.gmra.mxu0 %v1219
        %v1339 = vpop.f32.mrf.mxu0
        %v1340 = vadd.f32 0.0, %v1339
        %v1341 = vpop.f32.mrf.mxu0
        %v1342 = vpop.f32.mrf.mxu0
        %v1343 = vadd.f32 0.0, %v1342
        %v1344 = vpop.f32.mrf.mxu0
        %1345 = vmatprep.mubr.bf16.mxu0 0
        %1346 = vmatmul.mubr.bf16.gmra.mxu0 %v1222
        %v1347 = vpop.f32.mrf.mxu0
        %v1348 = vadd.f32 0.0, %v1347
        %v1349 = vpop.f32.mrf.mxu0
        %v1350 = vpop.f32.mrf.mxu0
        %v1351 = vadd.f32 0.0, %v1350
        %v1352 = vpop.f32.mrf.mxu0
        %1353 = vmatprep.mubr.bf16.mxu0 0
        %1354 = vmatmul.mubr.bf16.gmra.mxu0 %v1225
        %v1355 = vpop.f32.mrf.mxu0
        %v1356 = vadd.f32 0.0, %v1355
        %v1357 = vpop.f32.mrf.mxu0
        %v1358 = vpop.f32.mrf.mxu0
        %v1359 = vadd.f32 0.0, %v1358
        %v1360 = vpop.f32.mrf.mxu0
        %1361 = vmatprep.mubr.bf16.mxu0 0
        %1362 = vmatmul.mubr.bf16.gmra.mxu0 %v1228
        %v1363 = vpop.f32.mrf.mxu0
        %v1364 = vadd.f32 0.0, %v1363
        %v1365 = vpop.f32.mrf.mxu0
        %v1366 = vpop.f32.mrf.mxu0
        %v1367 = vadd.f32 0.0, %v1366
        %v1368 = vpop.f32.mrf.mxu0
        %1369 = vmatprep.mubr.bf16.mxu0 0
        %1370 = vmatmul.mubr.bf16.gmra.mxu0 %v1231
        %v1371 = vpop.f32.mrf.mxu0
        %v1372 = vadd.f32 0.0, %v1371
        %v1373 = vpop.f32.mrf.mxu0
        %v1374 = vpop.f32.mrf.mxu0
        %v1375 = vadd.f32 0.0, %v1374
        %v1376 = vpop.f32.mrf.mxu0
        %1377 = vmatprep.mubr.bf16.mxu0 0
        %1378 = vmatmul.mubr.bf16.gmra.mxu0 %v1234
        %v1379 = vpop.f32.mrf.mxu0
        %v1380 = vadd.f32 0.0, %v1379
        %v1381 = vpop.f32.mrf.mxu0
        %v1382 = vpop.f32.mrf.mxu0
        %v1383 = vadd.f32 0.0, %v1382
        %v1384 = vpop.f32.mrf.mxu0
        %1385 = vmatprep.mubr.bf16.mxu0 0
        %1386 = vmatmul.mubr.bf16.gmra.mxu0 %v1237
        %v1387 = vpop.f32.mrf.mxu0
        %v1388 = vadd.f32 0.0, %v1387
        %v1389 = vpop.f32.mrf.mxu0
        %v1390 = vpop.f32.mrf.mxu0
        %v1391 = vadd.f32 0.0, %v1390
        %v1392 = vpop.f32.mrf.mxu0
        %1393 = vmatprep.mubr.bf16.mxu0 0
        %1394 = vmatmul.mubr.bf16.gmra.mxu0 %v1240
        %v1395 = vpop.f32.mrf.mxu0
        %v1396 = vadd.f32 0.0, %v1395
        %v1397 = vpop.f32.mrf.mxu0
        %v1398 = vpop.f32.mrf.mxu0
        %v1399 = vadd.f32 0.0, %v1398
        %v1400 = vpop.f32.mrf.mxu0
        %1401 = vmatprep.mubr.bf16.mxu0 0
        %1402 = vmatmul.mubr.bf16.gmra.mxu0 %v1243
        %v1403 = vpop.f32.mrf.mxu0
        %v1404 = vadd.f32 0.0, %v1403
        %v1405 = vpop.f32.mrf.mxu0
        %v1406 = vpop.f32.mrf.mxu0
        %v1407 = vadd.f32 0.0, %v1406
        %v1408 = vpop.f32.mrf.mxu0
        %1409 = vdwg.mxu0
        %1410 = vst [vmem:[#allocation2] sm:$0xff] %v1284
        %1411 = vst [vmem:[#allocation2 + $0x8] sm:$0xff] %v1287
        %1412 = vst [vmem:[#allocation2 + $0x10] sm:$0xff] %v1292
        %1413 = vst [vmem:[#allocation2 + $0x18] sm:$0xff] %v1295
        %1414 = vst [vmem:[#allocation2 + $0x20] sm:$0xff] %v1300
        %1415 = vst [vmem:[#allocation2 + $0x28] sm:$0xff] %v1303
        %1416 = vst [vmem:[#allocation2 + $0x30] sm:$0xff] %v1308
        %1417 = vst [vmem:[#allocation2 + $0x38] sm:$0xff] %v1311
        %1418 = vst [vmem:[#allocation2 + $0x40] sm:$0xff] %v1316
        %1419 = vst [vmem:[#allocation2 + $0x48] sm:$0xff] %v1319
        %1420 = vst [vmem:[#allocation2 + $0x50] sm:$0xff] %v1324
        %1421 = vst [vmem:[#allocation2 + $0x58] sm:$0xff] %v1327
        %1422 = vst [vmem:[#allocation2 + $0x60] sm:$0xff] %v1332
        %1423 = vst [vmem:[#allocation2 + $0x68] sm:$0xff] %v1335
        %1424 = vst [vmem:[#allocation2 + $0x70] sm:$0xff] %v1340
        %1425 = vst [vmem:[#allocation2 + $0x78] sm:$0xff] %v1343
        %1426 = vst [vmem:[#allocation2 + $0x80] sm:$0xff] %v1348
        %1427 = vst [vmem:[#allocation2 + $0x88] sm:$0xff] %v1351
        %1428 = vst [vmem:[#allocation2 + $0x90] sm:$0xff] %v1356
        %1429 = vst [vmem:[#allocation2 + $0x98] sm:$0xff] %v1359
        %1430 = vst [vmem:[#allocation2 + $0xa0] sm:$0xff] %v1364
        %1431 = vst [vmem:[#allocation2 + $0xa8] sm:$0xff] %v1367
        %1432 = vst [vmem:[#allocation2 + $0xb0] sm:$0xff] %v1372
        %1433 = vst [vmem:[#allocation2 + $0xb8] sm:$0xff] %v1375
        %1434 = vst [vmem:[#allocation2 + $0xc0] sm:$0xff] %v1380
        %1435 = vst [vmem:[#allocation2 + $0xc8] sm:$0xff] %v1383
        %1436 = vst [vmem:[#allocation2 + $0xd0] sm:$0xff] %v1388
        %1437 = vst [vmem:[#allocation2 + $0xd8] sm:$0xff] %v1391
        %1438 = vst [vmem:[#allocation2 + $0xe0] sm:$0xff] %v1396
        %1439 = vst [vmem:[#allocation2 + $0xe8] sm:$0xff] %v1399
        %1440 = vst [vmem:[#allocation2 + $0xf0] sm:$0xff] %v1404
        %1441 = vst [vmem:[#allocation2 + $0xf8] sm:$0xff] %v1407
        %v1442 = vld [vmem:[%s1008] sm:$0xf]
        %v1443 = vld [vmem:[%s1008 + $0x4] sm:$0xf]
        %v1444 = vld [vmem:[%s1008 + $0x8] sm:$0x1]
        %v1445 = vld [vmem:[%s1008 + $0xc] sm:$0xf]
        %v1446 = vld [vmem:[%s1008 + $0x10] sm:$0xf]
        %v1447 = vld [vmem:[%s1008 + $0x14] sm:$0x1]
        %v1448 = vld [vmem:[%s1008 + $0x18] sm:$0xf]
        %v1449 = vld [vmem:[%s1008 + $0x1c] sm:$0xf]
        %v1450 = vld [vmem:[%s1008 + $0x20] sm:$0x1]
        %v1451 = vld [vmem:[%s1008 + $0x24] sm:$0xf]
        %v1452 = vld [vmem:[%s1008 + $0x28] sm:$0xf]
        %v1453 = vld [vmem:[%s1008 + $0x2c] sm:$0x1]
        %v1454 = vld [vmem:[%s1008 + $0x30] sm:$0xf]
        %v1455 = vld [vmem:[%s1008 + $0x34] sm:$0xf]
        %v1456 = vld [vmem:[%s1008 + $0x38] sm:$0x1]
        %v1457 = vld [vmem:[%s1008 + $0x3c] sm:$0xf]
        %v1458 = vld [vmem:[%s1008 + $0x40] sm:$0xf]
        %v1459 = vld [vmem:[%s1008 + $0x44] sm:$0x1]
        %v1460 = vld [vmem:[%s1008 + $0x48] sm:$0xf]
        %v1461 = vld [vmem:[%s1008 + $0x4c] sm:$0xf]
        %v1462 = vld [vmem:[%s1008 + $0x50] sm:$0x1]
        %v1463 = vld [vmem:[%s1008 + $0x54] sm:$0xf]
        %v1464 = vld [vmem:[%s1008 + $0x58] sm:$0xf]
        %v1465 = vld [vmem:[%s1008 + $0x5c] sm:$0x1]
        %v1466 = vld [vmem:[%s1008 + $0x60] sm:$0xf]
        %v1467 = vld [vmem:[%s1008 + $0x64] sm:$0xf]
        %v1468 = vld [vmem:[%s1008 + $0x68] sm:$0x1]
        %v1469 = vld [vmem:[%s1008 + $0x6c] sm:$0xf]
        %v1470 = vld [vmem:[%s1008 + $0x70] sm:$0xf]
        %v1471 = vld [vmem:[%s1008 + $0x74] sm:$0x1]
        %v1472 = vld [vmem:[%s1008 + $0x78] sm:$0xf]
        %v1473 = vld [vmem:[%s1008 + $0x7c] sm:$0xf]
        %v1474 = vld [vmem:[%s1008 + $0x80] sm:$0x1]
        %v1475 = vld [vmem:[%s1008 + $0x84] sm:$0xf]
        %v1476 = vld [vmem:[%s1008 + $0x88] sm:$0xf]
        %v1477 = vld [vmem:[%s1008 + $0x8c] sm:$0x1]
        %v1478 = vld [vmem:[%s1008 + $0x90] sm:$0xf]
        %v1479 = vld [vmem:[%s1008 + $0x94] sm:$0xf]
        %v1480 = vld [vmem:[%s1008 + $0x98] sm:$0x1]
        %v1481 = vld [vmem:[%s1008 + $0x9c] sm:$0xf]
        %v1482 = vld [vmem:[%s1008 + $0xa0] sm:$0xf]
        %v1483 = vld [vmem:[%s1008 + $0xa4] sm:$0x1]
        %v1484 = vld [vmem:[%s1008 + $0xa8] sm:$0xf]
        %v1485 = vld [vmem:[%s1008 + $0xac] sm:$0xf]
        %v1486 = vld [vmem:[%s1008 + $0xb0] sm:$0x1]
        %v1487 = vld [vmem:[%s1008 + $0xb4] sm:$0xf]
        %v1488 = vld [vmem:[%s1008 + $0xb8] sm:$0xf]
        %v1489 = vld [vmem:[%s1008 + $0xbc] sm:$0x1]
        %vm1490 = vsmask.f32 3328
        %vm1491 = vsmask.f32 7440
        %vm1492 = vmor %vm1490, %vm1491
        %v1494 = vshrl.u32 %v1442, 16
        %v1496 = vrot.slane %v1494, 4
        %v1497 = vshll.u32 %v1442, 16
        %v1499 = vrot.slane %v1497, 5
        %v1500 = vor.u32 %v1496, %v1499
        %v1501 = vrot.slane %v1500, 4
        %v1503 = vshll.u32 %v1443, 16
        %v1505 = vrot.slane %v1503, 5
        %v1506 = vsel %vm1492, %v1501, %v1505
        %v1507 = vshrl.u32 %v1443, 16
        %v1509 = vrot.slane %v1507, 4
        %v1510 = vor.u32 %v1509, %v1505
        %v1511 = vrot.slane %v1510, 4
        %v1513 = vshll.u32 %v1444, 16
        %v1515 = vrot.slane %v1513, 5
        %v1516 = vsel %vm1492, %v1511, %v1515
        %v1518 = vshrl.u32 %v1445, 16
        %v1520 = vrot.slane %v1518, 4
        %v1521 = vshll.u32 %v1445, 16
        %v1523 = vrot.slane %v1521, 5
        %v1524 = vor.u32 %v1520, %v1523
        %v1525 = vrot.slane %v1524, 4
        %v1527 = vshll.u32 %v1446, 16
        %v1529 = vrot.slane %v1527, 5
        %v1530 = vsel %vm1492, %v1525, %v1529
        %v1531 = vshrl.u32 %v1446, 16
        %v1533 = vrot.slane %v1531, 4
        %v1534 = vor.u32 %v1533, %v1529
        %v1535 = vrot.slane %v1534, 4
        %v1537 = vshll.u32 %v1447, 16
        %v1539 = vrot.slane %v1537, 5
        %v1540 = vsel %vm1492, %v1535, %v1539
        %v1542 = vshrl.u32 %v1448, 16
        %v1544 = vrot.slane %v1542, 4
        %v1545 = vshll.u32 %v1448, 16
        %v1547 = vrot.slane %v1545, 5
        %v1548 = vor.u32 %v1544, %v1547
        %v1549 = vrot.slane %v1548, 4
        %v1551 = vshll.u32 %v1449, 16
        %v1553 = vrot.slane %v1551, 5
        %v1554 = vsel %vm1492, %v1549, %v1553
        %v1555 = vshrl.u32 %v1449, 16
        %v1557 = vrot.slane %v1555, 4
        %v1558 = vor.u32 %v1557, %v1553
        %v1559 = vrot.slane %v1558, 4
        %v1561 = vshll.u32 %v1450, 16
        %v1563 = vrot.slane %v1561, 5
        %v1564 = vsel %vm1492, %v1559, %v1563
        %v1566 = vshrl.u32 %v1451, 16
        %v1568 = vrot.slane %v1566, 4
        %v1569 = vshll.u32 %v1451, 16
        %v1571 = vrot.slane %v1569, 5
        %v1572 = vor.u32 %v1568, %v1571
        %v1573 = vrot.slane %v1572, 4
        %v1575 = vshll.u32 %v1452, 16
        %v1577 = vrot.slane %v1575, 5
        %v1578 = vsel %vm1492, %v1573, %v1577
        %v1579 = vshrl.u32 %v1452, 16
        %v1581 = vrot.slane %v1579, 4
        %v1582 = vor.u32 %v1581, %v1577
        %v1583 = vrot.slane %v1582, 4
        %v1585 = vshll.u32 %v1453, 16
        %v1587 = vrot.slane %v1585, 5
        %v1588 = vsel %vm1492, %v1583, %v1587
        %v1590 = vshrl.u32 %v1454, 16
        %v1592 = vrot.slane %v1590, 4
        %v1593 = vshll.u32 %v1454, 16
        %v1595 = vrot.slane %v1593, 5
        %v1596 = vor.u32 %v1592, %v1595
        %v1597 = vrot.slane %v1596, 4
        %v1599 = vshll.u32 %v1455, 16
        %v1601 = vrot.slane %v1599, 5
        %v1602 = vsel %vm1492, %v1597, %v1601
        %v1603 = vshrl.u32 %v1455, 16
        %v1605 = vrot.slane %v1603, 4
        %v1606 = vor.u32 %v1605, %v1601
        %v1607 = vrot.slane %v1606, 4
        %v1609 = vshll.u32 %v1456, 16
        %v1611 = vrot.slane %v1609, 5
        %v1612 = vsel %vm1492, %v1607, %v1611
        %v1614 = vshrl.u32 %v1457, 16
        %v1616 = vrot.slane %v1614, 4
        %v1617 = vshll.u32 %v1457, 16
        %v1619 = vrot.slane %v1617, 5
        %v1620 = vor.u32 %v1616, %v1619
        %v1621 = vrot.slane %v1620, 4
        %v1623 = vshll.u32 %v1458, 16
        %v1625 = vrot.slane %v1623, 5
        %v1626 = vsel %vm1492, %v1621, %v1625
        %v1627 = vshrl.u32 %v1458, 16
        %v1629 = vrot.slane %v1627, 4
        %v1630 = vor.u32 %v1629, %v1625
        %v1631 = vrot.slane %v1630, 4
        %v1633 = vshll.u32 %v1459, 16
        %v1635 = vrot.slane %v1633, 5
        %v1636 = vsel %vm1492, %v1631, %v1635
        %v1638 = vshrl.u32 %v1460, 16
        %v1640 = vrot.slane %v1638, 4
        %v1641 = vshll.u32 %v1460, 16
        %v1643 = vrot.slane %v1641, 5
        %v1644 = vor.u32 %v1640, %v1643
        %v1645 = vrot.slane %v1644, 4
        %v1647 = vshll.u32 %v1461, 16
        %v1649 = vrot.slane %v1647, 5
        %v1650 = vsel %vm1492, %v1645, %v1649
        %v1651 = vshrl.u32 %v1461, 16
        %v1653 = vrot.slane %v1651, 4
        %v1654 = vor.u32 %v1653, %v1649
        %v1655 = vrot.slane %v1654, 4
        %v1657 = vshll.u32 %v1462, 16
        %v1659 = vrot.slane %v1657, 5
        %v1660 = vsel %vm1492, %v1655, %v1659
        %v1662 = vshrl.u32 %v1463, 16
        %v1664 = vrot.slane %v1662, 4
        %v1665 = vshll.u32 %v1463, 16
        %v1667 = vrot.slane %v1665, 5
        %v1668 = vor.u32 %v1664, %v1667
        %v1669 = vrot.slane %v1668, 4
        %v1671 = vshll.u32 %v1464, 16
        %v1673 = vrot.slane %v1671, 5
        %v1674 = vsel %vm1492, %v1669, %v1673
        %v1675 = vshrl.u32 %v1464, 16
        %v1677 = vrot.slane %v1675, 4
        %v1678 = vor.u32 %v1677, %v1673
        %v1679 = vrot.slane %v1678, 4
        %v1681 = vshll.u32 %v1465, 16
        %v1683 = vrot.slane %v1681, 5
        %v1684 = vsel %vm1492, %v1679, %v1683
        %v1686 = vshrl.u32 %v1466, 16
        %v1688 = vrot.slane %v1686, 4
        %v1689 = vshll.u32 %v1466, 16
        %v1691 = vrot.slane %v1689, 5
        %v1692 = vor.u32 %v1688, %v1691
        %v1693 = vrot.slane %v1692, 4
        %v1695 = vshll.u32 %v1467, 16
        %v1697 = vrot.slane %v1695, 5
        %v1698 = vsel %vm1492, %v1693, %v1697
        %v1699 = vshrl.u32 %v1467, 16
        %v1701 = vrot.slane %v1699, 4
        %v1702 = vor.u32 %v1701, %v1697
        %v1703 = vrot.slane %v1702, 4
        %v1705 = vshll.u32 %v1468, 16
        %v1707 = vrot.slane %v1705, 5
        %v1708 = vsel %vm1492, %v1703, %v1707
        %v1710 = vshrl.u32 %v1469, 16
        %v1712 = vrot.slane %v1710, 4
        %v1713 = vshll.u32 %v1469, 16
        %v1715 = vrot.slane %v1713, 5
        %v1716 = vor.u32 %v1712, %v1715
        %v1717 = vrot.slane %v1716, 4
        %v1719 = vshll.u32 %v1470, 16
        %v1721 = vrot.slane %v1719, 5
        %v1722 = vsel %vm1492, %v1717, %v1721
        %v1723 = vshrl.u32 %v1470, 16
        %v1725 = vrot.slane %v1723, 4
        %v1726 = vor.u32 %v1725, %v1721
        %v1727 = vrot.slane %v1726, 4
        %v1729 = vshll.u32 %v1471, 16
        %v1731 = vrot.slane %v1729, 5
        %v1732 = vsel %vm1492, %v1727, %v1731
        %v1734 = vshrl.u32 %v1472, 16
        %v1736 = vrot.slane %v1734, 4
        %v1737 = vshll.u32 %v1472, 16
        %v1739 = vrot.slane %v1737, 5
        %v1740 = vor.u32 %v1736, %v1739
        %v1741 = vrot.slane %v1740, 4
        %v1743 = vshll.u32 %v1473, 16
        %v1745 = vrot.slane %v1743, 5
        %v1746 = vsel %vm1492, %v1741, %v1745
        %v1747 = vshrl.u32 %v1473, 16
        %v1749 = vrot.slane %v1747, 4
        %v1750 = vor.u32 %v1749, %v1745
        %v1751 = vrot.slane %v1750, 4
        %v1753 = vshll.u32 %v1474, 16
        %v1755 = vrot.slane %v1753, 5
        %v1756 = vsel %vm1492, %v1751, %v1755
        %v1758 = vshrl.u32 %v1475, 16
        %v1760 = vrot.slane %v1758, 4
        %v1761 = vshll.u32 %v1475, 16
        %v1763 = vrot.slane %v1761, 5
        %v1764 = vor.u32 %v1760, %v1763
        %v1765 = vrot.slane %v1764, 4
        %v1767 = vshll.u32 %v1476, 16
        %v1769 = vrot.slane %v1767, 5
        %v1770 = vsel %vm1492, %v1765, %v1769
        %v1771 = vshrl.u32 %v1476, 16
        %v1773 = vrot.slane %v1771, 4
        %v1774 = vor.u32 %v1773, %v1769
        %v1775 = vrot.slane %v1774, 4
        %v1777 = vshll.u32 %v1477, 16
        %v1779 = vrot.slane %v1777, 5
        %v1780 = vsel %vm1492, %v1775, %v1779
        %v1782 = vshrl.u32 %v1478, 16
        %v1784 = vrot.slane %v1782, 4
        %v1785 = vshll.u32 %v1478, 16
        %v1787 = vrot.slane %v1785, 5
        %v1788 = vor.u32 %v1784, %v1787
        %v1789 = vrot.slane %v1788, 4
        %v1791 = vshll.u32 %v1479, 16
        %v1793 = vrot.slane %v1791, 5
        %v1794 = vsel %vm1492, %v1789, %v1793
        %v1795 = vshrl.u32 %v1479, 16
        %v1797 = vrot.slane %v1795, 4
        %v1798 = vor.u32 %v1797, %v1793
        %v1799 = vrot.slane %v1798, 4
        %v1801 = vshll.u32 %v1480, 16
        %v1803 = vrot.slane %v1801, 5
        %v1804 = vsel %vm1492, %v1799, %v1803
        %v1806 = vshrl.u32 %v1481, 16
        %v1808 = vrot.slane %v1806, 4
        %v1809 = vshll.u32 %v1481, 16
        %v1811 = vrot.slane %v1809, 5
        %v1812 = vor.u32 %v1808, %v1811
        %v1813 = vrot.slane %v1812, 4
        %v1815 = vshll.u32 %v1482, 16
        %v1817 = vrot.slane %v1815, 5
        %v1818 = vsel %vm1492, %v1813, %v1817
        %v1819 = vshrl.u32 %v1482, 16
        %v1821 = vrot.slane %v1819, 4
        %v1822 = vor.u32 %v1821, %v1817
        %v1823 = vrot.slane %v1822, 4
        %v1825 = vshll.u32 %v1483, 16
        %v1827 = vrot.slane %v1825, 5
        %v1828 = vsel %vm1492, %v1823, %v1827
        %v1830 = vshrl.u32 %v1484, 16
        %v1832 = vrot.slane %v1830, 4
        %v1833 = vshll.u32 %v1484, 16
        %v1835 = vrot.slane %v1833, 5
        %v1836 = vor.u32 %v1832, %v1835
        %v1837 = vrot.slane %v1836, 4
        %v1839 = vshll.u32 %v1485, 16
        %v1841 = vrot.slane %v1839, 5
        %v1842 = vsel %vm1492, %v1837, %v1841
        %v1843 = vshrl.u32 %v1485, 16
        %v1845 = vrot.slane %v1843, 4
        %v1846 = vor.u32 %v1845, %v1841
        %v1847 = vrot.slane %v1846, 4
        %v1849 = vshll.u32 %v1486, 16
        %v1851 = vrot.slane %v1849, 5
        %v1852 = vsel %vm1492, %v1847, %v1851
        %v1854 = vshrl.u32 %v1487, 16
        %v1856 = vrot.slane %v1854, 4
        %v1857 = vshll.u32 %v1487, 16
        %v1859 = vrot.slane %v1857, 5
        %v1860 = vor.u32 %v1856, %v1859
        %v1861 = vrot.slane %v1860, 4
        %v1863 = vshll.u32 %v1488, 16
        %v1865 = vrot.slane %v1863, 5
        %v1866 = vsel %vm1492, %v1861, %v1865
        %v1867 = vshrl.u32 %v1488, 16
        %v1869 = vrot.slane %v1867, 4
        %v1870 = vor.u32 %v1869, %v1865
        %v1871 = vrot.slane %v1870, 4
        %v1873 = vshll.u32 %v1489, 16
        %v1875 = vrot.slane %v1873, 5
        %v1876 = vsel %vm1492, %v1871, %v1875
        %s1877 = scalar_lea.vmem %s1077, 2
        %v1878 = vld [vmem:[%s1877] sm:$0x3]
        %v1879 = vunpack.c.l.b16 %v1506
        %v1880 = vunpack.c.l.b16 %v1516
        %v1881 = vunpack.c.l.b16 %v1530
        %v1882 = vunpack.c.l.b16 %v1540
        %v1883 = vunpack.c.l.b16 %v1554
        %v1884 = vunpack.c.l.b16 %v1564
        %v1885 = vunpack.c.l.b16 %v1578
        %v1886 = vunpack.c.l.b16 %v1588
        %v1887 = vunpack.c.l.b16 %v1602
        %v1888 = vunpack.c.l.b16 %v1612
        %v1889 = vunpack.c.l.b16 %v1626
        %v1890 = vunpack.c.l.b16 %v1636
        %v1891 = vunpack.c.l.b16 %v1650
        %v1892 = vunpack.c.l.b16 %v1660
        %v1893 = vunpack.c.l.b16 %v1674
        %v1894 = vunpack.c.l.b16 %v1684
        %v1895 = vunpack.c.l.b16 %v1698
        %v1896 = vunpack.c.l.b16 %v1708
        %v1897 = vunpack.c.l.b16 %v1722
        %v1898 = vunpack.c.l.b16 %v1732
        %v1899 = vunpack.c.l.b16 %v1746
        %v1900 = vunpack.c.l.b16 %v1756
        %v1901 = vunpack.c.l.b16 %v1770
        %v1902 = vunpack.c.l.b16 %v1780
        %v1903 = vunpack.c.l.b16 %v1794
        %v1904 = vunpack.c.l.b16 %v1804
        %v1905 = vunpack.c.l.b16 %v1818
        %v1906 = vunpack.c.l.b16 %v1828
        %v1907 = vunpack.c.l.b16 %v1842
        %v1908 = vunpack.c.l.b16 %v1852
        %v1909 = vunpack.c.l.b16 %v1866
        %v1910 = vunpack.c.l.b16 %v1876
        %v1911 = vpack.c.b16 %v1880, %v1879
        %v1912 = vpack.c.b16 %v1882, %v1881
        %v1913 = vpack.c.b16 %v1884, %v1883
        %v1914 = vpack.c.b16 %v1886, %v1885
        %v1915 = vpack.c.b16 %v1888, %v1887
        %v1916 = vpack.c.b16 %v1890, %v1889
        %v1917 = vpack.c.b16 %v1892, %v1891
        %v1918 = vpack.c.b16 %v1894, %v1893
        %v1919 = vpack.c.b16 %v1896, %v1895
        %v1920 = vpack.c.b16 %v1898, %v1897
        %v1921 = vpack.c.b16 %v1900, %v1899
        %v1922 = vpack.c.b16 %v1902, %v1901
        %v1923 = vpack.c.b16 %v1904, %v1903
        %v1924 = vpack.c.b16 %v1906, %v1905
        %v1925 = vpack.c.b16 %v1908, %v1907
        %v1926 = vpack.c.b16 %v1910, %v1909
        %v1928 = vsel %vm1196, %v1911, 0
        %v1931 = vsel %vm1196, %v1912, 0
        %v1934 = vsel %vm1196, %v1913, 0
        %v1937 = vsel %vm1196, %v1914, 0
        %v1940 = vsel %vm1196, %v1915, 0
        %v1943 = vsel %vm1196, %v1916, 0
        %v1946 = vsel %vm1196, %v1917, 0
        %v1949 = vsel %vm1196, %v1918, 0
        %v1952 = vsel %vm1196, %v1919, 0
        %v1955 = vsel %vm1196, %v1920, 0
        %v1958 = vsel %vm1196, %v1921, 0
        %v1961 = vsel %vm1196, %v1922, 0
        %v1964 = vsel %vm1196, %v1923, 0
        %v1967 = vsel %vm1196, %v1924, 0
        %v1970 = vsel %vm1196, %v1925, 0
        %v1973 = vsel %vm1196, %v1926, 0
        %v1976 = vsel %vm1245, %v1878, 0
        %1978 = vmatprep.subr.bf16.mxu0 0
        %1979 = vmatpush1.bf16.msra.mxu0 0
        %1980 = vmatprep.subr.bf16.mxu0 0
        %1981 = vmatpush1.bf16.msra.mxu0 0
        %1982 = vmatprep.subr.bf16.mxu0 0
        %1983 = vmatpush1.bf16.msra.mxu0 0
        %1984 = vmatprep.subr.bf16.mxu0 0
        %1985 = vmatpush1.bf16.msra.mxu0 0
        %1986 = vmatprep.subr.bf16.mxu0 0
        %1987 = vmatpush1.bf16.msra.mxu0 0
        %1988 = vmatprep.subr.bf16.mxu0 0
        %1989 = vmatpush1.bf16.msra.mxu0 0
        %1990 = vmatprep.subr.bf16.mxu0 0
        %1991 = vmatpush1.bf16.msra.mxu0 0
        %1992 = vmatprep.subr.bf16.mxu0 0
        %1993 = vmatpush1.bf16.msra.mxu0 %v1976
        %1994 = vmatprep.subr.bf16.mxu0 0
        %1995 = vmatpush2.bf16.msra.mxu0 0
        %1996 = vmatprep.subr.bf16.mxu0 0
        %1997 = vmatpush2.bf16.msra.mxu0 0
        %1998 = vmatprep.subr.bf16.mxu0 0
        %1999 = vmatpush2.bf16.msra.mxu0 0
        %2000 = vmatprep.subr.bf16.mxu0 0
        %2001 = vmatpush2.bf16.msra.mxu0 0
        %2002 = vmatprep.subr.bf16.mxu0 0
        %2003 = vmatpush2.bf16.msra.mxu0 0
        %2004 = vmatprep.subr.bf16.mxu0 0
        %2005 = vmatpush2.bf16.msra.mxu0 0
        %2006 = vmatprep.subr.bf16.mxu0 0
        %2007 = vmatpush2.bf16.msra.mxu0 0
        %2008 = vmatprep.subr.bf16.mxu0 0
        %2009 = vmatpush2.bf16.msra.mxu0 0
        %2010 = vmatprep.mubr.bf16.mxu0 0
        %2011 = vmatmul.mubr.bf16.gmra.mxu0 %v1928
        %v2012 = vpop.f32.mrf.mxu0
        %v2013 = vadd.f32 0.0, %v2012
        %v2014 = vpop.f32.mrf.mxu0
        %v2015 = vpop.f32.mrf.mxu0
        %v2016 = vadd.f32 0.0, %v2015
        %v2017 = vpop.f32.mrf.mxu0
        %2018 = vmatprep.mubr.bf16.mxu0 0
        %2019 = vmatmul.mubr.bf16.gmra.mxu0 %v1931
        %v2020 = vpop.f32.mrf.mxu0
        %v2021 = vadd.f32 0.0, %v2020
        %v2022 = vpop.f32.mrf.mxu0
        %v2023 = vpop.f32.mrf.mxu0
        %v2024 = vadd.f32 0.0, %v2023
        %v2025 = vpop.f32.mrf.mxu0
        %2026 = vmatprep.mubr.bf16.mxu0 0
        %2027 = vmatmul.mubr.bf16.gmra.mxu0 %v1934
        %v2028 = vpop.f32.mrf.mxu0
        %v2029 = vadd.f32 0.0, %v2028
        %v2030 = vpop.f32.mrf.mxu0
        %v2031 = vpop.f32.mrf.mxu0
        %v2032 = vadd.f32 0.0, %v2031
        %v2033 = vpop.f32.mrf.mxu0
        %2034 = vmatprep.mubr.bf16.mxu0 0
        %2035 = vmatmul.mubr.bf16.gmra.mxu0 %v1937
        %v2036 = vpop.f32.mrf.mxu0
        %v2037 = vadd.f32 0.0, %v2036
        %v2038 = vpop.f32.mrf.mxu0
        %v2039 = vpop.f32.mrf.mxu0
        %v2040 = vadd.f32 0.0, %v2039
        %v2041 = vpop.f32.mrf.mxu0
        %2042 = vmatprep.mubr.bf16.mxu0 0
        %2043 = vmatmul.mubr.bf16.gmra.mxu0 %v1940
        %v2044 = vpop.f32.mrf.mxu0
        %v2045 = vadd.f32 0.0, %v2044
        %v2046 = vpop.f32.mrf.mxu0
        %v2047 = vpop.f32.mrf.mxu0
        %v2048 = vadd.f32 0.0, %v2047
        %v2049 = vpop.f32.mrf.mxu0
        %2050 = vmatprep.mubr.bf16.mxu0 0
        %2051 = vmatmul.mubr.bf16.gmra.mxu0 %v1943
        %v2052 = vpop.f32.mrf.mxu0
        %v2053 = vadd.f32 0.0, %v2052
        %v2054 = vpop.f32.mrf.mxu0
        %v2055 = vpop.f32.mrf.mxu0
        %v2056 = vadd.f32 0.0, %v2055
        %v2057 = vpop.f32.mrf.mxu0
        %2058 = vmatprep.mubr.bf16.mxu0 0
        %2059 = vmatmul.mubr.bf16.gmra.mxu0 %v1946
        %v2060 = vpop.f32.mrf.mxu0
        %v2061 = vadd.f32 0.0, %v2060
        %v2062 = vpop.f32.mrf.mxu0
        %v2063 = vpop.f32.mrf.mxu0
        %v2064 = vadd.f32 0.0, %v2063
        %v2065 = vpop.f32.mrf.mxu0
        %2066 = vmatprep.mubr.bf16.mxu0 0
        %2067 = vmatmul.mubr.bf16.gmra.mxu0 %v1949
        %v2068 = vpop.f32.mrf.mxu0
        %v2069 = vadd.f32 0.0, %v2068
        %v2070 = vpop.f32.mrf.mxu0
        %v2071 = vpop.f32.mrf.mxu0
        %v2072 = vadd.f32 0.0, %v2071
        %v2073 = vpop.f32.mrf.mxu0
        %2074 = vmatprep.mubr.bf16.mxu0 0
        %2075 = vmatmul.mubr.bf16.gmra.mxu0 %v1952
        %v2076 = vpop.f32.mrf.mxu0
        %v2077 = vadd.f32 0.0, %v2076
        %v2078 = vpop.f32.mrf.mxu0
        %v2079 = vpop.f32.mrf.mxu0
        %v2080 = vadd.f32 0.0, %v2079
        %v2081 = vpop.f32.mrf.mxu0
        %2082 = vmatprep.mubr.bf16.mxu0 0
        %2083 = vmatmul.mubr.bf16.gmra.mxu0 %v1955
        %v2084 = vpop.f32.mrf.mxu0
        %v2085 = vadd.f32 0.0, %v2084
        %v2086 = vpop.f32.mrf.mxu0
        %v2087 = vpop.f32.mrf.mxu0
        %v2088 = vadd.f32 0.0, %v2087
        %v2089 = vpop.f32.mrf.mxu0
        %2090 = vmatprep.mubr.bf16.mxu0 0
        %2091 = vmatmul.mubr.bf16.gmra.mxu0 %v1958
        %v2092 = vpop.f32.mrf.mxu0
        %v2093 = vadd.f32 0.0, %v2092
        %v2094 = vpop.f32.mrf.mxu0
        %v2095 = vpop.f32.mrf.mxu0
        %v2096 = vadd.f32 0.0, %v2095
        %v2097 = vpop.f32.mrf.mxu0
        %2098 = vmatprep.mubr.bf16.mxu0 0
        %2099 = vmatmul.mubr.bf16.gmra.mxu0 %v1961
        %v2100 = vpop.f32.mrf.mxu0
        %v2101 = vadd.f32 0.0, %v2100
        %v2102 = vpop.f32.mrf.mxu0
        %v2103 = vpop.f32.mrf.mxu0
        %v2104 = vadd.f32 0.0, %v2103
        %v2105 = vpop.f32.mrf.mxu0
        %2106 = vmatprep.mubr.bf16.mxu0 0
        %2107 = vmatmul.mubr.bf16.gmra.mxu0 %v1964
        %v2108 = vpop.f32.mrf.mxu0
        %v2109 = vadd.f32 0.0, %v2108
        %v2110 = vpop.f32.mrf.mxu0
        %v2111 = vpop.f32.mrf.mxu0
        %v2112 = vadd.f32 0.0, %v2111
        %v2113 = vpop.f32.mrf.mxu0
        %2114 = vmatprep.mubr.bf16.mxu0 0
        %2115 = vmatmul.mubr.bf16.gmra.mxu0 %v1967
        %v2116 = vpop.f32.mrf.mxu0
        %v2117 = vadd.f32 0.0, %v2116
        %v2118 = vpop.f32.mrf.mxu0
        %v2119 = vpop.f32.mrf.mxu0
        %v2120 = vadd.f32 0.0, %v2119
        %v2121 = vpop.f32.mrf.mxu0
        %2122 = vmatprep.mubr.bf16.mxu0 0
        %2123 = vmatmul.mubr.bf16.gmra.mxu0 %v1970
        %v2124 = vpop.f32.mrf.mxu0
        %v2125 = vadd.f32 0.0, %v2124
        %v2126 = vpop.f32.mrf.mxu0
        %v2127 = vpop.f32.mrf.mxu0
        %v2128 = vadd.f32 0.0, %v2127
        %v2129 = vpop.f32.mrf.mxu0
        %2130 = vmatprep.mubr.bf16.mxu0 0
        %2131 = vmatmul.mubr.bf16.gmra.mxu0 %v1973
        %v2132 = vpop.f32.mrf.mxu0
        %v2133 = vadd.f32 0.0, %v2132
        %v2134 = vpop.f32.mrf.mxu0
        %v2135 = vpop.f32.mrf.mxu0
        %v2136 = vadd.f32 0.0, %v2135
        %v2137 = vpop.f32.mrf.mxu0
        %2138 = vdwg.mxu0
        %v2139 = vld [vmem:[#allocation2] sm:$0xff]
        %v2140 = vld [vmem:[#allocation2 + $0x8] sm:$0xff]
        %v2141 = vld [vmem:[#allocation2 + $0x10] sm:$0xff]
        %v2142 = vld [vmem:[#allocation2 + $0x18] sm:$0xff]
        %v2143 = vld [vmem:[#allocation2 + $0x20] sm:$0xff]
        %v2144 = vld [vmem:[#allocation2 + $0x28] sm:$0xff]
        %v2145 = vld [vmem:[#allocation2 + $0x30] sm:$0xff]
        %v2146 = vld [vmem:[#allocation2 + $0x38] sm:$0xff]
        %v2147 = vld [vmem:[#allocation2 + $0x40] sm:$0xff]
        %v2148 = vld [vmem:[#allocation2 + $0x48] sm:$0xff]
        %v2149 = vld [vmem:[#allocation2 + $0x50] sm:$0xff]
        %v2150 = vld [vmem:[#allocation2 + $0x58] sm:$0xff]
        %v2151 = vld [vmem:[#allocation2 + $0x60] sm:$0xff]
        %v2152 = vld [vmem:[#allocation2 + $0x68] sm:$0xff]
        %v2153 = vld [vmem:[#allocation2 + $0x70] sm:$0xff]
        %v2154 = vld [vmem:[#allocation2 + $0x78] sm:$0xff]
        %v2155 = vld [vmem:[#allocation2 + $0x80] sm:$0xff]
        %v2156 = vld [vmem:[#allocation2 + $0x88] sm:$0xff]
        %v2157 = vld [vmem:[#allocation2 + $0x90] sm:$0xff]
        %v2158 = vld [vmem:[#allocation2 + $0x98] sm:$0xff]
        %v2159 = vld [vmem:[#allocation2 + $0xa0] sm:$0xff]
        %v2160 = vld [vmem:[#allocation2 + $0xa8] sm:$0xff]
        %v2161 = vld [vmem:[#allocation2 + $0xb0] sm:$0xff]
        %v2162 = vld [vmem:[#allocation2 + $0xb8] sm:$0xff]
        %v2163 = vld [vmem:[#allocation2 + $0xc0] sm:$0xff]
        %v2164 = vld [vmem:[#allocation2 + $0xc8] sm:$0xff]
        %v2165 = vld [vmem:[#allocation2 + $0xd0] sm:$0xff]
        %v2166 = vld [vmem:[#allocation2 + $0xd8] sm:$0xff]
        %v2167 = vld [vmem:[#allocation2 + $0xe0] sm:$0xff]
        %v2168 = vld [vmem:[#allocation2 + $0xe8] sm:$0xff]
        %v2169 = vld [vmem:[#allocation2 + $0xf0] sm:$0xff]
        %v2170 = vld [vmem:[#allocation2 + $0xf8] sm:$0xff]
        %v2171 = vadd.f32 %v2139, %v2013
        %v2172 = vadd.f32 %v2140, %v2016
        %v2173 = vadd.f32 %v2141, %v2021
        %v2174 = vadd.f32 %v2142, %v2024
        %v2175 = vadd.f32 %v2143, %v2029
        %v2176 = vadd.f32 %v2144, %v2032
        %v2177 = vadd.f32 %v2145, %v2037
        %v2178 = vadd.f32 %v2146, %v2040
        %v2179 = vadd.f32 %v2147, %v2045
        %v2180 = vadd.f32 %v2148, %v2048
        %v2181 = vadd.f32 %v2149, %v2053
        %v2182 = vadd.f32 %v2150, %v2056
        %v2183 = vadd.f32 %v2151, %v2061
        %v2184 = vadd.f32 %v2152, %v2064
        %v2185 = vadd.f32 %v2153, %v2069
        %v2186 = vadd.f32 %v2154, %v2072
        %v2187 = vadd.f32 %v2155, %v2077
        %v2188 = vadd.f32 %v2156, %v2080
        %v2189 = vadd.f32 %v2157, %v2085
        %v2190 = vadd.f32 %v2158, %v2088
        %v2191 = vadd.f32 %v2159, %v2093
        %v2192 = vadd.f32 %v2160, %v2096
        %v2193 = vadd.f32 %v2161, %v2101
        %v2194 = vadd.f32 %v2162, %v2104
        %v2195 = vadd.f32 %v2163, %v2109
        %v2196 = vadd.f32 %v2164, %v2112
        %v2197 = vadd.f32 %v2165, %v2117
        %v2198 = vadd.f32 %v2166, %v2120
        %v2199 = vadd.f32 %v2167, %v2125
        %v2200 = vadd.f32 %v2168, %v2128
        %v2201 = vadd.f32 %v2169, %v2133
        %v2202 = vadd.f32 %v2170, %v2136
        %2203 = vst [vmem:[#allocation2] sm:$0xff] %v2171
        %2204 = vst [vmem:[#allocation2 + $0x8] sm:$0xff] %v2172
        %2205 = vst [vmem:[#allocation2 + $0x10] sm:$0xff] %v2173
        %2206 = vst [vmem:[#allocation2 + $0x18] sm:$0xff] %v2174
        %2207 = vst [vmem:[#allocation2 + $0x20] sm:$0xff] %v2175
        %2208 = vst [vmem:[#allocation2 + $0x28] sm:$0xff] %v2176
        %2209 = vst [vmem:[#allocation2 + $0x30] sm:$0xff] %v2177
        %2210 = vst [vmem:[#allocation2 + $0x38] sm:$0xff] %v2178
        %2211 = vst [vmem:[#allocation2 + $0x40] sm:$0xff] %v2179
        %2212 = vst [vmem:[#allocation2 + $0x48] sm:$0xff] %v2180
        %2213 = vst [vmem:[#allocation2 + $0x50] sm:$0xff] %v2181
        %2214 = vst [vmem:[#allocation2 + $0x58] sm:$0xff] %v2182
        %2215 = vst [vmem:[#allocation2 + $0x60] sm:$0xff] %v2183
        %2216 = vst [vmem:[#allocation2 + $0x68] sm:$0xff] %v2184
        %2217 = vst [vmem:[#allocation2 + $0x70] sm:$0xff] %v2185
        %2218 = vst [vmem:[#allocation2 + $0x78] sm:$0xff] %v2186
        %2219 = vst [vmem:[#allocation2 + $0x80] sm:$0xff] %v2187
        %2220 = vst [vmem:[#allocation2 + $0x88] sm:$0xff] %v2188
        %2221 = vst [vmem:[#allocation2 + $0x90] sm:$0xff] %v2189
        %2222 = vst [vmem:[#allocation2 + $0x98] sm:$0xff] %v2190
        %2223 = vst [vmem:[#allocation2 + $0xa0] sm:$0xff] %v2191
        %2224 = vst [vmem:[#allocation2 + $0xa8] sm:$0xff] %v2192
        %2225 = vst [vmem:[#allocation2 + $0xb0] sm:$0xff] %v2193
        %2226 = vst [vmem:[#allocation2 + $0xb8] sm:$0xff] %v2194
        %2227 = vst [vmem:[#allocation2 + $0xc0] sm:$0xff] %v2195
        %2228 = vst [vmem:[#allocation2 + $0xc8] sm:$0xff] %v2196
        %2229 = vst [vmem:[#allocation2 + $0xd0] sm:$0xff] %v2197
        %2230 = vst [vmem:[#allocation2 + $0xd8] sm:$0xff] %v2198
        %2231 = vst [vmem:[#allocation2 + $0xe0] sm:$0xff] %v2199
        %2232 = vst [vmem:[#allocation2 + $0xe8] sm:$0xff] %v2200
        %2233 = vst [vmem:[#allocation2 + $0xf0] sm:$0xff] %v2201
        %2234 = vst [vmem:[#allocation2 + $0xf8] sm:$0xff] %v2202
        %v2235 = vld [vmem:[%s1008] sm:$0xe]
        %v2236 = vld [vmem:[%s1008 + $0x4] sm:$0xf]
        %v2237 = vld [vmem:[%s1008 + $0x8] sm:$0x1]
        %v2238 = vld [vmem:[%s1008 + $0xc] sm:$0xe]
        %v2239 = vld [vmem:[%s1008 + $0x10] sm:$0xf]
        %v2240 = vld [vmem:[%s1008 + $0x14] sm:$0x1]
        %v2241 = vld [vmem:[%s1008 + $0x18] sm:$0xe]
        %v2242 = vld [vmem:[%s1008 + $0x1c] sm:$0xf]
        %v2243 = vld [vmem:[%s1008 + $0x20] sm:$0x1]
        %v2244 = vld [vmem:[%s1008 + $0x24] sm:$0xe]
        %v2245 = vld [vmem:[%s1008 + $0x28] sm:$0xf]
        %v2246 = vld [vmem:[%s1008 + $0x2c] sm:$0x1]
        %v2247 = vld [vmem:[%s1008 + $0x30] sm:$0xe]
        %v2248 = vld [vmem:[%s1008 + $0x34] sm:$0xf]
        %v2249 = vld [vmem:[%s1008 + $0x38] sm:$0x1]
        %v2250 = vld [vmem:[%s1008 + $0x3c] sm:$0xe]
        %v2251 = vld [vmem:[%s1008 + $0x40] sm:$0xf]
        %v2252 = vld [vmem:[%s1008 + $0x44] sm:$0x1]
        %v2253 = vld [vmem:[%s1008 + $0x48] sm:$0xe]
        %v2254 = vld [vmem:[%s1008 + $0x4c] sm:$0xf]
        %v2255 = vld [vmem:[%s1008 + $0x50] sm:$0x1]
        %v2256 = vld [vmem:[%s1008 + $0x54] sm:$0xe]
        %v2257 = vld [vmem:[%s1008 + $0x58] sm:$0xf]
        %v2258 = vld [vmem:[%s1008 + $0x5c] sm:$0x1]
        %v2259 = vld [vmem:[%s1008 + $0x60] sm:$0xe]
        %v2260 = vld [vmem:[%s1008 + $0x64] sm:$0xf]
        %v2261 = vld [vmem:[%s1008 + $0x68] sm:$0x1]
        %v2262 = vld [vmem:[%s1008 + $0x6c] sm:$0xe]
        %v2263 = vld [vmem:[%s1008 + $0x70] sm:$0xf]
        %v2264 = vld [vmem:[%s1008 + $0x74] sm:$0x1]
        %v2265 = vld [vmem:[%s1008 + $0x78] sm:$0xe]
        %v2266 = vld [vmem:[%s1008 + $0x7c] sm:$0xf]
        %v2267 = vld [vmem:[%s1008 + $0x80] sm:$0x1]
        %v2268 = vld [vmem:[%s1008 + $0x84] sm:$0xe]
        %v2269 = vld [vmem:[%s1008 + $0x88] sm:$0xf]
        %v2270 = vld [vmem:[%s1008 + $0x8c] sm:$0x1]
        %v2271 = vld [vmem:[%s1008 + $0x90] sm:$0xe]
        %v2272 = vld [vmem:[%s1008 + $0x94] sm:$0xf]
        %v2273 = vld [vmem:[%s1008 + $0x98] sm:$0x1]
        %v2274 = vld [vmem:[%s1008 + $0x9c] sm:$0xe]
        %v2275 = vld [vmem:[%s1008 + $0xa0] sm:$0xf]
        %v2276 = vld [vmem:[%s1008 + $0xa4] sm:$0x1]
        %v2277 = vld [vmem:[%s1008 + $0xa8] sm:$0xe]
        %v2278 = vld [vmem:[%s1008 + $0xac] sm:$0xf]
        %v2279 = vld [vmem:[%s1008 + $0xb0] sm:$0x1]
        %v2280 = vld [vmem:[%s1008 + $0xb4] sm:$0xe]
        %v2281 = vld [vmem:[%s1008 + $0xb8] sm:$0xf]
        %v2282 = vld [vmem:[%s1008 + $0xbc] sm:$0x1]
        %vm2331 = vcmask 1042432
        %vm2332 = vcmask 1046532
        %vm2333 = vmor %vm2331, %vm2332
        %v2334 = vrot.slane %v2235, 5
        %v2335 = vrot.slane %v2334, 4
        %v2336 = vrot.slane %v2236, 5
        %v2337 = vsel %vm2333, %v2335, %v2336
        %v2338 = vrot.slane %v2336, 4
        %v2339 = vrot.slane %v2237, 5
        %v2340 = vsel %vm2333, %v2338, %v2339
        %v2341 = vrot.slane %v2238, 5
        %v2342 = vrot.slane %v2341, 4
        %v2343 = vrot.slane %v2239, 5
        %v2344 = vsel %vm2333, %v2342, %v2343
        %v2345 = vrot.slane %v2343, 4
        %v2346 = vrot.slane %v2240, 5
        %v2347 = vsel %vm2333, %v2345, %v2346
        %v2348 = vrot.slane %v2241, 5
        %v2349 = vrot.slane %v2348, 4
        %v2350 = vrot.slane %v2242, 5
        %v2351 = vsel %vm2333, %v2349, %v2350
        %v2352 = vrot.slane %v2350, 4
        %v2353 = vrot.slane %v2243, 5
        %v2354 = vsel %vm2333, %v2352, %v2353
        %v2355 = vrot.slane %v2244, 5
        %v2356 = vrot.slane %v2355, 4
        %v2357 = vrot.slane %v2245, 5
        %v2358 = vsel %vm2333, %v2356, %v2357
        %v2359 = vrot.slane %v2357, 4
        %v2360 = vrot.slane %v2246, 5
        %v2361 = vsel %vm2333, %v2359, %v2360
        %v2362 = vrot.slane %v2247, 5
        %v2363 = vrot.slane %v2362, 4
        %v2364 = vrot.slane %v2248, 5
        %v2365 = vsel %vm2333, %v2363, %v2364
        %v2366 = vrot.slane %v2364, 4
        %v2367 = vrot.slane %v2249, 5
        %v2368 = vsel %vm2333, %v2366, %v2367
        %v2369 = vrot.slane %v2250, 5
        %v2370 = vrot.slane %v2369, 4
        %v2371 = vrot.slane %v2251, 5
        %v2372 = vsel %vm2333, %v2370, %v2371
        %v2373 = vrot.slane %v2371, 4
        %v2374 = vrot.slane %v2252, 5
        %v2375 = vsel %vm2333, %v2373, %v2374
        %v2376 = vrot.slane %v2253, 5
        %v2377 = vrot.slane %v2376, 4
        %v2378 = vrot.slane %v2254, 5
        %v2379 = vsel %vm2333, %v2377, %v2378
        %v2380 = vrot.slane %v2378, 4
        %v2381 = vrot.slane %v2255, 5
        %v2382 = vsel %vm2333, %v2380, %v2381
        %v2383 = vrot.slane %v2256, 5
        %v2384 = vrot.slane %v2383, 4
        %v2385 = vrot.slane %v2257, 5
        %v2386 = vsel %vm2333, %v2384, %v2385
        %v2387 = vrot.slane %v2385, 4
        %v2388 = vrot.slane %v2258, 5
        %v2389 = vsel %vm2333, %v2387, %v2388
        %v2390 = vrot.slane %v2259, 5
        %v2391 = vrot.slane %v2390, 4
        %v2392 = vrot.slane %v2260, 5
        %v2393 = vsel %vm2333, %v2391, %v2392
        %v2394 = vrot.slane %v2392, 4
        %v2395 = vrot.slane %v2261, 5
        %v2396 = vsel %vm2333, %v2394, %v2395
        %v2397 = vrot.slane %v2262, 5
        %v2398 = vrot.slane %v2397, 4
        %v2399 = vrot.slane %v2263, 5
        %v2400 = vsel %vm2333, %v2398, %v2399
        %v2401 = vrot.slane %v2399, 4
        %v2402 = vrot.slane %v2264, 5
        %v2403 = vsel %vm2333, %v2401, %v2402
        %v2404 = vrot.slane %v2265, 5
        %v2405 = vrot.slane %v2404, 4
        %v2406 = vrot.slane %v2266, 5
        %v2407 = vsel %vm2333, %v2405, %v2406
        %v2408 = vrot.slane %v2406, 4
        %v2409 = vrot.slane %v2267, 5
        %v2410 = vsel %vm2333, %v2408, %v2409
        %v2411 = vrot.slane %v2268, 5
        %v2412 = vrot.slane %v2411, 4
        %v2413 = vrot.slane %v2269, 5
        %v2414 = vsel %vm2333, %v2412, %v2413
        %v2415 = vrot.slane %v2413, 4
        %v2416 = vrot.slane %v2270, 5
        %v2417 = vsel %vm2333, %v2415, %v2416
        %v2418 = vrot.slane %v2271, 5
        %v2419 = vrot.slane %v2418, 4
        %v2420 = vrot.slane %v2272, 5
        %v2421 = vsel %vm2333, %v2419, %v2420
        %v2422 = vrot.slane %v2420, 4
        %v2423 = vrot.slane %v2273, 5
        %v2424 = vsel %vm2333, %v2422, %v2423
        %v2425 = vrot.slane %v2274, 5
        %v2426 = vrot.slane %v2425, 4
        %v2427 = vrot.slane %v2275, 5
        %v2428 = vsel %vm2333, %v2426, %v2427
        %v2429 = vrot.slane %v2427, 4
        %v2430 = vrot.slane %v2276, 5
        %v2431 = vsel %vm2333, %v2429, %v2430
        %v2432 = vrot.slane %v2277, 5
        %v2433 = vrot.slane %v2432, 4
        %v2434 = vrot.slane %v2278, 5
        %v2435 = vsel %vm2333, %v2433, %v2434
        %v2436 = vrot.slane %v2434, 4
        %v2437 = vrot.slane %v2279, 5
        %v2438 = vsel %vm2333, %v2436, %v2437
        %v2439 = vrot.slane %v2280, 5
        %v2440 = vrot.slane %v2439, 4
        %v2441 = vrot.slane %v2281, 5
        %v2442 = vsel %vm2333, %v2440, %v2441
        %v2443 = vrot.slane %v2441, 4
        %v2444 = vrot.slane %v2282, 5
        %v2445 = vsel %vm2333, %v2443, %v2444
        %s2446 = scalar_lea.vmem %s1077, 4
        %v2447 = vld [vmem:[%s2446] sm:$0x3]
        %v2448 = vunpack.c.l.b16 %v2337
        %v2449 = vunpack.c.l.b16 %v2340
        %v2450 = vunpack.c.l.b16 %v2344
        %v2451 = vunpack.c.l.b16 %v2347
        %v2452 = vunpack.c.l.b16 %v2351
        %v2453 = vunpack.c.l.b16 %v2354
        %v2454 = vunpack.c.l.b16 %v2358
        %v2455 = vunpack.c.l.b16 %v2361
        %v2456 = vunpack.c.l.b16 %v2365
        %v2457 = vunpack.c.l.b16 %v2368
        %v2458 = vunpack.c.l.b16 %v2372
        %v2459 = vunpack.c.l.b16 %v2375
        %v2460 = vunpack.c.l.b16 %v2379
        %v2461 = vunpack.c.l.b16 %v2382
        %v2462 = vunpack.c.l.b16 %v2386
        %v2463 = vunpack.c.l.b16 %v2389
        %v2464 = vunpack.c.l.b16 %v2393
        %v2465 = vunpack.c.l.b16 %v2396
        %v2466 = vunpack.c.l.b16 %v2400
        %v2467 = vunpack.c.l.b16 %v2403
        %v2468 = vunpack.c.l.b16 %v2407
        %v2469 = vunpack.c.l.b16 %v2410
        %v2470 = vunpack.c.l.b16 %v2414
        %v2471 = vunpack.c.l.b16 %v2417
        %v2472 = vunpack.c.l.b16 %v2421
        %v2473 = vunpack.c.l.b16 %v2424
        %v2474 = vunpack.c.l.b16 %v2428
        %v2475 = vunpack.c.l.b16 %v2431
        %v2476 = vunpack.c.l.b16 %v2435
        %v2477 = vunpack.c.l.b16 %v2438
        %v2478 = vunpack.c.l.b16 %v2442
        %v2479 = vunpack.c.l.b16 %v2445
        %v2480 = vpack.c.b16 %v2449, %v2448
        %v2481 = vpack.c.b16 %v2451, %v2450
        %v2482 = vpack.c.b16 %v2453, %v2452
        %v2483 = vpack.c.b16 %v2455, %v2454
        %v2484 = vpack.c.b16 %v2457, %v2456
        %v2485 = vpack.c.b16 %v2459, %v2458
        %v2486 = vpack.c.b16 %v2461, %v2460
        %v2487 = vpack.c.b16 %v2463, %v2462
        %v2488 = vpack.c.b16 %v2465, %v2464
        %v2489 = vpack.c.b16 %v2467, %v2466
        %v2490 = vpack.c.b16 %v2469, %v2468
        %v2491 = vpack.c.b16 %v2471, %v2470
        %v2492 = vpack.c.b16 %v2473, %v2472
        %v2493 = vpack.c.b16 %v2475, %v2474
        %v2494 = vpack.c.b16 %v2477, %v2476
        %v2495 = vpack.c.b16 %v2479, %v2478
        %v2497 = vsel %vm1196, %v2480, 0
        %v2500 = vsel %vm1196, %v2481, 0
        %v2503 = vsel %vm1196, %v2482, 0
        %v2506 = vsel %vm1196, %v2483, 0
        %v2509 = vsel %vm1196, %v2484, 0
        %v2512 = vsel %vm1196, %v2485, 0
        %v2515 = vsel %vm1196, %v2486, 0
        %v2518 = vsel %vm1196, %v2487, 0
        %v2521 = vsel %vm1196, %v2488, 0
        %v2524 = vsel %vm1196, %v2489, 0
        %v2527 = vsel %vm1196, %v2490, 0
        %v2530 = vsel %vm1196, %v2491, 0
        %v2533 = vsel %vm1196, %v2492, 0
        %v2536 = vsel %vm1196, %v2493, 0
        %v2539 = vsel %vm1196, %v2494, 0
        %v2542 = vsel %vm1196, %v2495, 0
        %v2545 = vsel %vm1245, %v2447, 0
        %2547 = vmatprep.subr.bf16.mxu0 0
        %2548 = vmatpush1.bf16.msra.mxu0 0
        %2549 = vmatprep.subr.bf16.mxu0 0
        %2550 = vmatpush1.bf16.msra.mxu0 0
        %2551 = vmatprep.subr.bf16.mxu0 0
        %2552 = vmatpush1.bf16.msra.mxu0 0
        %2553 = vmatprep.subr.bf16.mxu0 0
        %2554 = vmatpush1.bf16.msra.mxu0 0
        %2555 = vmatprep.subr.bf16.mxu0 0
        %2556 = vmatpush1.bf16.msra.mxu0 0
        %2557 = vmatprep.subr.bf16.mxu0 0
        %2558 = vmatpush1.bf16.msra.mxu0 0
        %2559 = vmatprep.subr.bf16.mxu0 0
        %2560 = vmatpush1.bf16.msra.mxu0 0
        %2561 = vmatprep.subr.bf16.mxu0 0
        %2562 = vmatpush1.bf16.msra.mxu0 %v2545
        %2563 = vmatprep.subr.bf16.mxu0 0
        %2564 = vmatpush2.bf16.msra.mxu0 0
        %2565 = vmatprep.subr.bf16.mxu0 0
        %2566 = vmatpush2.bf16.msra.mxu0 0
        %2567 = vmatprep.subr.bf16.mxu0 0
        %2568 = vmatpush2.bf16.msra.mxu0 0
        %2569 = vmatprep.subr.bf16.mxu0 0
        %2570 = vmatpush2.bf16.msra.mxu0 0
        %2571 = vmatprep.subr.bf16.mxu0 0
        %2572 = vmatpush2.bf16.msra.mxu0 0
        %2573 = vmatprep.subr.bf16.mxu0 0
        %2574 = vmatpush2.bf16.msra.mxu0 0
        %2575 = vmatprep.subr.bf16.mxu0 0
        %2576 = vmatpush2.bf16.msra.mxu0 0
        %2577 = vmatprep.subr.bf16.mxu0 0
        %2578 = vmatpush2.bf16.msra.mxu0 0
        %2579 = vmatprep.mubr.bf16.mxu0 0
        %2580 = vmatmul.mubr.bf16.gmra.mxu0 %v2497
        %v2581 = vpop.f32.mrf.mxu0
        %v2582 = vadd.f32 0.0, %v2581
        %v2583 = vpop.f32.mrf.mxu0
        %v2584 = vpop.f32.mrf.mxu0
        %v2585 = vadd.f32 0.0, %v2584
        %v2586 = vpop.f32.mrf.mxu0
        %2587 = vmatprep.mubr.bf16.mxu0 0
        %2588 = vmatmul.mubr.bf16.gmra.mxu0 %v2500
        %v2589 = vpop.f32.mrf.mxu0
        %v2590 = vadd.f32 0.0, %v2589
        %v2591 = vpop.f32.mrf.mxu0
        %v2592 = vpop.f32.mrf.mxu0
        %v2593 = vadd.f32 0.0, %v2592
        %v2594 = vpop.f32.mrf.mxu0
        %2595 = vmatprep.mubr.bf16.mxu0 0
        %2596 = vmatmul.mubr.bf16.gmra.mxu0 %v2503
        %v2597 = vpop.f32.mrf.mxu0
        %v2598 = vadd.f32 0.0, %v2597
        %v2599 = vpop.f32.mrf.mxu0
        %v2600 = vpop.f32.mrf.mxu0
        %v2601 = vadd.f32 0.0, %v2600
        %v2602 = vpop.f32.mrf.mxu0
        %2603 = vmatprep.mubr.bf16.mxu0 0
        %2604 = vmatmul.mubr.bf16.gmra.mxu0 %v2506
        %v2605 = vpop.f32.mrf.mxu0
        %v2606 = vadd.f32 0.0, %v2605
        %v2607 = vpop.f32.mrf.mxu0
        %v2608 = vpop.f32.mrf.mxu0
        %v2609 = vadd.f32 0.0, %v2608
        %v2610 = vpop.f32.mrf.mxu0
        %2611 = vmatprep.mubr.bf16.mxu0 0
        %2612 = vmatmul.mubr.bf16.gmra.mxu0 %v2509
        %v2613 = vpop.f32.mrf.mxu0
        %v2614 = vadd.f32 0.0, %v2613
        %v2615 = vpop.f32.mrf.mxu0
        %v2616 = vpop.f32.mrf.mxu0
        %v2617 = vadd.f32 0.0, %v2616
        %v2618 = vpop.f32.mrf.mxu0
        %2619 = vmatprep.mubr.bf16.mxu0 0
        %2620 = vmatmul.mubr.bf16.gmra.mxu0 %v2512
        %v2621 = vpop.f32.mrf.mxu0
        %v2622 = vadd.f32 0.0, %v2621
        %v2623 = vpop.f32.mrf.mxu0
        %v2624 = vpop.f32.mrf.mxu0
        %v2625 = vadd.f32 0.0, %v2624
        %v2626 = vpop.f32.mrf.mxu0
        %2627 = vmatprep.mubr.bf16.mxu0 0
        %2628 = vmatmul.mubr.bf16.gmra.mxu0 %v2515
        %v2629 = vpop.f32.mrf.mxu0
        %v2630 = vadd.f32 0.0, %v2629
        %v2631 = vpop.f32.mrf.mxu0
        %v2632 = vpop.f32.mrf.mxu0
        %v2633 = vadd.f32 0.0, %v2632
        %v2634 = vpop.f32.mrf.mxu0
        %2635 = vmatprep.mubr.bf16.mxu0 0
        %2636 = vmatmul.mubr.bf16.gmra.mxu0 %v2518
        %v2637 = vpop.f32.mrf.mxu0
        %v2638 = vadd.f32 0.0, %v2637
        %v2639 = vpop.f32.mrf.mxu0
        %v2640 = vpop.f32.mrf.mxu0
        %v2641 = vadd.f32 0.0, %v2640
        %v2642 = vpop.f32.mrf.mxu0
        %2643 = vmatprep.mubr.bf16.mxu0 0
        %2644 = vmatmul.mubr.bf16.gmra.mxu0 %v2521
        %v2645 = vpop.f32.mrf.mxu0
        %v2646 = vadd.f32 0.0, %v2645
        %v2647 = vpop.f32.mrf.mxu0
        %v2648 = vpop.f32.mrf.mxu0
        %v2649 = vadd.f32 0.0, %v2648
        %v2650 = vpop.f32.mrf.mxu0
        %2651 = vmatprep.mubr.bf16.mxu0 0
        %2652 = vmatmul.mubr.bf16.gmra.mxu0 %v2524
        %v2653 = vpop.f32.mrf.mxu0
        %v2654 = vadd.f32 0.0, %v2653
        %v2655 = vpop.f32.mrf.mxu0
        %v2656 = vpop.f32.mrf.mxu0
        %v2657 = vadd.f32 0.0, %v2656
        %v2658 = vpop.f32.mrf.mxu0
        %2659 = vmatprep.mubr.bf16.mxu0 0
        %2660 = vmatmul.mubr.bf16.gmra.mxu0 %v2527
        %v2661 = vpop.f32.mrf.mxu0
        %v2662 = vadd.f32 0.0, %v2661
        %v2663 = vpop.f32.mrf.mxu0
        %v2664 = vpop.f32.mrf.mxu0
        %v2665 = vadd.f32 0.0, %v2664
        %v2666 = vpop.f32.mrf.mxu0
        %2667 = vmatprep.mubr.bf16.mxu0 0
        %2668 = vmatmul.mubr.bf16.gmra.mxu0 %v2530
        %v2669 = vpop.f32.mrf.mxu0
        %v2670 = vadd.f32 0.0, %v2669
        %v2671 = vpop.f32.mrf.mxu0
        %v2672 = vpop.f32.mrf.mxu0
        %v2673 = vadd.f32 0.0, %v2672
        %v2674 = vpop.f32.mrf.mxu0
        %2675 = vmatprep.mubr.bf16.mxu0 0
        %2676 = vmatmul.mubr.bf16.gmra.mxu0 %v2533
        %v2677 = vpop.f32.mrf.mxu0
        %v2678 = vadd.f32 0.0, %v2677
        %v2679 = vpop.f32.mrf.mxu0
        %v2680 = vpop.f32.mrf.mxu0
        %v2681 = vadd.f32 0.0, %v2680
        %v2682 = vpop.f32.mrf.mxu0
        %2683 = vmatprep.mubr.bf16.mxu0 0
        %2684 = vmatmul.mubr.bf16.gmra.mxu0 %v2536
        %v2685 = vpop.f32.mrf.mxu0
        %v2686 = vadd.f32 0.0, %v2685
        %v2687 = vpop.f32.mrf.mxu0
        %v2688 = vpop.f32.mrf.mxu0
        %v2689 = vadd.f32 0.0, %v2688
        %v2690 = vpop.f32.mrf.mxu0
        %2691 = vmatprep.mubr.bf16.mxu0 0
        %2692 = vmatmul.mubr.bf16.gmra.mxu0 %v2539
        %v2693 = vpop.f32.mrf.mxu0
        %v2694 = vadd.f32 0.0, %v2693
        %v2695 = vpop.f32.mrf.mxu0
        %v2696 = vpop.f32.mrf.mxu0
        %v2697 = vadd.f32 0.0, %v2696
        %v2698 = vpop.f32.mrf.mxu0
        %2699 = vmatprep.mubr.bf16.mxu0 0
        %2700 = vmatmul.mubr.bf16.gmra.mxu0 %v2542
        %v2701 = vpop.f32.mrf.mxu0
        %v2702 = vadd.f32 0.0, %v2701
        %v2703 = vpop.f32.mrf.mxu0
        %v2704 = vpop.f32.mrf.mxu0
        %v2705 = vadd.f32 0.0, %v2704
        %v2706 = vpop.f32.mrf.mxu0
        %2707 = vdwg.mxu0
        %v2708 = vld [vmem:[#allocation2] sm:$0xff]
        %v2709 = vld [vmem:[#allocation2 + $0x8] sm:$0xff]
        %v2710 = vld [vmem:[#allocation2 + $0x10] sm:$0xff]
        %v2711 = vld [vmem:[#allocation2 + $0x18] sm:$0xff]
        %v2712 = vld [vmem:[#allocation2 + $0x20] sm:$0xff]
        %v2713 = vld [vmem:[#allocation2 + $0x28] sm:$0xff]
        %v2714 = vld [vmem:[#allocation2 + $0x30] sm:$0xff]
        %v2715 = vld [vmem:[#allocation2 + $0x38] sm:$0xff]
        %v2716 = vld [vmem:[#allocation2 + $0x40] sm:$0xff]
        %v2717 = vld [vmem:[#allocation2 + $0x48] sm:$0xff]
        %v2718 = vld [vmem:[#allocation2 + $0x50] sm:$0xff]
        %v2719 = vld [vmem:[#allocation2 + $0x58] sm:$0xff]
        %v2720 = vld [vmem:[#allocation2 + $0x60] sm:$0xff]
        %v2721 = vld [vmem:[#allocation2 + $0x68] sm:$0xff]
        %v2722 = vld [vmem:[#allocation2 + $0x70] sm:$0xff]
        %v2723 = vld [vmem:[#allocation2 + $0x78] sm:$0xff]
        %v2724 = vld [vmem:[#allocation2 + $0x80] sm:$0xff]
        %v2725 = vld [vmem:[#allocation2 + $0x88] sm:$0xff]
        %v2726 = vld [vmem:[#allocation2 + $0x90] sm:$0xff]
        %v2727 = vld [vmem:[#allocation2 + $0x98] sm:$0xff]
        %v2728 = vld [vmem:[#allocation2 + $0xa0] sm:$0xff]
        %v2729 = vld [vmem:[#allocation2 + $0xa8] sm:$0xff]
        %v2730 = vld [vmem:[#allocation2 + $0xb0] sm:$0xff]
        %v2731 = vld [vmem:[#allocation2 + $0xb8] sm:$0xff]
        %v2732 = vld [vmem:[#allocation2 + $0xc0] sm:$0xff]
        %v2733 = vld [vmem:[#allocation2 + $0xc8] sm:$0xff]
        %v2734 = vld [vmem:[#allocation2 + $0xd0] sm:$0xff]
        %v2735 = vld [vmem:[#allocation2 + $0xd8] sm:$0xff]
        %v2736 = vld [vmem:[#allocation2 + $0xe0] sm:$0xff]
        %v2737 = vld [vmem:[#allocation2 + $0xe8] sm:$0xff]
        %v2738 = vld [vmem:[#allocation2 + $0xf0] sm:$0xff]
        %v2739 = vld [vmem:[#allocation2 + $0xf8] sm:$0xff]
        %v2740 = vadd.f32 %v2708, %v2582
        %v2741 = vadd.f32 %v2709, %v2585
        %v2742 = vadd.f32 %v2710, %v2590
        %v2743 = vadd.f32 %v2711, %v2593
        %v2744 = vadd.f32 %v2712, %v2598
        %v2745 = vadd.f32 %v2713, %v2601
        %v2746 = vadd.f32 %v2714, %v2606
        %v2747 = vadd.f32 %v2715, %v2609
        %v2748 = vadd.f32 %v2716, %v2614
        %v2749 = vadd.f32 %v2717, %v2617
        %v2750 = vadd.f32 %v2718, %v2622
        %v2751 = vadd.f32 %v2719, %v2625
        %v2752 = vadd.f32 %v2720, %v2630
        %v2753 = vadd.f32 %v2721, %v2633
        %v2754 = vadd.f32 %v2722, %v2638
        %v2755 = vadd.f32 %v2723, %v2641
        %v2756 = vadd.f32 %v2724, %v2646
        %v2757 = vadd.f32 %v2725, %v2649
        %v2758 = vadd.f32 %v2726, %v2654
        %v2759 = vadd.f32 %v2727, %v2657
        %v2760 = vadd.f32 %v2728, %v2662
        %v2761 = vadd.f32 %v2729, %v2665
        %v2762 = vadd.f32 %v2730, %v2670
        %v2763 = vadd.f32 %v2731, %v2673
        %v2764 = vadd.f32 %v2732, %v2678
        %v2765 = vadd.f32 %v2733, %v2681
        %v2766 = vadd.f32 %v2734, %v2686
        %v2767 = vadd.f32 %v2735, %v2689
        %v2768 = vadd.f32 %v2736, %v2694
        %v2769 = vadd.f32 %v2737, %v2697
        %v2770 = vadd.f32 %v2738, %v2702
        %v2771 = vadd.f32 %v2739, %v2705
        %2772 = vst [vmem:[#allocation2] sm:$0xff] %v2740
        %2773 = vst [vmem:[#allocation2 + $0x8] sm:$0xff] %v2741
        %2774 = vst [vmem:[#allocation2 + $0x10] sm:$0xff] %v2742
        %2775 = vst [vmem:[#allocation2 + $0x18] sm:$0xff] %v2743
        %2776 = vst [vmem:[#allocation2 + $0x20] sm:$0xff] %v2744
        %2777 = vst [vmem:[#allocation2 + $0x28] sm:$0xff] %v2745
        %2778 = vst [vmem:[#allocation2 + $0x30] sm:$0xff] %v2746
        %2779 = vst [vmem:[#allocation2 + $0x38] sm:$0xff] %v2747
        %2780 = vst [vmem:[#allocation2 + $0x40] sm:$0xff] %v2748
        %2781 = vst [vmem:[#allocation2 + $0x48] sm:$0xff] %v2749
        %2782 = vst [vmem:[#allocation2 + $0x50] sm:$0xff] %v2750
        %2783 = vst [vmem:[#allocation2 + $0x58] sm:$0xff] %v2751
        %2784 = vst [vmem:[#allocation2 + $0x60] sm:$0xff] %v2752
        %2785 = vst [vmem:[#allocation2 + $0x68] sm:$0xff] %v2753
        %2786 = vst [vmem:[#allocation2 + $0x70] sm:$0xff] %v2754
        %2787 = vst [vmem:[#allocation2 + $0x78] sm:$0xff] %v2755
        %2788 = vst [vmem:[#allocation2 + $0x80] sm:$0xff] %v2756
        %2789 = vst [vmem:[#allocation2 + $0x88] sm:$0xff] %v2757
        %2790 = vst [vmem:[#allocation2 + $0x90] sm:$0xff] %v2758
        %2791 = vst [vmem:[#allocation2 + $0x98] sm:$0xff] %v2759
        %2792 = vst [vmem:[#allocation2 + $0xa0] sm:$0xff] %v2760
        %2793 = vst [vmem:[#allocation2 + $0xa8] sm:$0xff] %v2761
        %2794 = vst [vmem:[#allocation2 + $0xb0] sm:$0xff] %v2762
        %2795 = vst [vmem:[#allocation2 + $0xb8] sm:$0xff] %v2763
        %2796 = vst [vmem:[#allocation2 + $0xc0] sm:$0xff] %v2764
        %2797 = vst [vmem:[#allocation2 + $0xc8] sm:$0xff] %v2765
        %2798 = vst [vmem:[#allocation2 + $0xd0] sm:$0xff] %v2766
        %2799 = vst [vmem:[#allocation2 + $0xd8] sm:$0xff] %v2767
        %2800 = vst [vmem:[#allocation2 + $0xe0] sm:$0xff] %v2768
        %2801 = vst [vmem:[#allocation2 + $0xe8] sm:$0xff] %v2769
        %2802 = vst [vmem:[#allocation2 + $0xf0] sm:$0xff] %v2770
        %2803 = vst [vmem:[#allocation2 + $0xf8] sm:$0xff] %v2771
        %v2804 = vld [vmem:[%s1015] sm:$0xf]
        %v2805 = vld [vmem:[%s1015 + $0x4] sm:$0xf]
        %v2806 = vld [vmem:[%s1015 + $0xc] sm:$0xf]
        %v2807 = vld [vmem:[%s1015 + $0x10] sm:$0xf]
        %v2808 = vld [vmem:[%s1015 + $0x18] sm:$0xf]
        %v2809 = vld [vmem:[%s1015 + $0x1c] sm:$0xf]
        %v2810 = vld [vmem:[%s1015 + $0x24] sm:$0xf]
        %v2811 = vld [vmem:[%s1015 + $0x28] sm:$0xf]
        %v2812 = vld [vmem:[%s1015 + $0x30] sm:$0xf]
        %v2813 = vld [vmem:[%s1015 + $0x34] sm:$0xf]
        %v2814 = vld [vmem:[%s1015 + $0x3c] sm:$0xf]
        %v2815 = vld [vmem:[%s1015 + $0x40] sm:$0xf]
        %v2816 = vld [vmem:[%s1015 + $0x48] sm:$0xf]
        %v2817 = vld [vmem:[%s1015 + $0x4c] sm:$0xf]
        %v2818 = vld [vmem:[%s1015 + $0x54] sm:$0xf]
        %v2819 = vld [vmem:[%s1015 + $0x58] sm:$0xf]
        %v2820 = vld [vmem:[%s1015 + $0x60] sm:$0xf]
        %v2821 = vld [vmem:[%s1015 + $0x64] sm:$0xf]
        %v2822 = vld [vmem:[%s1015 + $0x6c] sm:$0xf]
        %v2823 = vld [vmem:[%s1015 + $0x70] sm:$0xf]
        %v2824 = vld [vmem:[%s1015 + $0x78] sm:$0xf]
        %v2825 = vld [vmem:[%s1015 + $0x7c] sm:$0xf]
        %v2826 = vld [vmem:[%s1015 + $0x84] sm:$0xf]
        %v2827 = vld [vmem:[%s1015 + $0x88] sm:$0xf]
        %v2828 = vld [vmem:[%s1015 + $0x90] sm:$0xf]
        %v2829 = vld [vmem:[%s1015 + $0x94] sm:$0xf]
        %v2830 = vld [vmem:[%s1015 + $0x9c] sm:$0xf]
        %v2831 = vld [vmem:[%s1015 + $0xa0] sm:$0xf]
        %v2832 = vld [vmem:[%s1015 + $0xa8] sm:$0xf]
        %v2833 = vld [vmem:[%s1015 + $0xac] sm:$0xf]
        %v2834 = vld [vmem:[%s1015 + $0xb4] sm:$0xf]
        %v2835 = vld [vmem:[%s1015 + $0xb8] sm:$0xf]
        %s2836 = scalar_lea.vmem %s1077, 6
        %v2837 = vld [vmem:[%s2836] sm:$0x3]
        %v2870 = vunpack.c.l.b16 %v2804
        %v2871 = vunpack.c.l.b16 %v2805
        %v2872 = vunpack.c.l.b16 %v2806
        %v2873 = vunpack.c.l.b16 %v2807
        %v2874 = vunpack.c.l.b16 %v2808
        %v2875 = vunpack.c.l.b16 %v2809
        %v2876 = vunpack.c.l.b16 %v2810
        %v2877 = vunpack.c.l.b16 %v2811
        %v2878 = vunpack.c.l.b16 %v2812
        %v2879 = vunpack.c.l.b16 %v2813
        %v2880 = vunpack.c.l.b16 %v2814
        %v2881 = vunpack.c.l.b16 %v2815
        %v2882 = vunpack.c.l.b16 %v2816
        %v2883 = vunpack.c.l.b16 %v2817
        %v2884 = vunpack.c.l.b16 %v2818
        %v2885 = vunpack.c.l.b16 %v2819
        %v2886 = vunpack.c.l.b16 %v2820
        %v2887 = vunpack.c.l.b16 %v2821
        %v2888 = vunpack.c.l.b16 %v2822
        %v2889 = vunpack.c.l.b16 %v2823
        %v2890 = vunpack.c.l.b16 %v2824
        %v2891 = vunpack.c.l.b16 %v2825
        %v2892 = vunpack.c.l.b16 %v2826
        %v2893 = vunpack.c.l.b16 %v2827
        %v2894 = vunpack.c.l.b16 %v2828
        %v2895 = vunpack.c.l.b16 %v2829
        %v2896 = vunpack.c.l.b16 %v2830
        %v2897 = vunpack.c.l.b16 %v2831
        %v2898 = vunpack.c.l.b16 %v2832
        %v2899 = vunpack.c.l.b16 %v2833
        %v2900 = vunpack.c.l.b16 %v2834
        %v2901 = vunpack.c.l.b16 %v2835
        %v2902 = vpack.c.b16 %v2871, %v2870
        %v2903 = vpack.c.b16 %v2873, %v2872
        %v2904 = vpack.c.b16 %v2875, %v2874
        %v2905 = vpack.c.b16 %v2877, %v2876
        %v2906 = vpack.c.b16 %v2879, %v2878
        %v2907 = vpack.c.b16 %v2881, %v2880
        %v2908 = vpack.c.b16 %v2883, %v2882
        %v2909 = vpack.c.b16 %v2885, %v2884
        %v2910 = vpack.c.b16 %v2887, %v2886
        %v2911 = vpack.c.b16 %v2889, %v2888
        %v2912 = vpack.c.b16 %v2891, %v2890
        %v2913 = vpack.c.b16 %v2893, %v2892
        %v2914 = vpack.c.b16 %v2895, %v2894
        %v2915 = vpack.c.b16 %v2897, %v2896
        %v2916 = vpack.c.b16 %v2899, %v2898
        %v2917 = vpack.c.b16 %v2901, %v2900
        %v2919 = vsel %vm1196, %v2902, 0
        %v2922 = vsel %vm1196, %v2903, 0
        %v2925 = vsel %vm1196, %v2904, 0
        %v2928 = vsel %vm1196, %v2905, 0
        %v2931 = vsel %vm1196, %v2906, 0
        %v2934 = vsel %vm1196, %v2907, 0
        %v2937 = vsel %vm1196, %v2908, 0
        %v2940 = vsel %vm1196, %v2909, 0
        %v2943 = vsel %vm1196, %v2910, 0
        %v2946 = vsel %vm1196, %v2911, 0
        %v2949 = vsel %vm1196, %v2912, 0
        %v2952 = vsel %vm1196, %v2913, 0
        %v2955 = vsel %vm1196, %v2914, 0
        %v2958 = vsel %vm1196, %v2915, 0
        %v2961 = vsel %vm1196, %v2916, 0
        %v2964 = vsel %vm1196, %v2917, 0
        %v2967 = vsel %vm1245, %v2837, 0
        %2969 = vmatprep.subr.bf16.mxu0 0
        %2970 = vmatpush1.bf16.msra.mxu0 0
        %2971 = vmatprep.subr.bf16.mxu0 0
        %2972 = vmatpush1.bf16.msra.mxu0 0
        %2973 = vmatprep.subr.bf16.mxu0 0
        %2974 = vmatpush1.bf16.msra.mxu0 0
        %2975 = vmatprep.subr.bf16.mxu0 0
        %2976 = vmatpush1.bf16.msra.mxu0 0
        %2977 = vmatprep.subr.bf16.mxu0 0
        %2978 = vmatpush1.bf16.msra.mxu0 0
        %2979 = vmatprep.subr.bf16.mxu0 0
        %2980 = vmatpush1.bf16.msra.mxu0 0
        %2981 = vmatprep.subr.bf16.mxu0 0
        %2982 = vmatpush1.bf16.msra.mxu0 0
        %2983 = vmatprep.subr.bf16.mxu0 0
        %2984 = vmatpush1.bf16.msra.mxu0 %v2967
        %2985 = vmatprep.subr.bf16.mxu0 0
        %2986 = vmatpush2.bf16.msra.mxu0 0
        %2987 = vmatprep.subr.bf16.mxu0 0
        %2988 = vmatpush2.bf16.msra.mxu0 0
        %2989 = vmatprep.subr.bf16.mxu0 0
        %2990 = vmatpush2.bf16.msra.mxu0 0
        %2991 = vmatprep.subr.bf16.mxu0 0
        %2992 = vmatpush2.bf16.msra.mxu0 0
        %2993 = vmatprep.subr.bf16.mxu0 0
        %2994 = vmatpush2.bf16.msra.mxu0 0
        %2995 = vmatprep.subr.bf16.mxu0 0
        %2996 = vmatpush2.bf16.msra.mxu0 0
        %2997 = vmatprep.subr.bf16.mxu0 0
        %2998 = vmatpush2.bf16.msra.mxu0 0
        %2999 = vmatprep.subr.bf16.mxu0 0
        %3000 = vmatpush2.bf16.msra.mxu0 0
        %3001 = vmatprep.mubr.bf16.mxu0 0
        %3002 = vmatmul.mubr.bf16.gmra.mxu0 %v2919
        %v3003 = vpop.f32.mrf.mxu0
        %v3004 = vadd.f32 0.0, %v3003
        %v3005 = vpop.f32.mrf.mxu0
        %v3006 = vpop.f32.mrf.mxu0
        %v3007 = vadd.f32 0.0, %v3006
        %v3008 = vpop.f32.mrf.mxu0
        %3009 = vmatprep.mubr.bf16.mxu0 0
        %3010 = vmatmul.mubr.bf16.gmra.mxu0 %v2922
        %v3011 = vpop.f32.mrf.mxu0
        %v3012 = vadd.f32 0.0, %v3011
        %v3013 = vpop.f32.mrf.mxu0
        %v3014 = vpop.f32.mrf.mxu0
        %v3015 = vadd.f32 0.0, %v3014
        %v3016 = vpop.f32.mrf.mxu0
        %3017 = vmatprep.mubr.bf16.mxu0 0
        %3018 = vmatmul.mubr.bf16.gmra.mxu0 %v2925
        %v3019 = vpop.f32.mrf.mxu0
        %v3020 = vadd.f32 0.0, %v3019
        %v3021 = vpop.f32.mrf.mxu0
        %v3022 = vpop.f32.mrf.mxu0
        %v3023 = vadd.f32 0.0, %v3022
        %v3024 = vpop.f32.mrf.mxu0
        %3025 = vmatprep.mubr.bf16.mxu0 0
        %3026 = vmatmul.mubr.bf16.gmra.mxu0 %v2928
        %v3027 = vpop.f32.mrf.mxu0
        %v3028 = vadd.f32 0.0, %v3027
        %v3029 = vpop.f32.mrf.mxu0
        %v3030 = vpop.f32.mrf.mxu0
        %v3031 = vadd.f32 0.0, %v3030
        %v3032 = vpop.f32.mrf.mxu0
        %3033 = vmatprep.mubr.bf16.mxu0 0
        %3034 = vmatmul.mubr.bf16.gmra.mxu0 %v2931
        %v3035 = vpop.f32.mrf.mxu0
        %v3036 = vadd.f32 0.0, %v3035
        %v3037 = vpop.f32.mrf.mxu0
        %v3038 = vpop.f32.mrf.mxu0
        %v3039 = vadd.f32 0.0, %v3038
        %v3040 = vpop.f32.mrf.mxu0
        %3041 = vmatprep.mubr.bf16.mxu0 0
        %3042 = vmatmul.mubr.bf16.gmra.mxu0 %v2934
        %v3043 = vpop.f32.mrf.mxu0
        %v3044 = vadd.f32 0.0, %v3043
        %v3045 = vpop.f32.mrf.mxu0
        %v3046 = vpop.f32.mrf.mxu0
        %v3047 = vadd.f32 0.0, %v3046
        %v3048 = vpop.f32.mrf.mxu0
        %3049 = vmatprep.mubr.bf16.mxu0 0
        %3050 = vmatmul.mubr.bf16.gmra.mxu0 %v2937
        %v3051 = vpop.f32.mrf.mxu0
        %v3052 = vadd.f32 0.0, %v3051
        %v3053 = vpop.f32.mrf.mxu0
        %v3054 = vpop.f32.mrf.mxu0
        %v3055 = vadd.f32 0.0, %v3054
        %v3056 = vpop.f32.mrf.mxu0
        %3057 = vmatprep.mubr.bf16.mxu0 0
        %3058 = vmatmul.mubr.bf16.gmra.mxu0 %v2940
        %v3059 = vpop.f32.mrf.mxu0
        %v3060 = vadd.f32 0.0, %v3059
        %v3061 = vpop.f32.mrf.mxu0
        %v3062 = vpop.f32.mrf.mxu0
        %v3063 = vadd.f32 0.0, %v3062
        %v3064 = vpop.f32.mrf.mxu0
        %3065 = vmatprep.mubr.bf16.mxu0 0
        %3066 = vmatmul.mubr.bf16.gmra.mxu0 %v2943
        %v3067 = vpop.f32.mrf.mxu0
        %v3068 = vadd.f32 0.0, %v3067
        %v3069 = vpop.f32.mrf.mxu0
        %v3070 = vpop.f32.mrf.mxu0
        %v3071 = vadd.f32 0.0, %v3070
        %v3072 = vpop.f32.mrf.mxu0
        %3073 = vmatprep.mubr.bf16.mxu0 0
        %3074 = vmatmul.mubr.bf16.gmra.mxu0 %v2946
        %v3075 = vpop.f32.mrf.mxu0
        %v3076 = vadd.f32 0.0, %v3075
        %v3077 = vpop.f32.mrf.mxu0
        %v3078 = vpop.f32.mrf.mxu0
        %v3079 = vadd.f32 0.0, %v3078
        %v3080 = vpop.f32.mrf.mxu0
        %3081 = vmatprep.mubr.bf16.mxu0 0
        %3082 = vmatmul.mubr.bf16.gmra.mxu0 %v2949
        %v3083 = vpop.f32.mrf.mxu0
        %v3084 = vadd.f32 0.0, %v3083
        %v3085 = vpop.f32.mrf.mxu0
        %v3086 = vpop.f32.mrf.mxu0
        %v3087 = vadd.f32 0.0, %v3086
        %v3088 = vpop.f32.mrf.mxu0
        %3089 = vmatprep.mubr.bf16.mxu0 0
        %3090 = vmatmul.mubr.bf16.gmra.mxu0 %v2952
        %v3091 = vpop.f32.mrf.mxu0
        %v3092 = vadd.f32 0.0, %v3091
        %v3093 = vpop.f32.mrf.mxu0
        %v3094 = vpop.f32.mrf.mxu0
        %v3095 = vadd.f32 0.0, %v3094
        %v3096 = vpop.f32.mrf.mxu0
        %3097 = vmatprep.mubr.bf16.mxu0 0
        %3098 = vmatmul.mubr.bf16.gmra.mxu0 %v2955
        %v3099 = vpop.f32.mrf.mxu0
        %v3100 = vadd.f32 0.0, %v3099
        %v3101 = vpop.f32.mrf.mxu0
        %v3102 = vpop.f32.mrf.mxu0
        %v3103 = vadd.f32 0.0, %v3102
        %v3104 = vpop.f32.mrf.mxu0
        %3105 = vmatprep.mubr.bf16.mxu0 0
        %3106 = vmatmul.mubr.bf16.gmra.mxu0 %v2958
        %v3107 = vpop.f32.mrf.mxu0
        %v3108 = vadd.f32 0.0, %v3107
        %v3109 = vpop.f32.mrf.mxu0
        %v3110 = vpop.f32.mrf.mxu0
        %v3111 = vadd.f32 0.0, %v3110
        %v3112 = vpop.f32.mrf.mxu0
        %3113 = vmatprep.mubr.bf16.mxu0 0
        %3114 = vmatmul.mubr.bf16.gmra.mxu0 %v2961
        %v3115 = vpop.f32.mrf.mxu0
        %v3116 = vadd.f32 0.0, %v3115
        %v3117 = vpop.f32.mrf.mxu0
        %v3118 = vpop.f32.mrf.mxu0
        %v3119 = vadd.f32 0.0, %v3118
        %v3120 = vpop.f32.mrf.mxu0
        %3121 = vmatprep.mubr.bf16.mxu0 0
        %3122 = vmatmul.mubr.bf16.gmra.mxu0 %v2964
        %v3123 = vpop.f32.mrf.mxu0
        %v3124 = vadd.f32 0.0, %v3123
        %v3125 = vpop.f32.mrf.mxu0
        %v3126 = vpop.f32.mrf.mxu0
        %v3127 = vadd.f32 0.0, %v3126
        %v3128 = vpop.f32.mrf.mxu0
        %3129 = vdwg.mxu0
        %v3130 = vld [vmem:[#allocation2] sm:$0xff]
        %v3131 = vld [vmem:[#allocation2 + $0x8] sm:$0xff]
        %v3132 = vld [vmem:[#allocation2 + $0x10] sm:$0xff]
        %v3133 = vld [vmem:[#allocation2 + $0x18] sm:$0xff]
        %v3134 = vld [vmem:[#allocation2 + $0x20] sm:$0xff]
        %v3135 = vld [vmem:[#allocation2 + $0x28] sm:$0xff]
        %v3136 = vld [vmem:[#allocation2 + $0x30] sm:$0xff]
        %v3137 = vld [vmem:[#allocation2 + $0x38] sm:$0xff]
        %v3138 = vld [vmem:[#allocation2 + $0x40] sm:$0xff]
        %v3139 = vld [vmem:[#allocation2 + $0x48] sm:$0xff]
        %v3140 = vld [vmem:[#allocation2 + $0x50] sm:$0xff]
        %v3141 = vld [vmem:[#allocation2 + $0x58] sm:$0xff]
        %v3142 = vld [vmem:[#allocation2 + $0x60] sm:$0xff]
        %v3143 = vld [vmem:[#allocation2 + $0x68] sm:$0xff]
        %v3144 = vld [vmem:[#allocation2 + $0x70] sm:$0xff]
        %v3145 = vld [vmem:[#allocation2 + $0x78] sm:$0xff]
        %v3146 = vld [vmem:[#allocation2 + $0x80] sm:$0xff]
        %v3147 = vld [vmem:[#allocation2 + $0x88] sm:$0xff]
        %v3148 = vld [vmem:[#allocation2 + $0x90] sm:$0xff]
        %v3149 = vld [vmem:[#allocation2 + $0x98] sm:$0xff]
        %v3150 = vld [vmem:[#allocation2 + $0xa0] sm:$0xff]
        %v3151 = vld [vmem:[#allocation2 + $0xa8] sm:$0xff]
        %v3152 = vld [vmem:[#allocation2 + $0xb0] sm:$0xff]
        %v3153 = vld [vmem:[#allocation2 + $0xb8] sm:$0xff]
        %v3154 = vld [vmem:[#allocation2 + $0xc0] sm:$0xff]
        %v3155 = vld [vmem:[#allocation2 + $0xc8] sm:$0xff]
        %v3156 = vld [vmem:[#allocation2 + $0xd0] sm:$0xff]
        %v3157 = vld [vmem:[#allocation2 + $0xd8] sm:$0xff]
        %v3158 = vld [vmem:[#allocation2 + $0xe0] sm:$0xff]
        %v3159 = vld [vmem:[#allocation2 + $0xe8] sm:$0xff]
        %v3160 = vld [vmem:[#allocation2 + $0xf0] sm:$0xff]
        %v3161 = vld [vmem:[#allocation2 + $0xf8] sm:$0xff]
        %v3162 = vadd.f32 %v3130, %v3004
        %v3163 = vadd.f32 %v3131, %v3007
        %v3164 = vadd.f32 %v3132, %v3012
        %v3165 = vadd.f32 %v3133, %v3015
        %v3166 = vadd.f32 %v3134, %v3020
        %v3167 = vadd.f32 %v3135, %v3023
        %v3168 = vadd.f32 %v3136, %v3028
        %v3169 = vadd.f32 %v3137, %v3031
        %v3170 = vadd.f32 %v3138, %v3036
        %v3171 = vadd.f32 %v3139, %v3039
        %v3172 = vadd.f32 %v3140, %v3044
        %v3173 = vadd.f32 %v3141, %v3047
        %v3174 = vadd.f32 %v3142, %v3052
        %v3175 = vadd.f32 %v3143, %v3055
        %v3176 = vadd.f32 %v3144, %v3060
        %v3177 = vadd.f32 %v3145, %v3063
        %v3178 = vadd.f32 %v3146, %v3068
        %v3179 = vadd.f32 %v3147, %v3071
        %v3180 = vadd.f32 %v3148, %v3076
        %v3181 = vadd.f32 %v3149, %v3079
        %v3182 = vadd.f32 %v3150, %v3084
        %v3183 = vadd.f32 %v3151, %v3087
        %v3184 = vadd.f32 %v3152, %v3092
        %v3185 = vadd.f32 %v3153, %v3095
        %v3186 = vadd.f32 %v3154, %v3100
        %v3187 = vadd.f32 %v3155, %v3103
        %v3188 = vadd.f32 %v3156, %v3108
        %v3189 = vadd.f32 %v3157, %v3111
        %v3190 = vadd.f32 %v3158, %v3116
        %v3191 = vadd.f32 %v3159, %v3119
        %v3192 = vadd.f32 %v3160, %v3124
        %v3193 = vadd.f32 %v3161, %v3127
        %3194 = vst [vmem:[#allocation2] sm:$0xff] %v3162
        %3195 = vst [vmem:[#allocation2 + $0x8] sm:$0xff] %v3163
        %3196 = vst [vmem:[#allocation2 + $0x10] sm:$0xff] %v3164
        %3197 = vst [vmem:[#allocation2 + $0x18] sm:$0xff] %v3165
        %3198 = vst [vmem:[#allocation2 + $0x20] sm:$0xff] %v3166
        %3199 = vst [vmem:[#allocation2 + $0x28] sm:$0xff] %v3167
        %3200 = vst [vmem:[#allocation2 + $0x30] sm:$0xff] %v3168
        %3201 = vst [vmem:[#allocation2 + $0x38] sm:$0xff] %v3169
        %3202 = vst [vmem:[#allocation2 + $0x40] sm:$0xff] %v3170
        %3203 = vst [vmem:[#allocation2 + $0x48] sm:$0xff] %v3171
        %3204 = vst [vmem:[#allocation2 + $0x50] sm:$0xff] %v3172
        %3205 = vst [vmem:[#allocation2 + $0x58] sm:$0xff] %v3173
        %3206 = vst [vmem:[#allocation2 + $0x60] sm:$0xff] %v3174
        %3207 = vst [vmem:[#allocation2 + $0x68] sm:$0xff] %v3175
        %3208 = vst [vmem:[#allocation2 + $0x70] sm:$0xff] %v3176
        %3209 = vst [vmem:[#allocation2 + $0x78] sm:$0xff] %v3177
        %3210 = vst [vmem:[#allocation2 + $0x80] sm:$0xff] %v3178
        %3211 = vst [vmem:[#allocation2 + $0x88] sm:$0xff] %v3179
        %3212 = vst [vmem:[#allocation2 + $0x90] sm:$0xff] %v3180
        %3213 = vst [vmem:[#allocation2 + $0x98] sm:$0xff] %v3181
        %3214 = vst [vmem:[#allocation2 + $0xa0] sm:$0xff] %v3182
        %3215 = vst [vmem:[#allocation2 + $0xa8] sm:$0xff] %v3183
        %3216 = vst [vmem:[#allocation2 + $0xb0] sm:$0xff] %v3184
        %3217 = vst [vmem:[#allocation2 + $0xb8] sm:$0xff] %v3185
        %3218 = vst [vmem:[#allocation2 + $0xc0] sm:$0xff] %v3186
        %3219 = vst [vmem:[#allocation2 + $0xc8] sm:$0xff] %v3187
        %3220 = vst [vmem:[#allocation2 + $0xd0] sm:$0xff] %v3188
        %3221 = vst [vmem:[#allocation2 + $0xd8] sm:$0xff] %v3189
        %3222 = vst [vmem:[#allocation2 + $0xe0] sm:$0xff] %v3190
        %3223 = vst [vmem:[#allocation2 + $0xe8] sm:$0xff] %v3191
        %3224 = vst [vmem:[#allocation2 + $0xf0] sm:$0xff] %v3192
        %3225 = vst [vmem:[#allocation2 + $0xf8] sm:$0xff] %v3193
        %v3226 = vld [vmem:[%s1015] sm:$0xf]
        %v3227 = vld [vmem:[%s1015 + $0x4] sm:$0xf]
        %v3228 = vld [vmem:[%s1015 + $0x8] sm:$0x1]
        %v3229 = vld [vmem:[%s1015 + $0xc] sm:$0xf]
        %v3230 = vld [vmem:[%s1015 + $0x10] sm:$0xf]
        %v3231 = vld [vmem:[%s1015 + $0x14] sm:$0x1]
        %v3232 = vld [vmem:[%s1015 + $0x18] sm:$0xf]
        %v3233 = vld [vmem:[%s1015 + $0x1c] sm:$0xf]
        %v3234 = vld [vmem:[%s1015 + $0x20] sm:$0x1]
        %v3235 = vld [vmem:[%s1015 + $0x24] sm:$0xf]
        %v3236 = vld [vmem:[%s1015 + $0x28] sm:$0xf]
        %v3237 = vld [vmem:[%s1015 + $0x2c] sm:$0x1]
        %v3238 = vld [vmem:[%s1015 + $0x30] sm:$0xf]
        %v3239 = vld [vmem:[%s1015 + $0x34] sm:$0xf]
        %v3240 = vld [vmem:[%s1015 + $0x38] sm:$0x1]
        %v3241 = vld [vmem:[%s1015 + $0x3c] sm:$0xf]
        %v3242 = vld [vmem:[%s1015 + $0x40] sm:$0xf]
        %v3243 = vld [vmem:[%s1015 + $0x44] sm:$0x1]
        %v3244 = vld [vmem:[%s1015 + $0x48] sm:$0xf]
        %v3245 = vld [vmem:[%s1015 + $0x4c] sm:$0xf]
        %v3246 = vld [vmem:[%s1015 + $0x50] sm:$0x1]
        %v3247 = vld [vmem:[%s1015 + $0x54] sm:$0xf]
        %v3248 = vld [vmem:[%s1015 + $0x58] sm:$0xf]
        %v3249 = vld [vmem:[%s1015 + $0x5c] sm:$0x1]
        %v3250 = vld [vmem:[%s1015 + $0x60] sm:$0xf]
        %v3251 = vld [vmem:[%s1015 + $0x64] sm:$0xf]
        %v3252 = vld [vmem:[%s1015 + $0x68] sm:$0x1]
        %v3253 = vld [vmem:[%s1015 + $0x6c] sm:$0xf]
        %v3254 = vld [vmem:[%s1015 + $0x70] sm:$0xf]
        %v3255 = vld [vmem:[%s1015 + $0x74] sm:$0x1]
        %v3256 = vld [vmem:[%s1015 + $0x78] sm:$0xf]
        %v3257 = vld [vmem:[%s1015 + $0x7c] sm:$0xf]
        %v3258 = vld [vmem:[%s1015 + $0x80] sm:$0x1]
        %v3259 = vld [vmem:[%s1015 + $0x84] sm:$0xf]
        %v3260 = vld [vmem:[%s1015 + $0x88] sm:$0xf]
        %v3261 = vld [vmem:[%s1015 + $0x8c] sm:$0x1]
        %v3262 = vld [vmem:[%s1015 + $0x90] sm:$0xf]
        %v3263 = vld [vmem:[%s1015 + $0x94] sm:$0xf]
        %v3264 = vld [vmem:[%s1015 + $0x98] sm:$0x1]
        %v3265 = vld [vmem:[%s1015 + $0x9c] sm:$0xf]
        %v3266 = vld [vmem:[%s1015 + $0xa0] sm:$0xf]
        %v3267 = vld [vmem:[%s1015 + $0xa4] sm:$0x1]
        %v3268 = vld [vmem:[%s1015 + $0xa8] sm:$0xf]
        %v3269 = vld [vmem:[%s1015 + $0xac] sm:$0xf]
        %v3270 = vld [vmem:[%s1015 + $0xb0] sm:$0x1]
        %v3271 = vld [vmem:[%s1015 + $0xb4] sm:$0xf]
        %v3272 = vld [vmem:[%s1015 + $0xb8] sm:$0xf]
        %v3273 = vld [vmem:[%s1015 + $0xbc] sm:$0x1]
        %v3275 = vshrl.u32 %v3226, 16
        %v3277 = vrot.slane %v3275, 4
        %v3278 = vshll.u32 %v3226, 16
        %v3280 = vrot.slane %v3278, 5
        %v3281 = vor.u32 %v3277, %v3280
        %v3282 = vrot.slane %v3281, 4
        %v3284 = vshll.u32 %v3227, 16
        %v3286 = vrot.slane %v3284, 5
        %v3287 = vsel %vm1492, %v3282, %v3286
        %v3288 = vshrl.u32 %v3227, 16
        %v3290 = vrot.slane %v3288, 4
        %v3291 = vor.u32 %v3290, %v3286
        %v3292 = vrot.slane %v3291, 4
        %v3294 = vshll.u32 %v3228, 16
        %v3296 = vrot.slane %v3294, 5
        %v3297 = vsel %vm1492, %v3292, %v3296
        %v3299 = vshrl.u32 %v3229, 16
        %v3301 = vrot.slane %v3299, 4
        %v3302 = vshll.u32 %v3229, 16
        %v3304 = vrot.slane %v3302, 5
        %v3305 = vor.u32 %v3301, %v3304
        %v3306 = vrot.slane %v3305, 4
        %v3308 = vshll.u32 %v3230, 16
        %v3310 = vrot.slane %v3308, 5
        %v3311 = vsel %vm1492, %v3306, %v3310
        %v3312 = vshrl.u32 %v3230, 16
        %v3314 = vrot.slane %v3312, 4
        %v3315 = vor.u32 %v3314, %v3310
        %v3316 = vrot.slane %v3315, 4
        %v3318 = vshll.u32 %v3231, 16
        %v3320 = vrot.slane %v3318, 5
        %v3321 = vsel %vm1492, %v3316, %v3320
        %v3323 = vshrl.u32 %v3232, 16
        %v3325 = vrot.slane %v3323, 4
        %v3326 = vshll.u32 %v3232, 16
        %v3328 = vrot.slane %v3326, 5
        %v3329 = vor.u32 %v3325, %v3328
        %v3330 = vrot.slane %v3329, 4
        %v3332 = vshll.u32 %v3233, 16
        %v3334 = vrot.slane %v3332, 5
        %v3335 = vsel %vm1492, %v3330, %v3334
        %v3336 = vshrl.u32 %v3233, 16
        %v3338 = vrot.slane %v3336, 4
        %v3339 = vor.u32 %v3338, %v3334
        %v3340 = vrot.slane %v3339, 4
        %v3342 = vshll.u32 %v3234, 16
        %v3344 = vrot.slane %v3342, 5
        %v3345 = vsel %vm1492, %v3340, %v3344
        %v3347 = vshrl.u32 %v3235, 16
        %v3349 = vrot.slane %v3347, 4
        %v3350 = vshll.u32 %v3235, 16
        %v3352 = vrot.slane %v3350, 5
        %v3353 = vor.u32 %v3349, %v3352
        %v3354 = vrot.slane %v3353, 4
        %v3356 = vshll.u32 %v3236, 16
        %v3358 = vrot.slane %v3356, 5
        %v3359 = vsel %vm1492, %v3354, %v3358
        %v3360 = vshrl.u32 %v3236, 16
        %v3362 = vrot.slane %v3360, 4
        %v3363 = vor.u32 %v3362, %v3358
        %v3364 = vrot.slane %v3363, 4
        %v3366 = vshll.u32 %v3237, 16
        %v3368 = vrot.slane %v3366, 5
        %v3369 = vsel %vm1492, %v3364, %v3368
        %v3371 = vshrl.u32 %v3238, 16
        %v3373 = vrot.slane %v3371, 4
        %v3374 = vshll.u32 %v3238, 16
        %v3376 = vrot.slane %v3374, 5
        %v3377 = vor.u32 %v3373, %v3376
        %v3378 = vrot.slane %v3377, 4
        %v3380 = vshll.u32 %v3239, 16
        %v3382 = vrot.slane %v3380, 5
        %v3383 = vsel %vm1492, %v3378, %v3382
        %v3384 = vshrl.u32 %v3239, 16
        %v3386 = vrot.slane %v3384, 4
        %v3387 = vor.u32 %v3386, %v3382
        %v3388 = vrot.slane %v3387, 4
        %v3390 = vshll.u32 %v3240, 16
        %v3392 = vrot.slane %v3390, 5
        %v3393 = vsel %vm1492, %v3388, %v3392
        %v3395 = vshrl.u32 %v3241, 16
        %v3397 = vrot.slane %v3395, 4
        %v3398 = vshll.u32 %v3241, 16
        %v3400 = vrot.slane %v3398, 5
        %v3401 = vor.u32 %v3397, %v3400
        %v3402 = vrot.slane %v3401, 4
        %v3404 = vshll.u32 %v3242, 16
        %v3406 = vrot.slane %v3404, 5
        %v3407 = vsel %vm1492, %v3402, %v3406
        %v3408 = vshrl.u32 %v3242, 16
        %v3410 = vrot.slane %v3408, 4
        %v3411 = vor.u32 %v3410, %v3406
        %v3412 = vrot.slane %v3411, 4
        %v3414 = vshll.u32 %v3243, 16
        %v3416 = vrot.slane %v3414, 5
        %v3417 = vsel %vm1492, %v3412, %v3416
        %v3419 = vshrl.u32 %v3244, 16
        %v3421 = vrot.slane %v3419, 4
        %v3422 = vshll.u32 %v3244, 16
        %v3424 = vrot.slane %v3422, 5
        %v3425 = vor.u32 %v3421, %v3424
        %v3426 = vrot.slane %v3425, 4
        %v3428 = vshll.u32 %v3245, 16
        %v3430 = vrot.slane %v3428, 5
        %v3431 = vsel %vm1492, %v3426, %v3430
        %v3432 = vshrl.u32 %v3245, 16
        %v3434 = vrot.slane %v3432, 4
        %v3435 = vor.u32 %v3434, %v3430
        %v3436 = vrot.slane %v3435, 4
        %v3438 = vshll.u32 %v3246, 16
        %v3440 = vrot.slane %v3438, 5
        %v3441 = vsel %vm1492, %v3436, %v3440
        %v3443 = vshrl.u32 %v3247, 16
        %v3445 = vrot.slane %v3443, 4
        %v3446 = vshll.u32 %v3247, 16
        %v3448 = vrot.slane %v3446, 5
        %v3449 = vor.u32 %v3445, %v3448
        %v3450 = vrot.slane %v3449, 4
        %v3452 = vshll.u32 %v3248, 16
        %v3454 = vrot.slane %v3452, 5
        %v3455 = vsel %vm1492, %v3450, %v3454
        %v3456 = vshrl.u32 %v3248, 16
        %v3458 = vrot.slane %v3456, 4
        %v3459 = vor.u32 %v3458, %v3454
        %v3460 = vrot.slane %v3459, 4
        %v3462 = vshll.u32 %v3249, 16
        %v3464 = vrot.slane %v3462, 5
        %v3465 = vsel %vm1492, %v3460, %v3464
        %v3467 = vshrl.u32 %v3250, 16
        %v3469 = vrot.slane %v3467, 4
        %v3470 = vshll.u32 %v3250, 16
        %v3472 = vrot.slane %v3470, 5
        %v3473 = vor.u32 %v3469, %v3472
        %v3474 = vrot.slane %v3473, 4
        %v3476 = vshll.u32 %v3251, 16
        %v3478 = vrot.slane %v3476, 5
        %v3479 = vsel %vm1492, %v3474, %v3478
        %v3480 = vshrl.u32 %v3251, 16
        %v3482 = vrot.slane %v3480, 4
        %v3483 = vor.u32 %v3482, %v3478
        %v3484 = vrot.slane %v3483, 4
        %v3486 = vshll.u32 %v3252, 16
        %v3488 = vrot.slane %v3486, 5
        %v3489 = vsel %vm1492, %v3484, %v3488
        %v3491 = vshrl.u32 %v3253, 16
        %v3493 = vrot.slane %v3491, 4
        %v3494 = vshll.u32 %v3253, 16
        %v3496 = vrot.slane %v3494, 5
        %v3497 = vor.u32 %v3493, %v3496
        %v3498 = vrot.slane %v3497, 4
        %v3500 = vshll.u32 %v3254, 16
        %v3502 = vrot.slane %v3500, 5
        %v3503 = vsel %vm1492, %v3498, %v3502
        %v3504 = vshrl.u32 %v3254, 16
        %v3506 = vrot.slane %v3504, 4
        %v3507 = vor.u32 %v3506, %v3502
        %v3508 = vrot.slane %v3507, 4
        %v3510 = vshll.u32 %v3255, 16
        %v3512 = vrot.slane %v3510, 5
        %v3513 = vsel %vm1492, %v3508, %v3512
        %v3515 = vshrl.u32 %v3256, 16
        %v3517 = vrot.slane %v3515, 4
        %v3518 = vshll.u32 %v3256, 16
        %v3520 = vrot.slane %v3518, 5
        %v3521 = vor.u32 %v3517, %v3520
        %v3522 = vrot.slane %v3521, 4
        %v3524 = vshll.u32 %v3257, 16
        %v3526 = vrot.slane %v3524, 5
        %v3527 = vsel %vm1492, %v3522, %v3526
        %v3528 = vshrl.u32 %v3257, 16
        %v3530 = vrot.slane %v3528, 4
        %v3531 = vor.u32 %v3530, %v3526
        %v3532 = vrot.slane %v3531, 4
        %v3534 = vshll.u32 %v3258, 16
        %v3536 = vrot.slane %v3534, 5
        %v3537 = vsel %vm1492, %v3532, %v3536
        %v3539 = vshrl.u32 %v3259, 16
        %v3541 = vrot.slane %v3539, 4
        %v3542 = vshll.u32 %v3259, 16
        %v3544 = vrot.slane %v3542, 5
        %v3545 = vor.u32 %v3541, %v3544
        %v3546 = vrot.slane %v3545, 4
        %v3548 = vshll.u32 %v3260, 16
        %v3550 = vrot.slane %v3548, 5
        %v3551 = vsel %vm1492, %v3546, %v3550
        %v3552 = vshrl.u32 %v3260, 16
        %v3554 = vrot.slane %v3552, 4
        %v3555 = vor.u32 %v3554, %v3550
        %v3556 = vrot.slane %v3555, 4
        %v3558 = vshll.u32 %v3261, 16
        %v3560 = vrot.slane %v3558, 5
        %v3561 = vsel %vm1492, %v3556, %v3560
        %v3563 = vshrl.u32 %v3262, 16
        %v3565 = vrot.slane %v3563, 4
        %v3566 = vshll.u32 %v3262, 16
        %v3568 = vrot.slane %v3566, 5
        %v3569 = vor.u32 %v3565, %v3568
        %v3570 = vrot.slane %v3569, 4
        %v3572 = vshll.u32 %v3263, 16
        %v3574 = vrot.slane %v3572, 5
        %v3575 = vsel %vm1492, %v3570, %v3574
        %v3576 = vshrl.u32 %v3263, 16
        %v3578 = vrot.slane %v3576, 4
        %v3579 = vor.u32 %v3578, %v3574
        %v3580 = vrot.slane %v3579, 4
        %v3582 = vshll.u32 %v3264, 16
        %v3584 = vrot.slane %v3582, 5
        %v3585 = vsel %vm1492, %v3580, %v3584
        %v3587 = vshrl.u32 %v3265, 16
        %v3589 = vrot.slane %v3587, 4
        %v3590 = vshll.u32 %v3265, 16
        %v3592 = vrot.slane %v3590, 5
        %v3593 = vor.u32 %v3589, %v3592
        %v3594 = vrot.slane %v3593, 4
        %v3596 = vshll.u32 %v3266, 16
        %v3598 = vrot.slane %v3596, 5
        %v3599 = vsel %vm1492, %v3594, %v3598
        %v3600 = vshrl.u32 %v3266, 16
        %v3602 = vrot.slane %v3600, 4
        %v3603 = vor.u32 %v3602, %v3598
        %v3604 = vrot.slane %v3603, 4
        %v3606 = vshll.u32 %v3267, 16
        %v3608 = vrot.slane %v3606, 5
        %v3609 = vsel %vm1492, %v3604, %v3608
        %v3611 = vshrl.u32 %v3268, 16
        %v3613 = vrot.slane %v3611, 4
        %v3614 = vshll.u32 %v3268, 16
        %v3616 = vrot.slane %v3614, 5
        %v3617 = vor.u32 %v3613, %v3616
        %v3618 = vrot.slane %v3617, 4
        %v3620 = vshll.u32 %v3269, 16
        %v3622 = vrot.slane %v3620, 5
        %v3623 = vsel %vm1492, %v3618, %v3622
        %v3624 = vshrl.u32 %v3269, 16
        %v3626 = vrot.slane %v3624, 4
        %v3627 = vor.u32 %v3626, %v3622
        %v3628 = vrot.slane %v3627, 4
        %v3630 = vshll.u32 %v3270, 16
        %v3632 = vrot.slane %v3630, 5
        %v3633 = vsel %vm1492, %v3628, %v3632
        %v3635 = vshrl.u32 %v3271, 16
        %v3637 = vrot.slane %v3635, 4
        %v3638 = vshll.u32 %v3271, 16
        %v3640 = vrot.slane %v3638, 5
        %v3641 = vor.u32 %v3637, %v3640
        %v3642 = vrot.slane %v3641, 4
        %v3644 = vshll.u32 %v3272, 16
        %v3646 = vrot.slane %v3644, 5
        %v3647 = vsel %vm1492, %v3642, %v3646
        %v3648 = vshrl.u32 %v3272, 16
        %v3650 = vrot.slane %v3648, 4
        %v3651 = vor.u32 %v3650, %v3646
        %v3652 = vrot.slane %v3651, 4
        %v3654 = vshll.u32 %v3273, 16
        %v3656 = vrot.slane %v3654, 5
        %v3657 = vsel %vm1492, %v3652, %v3656
        %s3658 = scalar_lea.vmem %s1077, 8
        %v3659 = vld [vmem:[%s3658] sm:$0x3]
        %v3660 = vunpack.c.l.b16 %v3287
        %v3661 = vunpack.c.l.b16 %v3297
        %v3662 = vunpack.c.l.b16 %v3311
        %v3663 = vunpack.c.l.b16 %v3321
        %v3664 = vunpack.c.l.b16 %v3335
        %v3665 = vunpack.c.l.b16 %v3345
        %v3666 = vunpack.c.l.b16 %v3359
        %v3667 = vunpack.c.l.b16 %v3369
        %v3668 = vunpack.c.l.b16 %v3383
        %v3669 = vunpack.c.l.b16 %v3393
        %v3670 = vunpack.c.l.b16 %v3407
        %v3671 = vunpack.c.l.b16 %v3417
        %v3672 = vunpack.c.l.b16 %v3431
        %v3673 = vunpack.c.l.b16 %v3441
        %v3674 = vunpack.c.l.b16 %v3455
        %v3675 = vunpack.c.l.b16 %v3465
        %v3676 = vunpack.c.l.b16 %v3479
        %v3677 = vunpack.c.l.b16 %v3489
        %v3678 = vunpack.c.l.b16 %v3503
        %v3679 = vunpack.c.l.b16 %v3513
        %v3680 = vunpack.c.l.b16 %v3527
        %v3681 = vunpack.c.l.b16 %v3537
        %v3682 = vunpack.c.l.b16 %v3551
        %v3683 = vunpack.c.l.b16 %v3561
        %v3684 = vunpack.c.l.b16 %v3575
        %v3685 = vunpack.c.l.b16 %v3585
        %v3686 = vunpack.c.l.b16 %v3599
        %v3687 = vunpack.c.l.b16 %v3609
        %v3688 = vunpack.c.l.b16 %v3623
        %v3689 = vunpack.c.l.b16 %v3633
        %v3690 = vunpack.c.l.b16 %v3647
        %v3691 = vunpack.c.l.b16 %v3657
        %v3692 = vpack.c.b16 %v3661, %v3660
        %v3693 = vpack.c.b16 %v3663, %v3662
        %v3694 = vpack.c.b16 %v3665, %v3664
        %v3695 = vpack.c.b16 %v3667, %v3666
        %v3696 = vpack.c.b16 %v3669, %v3668
        %v3697 = vpack.c.b16 %v3671, %v3670
        %v3698 = vpack.c.b16 %v3673, %v3672
        %v3699 = vpack.c.b16 %v3675, %v3674
        %v3700 = vpack.c.b16 %v3677, %v3676
        %v3701 = vpack.c.b16 %v3679, %v3678
        %v3702 = vpack.c.b16 %v3681, %v3680
        %v3703 = vpack.c.b16 %v3683, %v3682
        %v3704 = vpack.c.b16 %v3685, %v3684
        %v3705 = vpack.c.b16 %v3687, %v3686
        %v3706 = vpack.c.b16 %v3689, %v3688
        %v3707 = vpack.c.b16 %v3691, %v3690
        %v3709 = vsel %vm1196, %v3692, 0
        %v3712 = vsel %vm1196, %v3693, 0
        %v3715 = vsel %vm1196, %v3694, 0
        %v3718 = vsel %vm1196, %v3695, 0
        %v3721 = vsel %vm1196, %v3696, 0
        %v3724 = vsel %vm1196, %v3697, 0
        %v3727 = vsel %vm1196, %v3698, 0
        %v3730 = vsel %vm1196, %v3699, 0
        %v3733 = vsel %vm1196, %v3700, 0
        %v3736 = vsel %vm1196, %v3701, 0
        %v3739 = vsel %vm1196, %v3702, 0
        %v3742 = vsel %vm1196, %v3703, 0
        %v3745 = vsel %vm1196, %v3704, 0
        %v3748 = vsel %vm1196, %v3705, 0
        %v3751 = vsel %vm1196, %v3706, 0
        %v3754 = vsel %vm1196, %v3707, 0
        %v3757 = vsel %vm1245, %v3659, 0
        %3759 = vmatprep.subr.bf16.mxu0 0
        %3760 = vmatpush1.bf16.msra.mxu0 0
        %3761 = vmatprep.subr.bf16.mxu0 0
        %3762 = vmatpush1.bf16.msra.mxu0 0
        %3763 = vmatprep.subr.bf16.mxu0 0
        %3764 = vmatpush1.bf16.msra.mxu0 0
        %3765 = vmatprep.subr.bf16.mxu0 0
        %3766 = vmatpush1.bf16.msra.mxu0 0
        %3767 = vmatprep.subr.bf16.mxu0 0
        %3768 = vmatpush1.bf16.msra.mxu0 0
        %3769 = vmatprep.subr.bf16.mxu0 0
        %3770 = vmatpush1.bf16.msra.mxu0 0
        %3771 = vmatprep.subr.bf16.mxu0 0
        %3772 = vmatpush1.bf16.msra.mxu0 0
        %3773 = vmatprep.subr.bf16.mxu0 0
        %3774 = vmatpush1.bf16.msra.mxu0 %v3757
        %3775 = vmatprep.subr.bf16.mxu0 0
        %3776 = vmatpush2.bf16.msra.mxu0 0
        %3777 = vmatprep.subr.bf16.mxu0 0
        %3778 = vmatpush2.bf16.msra.mxu0 0
        %3779 = vmatprep.subr.bf16.mxu0 0
        %3780 = vmatpush2.bf16.msra.mxu0 0
        %3781 = vmatprep.subr.bf16.mxu0 0
        %3782 = vmatpush2.bf16.msra.mxu0 0
        %3783 = vmatprep.subr.bf16.mxu0 0
        %3784 = vmatpush2.bf16.msra.mxu0 0
        %3785 = vmatprep.subr.bf16.mxu0 0
        %3786 = vmatpush2.bf16.msra.mxu0 0
        %3787 = vmatprep.subr.bf16.mxu0 0
        %3788 = vmatpush2.bf16.msra.mxu0 0
        %3789 = vmatprep.subr.bf16.mxu0 0
        %3790 = vmatpush2.bf16.msra.mxu0 0
        %3791 = vmatprep.mubr.bf16.mxu0 0
        %3792 = vmatmul.mubr.bf16.gmra.mxu0 %v3709
        %v3793 = vpop.f32.mrf.mxu0
        %v3794 = vadd.f32 0.0, %v3793
        %v3795 = vpop.f32.mrf.mxu0
        %v3796 = vpop.f32.mrf.mxu0
        %v3797 = vadd.f32 0.0, %v3796
        %v3798 = vpop.f32.mrf.mxu0
        %3799 = vmatprep.mubr.bf16.mxu0 0
        %3800 = vmatmul.mubr.bf16.gmra.mxu0 %v3712
        %v3801 = vpop.f32.mrf.mxu0
        %v3802 = vadd.f32 0.0, %v3801
        %v3803 = vpop.f32.mrf.mxu0
        %v3804 = vpop.f32.mrf.mxu0
        %v3805 = vadd.f32 0.0, %v3804
        %v3806 = vpop.f32.mrf.mxu0
        %3807 = vmatprep.mubr.bf16.mxu0 0
        %3808 = vmatmul.mubr.bf16.gmra.mxu0 %v3715
        %v3809 = vpop.f32.mrf.mxu0
        %v3810 = vadd.f32 0.0, %v3809
        %v3811 = vpop.f32.mrf.mxu0
        %v3812 = vpop.f32.mrf.mxu0
        %v3813 = vadd.f32 0.0, %v3812
        %v3814 = vpop.f32.mrf.mxu0
        %3815 = vmatprep.mubr.bf16.mxu0 0
        %3816 = vmatmul.mubr.bf16.gmra.mxu0 %v3718
        %v3817 = vpop.f32.mrf.mxu0
        %v3818 = vadd.f32 0.0, %v3817
        %v3819 = vpop.f32.mrf.mxu0
        %v3820 = vpop.f32.mrf.mxu0
        %v3821 = vadd.f32 0.0, %v3820
        %v3822 = vpop.f32.mrf.mxu0
        %3823 = vmatprep.mubr.bf16.mxu0 0
        %3824 = vmatmul.mubr.bf16.gmra.mxu0 %v3721
        %v3825 = vpop.f32.mrf.mxu0
        %v3826 = vadd.f32 0.0, %v3825
        %v3827 = vpop.f32.mrf.mxu0
        %v3828 = vpop.f32.mrf.mxu0
        %v3829 = vadd.f32 0.0, %v3828
        %v3830 = vpop.f32.mrf.mxu0
        %3831 = vmatprep.mubr.bf16.mxu0 0
        %3832 = vmatmul.mubr.bf16.gmra.mxu0 %v3724
        %v3833 = vpop.f32.mrf.mxu0
        %v3834 = vadd.f32 0.0, %v3833
        %v3835 = vpop.f32.mrf.mxu0
        %v3836 = vpop.f32.mrf.mxu0
        %v3837 = vadd.f32 0.0, %v3836
        %v3838 = vpop.f32.mrf.mxu0
        %3839 = vmatprep.mubr.bf16.mxu0 0
        %3840 = vmatmul.mubr.bf16.gmra.mxu0 %v3727
        %v3841 = vpop.f32.mrf.mxu0
        %v3842 = vadd.f32 0.0, %v3841
        %v3843 = vpop.f32.mrf.mxu0
        %v3844 = vpop.f32.mrf.mxu0
        %v3845 = vadd.f32 0.0, %v3844
        %v3846 = vpop.f32.mrf.mxu0
        %3847 = vmatprep.mubr.bf16.mxu0 0
        %3848 = vmatmul.mubr.bf16.gmra.mxu0 %v3730
        %v3849 = vpop.f32.mrf.mxu0
        %v3850 = vadd.f32 0.0, %v3849
        %v3851 = vpop.f32.mrf.mxu0
        %v3852 = vpop.f32.mrf.mxu0
        %v3853 = vadd.f32 0.0, %v3852
        %v3854 = vpop.f32.mrf.mxu0
        %3855 = vmatprep.mubr.bf16.mxu0 0
        %3856 = vmatmul.mubr.bf16.gmra.mxu0 %v3733
        %v3857 = vpop.f32.mrf.mxu0
        %v3858 = vadd.f32 0.0, %v3857
        %v3859 = vpop.f32.mrf.mxu0
        %v3860 = vpop.f32.mrf.mxu0
        %v3861 = vadd.f32 0.0, %v3860
        %v3862 = vpop.f32.mrf.mxu0
        %3863 = vmatprep.mubr.bf16.mxu0 0
        %3864 = vmatmul.mubr.bf16.gmra.mxu0 %v3736
        %v3865 = vpop.f32.mrf.mxu0
        %v3866 = vadd.f32 0.0, %v3865
        %v3867 = vpop.f32.mrf.mxu0
        %v3868 = vpop.f32.mrf.mxu0
        %v3869 = vadd.f32 0.0, %v3868
        %v3870 = vpop.f32.mrf.mxu0
        %3871 = vmatprep.mubr.bf16.mxu0 0
        %3872 = vmatmul.mubr.bf16.gmra.mxu0 %v3739
        %v3873 = vpop.f32.mrf.mxu0
        %v3874 = vadd.f32 0.0, %v3873
        %v3875 = vpop.f32.mrf.mxu0
        %v3876 = vpop.f32.mrf.mxu0
        %v3877 = vadd.f32 0.0, %v3876
        %v3878 = vpop.f32.mrf.mxu0
        %3879 = vmatprep.mubr.bf16.mxu0 0
        %3880 = vmatmul.mubr.bf16.gmra.mxu0 %v3742
        %v3881 = vpop.f32.mrf.mxu0
        %v3882 = vadd.f32 0.0, %v3881
        %v3883 = vpop.f32.mrf.mxu0
        %v3884 = vpop.f32.mrf.mxu0
        %v3885 = vadd.f32 0.0, %v3884
        %v3886 = vpop.f32.mrf.mxu0
        %3887 = vmatprep.mubr.bf16.mxu0 0
        %3888 = vmatmul.mubr.bf16.gmra.mxu0 %v3745
        %v3889 = vpop.f32.mrf.mxu0
        %v3890 = vadd.f32 0.0, %v3889
        %v3891 = vpop.f32.mrf.mxu0
        %v3892 = vpop.f32.mrf.mxu0
        %v3893 = vadd.f32 0.0, %v3892
        %v3894 = vpop.f32.mrf.mxu0
        %3895 = vmatprep.mubr.bf16.mxu0 0
        %3896 = vmatmul.mubr.bf16.gmra.mxu0 %v3748
        %v3897 = vpop.f32.mrf.mxu0
        %v3898 = vadd.f32 0.0, %v3897
        %v3899 = vpop.f32.mrf.mxu0
        %v3900 = vpop.f32.mrf.mxu0
        %v3901 = vadd.f32 0.0, %v3900
        %v3902 = vpop.f32.mrf.mxu0
        %3903 = vmatprep.mubr.bf16.mxu0 0
        %3904 = vmatmul.mubr.bf16.gmra.mxu0 %v3751
        %v3905 = vpop.f32.mrf.mxu0
        %v3906 = vadd.f32 0.0, %v3905
        %v3907 = vpop.f32.mrf.mxu0
        %v3908 = vpop.f32.mrf.mxu0
        %v3909 = vadd.f32 0.0, %v3908
        %v3910 = vpop.f32.mrf.mxu0
        %3911 = vmatprep.mubr.bf16.mxu0 0
        %3912 = vmatmul.mubr.bf16.gmra.mxu0 %v3754
        %v3913 = vpop.f32.mrf.mxu0
        %v3914 = vadd.f32 0.0, %v3913
        %v3915 = vpop.f32.mrf.mxu0
        %v3916 = vpop.f32.mrf.mxu0
        %v3917 = vadd.f32 0.0, %v3916
        %v3918 = vpop.f32.mrf.mxu0
        %3919 = vdwg.mxu0
        %v3920 = vld [vmem:[#allocation2] sm:$0xff]
        %v3921 = vld [vmem:[#allocation2 + $0x8] sm:$0xff]
        %v3922 = vld [vmem:[#allocation2 + $0x10] sm:$0xff]
        %v3923 = vld [vmem:[#allocation2 + $0x18] sm:$0xff]
        %v3924 = vld [vmem:[#allocation2 + $0x20] sm:$0xff]
        %v3925 = vld [vmem:[#allocation2 + $0x28] sm:$0xff]
        %v3926 = vld [vmem:[#allocation2 + $0x30] sm:$0xff]
        %v3927 = vld [vmem:[#allocation2 + $0x38] sm:$0xff]
        %v3928 = vld [vmem:[#allocation2 + $0x40] sm:$0xff]
        %v3929 = vld [vmem:[#allocation2 + $0x48] sm:$0xff]
        %v3930 = vld [vmem:[#allocation2 + $0x50] sm:$0xff]
        %v3931 = vld [vmem:[#allocation2 + $0x58] sm:$0xff]
        %v3932 = vld [vmem:[#allocation2 + $0x60] sm:$0xff]
        %v3933 = vld [vmem:[#allocation2 + $0x68] sm:$0xff]
        %v3934 = vld [vmem:[#allocation2 + $0x70] sm:$0xff]
        %v3935 = vld [vmem:[#allocation2 + $0x78] sm:$0xff]
        %v3936 = vld [vmem:[#allocation2 + $0x80] sm:$0xff]
        %v3937 = vld [vmem:[#allocation2 + $0x88] sm:$0xff]
        %v3938 = vld [vmem:[#allocation2 + $0x90] sm:$0xff]
        %v3939 = vld [vmem:[#allocation2 + $0x98] sm:$0xff]
        %v3940 = vld [vmem:[#allocation2 + $0xa0] sm:$0xff]
        %v3941 = vld [vmem:[#allocation2 + $0xa8] sm:$0xff]
        %v3942 = vld [vmem:[#allocation2 + $0xb0] sm:$0xff]
        %v3943 = vld [vmem:[#allocation2 + $0xb8] sm:$0xff]
        %v3944 = vld [vmem:[#allocation2 + $0xc0] sm:$0xff]
        %v3945 = vld [vmem:[#allocation2 + $0xc8] sm:$0xff]
        %v3946 = vld [vmem:[#allocation2 + $0xd0] sm:$0xff]
        %v3947 = vld [vmem:[#allocation2 + $0xd8] sm:$0xff]
        %v3948 = vld [vmem:[#allocation2 + $0xe0] sm:$0xff]
        %v3949 = vld [vmem:[#allocation2 + $0xe8] sm:$0xff]
        %v3950 = vld [vmem:[#allocation2 + $0xf0] sm:$0xff]
        %v3951 = vld [vmem:[#allocation2 + $0xf8] sm:$0xff]
        %v3952 = vadd.f32 %v3920, %v3794
        %v3953 = vadd.f32 %v3921, %v3797
        %v3954 = vadd.f32 %v3922, %v3802
        %v3955 = vadd.f32 %v3923, %v3805
        %v3956 = vadd.f32 %v3924, %v3810
        %v3957 = vadd.f32 %v3925, %v3813
        %v3958 = vadd.f32 %v3926, %v3818
        %v3959 = vadd.f32 %v3927, %v3821
        %v3960 = vadd.f32 %v3928, %v3826
        %v3961 = vadd.f32 %v3929, %v3829
        %v3962 = vadd.f32 %v3930, %v3834
        %v3963 = vadd.f32 %v3931, %v3837
        %v3964 = vadd.f32 %v3932, %v3842
        %v3965 = vadd.f32 %v3933, %v3845
        %v3966 = vadd.f32 %v3934, %v3850
        %v3967 = vadd.f32 %v3935, %v3853
        %v3968 = vadd.f32 %v3936, %v3858
        %v3969 = vadd.f32 %v3937, %v3861
        %v3970 = vadd.f32 %v3938, %v3866
        %v3971 = vadd.f32 %v3939, %v3869
        %v3972 = vadd.f32 %v3940, %v3874
        %v3973 = vadd.f32 %v3941, %v3877
        %v3974 = vadd.f32 %v3942, %v3882
        %v3975 = vadd.f32 %v3943, %v3885
        %v3976 = vadd.f32 %v3944, %v3890
        %v3977 = vadd.f32 %v3945, %v3893
        %v3978 = vadd.f32 %v3946, %v3898
        %v3979 = vadd.f32 %v3947, %v3901
        %v3980 = vadd.f32 %v3948, %v3906
        %v3981 = vadd.f32 %v3949, %v3909
        %v3982 = vadd.f32 %v3950, %v3914
        %v3983 = vadd.f32 %v3951, %v3917
        %3984 = vst [vmem:[#allocation2] sm:$0xff] %v3952
        %3985 = vst [vmem:[#allocation2 + $0x8] sm:$0xff] %v3953
        %3986 = vst [vmem:[#allocation2 + $0x10] sm:$0xff] %v3954
        %3987 = vst [vmem:[#allocation2 + $0x18] sm:$0xff] %v3955
        %3988 = vst [vmem:[#allocation2 + $0x20] sm:$0xff] %v3956
        %3989 = vst [vmem:[#allocation2 + $0x28] sm:$0xff] %v3957
        %3990 = vst [vmem:[#allocation2 + $0x30] sm:$0xff] %v3958
        %3991 = vst [vmem:[#allocation2 + $0x38] sm:$0xff] %v3959
        %3992 = vst [vmem:[#allocation2 + $0x40] sm:$0xff] %v3960
        %3993 = vst [vmem:[#allocation2 + $0x48] sm:$0xff] %v3961
        %3994 = vst [vmem:[#allocation2 + $0x50] sm:$0xff] %v3962
        %3995 = vst [vmem:[#allocation2 + $0x58] sm:$0xff] %v3963
        %3996 = vst [vmem:[#allocation2 + $0x60] sm:$0xff] %v3964
        %3997 = vst [vmem:[#allocation2 + $0x68] sm:$0xff] %v3965
        %3998 = vst [vmem:[#allocation2 + $0x70] sm:$0xff] %v3966
        %3999 = vst [vmem:[#allocation2 + $0x78] sm:$0xff] %v3967
        %4000 = vst [vmem:[#allocation2 + $0x80] sm:$0xff] %v3968
        %4001 = vst [vmem:[#allocation2 + $0x88] sm:$0xff] %v3969
        %4002 = vst [vmem:[#allocation2 + $0x90] sm:$0xff] %v3970
        %4003 = vst [vmem:[#allocation2 + $0x98] sm:$0xff] %v3971
        %4004 = vst [vmem:[#allocation2 + $0xa0] sm:$0xff] %v3972
        %4005 = vst [vmem:[#allocation2 + $0xa8] sm:$0xff] %v3973
        %4006 = vst [vmem:[#allocation2 + $0xb0] sm:$0xff] %v3974
        %4007 = vst [vmem:[#allocation2 + $0xb8] sm:$0xff] %v3975
        %4008 = vst [vmem:[#allocation2 + $0xc0] sm:$0xff] %v3976
        %4009 = vst [vmem:[#allocation2 + $0xc8] sm:$0xff] %v3977
        %4010 = vst [vmem:[#allocation2 + $0xd0] sm:$0xff] %v3978
        %4011 = vst [vmem:[#allocation2 + $0xd8] sm:$0xff] %v3979
        %4012 = vst [vmem:[#allocation2 + $0xe0] sm:$0xff] %v3980
        %4013 = vst [vmem:[#allocation2 + $0xe8] sm:$0xff] %v3981
        %4014 = vst [vmem:[#allocation2 + $0xf0] sm:$0xff] %v3982
        %4015 = vst [vmem:[#allocation2 + $0xf8] sm:$0xff] %v3983
        %v4016 = vld [vmem:[%s1015] sm:$0xe]
        %v4017 = vld [vmem:[%s1015 + $0x4] sm:$0xf]
        %v4018 = vld [vmem:[%s1015 + $0x8] sm:$0x1]
        %v4019 = vld [vmem:[%s1015 + $0xc] sm:$0xe]
        %v4020 = vld [vmem:[%s1015 + $0x10] sm:$0xf]
        %v4021 = vld [vmem:[%s1015 + $0x14] sm:$0x1]
        %v4022 = vld [vmem:[%s1015 + $0x18] sm:$0xe]
        %v4023 = vld [vmem:[%s1015 + $0x1c] sm:$0xf]
        %v4024 = vld [vmem:[%s1015 + $0x20] sm:$0x1]
        %v4025 = vld [vmem:[%s1015 + $0x24] sm:$0xe]
        %v4026 = vld [vmem:[%s1015 + $0x28] sm:$0xf]
        %v4027 = vld [vmem:[%s1015 + $0x2c] sm:$0x1]
        %v4028 = vld [vmem:[%s1015 + $0x30] sm:$0xe]
        %v4029 = vld [vmem:[%s1015 + $0x34] sm:$0xf]
        %v4030 = vld [vmem:[%s1015 + $0x38] sm:$0x1]
        %v4031 = vld [vmem:[%s1015 + $0x3c] sm:$0xe]
        %v4032 = vld [vmem:[%s1015 + $0x40] sm:$0xf]
        %v4033 = vld [vmem:[%s1015 + $0x44] sm:$0x1]
        %v4034 = vld [vmem:[%s1015 + $0x48] sm:$0xe]
        %v4035 = vld [vmem:[%s1015 + $0x4c] sm:$0xf]
        %v4036 = vld [vmem:[%s1015 + $0x50] sm:$0x1]
        %v4037 = vld [vmem:[%s1015 + $0x54] sm:$0xe]
        %v4038 = vld [vmem:[%s1015 + $0x58] sm:$0xf]
        %v4039 = vld [vmem:[%s1015 + $0x5c] sm:$0x1]
        %v4040 = vld [vmem:[%s1015 + $0x60] sm:$0xe]
        %v4041 = vld [vmem:[%s1015 + $0x64] sm:$0xf]
        %v4042 = vld [vmem:[%s1015 + $0x68] sm:$0x1]
        %v4043 = vld [vmem:[%s1015 + $0x6c] sm:$0xe]
        %v4044 = vld [vmem:[%s1015 + $0x70] sm:$0xf]
        %v4045 = vld [vmem:[%s1015 + $0x74] sm:$0x1]
        %v4046 = vld [vmem:[%s1015 + $0x78] sm:$0xe]
        %v4047 = vld [vmem:[%s1015 + $0x7c] sm:$0xf]
        %v4048 = vld [vmem:[%s1015 + $0x80] sm:$0x1]
        %v4049 = vld [vmem:[%s1015 + $0x84] sm:$0xe]
        %v4050 = vld [vmem:[%s1015 + $0x88] sm:$0xf]
        %v4051 = vld [vmem:[%s1015 + $0x8c] sm:$0x1]
        %v4052 = vld [vmem:[%s1015 + $0x90] sm:$0xe]
        %v4053 = vld [vmem:[%s1015 + $0x94] sm:$0xf]
        %v4054 = vld [vmem:[%s1015 + $0x98] sm:$0x1]
        %v4055 = vld [vmem:[%s1015 + $0x9c] sm:$0xe]
        %v4056 = vld [vmem:[%s1015 + $0xa0] sm:$0xf]
        %v4057 = vld [vmem:[%s1015 + $0xa4] sm:$0x1]
        %v4058 = vld [vmem:[%s1015 + $0xa8] sm:$0xe]
        %v4059 = vld [vmem:[%s1015 + $0xac] sm:$0xf]
        %v4060 = vld [vmem:[%s1015 + $0xb0] sm:$0x1]
        %v4061 = vld [vmem:[%s1015 + $0xb4] sm:$0xe]
        %v4062 = vld [vmem:[%s1015 + $0xb8] sm:$0xf]
        %v4063 = vld [vmem:[%s1015 + $0xbc] sm:$0x1]
        %v4112 = vrot.slane %v4016, 5
        %v4113 = vrot.slane %v4112, 4
        %v4114 = vrot.slane %v4017, 5
        %v4115 = vsel %vm2333, %v4113, %v4114
        %v4116 = vrot.slane %v4114, 4
        %v4117 = vrot.slane %v4018, 5
        %v4118 = vsel %vm2333, %v4116, %v4117
        %v4119 = vrot.slane %v4019, 5
        %v4120 = vrot.slane %v4119, 4
        %v4121 = vrot.slane %v4020, 5
        %v4122 = vsel %vm2333, %v4120, %v4121
        %v4123 = vrot.slane %v4121, 4
        %v4124 = vrot.slane %v4021, 5
        %v4125 = vsel %vm2333, %v4123, %v4124
        %v4126 = vrot.slane %v4022, 5
        %v4127 = vrot.slane %v4126, 4
        %v4128 = vrot.slane %v4023, 5
        %v4129 = vsel %vm2333, %v4127, %v4128
        %v4130 = vrot.slane %v4128, 4
        %v4131 = vrot.slane %v4024, 5
        %v4132 = vsel %vm2333, %v4130, %v4131
        %v4133 = vrot.slane %v4025, 5
        %v4134 = vrot.slane %v4133, 4
        %v4135 = vrot.slane %v4026, 5
        %v4136 = vsel %vm2333, %v4134, %v4135
        %v4137 = vrot.slane %v4135, 4
        %v4138 = vrot.slane %v4027, 5
        %v4139 = vsel %vm2333, %v4137, %v4138
        %v4140 = vrot.slane %v4028, 5
        %v4141 = vrot.slane %v4140, 4
        %v4142 = vrot.slane %v4029, 5
        %v4143 = vsel %vm2333, %v4141, %v4142
        %v4144 = vrot.slane %v4142, 4
        %v4145 = vrot.slane %v4030, 5
        %v4146 = vsel %vm2333, %v4144, %v4145
        %v4147 = vrot.slane %v4031, 5
        %v4148 = vrot.slane %v4147, 4
        %v4149 = vrot.slane %v4032, 5
        %v4150 = vsel %vm2333, %v4148, %v4149
        %v4151 = vrot.slane %v4149, 4
        %v4152 = vrot.slane %v4033, 5
        %v4153 = vsel %vm2333, %v4151, %v4152
        %v4154 = vrot.slane %v4034, 5
        %v4155 = vrot.slane %v4154, 4
        %v4156 = vrot.slane %v4035, 5
        %v4157 = vsel %vm2333, %v4155, %v4156
        %v4158 = vrot.slane %v4156, 4
        %v4159 = vrot.slane %v4036, 5
        %v4160 = vsel %vm2333, %v4158, %v4159
        %v4161 = vrot.slane %v4037, 5
        %v4162 = vrot.slane %v4161, 4
        %v4163 = vrot.slane %v4038, 5
        %v4164 = vsel %vm2333, %v4162, %v4163
        %v4165 = vrot.slane %v4163, 4
        %v4166 = vrot.slane %v4039, 5
        %v4167 = vsel %vm2333, %v4165, %v4166
        %v4168 = vrot.slane %v4040, 5
        %v4169 = vrot.slane %v4168, 4
        %v4170 = vrot.slane %v4041, 5
        %v4171 = vsel %vm2333, %v4169, %v4170
        %v4172 = vrot.slane %v4170, 4
        %v4173 = vrot.slane %v4042, 5
        %v4174 = vsel %vm2333, %v4172, %v4173
        %v4175 = vrot.slane %v4043, 5
        %v4176 = vrot.slane %v4175, 4
        %v4177 = vrot.slane %v4044, 5
        %v4178 = vsel %vm2333, %v4176, %v4177
        %v4179 = vrot.slane %v4177, 4
        %v4180 = vrot.slane %v4045, 5
        %v4181 = vsel %vm2333, %v4179, %v4180
        %v4182 = vrot.slane %v4046, 5
        %v4183 = vrot.slane %v4182, 4
        %v4184 = vrot.slane %v4047, 5
        %v4185 = vsel %vm2333, %v4183, %v4184
        %v4186 = vrot.slane %v4184, 4
        %v4187 = vrot.slane %v4048, 5
        %v4188 = vsel %vm2333, %v4186, %v4187
        %v4189 = vrot.slane %v4049, 5
        %v4190 = vrot.slane %v4189, 4
        %v4191 = vrot.slane %v4050, 5
        %v4192 = vsel %vm2333, %v4190, %v4191
        %v4193 = vrot.slane %v4191, 4
        %v4194 = vrot.slane %v4051, 5
        %v4195 = vsel %vm2333, %v4193, %v4194
        %v4196 = vrot.slane %v4052, 5
        %v4197 = vrot.slane %v4196, 4
        %v4198 = vrot.slane %v4053, 5
        %v4199 = vsel %vm2333, %v4197, %v4198
        %v4200 = vrot.slane %v4198, 4
        %v4201 = vrot.slane %v4054, 5
        %v4202 = vsel %vm2333, %v4200, %v4201
        %v4203 = vrot.slane %v4055, 5
        %v4204 = vrot.slane %v4203, 4
        %v4205 = vrot.slane %v4056, 5
        %v4206 = vsel %vm2333, %v4204, %v4205
        %v4207 = vrot.slane %v4205, 4
        %v4208 = vrot.slane %v4057, 5
        %v4209 = vsel %vm2333, %v4207, %v4208
        %v4210 = vrot.slane %v4058, 5
        %v4211 = vrot.slane %v4210, 4
        %v4212 = vrot.slane %v4059, 5
        %v4213 = vsel %vm2333, %v4211, %v4212
        %v4214 = vrot.slane %v4212, 4
        %v4215 = vrot.slane %v4060, 5
        %v4216 = vsel %vm2333, %v4214, %v4215
        %v4217 = vrot.slane %v4061, 5
        %v4218 = vrot.slane %v4217, 4
        %v4219 = vrot.slane %v4062, 5
        %v4220 = vsel %vm2333, %v4218, %v4219
        %v4221 = vrot.slane %v4219, 4
        %v4222 = vrot.slane %v4063, 5
        %v4223 = vsel %vm2333, %v4221, %v4222
        %s4224 = scalar_lea.vmem %s1077, 10
        %v4225 = vld [vmem:[%s4224] sm:$0x3]
        %v4226 = vunpack.c.l.b16 %v4115
        %v4227 = vunpack.c.l.b16 %v4118
        %v4228 = vunpack.c.l.b16 %v4122
        %v4229 = vunpack.c.l.b16 %v4125
        %v4230 = vunpack.c.l.b16 %v4129
        %v4231 = vunpack.c.l.b16 %v4132
        %v4232 = vunpack.c.l.b16 %v4136
        %v4233 = vunpack.c.l.b16 %v4139
        %v4234 = vunpack.c.l.b16 %v4143
        %v4235 = vunpack.c.l.b16 %v4146
        %v4236 = vunpack.c.l.b16 %v4150
        %v4237 = vunpack.c.l.b16 %v4153
        %v4238 = vunpack.c.l.b16 %v4157
        %v4239 = vunpack.c.l.b16 %v4160
        %v4240 = vunpack.c.l.b16 %v4164
        %v4241 = vunpack.c.l.b16 %v4167
        %v4242 = vunpack.c.l.b16 %v4171
        %v4243 = vunpack.c.l.b16 %v4174
        %v4244 = vunpack.c.l.b16 %v4178
        %v4245 = vunpack.c.l.b16 %v4181
        %v4246 = vunpack.c.l.b16 %v4185
        %v4247 = vunpack.c.l.b16 %v4188
        %v4248 = vunpack.c.l.b16 %v4192
        %v4249 = vunpack.c.l.b16 %v4195
        %v4250 = vunpack.c.l.b16 %v4199
        %v4251 = vunpack.c.l.b16 %v4202
        %v4252 = vunpack.c.l.b16 %v4206
        %v4253 = vunpack.c.l.b16 %v4209
        %v4254 = vunpack.c.l.b16 %v4213
        %v4255 = vunpack.c.l.b16 %v4216
        %v4256 = vunpack.c.l.b16 %v4220
        %v4257 = vunpack.c.l.b16 %v4223
        %v4258 = vpack.c.b16 %v4227, %v4226
        %v4259 = vpack.c.b16 %v4229, %v4228
        %v4260 = vpack.c.b16 %v4231, %v4230
        %v4261 = vpack.c.b16 %v4233, %v4232
        %v4262 = vpack.c.b16 %v4235, %v4234
        %v4263 = vpack.c.b16 %v4237, %v4236
        %v4264 = vpack.c.b16 %v4239, %v4238
        %v4265 = vpack.c.b16 %v4241, %v4240
        %v4266 = vpack.c.b16 %v4243, %v4242
        %v4267 = vpack.c.b16 %v4245, %v4244
        %v4268 = vpack.c.b16 %v4247, %v4246
        %v4269 = vpack.c.b16 %v4249, %v4248
        %v4270 = vpack.c.b16 %v4251, %v4250
        %v4271 = vpack.c.b16 %v4253, %v4252
        %v4272 = vpack.c.b16 %v4255, %v4254
        %v4273 = vpack.c.b16 %v4257, %v4256
        %v4275 = vsel %vm1196, %v4258, 0
        %v4278 = vsel %vm1196, %v4259, 0
        %v4281 = vsel %vm1196, %v4260, 0
        %v4284 = vsel %vm1196, %v4261, 0
        %v4287 = vsel %vm1196, %v4262, 0
        %v4290 = vsel %vm1196, %v4263, 0
        %v4293 = vsel %vm1196, %v4264, 0
        %v4296 = vsel %vm1196, %v4265, 0
        %v4299 = vsel %vm1196, %v4266, 0
        %v4302 = vsel %vm1196, %v4267, 0
        %v4305 = vsel %vm1196, %v4268, 0
        %v4308 = vsel %vm1196, %v4269, 0
        %v4311 = vsel %vm1196, %v4270, 0
        %v4314 = vsel %vm1196, %v4271, 0
        %v4317 = vsel %vm1196, %v4272, 0
        %v4320 = vsel %vm1196, %v4273, 0
        %v4323 = vsel %vm1245, %v4225, 0
        %4325 = vmatprep.subr.bf16.mxu0 0
        %4326 = vmatpush1.bf16.msra.mxu0 0
        %4327 = vmatprep.subr.bf16.mxu0 0
        %4328 = vmatpush1.bf16.msra.mxu0 0
        %4329 = vmatprep.subr.bf16.mxu0 0
        %4330 = vmatpush1.bf16.msra.mxu0 0
        %4331 = vmatprep.subr.bf16.mxu0 0
        %4332 = vmatpush1.bf16.msra.mxu0 0
        %4333 = vmatprep.subr.bf16.mxu0 0
        %4334 = vmatpush1.bf16.msra.mxu0 0
        %4335 = vmatprep.subr.bf16.mxu0 0
        %4336 = vmatpush1.bf16.msra.mxu0 0
        %4337 = vmatprep.subr.bf16.mxu0 0
        %4338 = vmatpush1.bf16.msra.mxu0 0
        %4339 = vmatprep.subr.bf16.mxu0 0
        %4340 = vmatpush1.bf16.msra.mxu0 %v4323
        %4341 = vmatprep.subr.bf16.mxu0 0
        %4342 = vmatpush2.bf16.msra.mxu0 0
        %4343 = vmatprep.subr.bf16.mxu0 0
        %4344 = vmatpush2.bf16.msra.mxu0 0
        %4345 = vmatprep.subr.bf16.mxu0 0
        %4346 = vmatpush2.bf16.msra.mxu0 0
        %4347 = vmatprep.subr.bf16.mxu0 0
        %4348 = vmatpush2.bf16.msra.mxu0 0
        %4349 = vmatprep.subr.bf16.mxu0 0
        %4350 = vmatpush2.bf16.msra.mxu0 0
        %4351 = vmatprep.subr.bf16.mxu0 0
        %4352 = vmatpush2.bf16.msra.mxu0 0
        %4353 = vmatprep.subr.bf16.mxu0 0
        %4354 = vmatpush2.bf16.msra.mxu0 0
        %4355 = vmatprep.subr.bf16.mxu0 0
        %4356 = vmatpush2.bf16.msra.mxu0 0
        %4357 = vmatprep.mubr.bf16.mxu0 0
        %4358 = vmatmul.mubr.bf16.gmra.mxu0 %v4275
        %v4359 = vpop.f32.mrf.mxu0
        %v4360 = vadd.f32 0.0, %v4359
        %v4361 = vpop.f32.mrf.mxu0
        %v4362 = vpop.f32.mrf.mxu0
        %v4363 = vadd.f32 0.0, %v4362
        %v4364 = vpop.f32.mrf.mxu0
        %4365 = vmatprep.mubr.bf16.mxu0 0
        %4366 = vmatmul.mubr.bf16.gmra.mxu0 %v4278
        %v4367 = vpop.f32.mrf.mxu0
        %v4368 = vadd.f32 0.0, %v4367
        %v4369 = vpop.f32.mrf.mxu0
        %v4370 = vpop.f32.mrf.mxu0
        %v4371 = vadd.f32 0.0, %v4370
        %v4372 = vpop.f32.mrf.mxu0
        %4373 = vmatprep.mubr.bf16.mxu0 0
        %4374 = vmatmul.mubr.bf16.gmra.mxu0 %v4281
        %v4375 = vpop.f32.mrf.mxu0
        %v4376 = vadd.f32 0.0, %v4375
        %v4377 = vpop.f32.mrf.mxu0
        %v4378 = vpop.f32.mrf.mxu0
        %v4379 = vadd.f32 0.0, %v4378
        %v4380 = vpop.f32.mrf.mxu0
        %4381 = vmatprep.mubr.bf16.mxu0 0
        %4382 = vmatmul.mubr.bf16.gmra.mxu0 %v4284
        %v4383 = vpop.f32.mrf.mxu0
        %v4384 = vadd.f32 0.0, %v4383
        %v4385 = vpop.f32.mrf.mxu0
        %v4386 = vpop.f32.mrf.mxu0
        %v4387 = vadd.f32 0.0, %v4386
        %v4388 = vpop.f32.mrf.mxu0
        %4389 = vmatprep.mubr.bf16.mxu0 0
        %4390 = vmatmul.mubr.bf16.gmra.mxu0 %v4287
        %v4391 = vpop.f32.mrf.mxu0
        %v4392 = vadd.f32 0.0, %v4391
        %v4393 = vpop.f32.mrf.mxu0
        %v4394 = vpop.f32.mrf.mxu0
        %v4395 = vadd.f32 0.0, %v4394
        %v4396 = vpop.f32.mrf.mxu0
        %4397 = vmatprep.mubr.bf16.mxu0 0
        %4398 = vmatmul.mubr.bf16.gmra.mxu0 %v4290
        %v4399 = vpop.f32.mrf.mxu0
        %v4400 = vadd.f32 0.0, %v4399
        %v4401 = vpop.f32.mrf.mxu0
        %v4402 = vpop.f32.mrf.mxu0
        %v4403 = vadd.f32 0.0, %v4402
        %v4404 = vpop.f32.mrf.mxu0
        %4405 = vmatprep.mubr.bf16.mxu0 0
        %4406 = vmatmul.mubr.bf16.gmra.mxu0 %v4293
        %v4407 = vpop.f32.mrf.mxu0
        %v4408 = vadd.f32 0.0, %v4407
        %v4409 = vpop.f32.mrf.mxu0
        %v4410 = vpop.f32.mrf.mxu0
        %v4411 = vadd.f32 0.0, %v4410
        %v4412 = vpop.f32.mrf.mxu0
        %4413 = vmatprep.mubr.bf16.mxu0 0
        %4414 = vmatmul.mubr.bf16.gmra.mxu0 %v4296
        %v4415 = vpop.f32.mrf.mxu0
        %v4416 = vadd.f32 0.0, %v4415
        %v4417 = vpop.f32.mrf.mxu0
        %v4418 = vpop.f32.mrf.mxu0
        %v4419 = vadd.f32 0.0, %v4418
        %v4420 = vpop.f32.mrf.mxu0
        %4421 = vmatprep.mubr.bf16.mxu0 0
        %4422 = vmatmul.mubr.bf16.gmra.mxu0 %v4299
        %v4423 = vpop.f32.mrf.mxu0
        %v4424 = vadd.f32 0.0, %v4423
        %v4425 = vpop.f32.mrf.mxu0
        %v4426 = vpop.f32.mrf.mxu0
        %v4427 = vadd.f32 0.0, %v4426
        %v4428 = vpop.f32.mrf.mxu0
        %4429 = vmatprep.mubr.bf16.mxu0 0
        %4430 = vmatmul.mubr.bf16.gmra.mxu0 %v4302
        %v4431 = vpop.f32.mrf.mxu0
        %v4432 = vadd.f32 0.0, %v4431
        %v4433 = vpop.f32.mrf.mxu0
        %v4434 = vpop.f32.mrf.mxu0
        %v4435 = vadd.f32 0.0, %v4434
        %v4436 = vpop.f32.mrf.mxu0
        %4437 = vmatprep.mubr.bf16.mxu0 0
        %4438 = vmatmul.mubr.bf16.gmra.mxu0 %v4305
        %v4439 = vpop.f32.mrf.mxu0
        %v4440 = vadd.f32 0.0, %v4439
        %v4441 = vpop.f32.mrf.mxu0
        %v4442 = vpop.f32.mrf.mxu0
        %v4443 = vadd.f32 0.0, %v4442
        %v4444 = vpop.f32.mrf.mxu0
        %4445 = vmatprep.mubr.bf16.mxu0 0
        %4446 = vmatmul.mubr.bf16.gmra.mxu0 %v4308
        %v4447 = vpop.f32.mrf.mxu0
        %v4448 = vadd.f32 0.0, %v4447
        %v4449 = vpop.f32.mrf.mxu0
        %v4450 = vpop.f32.mrf.mxu0
        %v4451 = vadd.f32 0.0, %v4450
        %v4452 = vpop.f32.mrf.mxu0
        %4453 = vmatprep.mubr.bf16.mxu0 0
        %4454 = vmatmul.mubr.bf16.gmra.mxu0 %v4311
        %v4455 = vpop.f32.mrf.mxu0
        %v4456 = vadd.f32 0.0, %v4455
        %v4457 = vpop.f32.mrf.mxu0
        %v4458 = vpop.f32.mrf.mxu0
        %v4459 = vadd.f32 0.0, %v4458
        %v4460 = vpop.f32.mrf.mxu0
        %4461 = vmatprep.mubr.bf16.mxu0 0
        %4462 = vmatmul.mubr.bf16.gmra.mxu0 %v4314
        %v4463 = vpop.f32.mrf.mxu0
        %v4464 = vadd.f32 0.0, %v4463
        %v4465 = vpop.f32.mrf.mxu0
        %v4466 = vpop.f32.mrf.mxu0
        %v4467 = vadd.f32 0.0, %v4466
        %v4468 = vpop.f32.mrf.mxu0
        %4469 = vmatprep.mubr.bf16.mxu0 0
        %4470 = vmatmul.mubr.bf16.gmra.mxu0 %v4317
        %v4471 = vpop.f32.mrf.mxu0
        %v4472 = vadd.f32 0.0, %v4471
        %v4473 = vpop.f32.mrf.mxu0
        %v4474 = vpop.f32.mrf.mxu0
        %v4475 = vadd.f32 0.0, %v4474
        %v4476 = vpop.f32.mrf.mxu0
        %4477 = vmatprep.mubr.bf16.mxu0 0
        %4478 = vmatmul.mubr.bf16.gmra.mxu0 %v4320
        %v4479 = vpop.f32.mrf.mxu0
        %v4480 = vadd.f32 0.0, %v4479
        %v4481 = vpop.f32.mrf.mxu0
        %v4482 = vpop.f32.mrf.mxu0
        %v4483 = vadd.f32 0.0, %v4482
        %v4484 = vpop.f32.mrf.mxu0
        %4485 = vdwg.mxu0
        %v4486 = vld [vmem:[#allocation2] sm:$0xff]
        %v4487 = vld [vmem:[#allocation2 + $0x8] sm:$0xff]
        %v4488 = vld [vmem:[#allocation2 + $0x10] sm:$0xff]
        %v4489 = vld [vmem:[#allocation2 + $0x18] sm:$0xff]
        %v4490 = vld [vmem:[#allocation2 + $0x20] sm:$0xff]
        %v4491 = vld [vmem:[#allocation2 + $0x28] sm:$0xff]
        %v4492 = vld [vmem:[#allocation2 + $0x30] sm:$0xff]
        %v4493 = vld [vmem:[#allocation2 + $0x38] sm:$0xff]
        %v4494 = vld [vmem:[#allocation2 + $0x40] sm:$0xff]
        %v4495 = vld [vmem:[#allocation2 + $0x48] sm:$0xff]
        %v4496 = vld [vmem:[#allocation2 + $0x50] sm:$0xff]
        %v4497 = vld [vmem:[#allocation2 + $0x58] sm:$0xff]
        %v4498 = vld [vmem:[#allocation2 + $0x60] sm:$0xff]
        %v4499 = vld [vmem:[#allocation2 + $0x68] sm:$0xff]
        %v4500 = vld [vmem:[#allocation2 + $0x70] sm:$0xff]
        %v4501 = vld [vmem:[#allocation2 + $0x78] sm:$0xff]
        %v4502 = vld [vmem:[#allocation2 + $0x80] sm:$0xff]
        %v4503 = vld [vmem:[#allocation2 + $0x88] sm:$0xff]
        %v4504 = vld [vmem:[#allocation2 + $0x90] sm:$0xff]
        %v4505 = vld [vmem:[#allocation2 + $0x98] sm:$0xff]
        %v4506 = vld [vmem:[#allocation2 + $0xa0] sm:$0xff]
        %v4507 = vld [vmem:[#allocation2 + $0xa8] sm:$0xff]
        %v4508 = vld [vmem:[#allocation2 + $0xb0] sm:$0xff]
        %v4509 = vld [vmem:[#allocation2 + $0xb8] sm:$0xff]
        %v4510 = vld [vmem:[#allocation2 + $0xc0] sm:$0xff]
        %v4511 = vld [vmem:[#allocation2 + $0xc8] sm:$0xff]
        %v4512 = vld [vmem:[#allocation2 + $0xd0] sm:$0xff]
        %v4513 = vld [vmem:[#allocation2 + $0xd8] sm:$0xff]
        %v4514 = vld [vmem:[#allocation2 + $0xe0] sm:$0xff]
        %v4515 = vld [vmem:[#allocation2 + $0xe8] sm:$0xff]
        %v4516 = vld [vmem:[#allocation2 + $0xf0] sm:$0xff]
        %v4517 = vld [vmem:[#allocation2 + $0xf8] sm:$0xff]
        %v4518 = vadd.f32 %v4486, %v4360
        %v4519 = vadd.f32 %v4487, %v4363
        %v4520 = vadd.f32 %v4488, %v4368
        %v4521 = vadd.f32 %v4489, %v4371
        %v4522 = vadd.f32 %v4490, %v4376
        %v4523 = vadd.f32 %v4491, %v4379
        %v4524 = vadd.f32 %v4492, %v4384
        %v4525 = vadd.f32 %v4493, %v4387
        %v4526 = vadd.f32 %v4494, %v4392
        %v4527 = vadd.f32 %v4495, %v4395
        %v4528 = vadd.f32 %v4496, %v4400
        %v4529 = vadd.f32 %v4497, %v4403
        %v4530 = vadd.f32 %v4498, %v4408
        %v4531 = vadd.f32 %v4499, %v4411
        %v4532 = vadd.f32 %v4500, %v4416
        %v4533 = vadd.f32 %v4501, %v4419
        %v4534 = vadd.f32 %v4502, %v4424
        %v4535 = vadd.f32 %v4503, %v4427
        %v4536 = vadd.f32 %v4504, %v4432
        %v4537 = vadd.f32 %v4505, %v4435
        %v4538 = vadd.f32 %v4506, %v4440
        %v4539 = vadd.f32 %v4507, %v4443
        %v4540 = vadd.f32 %v4508, %v4448
        %v4541 = vadd.f32 %v4509, %v4451
        %v4542 = vadd.f32 %v4510, %v4456
        %v4543 = vadd.f32 %v4511, %v4459
        %v4544 = vadd.f32 %v4512, %v4464
        %v4545 = vadd.f32 %v4513, %v4467
        %v4546 = vadd.f32 %v4514, %v4472
        %v4547 = vadd.f32 %v4515, %v4475
        %v4548 = vadd.f32 %v4516, %v4480
        %v4549 = vadd.f32 %v4517, %v4483
        %4550 = vst [vmem:[#allocation2] sm:$0xff] %v4518
        %4551 = vst [vmem:[#allocation2 + $0x8] sm:$0xff] %v4519
        %4552 = vst [vmem:[#allocation2 + $0x10] sm:$0xff] %v4520
        %4553 = vst [vmem:[#allocation2 + $0x18] sm:$0xff] %v4521
        %4554 = vst [vmem:[#allocation2 + $0x20] sm:$0xff] %v4522
        %4555 = vst [vmem:[#allocation2 + $0x28] sm:$0xff] %v4523
        %4556 = vst [vmem:[#allocation2 + $0x30] sm:$0xff] %v4524
        %4557 = vst [vmem:[#allocation2 + $0x38] sm:$0xff] %v4525
        %4558 = vst [vmem:[#allocation2 + $0x40] sm:$0xff] %v4526
        %4559 = vst [vmem:[#allocation2 + $0x48] sm:$0xff] %v4527
        %4560 = vst [vmem:[#allocation2 + $0x50] sm:$0xff] %v4528
        %4561 = vst [vmem:[#allocation2 + $0x58] sm:$0xff] %v4529
        %4562 = vst [vmem:[#allocation2 + $0x60] sm:$0xff] %v4530
        %4563 = vst [vmem:[#allocation2 + $0x68] sm:$0xff] %v4531
        %4564 = vst [vmem:[#allocation2 + $0x70] sm:$0xff] %v4532
        %4565 = vst [vmem:[#allocation2 + $0x78] sm:$0xff] %v4533
        %4566 = vst [vmem:[#allocation2 + $0x80] sm:$0xff] %v4534
        %4567 = vst [vmem:[#allocation2 + $0x88] sm:$0xff] %v4535
        %4568 = vst [vmem:[#allocation2 + $0x90] sm:$0xff] %v4536
        %4569 = vst [vmem:[#allocation2 + $0x98] sm:$0xff] %v4537
        %4570 = vst [vmem:[#allocation2 + $0xa0] sm:$0xff] %v4538
        %4571 = vst [vmem:[#allocation2 + $0xa8] sm:$0xff] %v4539
        %4572 = vst [vmem:[#allocation2 + $0xb0] sm:$0xff] %v4540
        %4573 = vst [vmem:[#allocation2 + $0xb8] sm:$0xff] %v4541
        %4574 = vst [vmem:[#allocation2 + $0xc0] sm:$0xff] %v4542
        %4575 = vst [vmem:[#allocation2 + $0xc8] sm:$0xff] %v4543
        %4576 = vst [vmem:[#allocation2 + $0xd0] sm:$0xff] %v4544
        %4577 = vst [vmem:[#allocation2 + $0xd8] sm:$0xff] %v4545
        %4578 = vst [vmem:[#allocation2 + $0xe0] sm:$0xff] %v4546
        %4579 = vst [vmem:[#allocation2 + $0xe8] sm:$0xff] %v4547
        %4580 = vst [vmem:[#allocation2 + $0xf0] sm:$0xff] %v4548
        %4581 = vst [vmem:[#allocation2 + $0xf8] sm:$0xff] %v4549
        %v4582 = vld [vmem:[%s1022] sm:$0xf]
        %v4583 = vld [vmem:[%s1022 + $0x4] sm:$0xf]
        %v4584 = vld [vmem:[%s1022 + $0xc] sm:$0xf]
        %v4585 = vld [vmem:[%s1022 + $0x10] sm:$0xf]
        %v4586 = vld [vmem:[%s1022 + $0x18] sm:$0xf]
        %v4587 = vld [vmem:[%s1022 + $0x1c] sm:$0xf]
        %v4588 = vld [vmem:[%s1022 + $0x24] sm:$0xf]
        %v4589 = vld [vmem:[%s1022 + $0x28] sm:$0xf]
        %v4590 = vld [vmem:[%s1022 + $0x30] sm:$0xf]
        %v4591 = vld [vmem:[%s1022 + $0x34] sm:$0xf]
        %v4592 = vld [vmem:[%s1022 + $0x3c] sm:$0xf]
        %v4593 = vld [vmem:[%s1022 + $0x40] sm:$0xf]
        %v4594 = vld [vmem:[%s1022 + $0x48] sm:$0xf]
        %v4595 = vld [vmem:[%s1022 + $0x4c] sm:$0xf]
        %v4596 = vld [vmem:[%s1022 + $0x54] sm:$0xf]
        %v4597 = vld [vmem:[%s1022 + $0x58] sm:$0xf]
        %v4598 = vld [vmem:[%s1022 + $0x60] sm:$0xf]
        %v4599 = vld [vmem:[%s1022 + $0x64] sm:$0xf]
        %v4600 = vld [vmem:[%s1022 + $0x6c] sm:$0xf]
        %v4601 = vld [vmem:[%s1022 + $0x70] sm:$0xf]
        %v4602 = vld [vmem:[%s1022 + $0x78] sm:$0xf]
        %v4603 = vld [vmem:[%s1022 + $0x7c] sm:$0xf]
        %v4604 = vld [vmem:[%s1022 + $0x84] sm:$0xf]
        %v4605 = vld [vmem:[%s1022 + $0x88] sm:$0xf]
        %v4606 = vld [vmem:[%s1022 + $0x90] sm:$0xf]
        %v4607 = vld [vmem:[%s1022 + $0x94] sm:$0xf]
        %v4608 = vld [vmem:[%s1022 + $0x9c] sm:$0xf]
        %v4609 = vld [vmem:[%s1022 + $0xa0] sm:$0xf]
        %v4610 = vld [vmem:[%s1022 + $0xa8] sm:$0xf]
        %v4611 = vld [vmem:[%s1022 + $0xac] sm:$0xf]
        %v4612 = vld [vmem:[%s1022 + $0xb4] sm:$0xf]
        %v4613 = vld [vmem:[%s1022 + $0xb8] sm:$0xf]
        %s4614 = scalar_lea.vmem %s1077, 12
        %v4615 = vld [vmem:[%s4614] sm:$0x3]
        %v4648 = vunpack.c.l.b16 %v4582
        %v4649 = vunpack.c.l.b16 %v4583
        %v4650 = vunpack.c.l.b16 %v4584
        %v4651 = vunpack.c.l.b16 %v4585
        %v4652 = vunpack.c.l.b16 %v4586
        %v4653 = vunpack.c.l.b16 %v4587
        %v4654 = vunpack.c.l.b16 %v4588
        %v4655 = vunpack.c.l.b16 %v4589
        %v4656 = vunpack.c.l.b16 %v4590
        %v4657 = vunpack.c.l.b16 %v4591
        %v4658 = vunpack.c.l.b16 %v4592
        %v4659 = vunpack.c.l.b16 %v4593
        %v4660 = vunpack.c.l.b16 %v4594
        %v4661 = vunpack.c.l.b16 %v4595
        %v4662 = vunpack.c.l.b16 %v4596
        %v4663 = vunpack.c.l.b16 %v4597
        %v4664 = vunpack.c.l.b16 %v4598
        %v4665 = vunpack.c.l.b16 %v4599
        %v4666 = vunpack.c.l.b16 %v4600
        %v4667 = vunpack.c.l.b16 %v4601
        %v4668 = vunpack.c.l.b16 %v4602
        %v4669 = vunpack.c.l.b16 %v4603
        %v4670 = vunpack.c.l.b16 %v4604
        %v4671 = vunpack.c.l.b16 %v4605
        %v4672 = vunpack.c.l.b16 %v4606
        %v4673 = vunpack.c.l.b16 %v4607
        %v4674 = vunpack.c.l.b16 %v4608
        %v4675 = vunpack.c.l.b16 %v4609
        %v4676 = vunpack.c.l.b16 %v4610
        %v4677 = vunpack.c.l.b16 %v4611
        %v4678 = vunpack.c.l.b16 %v4612
        %v4679 = vunpack.c.l.b16 %v4613
        %v4680 = vpack.c.b16 %v4649, %v4648
        %v4681 = vpack.c.b16 %v4651, %v4650
        %v4682 = vpack.c.b16 %v4653, %v4652
        %v4683 = vpack.c.b16 %v4655, %v4654
        %v4684 = vpack.c.b16 %v4657, %v4656
        %v4685 = vpack.c.b16 %v4659, %v4658
        %v4686 = vpack.c.b16 %v4661, %v4660
        %v4687 = vpack.c.b16 %v4663, %v4662
        %v4688 = vpack.c.b16 %v4665, %v4664
        %v4689 = vpack.c.b16 %v4667, %v4666
        %v4690 = vpack.c.b16 %v4669, %v4668
        %v4691 = vpack.c.b16 %v4671, %v4670
        %v4692 = vpack.c.b16 %v4673, %v4672
        %v4693 = vpack.c.b16 %v4675, %v4674
        %v4694 = vpack.c.b16 %v4677, %v4676
        %v4695 = vpack.c.b16 %v4679, %v4678
        %v4697 = vsel %vm1196, %v4680, 0
        %v4700 = vsel %vm1196, %v4681, 0
        %v4703 = vsel %vm1196, %v4682, 0
        %v4706 = vsel %vm1196, %v4683, 0
        %v4709 = vsel %vm1196, %v4684, 0
        %v4712 = vsel %vm1196, %v4685, 0
        %v4715 = vsel %vm1196, %v4686, 0
        %v4718 = vsel %vm1196, %v4687, 0
        %v4721 = vsel %vm1196, %v4688, 0
        %v4724 = vsel %vm1196, %v4689, 0
        %v4727 = vsel %vm1196, %v4690, 0
        %v4730 = vsel %vm1196, %v4691, 0
        %v4733 = vsel %vm1196, %v4692, 0
        %v4736 = vsel %vm1196, %v4693, 0
        %v4739 = vsel %vm1196, %v4694, 0
        %v4742 = vsel %vm1196, %v4695, 0
        %v4745 = vsel %vm1245, %v4615, 0
        %4747 = vmatprep.subr.bf16.mxu0 0
        %4748 = vmatpush1.bf16.msra.mxu0 0
        %4749 = vmatprep.subr.bf16.mxu0 0
        %4750 = vmatpush1.bf16.msra.mxu0 0
        %4751 = vmatprep.subr.bf16.mxu0 0
        %4752 = vmatpush1.bf16.msra.mxu0 0
        %4753 = vmatprep.subr.bf16.mxu0 0
        %4754 = vmatpush1.bf16.msra.mxu0 0
        %4755 = vmatprep.subr.bf16.mxu0 0
        %4756 = vmatpush1.bf16.msra.mxu0 0
        %4757 = vmatprep.subr.bf16.mxu0 0
        %4758 = vmatpush1.bf16.msra.mxu0 0
        %4759 = vmatprep.subr.bf16.mxu0 0
        %4760 = vmatpush1.bf16.msra.mxu0 0
        %4761 = vmatprep.subr.bf16.mxu0 0
        %4762 = vmatpush1.bf16.msra.mxu0 %v4745
        %4763 = vmatprep.subr.bf16.mxu0 0
        %4764 = vmatpush2.bf16.msra.mxu0 0
        %4765 = vmatprep.subr.bf16.mxu0 0
        %4766 = vmatpush2.bf16.msra.mxu0 0
        %4767 = vmatprep.subr.bf16.mxu0 0
        %4768 = vmatpush2.bf16.msra.mxu0 0
        %4769 = vmatprep.subr.bf16.mxu0 0
        %4770 = vmatpush2.bf16.msra.mxu0 0
        %4771 = vmatprep.subr.bf16.mxu0 0
        %4772 = vmatpush2.bf16.msra.mxu0 0
        %4773 = vmatprep.subr.bf16.mxu0 0
        %4774 = vmatpush2.bf16.msra.mxu0 0
        %4775 = vmatprep.subr.bf16.mxu0 0
        %4776 = vmatpush2.bf16.msra.mxu0 0
        %4777 = vmatprep.subr.bf16.mxu0 0
        %4778 = vmatpush2.bf16.msra.mxu0 0
        %4779 = vmatprep.mubr.bf16.mxu0 0
        %4780 = vmatmul.mubr.bf16.gmra.mxu0 %v4697
        %v4781 = vpop.f32.mrf.mxu0
        %v4782 = vadd.f32 0.0, %v4781
        %v4783 = vpop.f32.mrf.mxu0
        %v4784 = vpop.f32.mrf.mxu0
        %v4785 = vadd.f32 0.0, %v4784
        %v4786 = vpop.f32.mrf.mxu0
        %4787 = vmatprep.mubr.bf16.mxu0 0
        %4788 = vmatmul.mubr.bf16.gmra.mxu0 %v4700
        %v4789 = vpop.f32.mrf.mxu0
        %v4790 = vadd.f32 0.0, %v4789
        %v4791 = vpop.f32.mrf.mxu0
        %v4792 = vpop.f32.mrf.mxu0
        %v4793 = vadd.f32 0.0, %v4792
        %v4794 = vpop.f32.mrf.mxu0
        %4795 = vmatprep.mubr.bf16.mxu0 0
        %4796 = vmatmul.mubr.bf16.gmra.mxu0 %v4703
        %v4797 = vpop.f32.mrf.mxu0
        %v4798 = vadd.f32 0.0, %v4797
        %v4799 = vpop.f32.mrf.mxu0
        %v4800 = vpop.f32.mrf.mxu0
        %v4801 = vadd.f32 0.0, %v4800
        %v4802 = vpop.f32.mrf.mxu0
        %4803 = vmatprep.mubr.bf16.mxu0 0
        %4804 = vmatmul.mubr.bf16.gmra.mxu0 %v4706
        %v4805 = vpop.f32.mrf.mxu0
        %v4806 = vadd.f32 0.0, %v4805
        %v4807 = vpop.f32.mrf.mxu0
        %v4808 = vpop.f32.mrf.mxu0
        %v4809 = vadd.f32 0.0, %v4808
        %v4810 = vpop.f32.mrf.mxu0
        %4811 = vmatprep.mubr.bf16.mxu0 0
        %4812 = vmatmul.mubr.bf16.gmra.mxu0 %v4709
        %v4813 = vpop.f32.mrf.mxu0
        %v4814 = vadd.f32 0.0, %v4813
        %v4815 = vpop.f32.mrf.mxu0
        %v4816 = vpop.f32.mrf.mxu0
        %v4817 = vadd.f32 0.0, %v4816
        %v4818 = vpop.f32.mrf.mxu0
        %4819 = vmatprep.mubr.bf16.mxu0 0
        %4820 = vmatmul.mubr.bf16.gmra.mxu0 %v4712
        %v4821 = vpop.f32.mrf.mxu0
        %v4822 = vadd.f32 0.0, %v4821
        %v4823 = vpop.f32.mrf.mxu0
        %v4824 = vpop.f32.mrf.mxu0
        %v4825 = vadd.f32 0.0, %v4824
        %v4826 = vpop.f32.mrf.mxu0
        %4827 = vmatprep.mubr.bf16.mxu0 0
        %4828 = vmatmul.mubr.bf16.gmra.mxu0 %v4715
        %v4829 = vpop.f32.mrf.mxu0
        %v4830 = vadd.f32 0.0, %v4829
        %v4831 = vpop.f32.mrf.mxu0
        %v4832 = vpop.f32.mrf.mxu0
        %v4833 = vadd.f32 0.0, %v4832
        %v4834 = vpop.f32.mrf.mxu0
        %4835 = vmatprep.mubr.bf16.mxu0 0
        %4836 = vmatmul.mubr.bf16.gmra.mxu0 %v4718
        %v4837 = vpop.f32.mrf.mxu0
        %v4838 = vadd.f32 0.0, %v4837
        %v4839 = vpop.f32.mrf.mxu0
        %v4840 = vpop.f32.mrf.mxu0
        %v4841 = vadd.f32 0.0, %v4840
        %v4842 = vpop.f32.mrf.mxu0
        %4843 = vmatprep.mubr.bf16.mxu0 0
        %4844 = vmatmul.mubr.bf16.gmra.mxu0 %v4721
        %v4845 = vpop.f32.mrf.mxu0
        %v4846 = vadd.f32 0.0, %v4845
        %v4847 = vpop.f32.mrf.mxu0
        %v4848 = vpop.f32.mrf.mxu0
        %v4849 = vadd.f32 0.0, %v4848
        %v4850 = vpop.f32.mrf.mxu0
        %4851 = vmatprep.mubr.bf16.mxu0 0
        %4852 = vmatmul.mubr.bf16.gmra.mxu0 %v4724
        %v4853 = vpop.f32.mrf.mxu0
        %v4854 = vadd.f32 0.0, %v4853
        %v4855 = vpop.f32.mrf.mxu0
        %v4856 = vpop.f32.mrf.mxu0
        %v4857 = vadd.f32 0.0, %v4856
        %v4858 = vpop.f32.mrf.mxu0
        %4859 = vmatprep.mubr.bf16.mxu0 0
        %4860 = vmatmul.mubr.bf16.gmra.mxu0 %v4727
        %v4861 = vpop.f32.mrf.mxu0
        %v4862 = vadd.f32 0.0, %v4861
        %v4863 = vpop.f32.mrf.mxu0
        %v4864 = vpop.f32.mrf.mxu0
        %v4865 = vadd.f32 0.0, %v4864
        %v4866 = vpop.f32.mrf.mxu0
        %4867 = vmatprep.mubr.bf16.mxu0 0
        %4868 = vmatmul.mubr.bf16.gmra.mxu0 %v4730
        %v4869 = vpop.f32.mrf.mxu0
        %v4870 = vadd.f32 0.0, %v4869
        %v4871 = vpop.f32.mrf.mxu0
        %v4872 = vpop.f32.mrf.mxu0
        %v4873 = vadd.f32 0.0, %v4872
        %v4874 = vpop.f32.mrf.mxu0
        %4875 = vmatprep.mubr.bf16.mxu0 0
        %4876 = vmatmul.mubr.bf16.gmra.mxu0 %v4733
        %v4877 = vpop.f32.mrf.mxu0
        %v4878 = vadd.f32 0.0, %v4877
        %v4879 = vpop.f32.mrf.mxu0
        %v4880 = vpop.f32.mrf.mxu0
        %v4881 = vadd.f32 0.0, %v4880
        %v4882 = vpop.f32.mrf.mxu0
        %4883 = vmatprep.mubr.bf16.mxu0 0
        %4884 = vmatmul.mubr.bf16.gmra.mxu0 %v4736
        %v4885 = vpop.f32.mrf.mxu0
        %v4886 = vadd.f32 0.0, %v4885
        %v4887 = vpop.f32.mrf.mxu0
        %v4888 = vpop.f32.mrf.mxu0
        %v4889 = vadd.f32 0.0, %v4888
        %v4890 = vpop.f32.mrf.mxu0
        %4891 = vmatprep.mubr.bf16.mxu0 0
        %4892 = vmatmul.mubr.bf16.gmra.mxu0 %v4739
        %v4893 = vpop.f32.mrf.mxu0
        %v4894 = vadd.f32 0.0, %v4893
        %v4895 = vpop.f32.mrf.mxu0
        %v4896 = vpop.f32.mrf.mxu0
        %v4897 = vadd.f32 0.0, %v4896
        %v4898 = vpop.f32.mrf.mxu0
        %4899 = vmatprep.mubr.bf16.mxu0 0
        %4900 = vmatmul.mubr.bf16.gmra.mxu0 %v4742
        %v4901 = vpop.f32.mrf.mxu0
        %v4902 = vadd.f32 0.0, %v4901
        %v4903 = vpop.f32.mrf.mxu0
        %v4904 = vpop.f32.mrf.mxu0
        %v4905 = vadd.f32 0.0, %v4904
        %v4906 = vpop.f32.mrf.mxu0
        %4907 = vdwg.mxu0
        %v4908 = vld [vmem:[#allocation2] sm:$0xff]
        %v4909 = vld [vmem:[#allocation2 + $0x8] sm:$0xff]
        %v4910 = vld [vmem:[#allocation2 + $0x10] sm:$0xff]
        %v4911 = vld [vmem:[#allocation2 + $0x18] sm:$0xff]
        %v4912 = vld [vmem:[#allocation2 + $0x20] sm:$0xff]
        %v4913 = vld [vmem:[#allocation2 + $0x28] sm:$0xff]
        %v4914 = vld [vmem:[#allocation2 + $0x30] sm:$0xff]
        %v4915 = vld [vmem:[#allocation2 + $0x38] sm:$0xff]
        %v4916 = vld [vmem:[#allocation2 + $0x40] sm:$0xff]
        %v4917 = vld [vmem:[#allocation2 + $0x48] sm:$0xff]
        %v4918 = vld [vmem:[#allocation2 + $0x50] sm:$0xff]
        %v4919 = vld [vmem:[#allocation2 + $0x58] sm:$0xff]
        %v4920 = vld [vmem:[#allocation2 + $0x60] sm:$0xff]
        %v4921 = vld [vmem:[#allocation2 + $0x68] sm:$0xff]
        %v4922 = vld [vmem:[#allocation2 + $0x70] sm:$0xff]
        %v4923 = vld [vmem:[#allocation2 + $0x78] sm:$0xff]
        %v4924 = vld [vmem:[#allocation2 + $0x80] sm:$0xff]
        %v4925 = vld [vmem:[#allocation2 + $0x88] sm:$0xff]
        %v4926 = vld [vmem:[#allocation2 + $0x90] sm:$0xff]
        %v4927 = vld [vmem:[#allocation2 + $0x98] sm:$0xff]
        %v4928 = vld [vmem:[#allocation2 + $0xa0] sm:$0xff]
        %v4929 = vld [vmem:[#allocation2 + $0xa8] sm:$0xff]
        %v4930 = vld [vmem:[#allocation2 + $0xb0] sm:$0xff]
        %v4931 = vld [vmem:[#allocation2 + $0xb8] sm:$0xff]
        %v4932 = vld [vmem:[#allocation2 + $0xc0] sm:$0xff]
        %v4933 = vld [vmem:[#allocation2 + $0xc8] sm:$0xff]
        %v4934 = vld [vmem:[#allocation2 + $0xd0] sm:$0xff]
        %v4935 = vld [vmem:[#allocation2 + $0xd8] sm:$0xff]
        %v4936 = vld [vmem:[#allocation2 + $0xe0] sm:$0xff]
        %v4937 = vld [vmem:[#allocation2 + $0xe8] sm:$0xff]
        %v4938 = vld [vmem:[#allocation2 + $0xf0] sm:$0xff]
        %v4939 = vld [vmem:[#allocation2 + $0xf8] sm:$0xff]
        %v4940 = vadd.f32 %v4908, %v4782
        %v4941 = vadd.f32 %v4909, %v4785
        %v4942 = vadd.f32 %v4910, %v4790
        %v4943 = vadd.f32 %v4911, %v4793
        %v4944 = vadd.f32 %v4912, %v4798
        %v4945 = vadd.f32 %v4913, %v4801
        %v4946 = vadd.f32 %v4914, %v4806
        %v4947 = vadd.f32 %v4915, %v4809
        %v4948 = vadd.f32 %v4916, %v4814
        %v4949 = vadd.f32 %v4917, %v4817
        %v4950 = vadd.f32 %v4918, %v4822
        %v4951 = vadd.f32 %v4919, %v4825
        %v4952 = vadd.f32 %v4920, %v4830
        %v4953 = vadd.f32 %v4921, %v4833
        %v4954 = vadd.f32 %v4922, %v4838
        %v4955 = vadd.f32 %v4923, %v4841
        %v4956 = vadd.f32 %v4924, %v4846
        %v4957 = vadd.f32 %v4925, %v4849
        %v4958 = vadd.f32 %v4926, %v4854
        %v4959 = vadd.f32 %v4927, %v4857
        %v4960 = vadd.f32 %v4928, %v4862
        %v4961 = vadd.f32 %v4929, %v4865
        %v4962 = vadd.f32 %v4930, %v4870
        %v4963 = vadd.f32 %v4931, %v4873
        %v4964 = vadd.f32 %v4932, %v4878
        %v4965 = vadd.f32 %v4933, %v4881
        %v4966 = vadd.f32 %v4934, %v4886
        %v4967 = vadd.f32 %v4935, %v4889
        %v4968 = vadd.f32 %v4936, %v4894
        %v4969 = vadd.f32 %v4937, %v4897
        %v4970 = vadd.f32 %v4938, %v4902
        %v4971 = vadd.f32 %v4939, %v4905
        %4972 = vst [vmem:[#allocation2] sm:$0xff] %v4940
        %4973 = vst [vmem:[#allocation2 + $0x8] sm:$0xff] %v4941
        %4974 = vst [vmem:[#allocation2 + $0x10] sm:$0xff] %v4942
        %4975 = vst [vmem:[#allocation2 + $0x18] sm:$0xff] %v4943
        %4976 = vst [vmem:[#allocation2 + $0x20] sm:$0xff] %v4944
        %4977 = vst [vmem:[#allocation2 + $0x28] sm:$0xff] %v4945
        %4978 = vst [vmem:[#allocation2 + $0x30] sm:$0xff] %v4946
        %4979 = vst [vmem:[#allocation2 + $0x38] sm:$0xff] %v4947
        %4980 = vst [vmem:[#allocation2 + $0x40] sm:$0xff] %v4948
        %4981 = vst [vmem:[#allocation2 + $0x48] sm:$0xff] %v4949
        %4982 = vst [vmem:[#allocation2 + $0x50] sm:$0xff] %v4950
        %4983 = vst [vmem:[#allocation2 + $0x58] sm:$0xff] %v4951
        %4984 = vst [vmem:[#allocation2 + $0x60] sm:$0xff] %v4952
        %4985 = vst [vmem:[#allocation2 + $0x68] sm:$0xff] %v4953
        %4986 = vst [vmem:[#allocation2 + $0x70] sm:$0xff] %v4954
        %4987 = vst [vmem:[#allocation2 + $0x78] sm:$0xff] %v4955
        %4988 = vst [vmem:[#allocation2 + $0x80] sm:$0xff] %v4956
        %4989 = vst [vmem:[#allocation2 + $0x88] sm:$0xff] %v4957
        %4990 = vst [vmem:[#allocation2 + $0x90] sm:$0xff] %v4958
        %4991 = vst [vmem:[#allocation2 + $0x98] sm:$0xff] %v4959
        %4992 = vst [vmem:[#allocation2 + $0xa0] sm:$0xff] %v4960
        %4993 = vst [vmem:[#allocation2 + $0xa8] sm:$0xff] %v4961
        %4994 = vst [vmem:[#allocation2 + $0xb0] sm:$0xff] %v4962
        %4995 = vst [vmem:[#allocation2 + $0xb8] sm:$0xff] %v4963
        %4996 = vst [vmem:[#allocation2 + $0xc0] sm:$0xff] %v4964
        %4997 = vst [vmem:[#allocation2 + $0xc8] sm:$0xff] %v4965
        %4998 = vst [vmem:[#allocation2 + $0xd0] sm:$0xff] %v4966
        %4999 = vst [vmem:[#allocation2 + $0xd8] sm:$0xff] %v4967
        %5000 = vst [vmem:[#allocation2 + $0xe0] sm:$0xff] %v4968
        %5001 = vst [vmem:[#allocation2 + $0xe8] sm:$0xff] %v4969
        %5002 = vst [vmem:[#allocation2 + $0xf0] sm:$0xff] %v4970
        %5003 = vst [vmem:[#allocation2 + $0xf8] sm:$0xff] %v4971
        %v5004 = vld [vmem:[%s1022] sm:$0xf]
        %v5005 = vld [vmem:[%s1022 + $0x4] sm:$0xf]
        %v5006 = vld [vmem:[%s1022 + $0x8] sm:$0x1]
        %v5007 = vld [vmem:[%s1022 + $0xc] sm:$0xf]
        %v5008 = vld [vmem:[%s1022 + $0x10] sm:$0xf]
        %v5009 = vld [vmem:[%s1022 + $0x14] sm:$0x1]
        %v5010 = vld [vmem:[%s1022 + $0x18] sm:$0xf]
        %v5011 = vld [vmem:[%s1022 + $0x1c] sm:$0xf]
        %v5012 = vld [vmem:[%s1022 + $0x20] sm:$0x1]
        %v5013 = vld [vmem:[%s1022 + $0x24] sm:$0xf]
        %v5014 = vld [vmem:[%s1022 + $0x28] sm:$0xf]
        %v5015 = vld [vmem:[%s1022 + $0x2c] sm:$0x1]
        %v5016 = vld [vmem:[%s1022 + $0x30] sm:$0xf]
        %v5017 = vld [vmem:[%s1022 + $0x34] sm:$0xf]
        %v5018 = vld [vmem:[%s1022 + $0x38] sm:$0x1]
        %v5019 = vld [vmem:[%s1022 + $0x3c] sm:$0xf]
        %v5020 = vld [vmem:[%s1022 + $0x40] sm:$0xf]
        %v5021 = vld [vmem:[%s1022 + $0x44] sm:$0x1]
        %v5022 = vld [vmem:[%s1022 + $0x48] sm:$0xf]
        %v5023 = vld [vmem:[%s1022 + $0x4c] sm:$0xf]
        %v5024 = vld [vmem:[%s1022 + $0x50] sm:$0x1]
        %v5025 = vld [vmem:[%s1022 + $0x54] sm:$0xf]
        %v5026 = vld [vmem:[%s1022 + $0x58] sm:$0xf]
        %v5027 = vld [vmem:[%s1022 + $0x5c] sm:$0x1]
        %v5028 = vld [vmem:[%s1022 + $0x60] sm:$0xf]
        %v5029 = vld [vmem:[%s1022 + $0x64] sm:$0xf]
        %v5030 = vld [vmem:[%s1022 + $0x68] sm:$0x1]
        %v5031 = vld [vmem:[%s1022 + $0x6c] sm:$0xf]
        %v5032 = vld [vmem:[%s1022 + $0x70] sm:$0xf]
        %v5033 = vld [vmem:[%s1022 + $0x74] sm:$0x1]
        %v5034 = vld [vmem:[%s1022 + $0x78] sm:$0xf]
        %v5035 = vld [vmem:[%s1022 + $0x7c] sm:$0xf]
        %v5036 = vld [vmem:[%s1022 + $0x80] sm:$0x1]
        %v5037 = vld [vmem:[%s1022 + $0x84] sm:$0xf]
        %v5038 = vld [vmem:[%s1022 + $0x88] sm:$0xf]
        %v5039 = vld [vmem:[%s1022 + $0x8c] sm:$0x1]
        %v5040 = vld [vmem:[%s1022 + $0x90] sm:$0xf]
        %v5041 = vld [vmem:[%s1022 + $0x94] sm:$0xf]
        %v5042 = vld [vmem:[%s1022 + $0x98] sm:$0x1]
        %v5043 = vld [vmem:[%s1022 + $0x9c] sm:$0xf]
        %v5044 = vld [vmem:[%s1022 + $0xa0] sm:$0xf]
        %v5045 = vld [vmem:[%s1022 + $0xa4] sm:$0x1]
        %v5046 = vld [vmem:[%s1022 + $0xa8] sm:$0xf]
        %v5047 = vld [vmem:[%s1022 + $0xac] sm:$0xf]
        %v5048 = vld [vmem:[%s1022 + $0xb0] sm:$0x1]
        %v5049 = vld [vmem:[%s1022 + $0xb4] sm:$0xf]
        %v5050 = vld [vmem:[%s1022 + $0xb8] sm:$0xf]
        %v5051 = vld [vmem:[%s1022 + $0xbc] sm:$0x1]
        %v5053 = vshrl.u32 %v5004, 16
        %v5055 = vrot.slane %v5053, 4
        %v5056 = vshll.u32 %v5004, 16
        %v5058 = vrot.slane %v5056, 5
        %v5059 = vor.u32 %v5055, %v5058
        %v5060 = vrot.slane %v5059, 4
        %v5062 = vshll.u32 %v5005, 16
        %v5064 = vrot.slane %v5062, 5
        %v5065 = vsel %vm1492, %v5060, %v5064
        %v5066 = vshrl.u32 %v5005, 16
        %v5068 = vrot.slane %v5066, 4
        %v5069 = vor.u32 %v5068, %v5064
        %v5070 = vrot.slane %v5069, 4
        %v5072 = vshll.u32 %v5006, 16
        %v5074 = vrot.slane %v5072, 5
        %v5075 = vsel %vm1492, %v5070, %v5074
        %v5077 = vshrl.u32 %v5007, 16
        %v5079 = vrot.slane %v5077, 4
        %v5080 = vshll.u32 %v5007, 16
        %v5082 = vrot.slane %v5080, 5
        %v5083 = vor.u32 %v5079, %v5082
        %v5084 = vrot.slane %v5083, 4
        %v5086 = vshll.u32 %v5008, 16
        %v5088 = vrot.slane %v5086, 5
        %v5089 = vsel %vm1492, %v5084, %v5088
        %v5090 = vshrl.u32 %v5008, 16
        %v5092 = vrot.slane %v5090, 4
        %v5093 = vor.u32 %v5092, %v5088
        %v5094 = vrot.slane %v5093, 4
        %v5096 = vshll.u32 %v5009, 16
        %v5098 = vrot.slane %v5096, 5
        %v5099 = vsel %vm1492, %v5094, %v5098
        %v5101 = vshrl.u32 %v5010, 16
        %v5103 = vrot.slane %v5101, 4
        %v5104 = vshll.u32 %v5010, 16
        %v5106 = vrot.slane %v5104, 5
        %v5107 = vor.u32 %v5103, %v5106
        %v5108 = vrot.slane %v5107, 4
        %v5110 = vshll.u32 %v5011, 16
        %v5112 = vrot.slane %v5110, 5
        %v5113 = vsel %vm1492, %v5108, %v5112
        %v5114 = vshrl.u32 %v5011, 16
        %v5116 = vrot.slane %v5114, 4
        %v5117 = vor.u32 %v5116, %v5112
        %v5118 = vrot.slane %v5117, 4
        %v5120 = vshll.u32 %v5012, 16
        %v5122 = vrot.slane %v5120, 5
        %v5123 = vsel %vm1492, %v5118, %v5122
        %v5125 = vshrl.u32 %v5013, 16
        %v5127 = vrot.slane %v5125, 4
        %v5128 = vshll.u32 %v5013, 16
        %v5130 = vrot.slane %v5128, 5
        %v5131 = vor.u32 %v5127, %v5130
        %v5132 = vrot.slane %v5131, 4
        %v5134 = vshll.u32 %v5014, 16
        %v5136 = vrot.slane %v5134, 5
        %v5137 = vsel %vm1492, %v5132, %v5136
        %v5138 = vshrl.u32 %v5014, 16
        %v5140 = vrot.slane %v5138, 4
        %v5141 = vor.u32 %v5140, %v5136
        %v5142 = vrot.slane %v5141, 4
        %v5144 = vshll.u32 %v5015, 16
        %v5146 = vrot.slane %v5144, 5
        %v5147 = vsel %vm1492, %v5142, %v5146
        %v5149 = vshrl.u32 %v5016, 16
        %v5151 = vrot.slane %v5149, 4
        %v5152 = vshll.u32 %v5016, 16
        %v5154 = vrot.slane %v5152, 5
        %v5155 = vor.u32 %v5151, %v5154
        %v5156 = vrot.slane %v5155, 4
        %v5158 = vshll.u32 %v5017, 16
        %v5160 = vrot.slane %v5158, 5
        %v5161 = vsel %vm1492, %v5156, %v5160
        %v5162 = vshrl.u32 %v5017, 16
        %v5164 = vrot.slane %v5162, 4
        %v5165 = vor.u32 %v5164, %v5160
        %v5166 = vrot.slane %v5165, 4
        %v5168 = vshll.u32 %v5018, 16
        %v5170 = vrot.slane %v5168, 5
        %v5171 = vsel %vm1492, %v5166, %v5170
        %v5173 = vshrl.u32 %v5019, 16
        %v5175 = vrot.slane %v5173, 4
        %v5176 = vshll.u32 %v5019, 16
        %v5178 = vrot.slane %v5176, 5
        %v5179 = vor.u32 %v5175, %v5178
        %v5180 = vrot.slane %v5179, 4
        %v5182 = vshll.u32 %v5020, 16
        %v5184 = vrot.slane %v5182, 5
        %v5185 = vsel %vm1492, %v5180, %v5184
        %v5186 = vshrl.u32 %v5020, 16
        %v5188 = vrot.slane %v5186, 4
        %v5189 = vor.u32 %v5188, %v5184
        %v5190 = vrot.slane %v5189, 4
        %v5192 = vshll.u32 %v5021, 16
        %v5194 = vrot.slane %v5192, 5
        %v5195 = vsel %vm1492, %v5190, %v5194
        %v5197 = vshrl.u32 %v5022, 16
        %v5199 = vrot.slane %v5197, 4
        %v5200 = vshll.u32 %v5022, 16
        %v5202 = vrot.slane %v5200, 5
        %v5203 = vor.u32 %v5199, %v5202
        %v5204 = vrot.slane %v5203, 4
        %v5206 = vshll.u32 %v5023, 16
        %v5208 = vrot.slane %v5206, 5
        %v5209 = vsel %vm1492, %v5204, %v5208
        %v5210 = vshrl.u32 %v5023, 16
        %v5212 = vrot.slane %v5210, 4
        %v5213 = vor.u32 %v5212, %v5208
        %v5214 = vrot.slane %v5213, 4
        %v5216 = vshll.u32 %v5024, 16
        %v5218 = vrot.slane %v5216, 5
        %v5219 = vsel %vm1492, %v5214, %v5218
        %v5221 = vshrl.u32 %v5025, 16
        %v5223 = vrot.slane %v5221, 4
        %v5224 = vshll.u32 %v5025, 16
        %v5226 = vrot.slane %v5224, 5
        %v5227 = vor.u32 %v5223, %v5226
        %v5228 = vrot.slane %v5227, 4
        %v5230 = vshll.u32 %v5026, 16
        %v5232 = vrot.slane %v5230, 5
        %v5233 = vsel %vm1492, %v5228, %v5232
        %v5234 = vshrl.u32 %v5026, 16
        %v5236 = vrot.slane %v5234, 4
        %v5237 = vor.u32 %v5236, %v5232
        %v5238 = vrot.slane %v5237, 4
        %v5240 = vshll.u32 %v5027, 16
        %v5242 = vrot.slane %v5240, 5
        %v5243 = vsel %vm1492, %v5238, %v5242
        %v5245 = vshrl.u32 %v5028, 16
        %v5247 = vrot.slane %v5245, 4
        %v5248 = vshll.u32 %v5028, 16
        %v5250 = vrot.slane %v5248, 5
        %v5251 = vor.u32 %v5247, %v5250
        %v5252 = vrot.slane %v5251, 4
        %v5254 = vshll.u32 %v5029, 16
        %v5256 = vrot.slane %v5254, 5
        %v5257 = vsel %vm1492, %v5252, %v5256
        %v5258 = vshrl.u32 %v5029, 16
        %v5260 = vrot.slane %v5258, 4
        %v5261 = vor.u32 %v5260, %v5256
        %v5262 = vrot.slane %v5261, 4
        %v5264 = vshll.u32 %v5030, 16
        %v5266 = vrot.slane %v5264, 5
        %v5267 = vsel %vm1492, %v5262, %v5266
        %v5269 = vshrl.u32 %v5031, 16
        %v5271 = vrot.slane %v5269, 4
        %v5272 = vshll.u32 %v5031, 16
        %v5274 = vrot.slane %v5272, 5
        %v5275 = vor.u32 %v5271, %v5274
        %v5276 = vrot.slane %v5275, 4
        %v5278 = vshll.u32 %v5032, 16
        %v5280 = vrot.slane %v5278, 5
        %v5281 = vsel %vm1492, %v5276, %v5280
        %v5282 = vshrl.u32 %v5032, 16
        %v5284 = vrot.slane %v5282, 4
        %v5285 = vor.u32 %v5284, %v5280
        %v5286 = vrot.slane %v5285, 4
        %v5288 = vshll.u32 %v5033, 16
        %v5290 = vrot.slane %v5288, 5
        %v5291 = vsel %vm1492, %v5286, %v5290
        %v5293 = vshrl.u32 %v5034, 16
        %v5295 = vrot.slane %v5293, 4
        %v5296 = vshll.u32 %v5034, 16
        %v5298 = vrot.slane %v5296, 5
        %v5299 = vor.u32 %v5295, %v5298
        %v5300 = vrot.slane %v5299, 4
        %v5302 = vshll.u32 %v5035, 16
        %v5304 = vrot.slane %v5302, 5
        %v5305 = vsel %vm1492, %v5300, %v5304
        %v5306 = vshrl.u32 %v5035, 16
        %v5308 = vrot.slane %v5306, 4
        %v5309 = vor.u32 %v5308, %v5304
        %v5310 = vrot.slane %v5309, 4
        %v5312 = vshll.u32 %v5036, 16
        %v5314 = vrot.slane %v5312, 5
        %v5315 = vsel %vm1492, %v5310, %v5314
        %v5317 = vshrl.u32 %v5037, 16
        %v5319 = vrot.slane %v5317, 4
        %v5320 = vshll.u32 %v5037, 16
        %v5322 = vrot.slane %v5320, 5
        %v5323 = vor.u32 %v5319, %v5322
        %v5324 = vrot.slane %v5323, 4
        %v5326 = vshll.u32 %v5038, 16
        %v5328 = vrot.slane %v5326, 5
        %v5329 = vsel %vm1492, %v5324, %v5328
        %v5330 = vshrl.u32 %v5038, 16
        %v5332 = vrot.slane %v5330, 4
        %v5333 = vor.u32 %v5332, %v5328
        %v5334 = vrot.slane %v5333, 4
        %v5336 = vshll.u32 %v5039, 16
        %v5338 = vrot.slane %v5336, 5
        %v5339 = vsel %vm1492, %v5334, %v5338
        %v5341 = vshrl.u32 %v5040, 16
        %v5343 = vrot.slane %v5341, 4
        %v5344 = vshll.u32 %v5040, 16
        %v5346 = vrot.slane %v5344, 5
        %v5347 = vor.u32 %v5343, %v5346
        %v5348 = vrot.slane %v5347, 4
        %v5350 = vshll.u32 %v5041, 16
        %v5352 = vrot.slane %v5350, 5
        %v5353 = vsel %vm1492, %v5348, %v5352
        %v5354 = vshrl.u32 %v5041, 16
        %v5356 = vrot.slane %v5354, 4
        %v5357 = vor.u32 %v5356, %v5352
        %v5358 = vrot.slane %v5357, 4
        %v5360 = vshll.u32 %v5042, 16
        %v5362 = vrot.slane %v5360, 5
        %v5363 = vsel %vm1492, %v5358, %v5362
        %v5365 = vshrl.u32 %v5043, 16
        %v5367 = vrot.slane %v5365, 4
        %v5368 = vshll.u32 %v5043, 16
        %v5370 = vrot.slane %v5368, 5
        %v5371 = vor.u32 %v5367, %v5370
        %v5372 = vrot.slane %v5371, 4
        %v5374 = vshll.u32 %v5044, 16
        %v5376 = vrot.slane %v5374, 5
        %v5377 = vsel %vm1492, %v5372, %v5376
        %v5378 = vshrl.u32 %v5044, 16
        %v5380 = vrot.slane %v5378, 4
        %v5381 = vor.u32 %v5380, %v5376
        %v5382 = vrot.slane %v5381, 4
        %v5384 = vshll.u32 %v5045, 16
        %v5386 = vrot.slane %v5384, 5
        %v5387 = vsel %vm1492, %v5382, %v5386
        %v5389 = vshrl.u32 %v5046, 16
        %v5391 = vrot.slane %v5389, 4
        %v5392 = vshll.u32 %v5046, 16
        %v5394 = vrot.slane %v5392, 5
        %v5395 = vor.u32 %v5391, %v5394
        %v5396 = vrot.slane %v5395, 4
        %v5398 = vshll.u32 %v5047, 16
        %v5400 = vrot.slane %v5398, 5
        %v5401 = vsel %vm1492, %v5396, %v5400
        %v5402 = vshrl.u32 %v5047, 16
        %v5404 = vrot.slane %v5402, 4
        %v5405 = vor.u32 %v5404, %v5400
        %v5406 = vrot.slane %v5405, 4
        %v5408 = vshll.u32 %v5048, 16
        %v5410 = vrot.slane %v5408, 5
        %v5411 = vsel %vm1492, %v5406, %v5410
        %v5413 = vshrl.u32 %v5049, 16
        %v5415 = vrot.slane %v5413, 4
        %v5416 = vshll.u32 %v5049, 16
        %v5418 = vrot.slane %v5416, 5
        %v5419 = vor.u32 %v5415, %v5418
        %v5420 = vrot.slane %v5419, 4
        %v5422 = vshll.u32 %v5050, 16
        %v5424 = vrot.slane %v5422, 5
        %v5425 = vsel %vm1492, %v5420, %v5424
        %v5426 = vshrl.u32 %v5050, 16
        %v5428 = vrot.slane %v5426, 4
        %v5429 = vor.u32 %v5428, %v5424
        %v5430 = vrot.slane %v5429, 4
        %v5432 = vshll.u32 %v5051, 16
        %v5434 = vrot.slane %v5432, 5
        %v5435 = vsel %vm1492, %v5430, %v5434
        %s5436 = scalar_lea.vmem %s1077, 14
        %v5437 = vld [vmem:[%s5436] sm:$0x3]
        %v5438 = vunpack.c.l.b16 %v5065
        %v5439 = vunpack.c.l.b16 %v5075
        %v5440 = vunpack.c.l.b16 %v5089
        %v5441 = vunpack.c.l.b16 %v5099
        %v5442 = vunpack.c.l.b16 %v5113
        %v5443 = vunpack.c.l.b16 %v5123
        %v5444 = vunpack.c.l.b16 %v5137
        %v5445 = vunpack.c.l.b16 %v5147
        %v5446 = vunpack.c.l.b16 %v5161
        %v5447 = vunpack.c.l.b16 %v5171
        %v5448 = vunpack.c.l.b16 %v5185
        %v5449 = vunpack.c.l.b16 %v5195
        %v5450 = vunpack.c.l.b16 %v5209
        %v5451 = vunpack.c.l.b16 %v5219
        %v5452 = vunpack.c.l.b16 %v5233
        %v5453 = vunpack.c.l.b16 %v5243
        %v5454 = vunpack.c.l.b16 %v5257
        %v5455 = vunpack.c.l.b16 %v5267
        %v5456 = vunpack.c.l.b16 %v5281
        %v5457 = vunpack.c.l.b16 %v5291
        %v5458 = vunpack.c.l.b16 %v5305
        %v5459 = vunpack.c.l.b16 %v5315
        %v5460 = vunpack.c.l.b16 %v5329
        %v5461 = vunpack.c.l.b16 %v5339
        %v5462 = vunpack.c.l.b16 %v5353
        %v5463 = vunpack.c.l.b16 %v5363
        %v5464 = vunpack.c.l.b16 %v5377
        %v5465 = vunpack.c.l.b16 %v5387
        %v5466 = vunpack.c.l.b16 %v5401
        %v5467 = vunpack.c.l.b16 %v5411
        %v5468 = vunpack.c.l.b16 %v5425
        %v5469 = vunpack.c.l.b16 %v5435
        %v5470 = vpack.c.b16 %v5439, %v5438
        %v5471 = vpack.c.b16 %v5441, %v5440
        %v5472 = vpack.c.b16 %v5443, %v5442
        %v5473 = vpack.c.b16 %v5445, %v5444
        %v5474 = vpack.c.b16 %v5447, %v5446
        %v5475 = vpack.c.b16 %v5449, %v5448
        %v5476 = vpack.c.b16 %v5451, %v5450
        %v5477 = vpack.c.b16 %v5453, %v5452
        %v5478 = vpack.c.b16 %v5455, %v5454
        %v5479 = vpack.c.b16 %v5457, %v5456
        %v5480 = vpack.c.b16 %v5459, %v5458
        %v5481 = vpack.c.b16 %v5461, %v5460
        %v5482 = vpack.c.b16 %v5463, %v5462
        %v5483 = vpack.c.b16 %v5465, %v5464
        %v5484 = vpack.c.b16 %v5467, %v5466
        %v5485 = vpack.c.b16 %v5469, %v5468
        %v5487 = vsel %vm1196, %v5470, 0
        %v5490 = vsel %vm1196, %v5471, 0
        %v5493 = vsel %vm1196, %v5472, 0
        %v5496 = vsel %vm1196, %v5473, 0
        %v5499 = vsel %vm1196, %v5474, 0
        %v5502 = vsel %vm1196, %v5475, 0
        %v5505 = vsel %vm1196, %v5476, 0
        %v5508 = vsel %vm1196, %v5477, 0
        %v5511 = vsel %vm1196, %v5478, 0
        %v5514 = vsel %vm1196, %v5479, 0
        %v5517 = vsel %vm1196, %v5480, 0
        %v5520 = vsel %vm1196, %v5481, 0
        %v5523 = vsel %vm1196, %v5482, 0
        %v5526 = vsel %vm1196, %v5483, 0
        %v5529 = vsel %vm1196, %v5484, 0
        %v5532 = vsel %vm1196, %v5485, 0
        %v5535 = vsel %vm1245, %v5437, 0
        %5537 = vmatprep.subr.bf16.mxu0 0
        %5538 = vmatpush1.bf16.msra.mxu0 0
        %5539 = vmatprep.subr.bf16.mxu0 0
        %5540 = vmatpush1.bf16.msra.mxu0 0
        %5541 = vmatprep.subr.bf16.mxu0 0
        %5542 = vmatpush1.bf16.msra.mxu0 0
        %5543 = vmatprep.subr.bf16.mxu0 0
        %5544 = vmatpush1.bf16.msra.mxu0 0
        %5545 = vmatprep.subr.bf16.mxu0 0
        %5546 = vmatpush1.bf16.msra.mxu0 0
        %5547 = vmatprep.subr.bf16.mxu0 0
        %5548 = vmatpush1.bf16.msra.mxu0 0
        %5549 = vmatprep.subr.bf16.mxu0 0
        %5550 = vmatpush1.bf16.msra.mxu0 0
        %5551 = vmatprep.subr.bf16.mxu0 0
        %5552 = vmatpush1.bf16.msra.mxu0 %v5535
        %5553 = vmatprep.subr.bf16.mxu0 0
        %5554 = vmatpush2.bf16.msra.mxu0 0
        %5555 = vmatprep.subr.bf16.mxu0 0
        %5556 = vmatpush2.bf16.msra.mxu0 0
        %5557 = vmatprep.subr.bf16.mxu0 0
        %5558 = vmatpush2.bf16.msra.mxu0 0
        %5559 = vmatprep.subr.bf16.mxu0 0
        %5560 = vmatpush2.bf16.msra.mxu0 0
        %5561 = vmatprep.subr.bf16.mxu0 0
        %5562 = vmatpush2.bf16.msra.mxu0 0
        %5563 = vmatprep.subr.bf16.mxu0 0
        %5564 = vmatpush2.bf16.msra.mxu0 0
        %5565 = vmatprep.subr.bf16.mxu0 0
        %5566 = vmatpush2.bf16.msra.mxu0 0
        %5567 = vmatprep.subr.bf16.mxu0 0
        %5568 = vmatpush2.bf16.msra.mxu0 0
        %5569 = vmatprep.mubr.bf16.mxu0 0
        %5570 = vmatmul.mubr.bf16.gmra.mxu0 %v5487
        %v5571 = vpop.f32.mrf.mxu0
        %v5572 = vadd.f32 0.0, %v5571
        %v5573 = vpop.f32.mrf.mxu0
        %v5574 = vpop.f32.mrf.mxu0
        %v5575 = vadd.f32 0.0, %v5574
        %v5576 = vpop.f32.mrf.mxu0
        %5577 = vmatprep.mubr.bf16.mxu0 0
        %5578 = vmatmul.mubr.bf16.gmra.mxu0 %v5490
        %v5579 = vpop.f32.mrf.mxu0
        %v5580 = vadd.f32 0.0, %v5579
        %v5581 = vpop.f32.mrf.mxu0
        %v5582 = vpop.f32.mrf.mxu0
        %v5583 = vadd.f32 0.0, %v5582
        %v5584 = vpop.f32.mrf.mxu0
        %5585 = vmatprep.mubr.bf16.mxu0 0
        %5586 = vmatmul.mubr.bf16.gmra.mxu0 %v5493
        %v5587 = vpop.f32.mrf.mxu0
        %v5588 = vadd.f32 0.0, %v5587
        %v5589 = vpop.f32.mrf.mxu0
        %v5590 = vpop.f32.mrf.mxu0
        %v5591 = vadd.f32 0.0, %v5590
        %v5592 = vpop.f32.mrf.mxu0
        %5593 = vmatprep.mubr.bf16.mxu0 0
        %5594 = vmatmul.mubr.bf16.gmra.mxu0 %v5496
        %v5595 = vpop.f32.mrf.mxu0
        %v5596 = vadd.f32 0.0, %v5595
        %v5597 = vpop.f32.mrf.mxu0
        %v5598 = vpop.f32.mrf.mxu0
        %v5599 = vadd.f32 0.0, %v5598
        %v5600 = vpop.f32.mrf.mxu0
        %5601 = vmatprep.mubr.bf16.mxu0 0
        %5602 = vmatmul.mubr.bf16.gmra.mxu0 %v5499
        %v5603 = vpop.f32.mrf.mxu0
        %v5604 = vadd.f32 0.0, %v5603
        %v5605 = vpop.f32.mrf.mxu0
        %v5606 = vpop.f32.mrf.mxu0
        %v5607 = vadd.f32 0.0, %v5606
        %v5608 = vpop.f32.mrf.mxu0
        %5609 = vmatprep.mubr.bf16.mxu0 0
        %5610 = vmatmul.mubr.bf16.gmra.mxu0 %v5502
        %v5611 = vpop.f32.mrf.mxu0
        %v5612 = vadd.f32 0.0, %v5611
        %v5613 = vpop.f32.mrf.mxu0
        %v5614 = vpop.f32.mrf.mxu0
        %v5615 = vadd.f32 0.0, %v5614
        %v5616 = vpop.f32.mrf.mxu0
        %5617 = vmatprep.mubr.bf16.mxu0 0
        %5618 = vmatmul.mubr.bf16.gmra.mxu0 %v5505
        %v5619 = vpop.f32.mrf.mxu0
        %v5620 = vadd.f32 0.0, %v5619
        %v5621 = vpop.f32.mrf.mxu0
        %v5622 = vpop.f32.mrf.mxu0
        %v5623 = vadd.f32 0.0, %v5622
        %v5624 = vpop.f32.mrf.mxu0
        %5625 = vmatprep.mubr.bf16.mxu0 0
        %5626 = vmatmul.mubr.bf16.gmra.mxu0 %v5508
        %v5627 = vpop.f32.mrf.mxu0
        %v5628 = vadd.f32 0.0, %v5627
        %v5629 = vpop.f32.mrf.mxu0
        %v5630 = vpop.f32.mrf.mxu0
        %v5631 = vadd.f32 0.0, %v5630
        %v5632 = vpop.f32.mrf.mxu0
        %5633 = vmatprep.mubr.bf16.mxu0 0
        %5634 = vmatmul.mubr.bf16.gmra.mxu0 %v5511
        %v5635 = vpop.f32.mrf.mxu0
        %v5636 = vadd.f32 0.0, %v5635
        %v5637 = vpop.f32.mrf.mxu0
        %v5638 = vpop.f32.mrf.mxu0
        %v5639 = vadd.f32 0.0, %v5638
        %v5640 = vpop.f32.mrf.mxu0
        %5641 = vmatprep.mubr.bf16.mxu0 0
        %5642 = vmatmul.mubr.bf16.gmra.mxu0 %v5514
        %v5643 = vpop.f32.mrf.mxu0
        %v5644 = vadd.f32 0.0, %v5643
        %v5645 = vpop.f32.mrf.mxu0
        %v5646 = vpop.f32.mrf.mxu0
        %v5647 = vadd.f32 0.0, %v5646
        %v5648 = vpop.f32.mrf.mxu0
        %5649 = vmatprep.mubr.bf16.mxu0 0
        %5650 = vmatmul.mubr.bf16.gmra.mxu0 %v5517
        %v5651 = vpop.f32.mrf.mxu0
        %v5652 = vadd.f32 0.0, %v5651
        %v5653 = vpop.f32.mrf.mxu0
        %v5654 = vpop.f32.mrf.mxu0
        %v5655 = vadd.f32 0.0, %v5654
        %v5656 = vpop.f32.mrf.mxu0
        %5657 = vmatprep.mubr.bf16.mxu0 0
        %5658 = vmatmul.mubr.bf16.gmra.mxu0 %v5520
        %v5659 = vpop.f32.mrf.mxu0
        %v5660 = vadd.f32 0.0, %v5659
        %v5661 = vpop.f32.mrf.mxu0
        %v5662 = vpop.f32.mrf.mxu0
        %v5663 = vadd.f32 0.0, %v5662
        %v5664 = vpop.f32.mrf.mxu0
        %5665 = vmatprep.mubr.bf16.mxu0 0
        %5666 = vmatmul.mubr.bf16.gmra.mxu0 %v5523
        %v5667 = vpop.f32.mrf.mxu0
        %v5668 = vadd.f32 0.0, %v5667
        %v5669 = vpop.f32.mrf.mxu0
        %v5670 = vpop.f32.mrf.mxu0
        %v5671 = vadd.f32 0.0, %v5670
        %v5672 = vpop.f32.mrf.mxu0
        %5673 = vmatprep.mubr.bf16.mxu0 0
        %5674 = vmatmul.mubr.bf16.gmra.mxu0 %v5526
        %v5675 = vpop.f32.mrf.mxu0
        %v5676 = vadd.f32 0.0, %v5675
        %v5677 = vpop.f32.mrf.mxu0
        %v5678 = vpop.f32.mrf.mxu0
        %v5679 = vadd.f32 0.0, %v5678
        %v5680 = vpop.f32.mrf.mxu0
        %5681 = vmatprep.mubr.bf16.mxu0 0
        %5682 = vmatmul.mubr.bf16.gmra.mxu0 %v5529
        %v5683 = vpop.f32.mrf.mxu0
        %v5684 = vadd.f32 0.0, %v5683
        %v5685 = vpop.f32.mrf.mxu0
        %v5686 = vpop.f32.mrf.mxu0
        %v5687 = vadd.f32 0.0, %v5686
        %v5688 = vpop.f32.mrf.mxu0
        %5689 = vmatprep.mubr.bf16.mxu0 0
        %5690 = vmatmul.mubr.bf16.gmra.mxu0 %v5532
        %v5691 = vpop.f32.mrf.mxu0
        %v5692 = vadd.f32 0.0, %v5691
        %v5693 = vpop.f32.mrf.mxu0
        %v5694 = vpop.f32.mrf.mxu0
        %v5695 = vadd.f32 0.0, %v5694
        %v5696 = vpop.f32.mrf.mxu0
        %5697 = vdwg.mxu0
        %v5698 = vld [vmem:[#allocation2] sm:$0xff]
        %v5699 = vld [vmem:[#allocation2 + $0x8] sm:$0xff]
        %v5700 = vld [vmem:[#allocation2 + $0x10] sm:$0xff]
        %v5701 = vld [vmem:[#allocation2 + $0x18] sm:$0xff]
        %v5702 = vld [vmem:[#allocation2 + $0x20] sm:$0xff]
        %v5703 = vld [vmem:[#allocation2 + $0x28] sm:$0xff]
        %v5704 = vld [vmem:[#allocation2 + $0x30] sm:$0xff]
        %v5705 = vld [vmem:[#allocation2 + $0x38] sm:$0xff]
        %v5706 = vld [vmem:[#allocation2 + $0x40] sm:$0xff]
        %v5707 = vld [vmem:[#allocation2 + $0x48] sm:$0xff]
        %v5708 = vld [vmem:[#allocation2 + $0x50] sm:$0xff]
        %v5709 = vld [vmem:[#allocation2 + $0x58] sm:$0xff]
        %v5710 = vld [vmem:[#allocation2 + $0x60] sm:$0xff]
        %v5711 = vld [vmem:[#allocation2 + $0x68] sm:$0xff]
        %v5712 = vld [vmem:[#allocation2 + $0x70] sm:$0xff]
        %v5713 = vld [vmem:[#allocation2 + $0x78] sm:$0xff]
        %v5714 = vld [vmem:[#allocation2 + $0x80] sm:$0xff]
        %v5715 = vld [vmem:[#allocation2 + $0x88] sm:$0xff]
        %v5716 = vld [vmem:[#allocation2 + $0x90] sm:$0xff]
        %v5717 = vld [vmem:[#allocation2 + $0x98] sm:$0xff]
        %v5718 = vld [vmem:[#allocation2 + $0xa0] sm:$0xff]
        %v5719 = vld [vmem:[#allocation2 + $0xa8] sm:$0xff]
        %v5720 = vld [vmem:[#allocation2 + $0xb0] sm:$0xff]
        %v5721 = vld [vmem:[#allocation2 + $0xb8] sm:$0xff]
        %v5722 = vld [vmem:[#allocation2 + $0xc0] sm:$0xff]
        %v5723 = vld [vmem:[#allocation2 + $0xc8] sm:$0xff]
        %v5724 = vld [vmem:[#allocation2 + $0xd0] sm:$0xff]
        %v5725 = vld [vmem:[#allocation2 + $0xd8] sm:$0xff]
        %v5726 = vld [vmem:[#allocation2 + $0xe0] sm:$0xff]
        %v5727 = vld [vmem:[#allocation2 + $0xe8] sm:$0xff]
        %v5728 = vld [vmem:[#allocation2 + $0xf0] sm:$0xff]
        %v5729 = vld [vmem:[#allocation2 + $0xf8] sm:$0xff]
        %v5730 = vadd.f32 %v5698, %v5572
        %v5731 = vadd.f32 %v5699, %v5575
        %v5732 = vadd.f32 %v5700, %v5580
        %v5733 = vadd.f32 %v5701, %v5583
        %v5734 = vadd.f32 %v5702, %v5588
        %v5735 = vadd.f32 %v5703, %v5591
        %v5736 = vadd.f32 %v5704, %v5596
        %v5737 = vadd.f32 %v5705, %v5599
        %v5738 = vadd.f32 %v5706, %v5604
        %v5739 = vadd.f32 %v5707, %v5607
        %v5740 = vadd.f32 %v5708, %v5612
        %v5741 = vadd.f32 %v5709, %v5615
        %v5742 = vadd.f32 %v5710, %v5620
        %v5743 = vadd.f32 %v5711, %v5623
        %v5744 = vadd.f32 %v5712, %v5628
        %v5745 = vadd.f32 %v5713, %v5631
        %v5746 = vadd.f32 %v5714, %v5636
        %v5747 = vadd.f32 %v5715, %v5639
        %v5748 = vadd.f32 %v5716, %v5644
        %v5749 = vadd.f32 %v5717, %v5647
        %v5750 = vadd.f32 %v5718, %v5652
        %v5751 = vadd.f32 %v5719, %v5655
        %v5752 = vadd.f32 %v5720, %v5660
        %v5753 = vadd.f32 %v5721, %v5663
        %v5754 = vadd.f32 %v5722, %v5668
        %v5755 = vadd.f32 %v5723, %v5671
        %v5756 = vadd.f32 %v5724, %v5676
        %v5757 = vadd.f32 %v5725, %v5679
        %v5758 = vadd.f32 %v5726, %v5684
        %v5759 = vadd.f32 %v5727, %v5687
        %v5760 = vadd.f32 %v5728, %v5692
        %v5761 = vadd.f32 %v5729, %v5695
        %5762 = vst [vmem:[#allocation2] sm:$0xff] %v5730
        %5763 = vst [vmem:[#allocation2 + $0x8] sm:$0xff] %v5731
        %5764 = vst [vmem:[#allocation2 + $0x10] sm:$0xff] %v5732
        %5765 = vst [vmem:[#allocation2 + $0x18] sm:$0xff] %v5733
        %5766 = vst [vmem:[#allocation2 + $0x20] sm:$0xff] %v5734
        %5767 = vst [vmem:[#allocation2 + $0x28] sm:$0xff] %v5735
        %5768 = vst [vmem:[#allocation2 + $0x30] sm:$0xff] %v5736
        %5769 = vst [vmem:[#allocation2 + $0x38] sm:$0xff] %v5737
        %5770 = vst [vmem:[#allocation2 + $0x40] sm:$0xff] %v5738
        %5771 = vst [vmem:[#allocation2 + $0x48] sm:$0xff] %v5739
        %5772 = vst [vmem:[#allocation2 + $0x50] sm:$0xff] %v5740
        %5773 = vst [vmem:[#allocation2 + $0x58] sm:$0xff] %v5741
        %5774 = vst [vmem:[#allocation2 + $0x60] sm:$0xff] %v5742
        %5775 = vst [vmem:[#allocation2 + $0x68] sm:$0xff] %v5743
        %5776 = vst [vmem:[#allocation2 + $0x70] sm:$0xff] %v5744
        %5777 = vst [vmem:[#allocation2 + $0x78] sm:$0xff] %v5745
        %5778 = vst [vmem:[#allocation2 + $0x80] sm:$0xff] %v5746
        %5779 = vst [vmem:[#allocation2 + $0x88] sm:$0xff] %v5747
        %5780 = vst [vmem:[#allocation2 + $0x90] sm:$0xff] %v5748
        %5781 = vst [vmem:[#allocation2 + $0x98] sm:$0xff] %v5749
        %5782 = vst [vmem:[#allocation2 + $0xa0] sm:$0xff] %v5750
        %5783 = vst [vmem:[#allocation2 + $0xa8] sm:$0xff] %v5751
        %5784 = vst [vmem:[#allocation2 + $0xb0] sm:$0xff] %v5752
        %5785 = vst [vmem:[#allocation2 + $0xb8] sm:$0xff] %v5753
        %5786 = vst [vmem:[#allocation2 + $0xc0] sm:$0xff] %v5754
        %5787 = vst [vmem:[#allocation2 + $0xc8] sm:$0xff] %v5755
        %5788 = vst [vmem:[#allocation2 + $0xd0] sm:$0xff] %v5756
        %5789 = vst [vmem:[#allocation2 + $0xd8] sm:$0xff] %v5757
        %5790 = vst [vmem:[#allocation2 + $0xe0] sm:$0xff] %v5758
        %5791 = vst [vmem:[#allocation2 + $0xe8] sm:$0xff] %v5759
        %5792 = vst [vmem:[#allocation2 + $0xf0] sm:$0xff] %v5760
        %5793 = vst [vmem:[#allocation2 + $0xf8] sm:$0xff] %v5761
        %v5794 = vld [vmem:[%s1022] sm:$0xe]
        %v5795 = vld [vmem:[%s1022 + $0x4] sm:$0xf]
        %v5796 = vld [vmem:[%s1022 + $0x8] sm:$0x1]
        %v5797 = vld [vmem:[%s1022 + $0xc] sm:$0xe]
        %v5798 = vld [vmem:[%s1022 + $0x10] sm:$0xf]
        %v5799 = vld [vmem:[%s1022 + $0x14] sm:$0x1]
        %v5800 = vld [vmem:[%s1022 + $0x18] sm:$0xe]
        %v5801 = vld [vmem:[%s1022 + $0x1c] sm:$0xf]
        %v5802 = vld [vmem:[%s1022 + $0x20] sm:$0x1]
        %v5803 = vld [vmem:[%s1022 + $0x24] sm:$0xe]
        %v5804 = vld [vmem:[%s1022 + $0x28] sm:$0xf]
        %v5805 = vld [vmem:[%s1022 + $0x2c] sm:$0x1]
        %v5806 = vld [vmem:[%s1022 + $0x30] sm:$0xe]
        %v5807 = vld [vmem:[%s1022 + $0x34] sm:$0xf]
        %v5808 = vld [vmem:[%s1022 + $0x38] sm:$0x1]
        %v5809 = vld [vmem:[%s1022 + $0x3c] sm:$0xe]
        %v5810 = vld [vmem:[%s1022 + $0x40] sm:$0xf]
        %v5811 = vld [vmem:[%s1022 + $0x44] sm:$0x1]
        %v5812 = vld [vmem:[%s1022 + $0x48] sm:$0xe]
        %v5813 = vld [vmem:[%s1022 + $0x4c] sm:$0xf]
        %v5814 = vld [vmem:[%s1022 + $0x50] sm:$0x1]
        %v5815 = vld [vmem:[%s1022 + $0x54] sm:$0xe]
        %v5816 = vld [vmem:[%s1022 + $0x58] sm:$0xf]
        %v5817 = vld [vmem:[%s1022 + $0x5c] sm:$0x1]
        %v5818 = vld [vmem:[%s1022 + $0x60] sm:$0xe]
        %v5819 = vld [vmem:[%s1022 + $0x64] sm:$0xf]
        %v5820 = vld [vmem:[%s1022 + $0x68] sm:$0x1]
        %v5821 = vld [vmem:[%s1022 + $0x6c] sm:$0xe]
        %v5822 = vld [vmem:[%s1022 + $0x70] sm:$0xf]
        %v5823 = vld [vmem:[%s1022 + $0x74] sm:$0x1]
        %v5824 = vld [vmem:[%s1022 + $0x78] sm:$0xe]
        %v5825 = vld [vmem:[%s1022 + $0x7c] sm:$0xf]
        %v5826 = vld [vmem:[%s1022 + $0x80] sm:$0x1]
        %v5827 = vld [vmem:[%s1022 + $0x84] sm:$0xe]
        %v5828 = vld [vmem:[%s1022 + $0x88] sm:$0xf]
        %v5829 = vld [vmem:[%s1022 + $0x8c] sm:$0x1]
        %v5830 = vld [vmem:[%s1022 + $0x90] sm:$0xe]
        %v5831 = vld [vmem:[%s1022 + $0x94] sm:$0xf]
        %v5832 = vld [vmem:[%s1022 + $0x98] sm:$0x1]
        %v5833 = vld [vmem:[%s1022 + $0x9c] sm:$0xe]
        %v5834 = vld [vmem:[%s1022 + $0xa0] sm:$0xf]
        %v5835 = vld [vmem:[%s1022 + $0xa4] sm:$0x1]
        %v5836 = vld [vmem:[%s1022 + $0xa8] sm:$0xe]
        %v5837 = vld [vmem:[%s1022 + $0xac] sm:$0xf]
        %v5838 = vld [vmem:[%s1022 + $0xb0] sm:$0x1]
        %v5839 = vld [vmem:[%s1022 + $0xb4] sm:$0xe]
        %v5840 = vld [vmem:[%s1022 + $0xb8] sm:$0xf]
        %v5841 = vld [vmem:[%s1022 + $0xbc] sm:$0x1]
        %v5890 = vrot.slane %v5794, 5
        %v5891 = vrot.slane %v5890, 4
        %v5892 = vrot.slane %v5795, 5
        %v5893 = vsel %vm2333, %v5891, %v5892
        %v5894 = vrot.slane %v5892, 4
        %v5895 = vrot.slane %v5796, 5
        %v5896 = vsel %vm2333, %v5894, %v5895
        %v5897 = vrot.slane %v5797, 5
        %v5898 = vrot.slane %v5897, 4
        %v5899 = vrot.slane %v5798, 5
        %v5900 = vsel %vm2333, %v5898, %v5899
        %v5901 = vrot.slane %v5899, 4
        %v5902 = vrot.slane %v5799, 5
        %v5903 = vsel %vm2333, %v5901, %v5902
        %v5904 = vrot.slane %v5800, 5
        %v5905 = vrot.slane %v5904, 4
        %v5906 = vrot.slane %v5801, 5
        %v5907 = vsel %vm2333, %v5905, %v5906
        %v5908 = vrot.slane %v5906, 4
        %v5909 = vrot.slane %v5802, 5
        %v5910 = vsel %vm2333, %v5908, %v5909
        %v5911 = vrot.slane %v5803, 5
        %v5912 = vrot.slane %v5911, 4
        %v5913 = vrot.slane %v5804, 5
        %v5914 = vsel %vm2333, %v5912, %v5913
        %v5915 = vrot.slane %v5913, 4
        %v5916 = vrot.slane %v5805, 5
        %v5917 = vsel %vm2333, %v5915, %v5916
        %v5918 = vrot.slane %v5806, 5
        %v5919 = vrot.slane %v5918, 4
        %v5920 = vrot.slane %v5807, 5
        %v5921 = vsel %vm2333, %v5919, %v5920
        %v5922 = vrot.slane %v5920, 4
        %v5923 = vrot.slane %v5808, 5
        %v5924 = vsel %vm2333, %v5922, %v5923
        %v5925 = vrot.slane %v5809, 5
        %v5926 = vrot.slane %v5925, 4
        %v5927 = vrot.slane %v5810, 5
        %v5928 = vsel %vm2333, %v5926, %v5927
        %v5929 = vrot.slane %v5927, 4
        %v5930 = vrot.slane %v5811, 5
        %v5931 = vsel %vm2333, %v5929, %v5930
        %v5932 = vrot.slane %v5812, 5
        %v5933 = vrot.slane %v5932, 4
        %v5934 = vrot.slane %v5813, 5
        %v5935 = vsel %vm2333, %v5933, %v5934
        %v5936 = vrot.slane %v5934, 4
        %v5937 = vrot.slane %v5814, 5
        %v5938 = vsel %vm2333, %v5936, %v5937
        %v5939 = vrot.slane %v5815, 5
        %v5940 = vrot.slane %v5939, 4
        %v5941 = vrot.slane %v5816, 5
        %v5942 = vsel %vm2333, %v5940, %v5941
        %v5943 = vrot.slane %v5941, 4
        %v5944 = vrot.slane %v5817, 5
        %v5945 = vsel %vm2333, %v5943, %v5944
        %v5946 = vrot.slane %v5818, 5
        %v5947 = vrot.slane %v5946, 4
        %v5948 = vrot.slane %v5819, 5
        %v5949 = vsel %vm2333, %v5947, %v5948
        %v5950 = vrot.slane %v5948, 4
        %v5951 = vrot.slane %v5820, 5
        %v5952 = vsel %vm2333, %v5950, %v5951
        %v5953 = vrot.slane %v5821, 5
        %v5954 = vrot.slane %v5953, 4
        %v5955 = vrot.slane %v5822, 5
        %v5956 = vsel %vm2333, %v5954, %v5955
        %v5957 = vrot.slane %v5955, 4
        %v5958 = vrot.slane %v5823, 5
        %v5959 = vsel %vm2333, %v5957, %v5958
        %v5960 = vrot.slane %v5824, 5
        %v5961 = vrot.slane %v5960, 4
        %v5962 = vrot.slane %v5825, 5
        %v5963 = vsel %vm2333, %v5961, %v5962
        %v5964 = vrot.slane %v5962, 4
        %v5965 = vrot.slane %v5826, 5
        %v5966 = vsel %vm2333, %v5964, %v5965
        %v5967 = vrot.slane %v5827, 5
        %v5968 = vrot.slane %v5967, 4
        %v5969 = vrot.slane %v5828, 5
        %v5970 = vsel %vm2333, %v5968, %v5969
        %v5971 = vrot.slane %v5969, 4
        %v5972 = vrot.slane %v5829, 5
        %v5973 = vsel %vm2333, %v5971, %v5972
        %v5974 = vrot.slane %v5830, 5
        %v5975 = vrot.slane %v5974, 4
        %v5976 = vrot.slane %v5831, 5
        %v5977 = vsel %vm2333, %v5975, %v5976
        %v5978 = vrot.slane %v5976, 4
        %v5979 = vrot.slane %v5832, 5
        %v5980 = vsel %vm2333, %v5978, %v5979
        %v5981 = vrot.slane %v5833, 5
        %v5982 = vrot.slane %v5981, 4
        %v5983 = vrot.slane %v5834, 5
        %v5984 = vsel %vm2333, %v5982, %v5983
        %v5985 = vrot.slane %v5983, 4
        %v5986 = vrot.slane %v5835, 5
        %v5987 = vsel %vm2333, %v5985, %v5986
        %v5988 = vrot.slane %v5836, 5
        %v5989 = vrot.slane %v5988, 4
        %v5990 = vrot.slane %v5837, 5
        %v5991 = vsel %vm2333, %v5989, %v5990
        %v5992 = vrot.slane %v5990, 4
        %v5993 = vrot.slane %v5838, 5
        %v5994 = vsel %vm2333, %v5992, %v5993
        %v5995 = vrot.slane %v5839, 5
        %v5996 = vrot.slane %v5995, 4
        %v5997 = vrot.slane %v5840, 5
        %v5998 = vsel %vm2333, %v5996, %v5997
        %v5999 = vrot.slane %v5997, 4
        %v6000 = vrot.slane %v5841, 5
        %v6001 = vsel %vm2333, %v5999, %v6000
        %s6002 = scalar_lea.vmem %s1077, 16
        %v6003 = vld [vmem:[%s6002] sm:$0x3]
        %v6004 = vunpack.c.l.b16 %v5893
        %v6005 = vunpack.c.l.b16 %v5896
        %v6006 = vunpack.c.l.b16 %v5900
        %v6007 = vunpack.c.l.b16 %v5903
        %v6008 = vunpack.c.l.b16 %v5907
        %v6009 = vunpack.c.l.b16 %v5910
        %v6010 = vunpack.c.l.b16 %v5914
        %v6011 = vunpack.c.l.b16 %v5917
        %v6012 = vunpack.c.l.b16 %v5921
        %v6013 = vunpack.c.l.b16 %v5924
        %v6014 = vunpack.c.l.b16 %v5928
        %v6015 = vunpack.c.l.b16 %v5931
        %v6016 = vunpack.c.l.b16 %v5935
        %v6017 = vunpack.c.l.b16 %v5938
        %v6018 = vunpack.c.l.b16 %v5942
        %v6019 = vunpack.c.l.b16 %v5945
        %v6020 = vunpack.c.l.b16 %v5949
        %v6021 = vunpack.c.l.b16 %v5952
        %v6022 = vunpack.c.l.b16 %v5956
        %v6023 = vunpack.c.l.b16 %v5959
        %v6024 = vunpack.c.l.b16 %v5963
        %v6025 = vunpack.c.l.b16 %v5966
        %v6026 = vunpack.c.l.b16 %v5970
        %v6027 = vunpack.c.l.b16 %v5973
        %v6028 = vunpack.c.l.b16 %v5977
        %v6029 = vunpack.c.l.b16 %v5980
        %v6030 = vunpack.c.l.b16 %v5984
        %v6031 = vunpack.c.l.b16 %v5987
        %v6032 = vunpack.c.l.b16 %v5991
        %v6033 = vunpack.c.l.b16 %v5994
        %v6034 = vunpack.c.l.b16 %v5998
        %v6035 = vunpack.c.l.b16 %v6001
        %v6036 = vpack.c.b16 %v6005, %v6004
        %v6037 = vpack.c.b16 %v6007, %v6006
        %v6038 = vpack.c.b16 %v6009, %v6008
        %v6039 = vpack.c.b16 %v6011, %v6010
        %v6040 = vpack.c.b16 %v6013, %v6012
        %v6041 = vpack.c.b16 %v6015, %v6014
        %v6042 = vpack.c.b16 %v6017, %v6016
        %v6043 = vpack.c.b16 %v6019, %v6018
        %v6044 = vpack.c.b16 %v6021, %v6020
        %v6045 = vpack.c.b16 %v6023, %v6022
        %v6046 = vpack.c.b16 %v6025, %v6024
        %v6047 = vpack.c.b16 %v6027, %v6026
        %v6048 = vpack.c.b16 %v6029, %v6028
        %v6049 = vpack.c.b16 %v6031, %v6030
        %v6050 = vpack.c.b16 %v6033, %v6032
        %v6051 = vpack.c.b16 %v6035, %v6034
        %v6053 = vsel %vm1196, %v6036, 0
        %v6056 = vsel %vm1196, %v6037, 0
        %v6059 = vsel %vm1196, %v6038, 0
        %v6062 = vsel %vm1196, %v6039, 0
        %v6065 = vsel %vm1196, %v6040, 0
        %v6068 = vsel %vm1196, %v6041, 0
        %v6071 = vsel %vm1196, %v6042, 0
        %v6074 = vsel %vm1196, %v6043, 0
        %v6077 = vsel %vm1196, %v6044, 0
        %v6080 = vsel %vm1196, %v6045, 0
        %v6083 = vsel %vm1196, %v6046, 0
        %v6086 = vsel %vm1196, %v6047, 0
        %v6089 = vsel %vm1196, %v6048, 0
        %v6092 = vsel %vm1196, %v6049, 0
        %v6095 = vsel %vm1196, %v6050, 0
        %v6098 = vsel %vm1196, %v6051, 0
        %v6101 = vsel %vm1245, %v6003, 0
        %6103 = vmatprep.subr.bf16.mxu0 0
        %6104 = vmatpush1.bf16.msra.mxu0 0
        %6105 = vmatprep.subr.bf16.mxu0 0
        %6106 = vmatpush1.bf16.msra.mxu0 0
        %6107 = vmatprep.subr.bf16.mxu0 0
        %6108 = vmatpush1.bf16.msra.mxu0 0
        %6109 = vmatprep.subr.bf16.mxu0 0
        %6110 = vmatpush1.bf16.msra.mxu0 0
        %6111 = vmatprep.subr.bf16.mxu0 0
        %6112 = vmatpush1.bf16.msra.mxu0 0
        %6113 = vmatprep.subr.bf16.mxu0 0
        %6114 = vmatpush1.bf16.msra.mxu0 0
        %6115 = vmatprep.subr.bf16.mxu0 0
        %6116 = vmatpush1.bf16.msra.mxu0 0
        %6117 = vmatprep.subr.bf16.mxu0 0
        %6118 = vmatpush1.bf16.msra.mxu0 %v6101
        %6119 = vmatprep.subr.bf16.mxu0 0
        %6120 = vmatpush2.bf16.msra.mxu0 0
        %6121 = vmatprep.subr.bf16.mxu0 0
        %6122 = vmatpush2.bf16.msra.mxu0 0
        %6123 = vmatprep.subr.bf16.mxu0 0
        %6124 = vmatpush2.bf16.msra.mxu0 0
        %6125 = vmatprep.subr.bf16.mxu0 0
        %6126 = vmatpush2.bf16.msra.mxu0 0
        %6127 = vmatprep.subr.bf16.mxu0 0
        %6128 = vmatpush2.bf16.msra.mxu0 0
        %6129 = vmatprep.subr.bf16.mxu0 0
        %6130 = vmatpush2.bf16.msra.mxu0 0
        %6131 = vmatprep.subr.bf16.mxu0 0
        %6132 = vmatpush2.bf16.msra.mxu0 0
        %6133 = vmatprep.subr.bf16.mxu0 0
        %6134 = vmatpush2.bf16.msra.mxu0 0
        %6135 = vmatprep.mubr.bf16.mxu0 0
        %6136 = vmatmul.mubr.bf16.gmra.mxu0 %v6053
        %v6137 = vpop.f32.mrf.mxu0
        %v6138 = vadd.f32 0.0, %v6137
        %v6139 = vpop.f32.mrf.mxu0
        %v6140 = vpop.f32.mrf.mxu0
        %v6141 = vadd.f32 0.0, %v6140
        %v6142 = vpop.f32.mrf.mxu0
        %6143 = vmatprep.mubr.bf16.mxu0 0
        %6144 = vmatmul.mubr.bf16.gmra.mxu0 %v6056
        %v6145 = vpop.f32.mrf.mxu0
        %v6146 = vadd.f32 0.0, %v6145
        %v6147 = vpop.f32.mrf.mxu0
        %v6148 = vpop.f32.mrf.mxu0
        %v6149 = vadd.f32 0.0, %v6148
        %v6150 = vpop.f32.mrf.mxu0
        %6151 = vmatprep.mubr.bf16.mxu0 0
        %6152 = vmatmul.mubr.bf16.gmra.mxu0 %v6059
        %v6153 = vpop.f32.mrf.mxu0
        %v6154 = vadd.f32 0.0, %v6153
        %v6155 = vpop.f32.mrf.mxu0
        %v6156 = vpop.f32.mrf.mxu0
        %v6157 = vadd.f32 0.0, %v6156
        %v6158 = vpop.f32.mrf.mxu0
        %6159 = vmatprep.mubr.bf16.mxu0 0
        %6160 = vmatmul.mubr.bf16.gmra.mxu0 %v6062
        %v6161 = vpop.f32.mrf.mxu0
        %v6162 = vadd.f32 0.0, %v6161
        %v6163 = vpop.f32.mrf.mxu0
        %v6164 = vpop.f32.mrf.mxu0
        %v6165 = vadd.f32 0.0, %v6164
        %v6166 = vpop.f32.mrf.mxu0
        %6167 = vmatprep.mubr.bf16.mxu0 0
        %6168 = vmatmul.mubr.bf16.gmra.mxu0 %v6065
        %v6169 = vpop.f32.mrf.mxu0
        %v6170 = vadd.f32 0.0, %v6169
        %v6171 = vpop.f32.mrf.mxu0
        %v6172 = vpop.f32.mrf.mxu0
        %v6173 = vadd.f32 0.0, %v6172
        %v6174 = vpop.f32.mrf.mxu0
        %6175 = vmatprep.mubr.bf16.mxu0 0
        %6176 = vmatmul.mubr.bf16.gmra.mxu0 %v6068
        %v6177 = vpop.f32.mrf.mxu0
        %v6178 = vadd.f32 0.0, %v6177
        %v6179 = vpop.f32.mrf.mxu0
        %v6180 = vpop.f32.mrf.mxu0
        %v6181 = vadd.f32 0.0, %v6180
        %v6182 = vpop.f32.mrf.mxu0
        %6183 = vmatprep.mubr.bf16.mxu0 0
        %6184 = vmatmul.mubr.bf16.gmra.mxu0 %v6071
        %v6185 = vpop.f32.mrf.mxu0
        %v6186 = vadd.f32 0.0, %v6185
        %v6187 = vpop.f32.mrf.mxu0
        %v6188 = vpop.f32.mrf.mxu0
        %v6189 = vadd.f32 0.0, %v6188
        %v6190 = vpop.f32.mrf.mxu0
        %6191 = vmatprep.mubr.bf16.mxu0 0
        %6192 = vmatmul.mubr.bf16.gmra.mxu0 %v6074
        %v6193 = vpop.f32.mrf.mxu0
        %v6194 = vadd.f32 0.0, %v6193
        %v6195 = vpop.f32.mrf.mxu0
        %v6196 = vpop.f32.mrf.mxu0
        %v6197 = vadd.f32 0.0, %v6196
        %v6198 = vpop.f32.mrf.mxu0
        %6199 = vmatprep.mubr.bf16.mxu0 0
        %6200 = vmatmul.mubr.bf16.gmra.mxu0 %v6077
        %v6201 = vpop.f32.mrf.mxu0
        %v6202 = vadd.f32 0.0, %v6201
        %v6203 = vpop.f32.mrf.mxu0
        %v6204 = vpop.f32.mrf.mxu0
        %v6205 = vadd.f32 0.0, %v6204
        %v6206 = vpop.f32.mrf.mxu0
        %6207 = vmatprep.mubr.bf16.mxu0 0
        %6208 = vmatmul.mubr.bf16.gmra.mxu0 %v6080
        %v6209 = vpop.f32.mrf.mxu0
        %v6210 = vadd.f32 0.0, %v6209
        %v6211 = vpop.f32.mrf.mxu0
        %v6212 = vpop.f32.mrf.mxu0
        %v6213 = vadd.f32 0.0, %v6212
        %v6214 = vpop.f32.mrf.mxu0
        %6215 = vmatprep.mubr.bf16.mxu0 0
        %6216 = vmatmul.mubr.bf16.gmra.mxu0 %v6083
        %v6217 = vpop.f32.mrf.mxu0
        %v6218 = vadd.f32 0.0, %v6217
        %v6219 = vpop.f32.mrf.mxu0
        %v6220 = vpop.f32.mrf.mxu0
        %v6221 = vadd.f32 0.0, %v6220
        %v6222 = vpop.f32.mrf.mxu0
        %6223 = vmatprep.mubr.bf16.mxu0 0
        %6224 = vmatmul.mubr.bf16.gmra.mxu0 %v6086
        %v6225 = vpop.f32.mrf.mxu0
        %v6226 = vadd.f32 0.0, %v6225
        %v6227 = vpop.f32.mrf.mxu0
        %v6228 = vpop.f32.mrf.mxu0
        %v6229 = vadd.f32 0.0, %v6228
        %v6230 = vpop.f32.mrf.mxu0
        %6231 = vmatprep.mubr.bf16.mxu0 0
        %6232 = vmatmul.mubr.bf16.gmra.mxu0 %v6089
        %v6233 = vpop.f32.mrf.mxu0
        %v6234 = vadd.f32 0.0, %v6233
        %v6235 = vpop.f32.mrf.mxu0
        %v6236 = vpop.f32.mrf.mxu0
        %v6237 = vadd.f32 0.0, %v6236
        %v6238 = vpop.f32.mrf.mxu0
        %6239 = vmatprep.mubr.bf16.mxu0 0
        %6240 = vmatmul.mubr.bf16.gmra.mxu0 %v6092
        %v6241 = vpop.f32.mrf.mxu0
        %v6242 = vadd.f32 0.0, %v6241
        %v6243 = vpop.f32.mrf.mxu0
        %v6244 = vpop.f32.mrf.mxu0
        %v6245 = vadd.f32 0.0, %v6244
        %v6246 = vpop.f32.mrf.mxu0
        %6247 = vmatprep.mubr.bf16.mxu0 0
        %6248 = vmatmul.mubr.bf16.gmra.mxu0 %v6095
        %v6249 = vpop.f32.mrf.mxu0
        %v6250 = vadd.f32 0.0, %v6249
        %v6251 = vpop.f32.mrf.mxu0
        %v6252 = vpop.f32.mrf.mxu0
        %v6253 = vadd.f32 0.0, %v6252
        %v6254 = vpop.f32.mrf.mxu0
        %6255 = vmatprep.mubr.bf16.mxu0 0
        %6256 = vmatmul.mubr.bf16.gmra.mxu0 %v6098
        %v6257 = vpop.f32.mrf.mxu0
        %v6258 = vadd.f32 0.0, %v6257
        %v6259 = vpop.f32.mrf.mxu0
        %v6260 = vpop.f32.mrf.mxu0
        %v6261 = vadd.f32 0.0, %v6260
        %v6262 = vpop.f32.mrf.mxu0
        %6263 = vdwg.mxu0
        %v6264 = vld [vmem:[#allocation2] sm:$0xff]
        %v6265 = vld [vmem:[#allocation2 + $0x8] sm:$0xff]
        %v6266 = vld [vmem:[#allocation2 + $0x10] sm:$0xff]
        %v6267 = vld [vmem:[#allocation2 + $0x18] sm:$0xff]
        %v6268 = vld [vmem:[#allocation2 + $0x20] sm:$0xff]
        %v6269 = vld [vmem:[#allocation2 + $0x28] sm:$0xff]
        %v6270 = vld [vmem:[#allocation2 + $0x30] sm:$0xff]
        %v6271 = vld [vmem:[#allocation2 + $0x38] sm:$0xff]
        %v6272 = vld [vmem:[#allocation2 + $0x40] sm:$0xff]
        %v6273 = vld [vmem:[#allocation2 + $0x48] sm:$0xff]
        %v6274 = vld [vmem:[#allocation2 + $0x50] sm:$0xff]
        %v6275 = vld [vmem:[#allocation2 + $0x58] sm:$0xff]
        %v6276 = vld [vmem:[#allocation2 + $0x60] sm:$0xff]
        %v6277 = vld [vmem:[#allocation2 + $0x68] sm:$0xff]
        %v6278 = vld [vmem:[#allocation2 + $0x70] sm:$0xff]
        %v6279 = vld [vmem:[#allocation2 + $0x78] sm:$0xff]
        %v6280 = vld [vmem:[#allocation2 + $0x80] sm:$0xff]
        %v6281 = vld [vmem:[#allocation2 + $0x88] sm:$0xff]
        %v6282 = vld [vmem:[#allocation2 + $0x90] sm:$0xff]
        %v6283 = vld [vmem:[#allocation2 + $0x98] sm:$0xff]
        %v6284 = vld [vmem:[#allocation2 + $0xa0] sm:$0xff]
        %v6285 = vld [vmem:[#allocation2 + $0xa8] sm:$0xff]
        %v6286 = vld [vmem:[#allocation2 + $0xb0] sm:$0xff]
        %v6287 = vld [vmem:[#allocation2 + $0xb8] sm:$0xff]
        %v6288 = vld [vmem:[#allocation2 + $0xc0] sm:$0xff]
        %v6289 = vld [vmem:[#allocation2 + $0xc8] sm:$0xff]
        %v6290 = vld [vmem:[#allocation2 + $0xd0] sm:$0xff]
        %v6291 = vld [vmem:[#allocation2 + $0xd8] sm:$0xff]
        %v6292 = vld [vmem:[#allocation2 + $0xe0] sm:$0xff]
        %v6293 = vld [vmem:[#allocation2 + $0xe8] sm:$0xff]
        %v6294 = vld [vmem:[#allocation2 + $0xf0] sm:$0xff]
        %v6295 = vld [vmem:[#allocation2 + $0xf8] sm:$0xff]
        %v6296 = vadd.f32 %v6264, %v6138
        %v6297 = vadd.f32 %v6265, %v6141
        %v6298 = vadd.f32 %v6266, %v6146
        %v6299 = vadd.f32 %v6267, %v6149
        %v6300 = vadd.f32 %v6268, %v6154
        %v6301 = vadd.f32 %v6269, %v6157
        %v6302 = vadd.f32 %v6270, %v6162
        %v6303 = vadd.f32 %v6271, %v6165
        %v6304 = vadd.f32 %v6272, %v6170
        %v6305 = vadd.f32 %v6273, %v6173
        %v6306 = vadd.f32 %v6274, %v6178
        %v6307 = vadd.f32 %v6275, %v6181
        %v6308 = vadd.f32 %v6276, %v6186
        %v6309 = vadd.f32 %v6277, %v6189
        %v6310 = vadd.f32 %v6278, %v6194
        %v6311 = vadd.f32 %v6279, %v6197
        %v6312 = vadd.f32 %v6280, %v6202
        %v6313 = vadd.f32 %v6281, %v6205
        %v6314 = vadd.f32 %v6282, %v6210
        %v6315 = vadd.f32 %v6283, %v6213
        %v6316 = vadd.f32 %v6284, %v6218
        %v6317 = vadd.f32 %v6285, %v6221
        %v6318 = vadd.f32 %v6286, %v6226
        %v6319 = vadd.f32 %v6287, %v6229
        %v6320 = vadd.f32 %v6288, %v6234
        %v6321 = vadd.f32 %v6289, %v6237
        %v6322 = vadd.f32 %v6290, %v6242
        %v6323 = vadd.f32 %v6291, %v6245
        %v6324 = vadd.f32 %v6292, %v6250
        %v6325 = vadd.f32 %v6293, %v6253
        %v6326 = vadd.f32 %v6294, %v6258
        %v6327 = vadd.f32 %v6295, %v6261
        %6328 = vst [vmem:[#allocation2] sm:$0xff] %v6296
        %6329 = vst [vmem:[#allocation2 + $0x8] sm:$0xff] %v6297
        %6330 = vst [vmem:[#allocation2 + $0x10] sm:$0xff] %v6298
        %6331 = vst [vmem:[#allocation2 + $0x18] sm:$0xff] %v6299
        %6332 = vst [vmem:[#allocation2 + $0x20] sm:$0xff] %v6300
        %6333 = vst [vmem:[#allocation2 + $0x28] sm:$0xff] %v6301
        %6334 = vst [vmem:[#allocation2 + $0x30] sm:$0xff] %v6302
        %6335 = vst [vmem:[#allocation2 + $0x38] sm:$0xff] %v6303
        %6336 = vst [vmem:[#allocation2 + $0x40] sm:$0xff] %v6304
        %6337 = vst [vmem:[#allocation2 + $0x48] sm:$0xff] %v6305
        %6338 = vst [vmem:[#allocation2 + $0x50] sm:$0xff] %v6306
        %6339 = vst [vmem:[#allocation2 + $0x58] sm:$0xff] %v6307
        %6340 = vst [vmem:[#allocation2 + $0x60] sm:$0xff] %v6308
        %6341 = vst [vmem:[#allocation2 + $0x68] sm:$0xff] %v6309
        %6342 = vst [vmem:[#allocation2 + $0x70] sm:$0xff] %v6310
        %6343 = vst [vmem:[#allocation2 + $0x78] sm:$0xff] %v6311
        %6344 = vst [vmem:[#allocation2 + $0x80] sm:$0xff] %v6312
        %6345 = vst [vmem:[#allocation2 + $0x88] sm:$0xff] %v6313
        %6346 = vst [vmem:[#allocation2 + $0x90] sm:$0xff] %v6314
        %6347 = vst [vmem:[#allocation2 + $0x98] sm:$0xff] %v6315
        %6348 = vst [vmem:[#allocation2 + $0xa0] sm:$0xff] %v6316
        %6349 = vst [vmem:[#allocation2 + $0xa8] sm:$0xff] %v6317
        %6350 = vst [vmem:[#allocation2 + $0xb0] sm:$0xff] %v6318
        %6351 = vst [vmem:[#allocation2 + $0xb8] sm:$0xff] %v6319
        %6352 = vst [vmem:[#allocation2 + $0xc0] sm:$0xff] %v6320
        %6353 = vst [vmem:[#allocation2 + $0xc8] sm:$0xff] %v6321
        %6354 = vst [vmem:[#allocation2 + $0xd0] sm:$0xff] %v6322
        %6355 = vst [vmem:[#allocation2 + $0xd8] sm:$0xff] %v6323
        %6356 = vst [vmem:[#allocation2 + $0xe0] sm:$0xff] %v6324
        %6357 = vst [vmem:[#allocation2 + $0xe8] sm:$0xff] %v6325
        %6358 = vst [vmem:[#allocation2 + $0xf0] sm:$0xff] %v6326
        %6359 = vst [vmem:[#allocation2 + $0xf8] sm:$0xff] %v6327
        %v6360 = vld [vmem:[#allocation2] sm:$0xff]
        %v6361 = vld [vmem:[#allocation2 + $0x8] sm:$0xff]
        %v6362 = vld [vmem:[#allocation2 + $0x10] sm:$0xff]
        %v6363 = vld [vmem:[#allocation2 + $0x18] sm:$0xff]
        %v6364 = vld [vmem:[#allocation2 + $0x20] sm:$0xff]
        %v6365 = vld [vmem:[#allocation2 + $0x28] sm:$0xff]
        %v6366 = vld [vmem:[#allocation2 + $0x30] sm:$0xff]
        %v6367 = vld [vmem:[#allocation2 + $0x38] sm:$0xff]
        %v6368 = vld [vmem:[#allocation2 + $0x40] sm:$0xff]
        %v6369 = vld [vmem:[#allocation2 + $0x48] sm:$0xff]
        %v6370 = vld [vmem:[#allocation2 + $0x50] sm:$0xff]
        %v6371 = vld [vmem:[#allocation2 + $0x58] sm:$0xff]
        %v6372 = vld [vmem:[#allocation2 + $0x60] sm:$0xff]
        %v6373 = vld [vmem:[#allocation2 + $0x68] sm:$0xff]
        %v6374 = vld [vmem:[#allocation2 + $0x70] sm:$0xff]
        %v6375 = vld [vmem:[#allocation2 + $0x78] sm:$0xff]
        %v6376 = vld [vmem:[#allocation2 + $0x80] sm:$0xff]
        %v6377 = vld [vmem:[#allocation2 + $0x88] sm:$0xff]
        %v6378 = vld [vmem:[#allocation2 + $0x90] sm:$0xff]
        %v6379 = vld [vmem:[#allocation2 + $0x98] sm:$0xff]
        %v6380 = vld [vmem:[#allocation2 + $0xa0] sm:$0xff]
        %v6381 = vld [vmem:[#allocation2 + $0xa8] sm:$0xff]
        %v6382 = vld [vmem:[#allocation2 + $0xb0] sm:$0xff]
        %v6383 = vld [vmem:[#allocation2 + $0xb8] sm:$0xff]
        %v6384 = vld [vmem:[#allocation2 + $0xc0] sm:$0xff]
        %v6385 = vld [vmem:[#allocation2 + $0xc8] sm:$0xff]
        %v6386 = vld [vmem:[#allocation2 + $0xd0] sm:$0xff]
        %v6387 = vld [vmem:[#allocation2 + $0xd8] sm:$0xff]
        %v6388 = vld [vmem:[#allocation2 + $0xe0] sm:$0xff]
        %v6389 = vld [vmem:[#allocation2 + $0xe8] sm:$0xff]
        %v6390 = vld [vmem:[#allocation2 + $0xf0] sm:$0xff]
        %v6391 = vld [vmem:[#allocation2 + $0xf8] sm:$0xff]
        %v6392 = vld [vmem:[%s1080] sm:$0x1]
        %v6394 = vlaneseq
        %v6395 = vshrl.u32 %v6394, 7
        %v6396 = vsub.s32 0, %v6395
        %v6397 = vrot.slane %v6392, %v6396
        %v6399 = vadd.f32 %v6360, %v6397
        %v6400 = vadd.f32 %v6361, %v6397
        %v6401 = vadd.f32 %v6362, %v6397
        %v6402 = vadd.f32 %v6363, %v6397
        %v6403 = vadd.f32 %v6364, %v6397
        %v6404 = vadd.f32 %v6365, %v6397
        %v6405 = vadd.f32 %v6366, %v6397
        %v6406 = vadd.f32 %v6367, %v6397
        %v6407 = vadd.f32 %v6368, %v6397
        %v6408 = vadd.f32 %v6369, %v6397
        %v6409 = vadd.f32 %v6370, %v6397
        %v6410 = vadd.f32 %v6371, %v6397
        %v6411 = vadd.f32 %v6372, %v6397
        %v6412 = vadd.f32 %v6373, %v6397
        %v6413 = vadd.f32 %v6374, %v6397
        %v6414 = vadd.f32 %v6375, %v6397
        %v6415 = vadd.f32 %v6376, %v6397
        %v6416 = vadd.f32 %v6377, %v6397
        %v6417 = vadd.f32 %v6378, %v6397
        %v6418 = vadd.f32 %v6379, %v6397
        %v6419 = vadd.f32 %v6380, %v6397
        %v6420 = vadd.f32 %v6381, %v6397
        %v6421 = vadd.f32 %v6382, %v6397
        %v6422 = vadd.f32 %v6383, %v6397
        %v6423 = vadd.f32 %v6384, %v6397
        %v6424 = vadd.f32 %v6385, %v6397
        %v6425 = vadd.f32 %v6386, %v6397
        %v6426 = vadd.f32 %v6387, %v6397
        %v6427 = vadd.f32 %v6388, %v6397
        %v6428 = vadd.f32 %v6389, %v6397
        %v6429 = vadd.f32 %v6390, %v6397
        %v6430 = vadd.f32 %v6391, %v6397
        %v6431 = vpack.c.bf16 %v6400, %v6399
        %v6432 = vpack.c.bf16 %v6402, %v6401
        %v6433 = vpack.c.bf16 %v6404, %v6403
        %v6434 = vpack.c.bf16 %v6406, %v6405
        %v6435 = vpack.c.bf16 %v6408, %v6407
        %v6436 = vpack.c.bf16 %v6410, %v6409
        %v6437 = vpack.c.bf16 %v6412, %v6411
        %v6438 = vpack.c.bf16 %v6414, %v6413
        %v6439 = vpack.c.bf16 %v6416, %v6415
        %v6440 = vpack.c.bf16 %v6418, %v6417
        %v6441 = vpack.c.bf16 %v6420, %v6419
        %v6442 = vpack.c.bf16 %v6422, %v6421
        %v6443 = vpack.c.bf16 %v6424, %v6423
        %v6444 = vpack.c.bf16 %v6426, %v6425
        %v6445 = vpack.c.bf16 %v6428, %v6427
        %v6446 = vpack.c.bf16 %v6430, %v6429
        %v6463 = vunpack.c.l.b16 %v6431
        %v6464 = vunpack.c.h.b16 %v6431
        %v6465 = vunpack.c.l.b16 %v6432
        %v6466 = vunpack.c.h.b16 %v6432
        %v6467 = vunpack.c.l.b16 %v6433
        %v6468 = vunpack.c.h.b16 %v6433
        %v6469 = vunpack.c.l.b16 %v6434
        %v6470 = vunpack.c.h.b16 %v6434
        %v6471 = vunpack.c.l.b16 %v6435
        %v6472 = vunpack.c.h.b16 %v6435
        %v6473 = vunpack.c.l.b16 %v6436
        %v6474 = vunpack.c.h.b16 %v6436
        %v6475 = vunpack.c.l.b16 %v6437
        %v6476 = vunpack.c.h.b16 %v6437
        %v6477 = vunpack.c.l.b16 %v6438
        %v6478 = vunpack.c.h.b16 %v6438
        %v6479 = vunpack.c.l.b16 %v6439
        %v6480 = vunpack.c.h.b16 %v6439
        %v6481 = vunpack.c.l.b16 %v6440
        %v6482 = vunpack.c.h.b16 %v6440
        %v6483 = vunpack.c.l.b16 %v6441
        %v6484 = vunpack.c.h.b16 %v6441
        %v6485 = vunpack.c.l.b16 %v6442
        %v6486 = vunpack.c.h.b16 %v6442
        %v6487 = vunpack.c.l.b16 %v6443
        %v6488 = vunpack.c.h.b16 %v6443
        %v6489 = vunpack.c.l.b16 %v6444
        %v6490 = vunpack.c.h.b16 %v6444
        %v6491 = vunpack.c.l.b16 %v6445
        %v6492 = vunpack.c.h.b16 %v6445
        %v6493 = vunpack.c.l.b16 %v6446
        %v6494 = vunpack.c.h.b16 %v6446
        %v6495 = vpack.c.b16 %v6463, %v6463
        %v6496 = vpack.c.b16 %v6464, %v6464
        %v6497 = vpack.c.b16 %v6465, %v6465
        %v6498 = vpack.c.b16 %v6466, %v6466
        %v6499 = vpack.c.b16 %v6467, %v6467
        %v6500 = vpack.c.b16 %v6468, %v6468
        %v6501 = vpack.c.b16 %v6469, %v6469
        %v6502 = vpack.c.b16 %v6470, %v6470
        %v6503 = vpack.c.b16 %v6471, %v6471
        %v6504 = vpack.c.b16 %v6472, %v6472
        %v6505 = vpack.c.b16 %v6473, %v6473
        %v6506 = vpack.c.b16 %v6474, %v6474
        %v6507 = vpack.c.b16 %v6475, %v6475
        %v6508 = vpack.c.b16 %v6476, %v6476
        %v6509 = vpack.c.b16 %v6477, %v6477
        %v6510 = vpack.c.b16 %v6478, %v6478
        %v6511 = vpack.c.b16 %v6479, %v6479
        %v6512 = vpack.c.b16 %v6480, %v6480
        %v6513 = vpack.c.b16 %v6481, %v6481
        %v6514 = vpack.c.b16 %v6482, %v6482
        %v6515 = vpack.c.b16 %v6483, %v6483
        %v6516 = vpack.c.b16 %v6484, %v6484
        %v6517 = vpack.c.b16 %v6485, %v6485
        %v6518 = vpack.c.b16 %v6486, %v6486
        %v6519 = vpack.c.b16 %v6487, %v6487
        %v6520 = vpack.c.b16 %v6488, %v6488
        %v6521 = vpack.c.b16 %v6489, %v6489
        %v6522 = vpack.c.b16 %v6490, %v6490
        %v6523 = vpack.c.b16 %v6491, %v6491
        %v6524 = vpack.c.b16 %v6492, %v6492
        %v6525 = vpack.c.b16 %v6493, %v6493
        %v6526 = vpack.c.b16 %v6494, %v6494
        %6559 = vst [vmem:[%s1061] sm:$0xf] %v6495
        %6560 = vst [vmem:[%s1061 + $0x4] sm:$0xf] %v6496
        %6561 = vst [vmem:[%s1061 + $0x8] sm:$0xf] %v6497
        %6562 = vst [vmem:[%s1061 + $0xc] sm:$0xf] %v6498
        %6563 = vst [vmem:[%s1061 + $0x10] sm:$0xf] %v6499
        %6564 = vst [vmem:[%s1061 + $0x14] sm:$0xf] %v6500
        %6565 = vst [vmem:[%s1061 + $0x18] sm:$0xf] %v6501
        %6566 = vst [vmem:[%s1061 + $0x1c] sm:$0xf] %v6502
        %6567 = vst [vmem:[%s1061 + $0x20] sm:$0xf] %v6503
        %6568 = vst [vmem:[%s1061 + $0x24] sm:$0xf] %v6504
        %6569 = vst [vmem:[%s1061 + $0x28] sm:$0xf] %v6505
        %6570 = vst [vmem:[%s1061 + $0x2c] sm:$0xf] %v6506
        %6571 = vst [vmem:[%s1061 + $0x30] sm:$0xf] %v6507
        %6572 = vst [vmem:[%s1061 + $0x34] sm:$0xf] %v6508
        %6573 = vst [vmem:[%s1061 + $0x38] sm:$0xf] %v6509
        %6574 = vst [vmem:[%s1061 + $0x3c] sm:$0xf] %v6510
        %6575 = vst [vmem:[%s1061 + $0x40] sm:$0xf] %v6511
        %6576 = vst [vmem:[%s1061 + $0x44] sm:$0xf] %v6512
        %6577 = vst [vmem:[%s1061 + $0x48] sm:$0xf] %v6513
        %6578 = vst [vmem:[%s1061 + $0x4c] sm:$0xf] %v6514
        %6579 = vst [vmem:[%s1061 + $0x50] sm:$0xf] %v6515
        %6580 = vst [vmem:[%s1061 + $0x54] sm:$0xf] %v6516
        %6581 = vst [vmem:[%s1061 + $0x58] sm:$0xf] %v6517
        %6582 = vst [vmem:[%s1061 + $0x5c] sm:$0xf] %v6518
        %6583 = vst [vmem:[%s1061 + $0x60] sm:$0xf] %v6519
        %6584 = vst [vmem:[%s1061 + $0x64] sm:$0xf] %v6520
        %6585 = vst [vmem:[%s1061 + $0x68] sm:$0xf] %v6521
        %6586 = vst [vmem:[%s1061 + $0x6c] sm:$0xf] %v6522
        %6587 = vst [vmem:[%s1061 + $0x70] sm:$0xf] %v6523
        %6588 = vst [vmem:[%s1061 + $0x74] sm:$0xf] %v6524
        %6589 = vst [vmem:[%s1061 + $0x78] sm:$0xf] %v6525
        %6590 = vst [vmem:[%s1061 + $0x7c] sm:$0xf] %v6526
        %v6591 = vadd.f32 %v6360, %v6361
        %v6592 = vadd.f32 %v6591, %v6362
        %v6593 = vadd.f32 %v6592, %v6363
        %v6594 = vadd.f32 %v6593, %v6364
        %v6595 = vadd.f32 %v6594, %v6365
        %v6596 = vadd.f32 %v6595, %v6366
        %v6597 = vadd.f32 %v6596, %v6367
        %v6598 = vadd.f32 %v6597, %v6368
        %v6599 = vadd.f32 %v6598, %v6369
        %v6600 = vadd.f32 %v6599, %v6370
        %v6601 = vadd.f32 %v6600, %v6371
        %v6602 = vadd.f32 %v6601, %v6372
        %v6603 = vadd.f32 %v6602, %v6373
        %v6604 = vadd.f32 %v6603, %v6374
        %v6605 = vadd.f32 %v6604, %v6375
        %v6606 = vadd.f32 %v6605, %v6376
        %v6607 = vadd.f32 %v6606, %v6377
        %v6608 = vadd.f32 %v6607, %v6378
        %v6609 = vadd.f32 %v6608, %v6379
        %v6610 = vadd.f32 %v6609, %v6380
        %v6611 = vadd.f32 %v6610, %v6381
        %v6612 = vadd.f32 %v6611, %v6382
        %v6613 = vadd.f32 %v6612, %v6383
        %v6614 = vadd.f32 %v6613, %v6384
        %v6615 = vadd.f32 %v6614, %v6385
        %v6616 = vadd.f32 %v6615, %v6386
        %v6617 = vadd.f32 %v6616, %v6387
        %v6618 = vadd.f32 %v6617, %v6388
        %v6619 = vadd.f32 %v6618, %v6389
        %v6620 = vadd.f32 %v6619, %v6390
        %v6621 = vadd.f32 %v6620, %v6391
        %v6622 = vrot.slane %v6621, 4
        %v6623 = vadd.f32 %v6621, %v6622
        %v6624 = vrot.slane %v6623, 2
        %v6625 = vadd.f32 %v6623, %v6624
        %v6626 = vrot.slane %v6625, 1
        %v6627 = vadd.f32 %v6625, %v6626
        %v6628 = vmul.f32 %v6360, %v6360
        %v6629 = vmul.f32 %v6361, %v6361
        %v6630 = vmul.f32 %v6362, %v6362
        %v6631 = vmul.f32 %v6363, %v6363
        %v6632 = vmul.f32 %v6364, %v6364
        %v6633 = vmul.f32 %v6365, %v6365
        %v6634 = vmul.f32 %v6366, %v6366
        %v6635 = vmul.f32 %v6367, %v6367
        %v6636 = vmul.f32 %v6368, %v6368
        %v6637 = vmul.f32 %v6369, %v6369
        %v6638 = vmul.f32 %v6370, %v6370
        %v6639 = vmul.f32 %v6371, %v6371
        %v6640 = vmul.f32 %v6372, %v6372
        %v6641 = vmul.f32 %v6373, %v6373
        %v6642 = vmul.f32 %v6374, %v6374
        %v6643 = vmul.f32 %v6375, %v6375
        %v6644 = vmul.f32 %v6376, %v6376
        %v6645 = vmul.f32 %v6377, %v6377
        %v6646 = vmul.f32 %v6378, %v6378
        %v6647 = vmul.f32 %v6379, %v6379
        %v6648 = vmul.f32 %v6380, %v6380
        %v6649 = vmul.f32 %v6381, %v6381
        %v6650 = vmul.f32 %v6382, %v6382
        %v6651 = vmul.f32 %v6383, %v6383
        %v6652 = vmul.f32 %v6384, %v6384
        %v6653 = vmul.f32 %v6385, %v6385
        %v6654 = vmul.f32 %v6386, %v6386
        %v6655 = vmul.f32 %v6387, %v6387
        %v6656 = vmul.f32 %v6388, %v6388
        %v6657 = vmul.f32 %v6389, %v6389
        %v6658 = vmul.f32 %v6390, %v6390
        %v6659 = vmul.f32 %v6391, %v6391
        %v6660 = vadd.f32 %v6628, %v6629
        %v6661 = vadd.f32 %v6660, %v6630
        %v6662 = vadd.f32 %v6661, %v6631
        %v6663 = vadd.f32 %v6662, %v6632
        %v6664 = vadd.f32 %v6663, %v6633
        %v6665 = vadd.f32 %v6664, %v6634
        %v6666 = vadd.f32 %v6665, %v6635
        %v6667 = vadd.f32 %v6666, %v6636
        %v6668 = vadd.f32 %v6667, %v6637
        %v6669 = vadd.f32 %v6668, %v6638
        %v6670 = vadd.f32 %v6669, %v6639
        %v6671 = vadd.f32 %v6670, %v6640
        %v6672 = vadd.f32 %v6671, %v6641
        %v6673 = vadd.f32 %v6672, %v6642
        %v6674 = vadd.f32 %v6673, %v6643
        %v6675 = vadd.f32 %v6674, %v6644
        %v6676 = vadd.f32 %v6675, %v6645
        %v6677 = vadd.f32 %v6676, %v6646
        %v6678 = vadd.f32 %v6677, %v6647
        %v6679 = vadd.f32 %v6678, %v6648
        %v6680 = vadd.f32 %v6679, %v6649
        %v6681 = vadd.f32 %v6680, %v6650
        %v6682 = vadd.f32 %v6681, %v6651
        %v6683 = vadd.f32 %v6682, %v6652
        %v6684 = vadd.f32 %v6683, %v6653
        %v6685 = vadd.f32 %v6684, %v6654
        %v6686 = vadd.f32 %v6685, %v6655
        %v6687 = vadd.f32 %v6686, %v6656
        %v6688 = vadd.f32 %v6687, %v6657
        %v6689 = vadd.f32 %v6688, %v6658
        %v6690 = vadd.f32 %v6689, %v6659
        %v6691 = vrot.slane %v6690, 4
        %v6692 = vadd.f32 %v6690, %v6691
        %v6693 = vrot.slane %v6692, 2
        %v6694 = vadd.f32 %v6692, %v6693
        %v6695 = vrot.slane %v6694, 1
        %v6696 = vadd.f32 %v6694, %v6695
        %vm6697 = vcmask 1040384
        %v6698 = vsel %vm6697, %v6627, %v6696
        %6699 = vst [vmem:[%s1068] sm:$0x3] %v6698
        %s6700 = sand.u32 %s195, 1
        %s6701 = scalar_lea.sflag [#allocation7], %s6700
        %s6702 = sand.u32 %s195, 1
        %s6703 = smul.addr %s6702, 128
        %s6704 = scalar_lea.vmem [#allocation6], %s6703
        %s6705 = sand.u32 %s225, 1
        %s6706 = scalar_lea.sflag [#allocation9], %s6705
        %s6707 = sand.u32 %s225, 1
        %s6708 = smul.addr %s6707, 2
        %s6709 = scalar_lea.vmem [#allocation8], %s6708
        // Predicated region
        $region164: #{tpu_custom_call.1} parent=150 // pred_check
          %p6710 = pneg %p205
        $region165: #{tpu_custom_call.1} parent=150 // pred_check_branch
          %6712 = sbr.rel (%p6710) target = $region167
        $region166: #{tpu_custom_call.1} parent=150 // pred_region
          #allocation11 [shape = 'u32[6]{0}', space=smem, size = 0x18, scoped, tag = 'DMA stride descriptor']
          %s6713 = smul.u32 16, %s30
          %s6715 = ssub.s32 2048, 2048
          %6716 = vsyncadd %s6701, %s6715
          %s6717 = smul.addr %s31, 2
          %s6718 = sadd.s32 %s29, %s6717
          %s6719 = smul.addr %s6713, 32
          %s6720 = sadd.s32 %s6718, %s6719
          %s6721 = smul.addr %s6720, 64
          %s6722 = scalar_lea.hbm %s5, %s6721
          %s6724 = sshll.u32 1, 14
          %s6725 = sxor.u32 4294967295, %s6724
          %s6728 = sshll.u32 7, 18
          %s6729 = sxor.u32 4294967295, %s6728
          %s6730 = sand.u32 0, %s6729
          %s6732 = sor.u32 %s6730, 0
          %s6733 = sshll.u32 %s6704, 4
          %s6734 = int_to_ptr.vmem [resolvable:$true] %s6733
          %6740 = sst [smem:[#allocation11]] 128
          %s6741 = scalar_lea.smem [#allocation11], 1
          %6742 = sst [smem:[%s6741]] 2048
          %s6743 = scalar_lea.smem [#allocation11], 2
          %6744 = sst [smem:[%s6743]] 2
          %s6745 = scalar_lea.smem [#allocation11], 3
          %6746 = sst [smem:[%s6745]] 64
          %s6747 = scalar_lea.smem [#allocation11], 4
          %6748 = sst [smem:[%s6747]] 64
          %s6749 = scalar_lea.smem [#allocation11], 5
          %6750 = sst [smem:[%s6749]] 4
          %6752 = dma.general %s6734, 2048, %s6722, %s6701, 131072, [#allocation11], %s6732, 0
        $region167: #{tpu_custom_call.1} parent=150 // pred_fallthru
          _
        // Predicated region
        $region168: #{tpu_custom_call.1} parent=150 // pred_check
          %p6753 = pneg %p235
        $region169: #{tpu_custom_call.1} parent=150 // pred_check_branch
          %6755 = sbr.rel (%p6753) target = $region171
        $region170: #{tpu_custom_call.1} parent=150 // pred_region
          %s6757 = ssub.s32 32, 32
          %6758 = vsyncadd %s6706, %s6757
          %s6759 = sadd.s32 %s29, %s31
          %s6760 = smul.addr %s30, 16
          %s6761 = sadd.s32 %s6759, %s6760
          %s6762 = smul.addr %s6761, 32
          %s6763 = scalar_lea.hbm %s6, %s6762
          %s6765 = sshll.u32 %s6709, 4
          %s6766 = int_to_ptr.vmem [resolvable:$true] %s6765
          %6768 = dma.vmem_to_hbm [thread:$0]  %s6766, 32, %s6763, %s6706
        $region171: #{tpu_custom_call.1} parent=150 // pred_fallthru
          _
      $region151: #{tpu_custom_call.1} parent=5 // pred_fallthru
        _
      %p6769 = scmp.le.s32.totalorder 2, %s19
      // Predicated region
      $region172: #{tpu_custom_call.1} parent=5 // pred_check
        %p6770 = pneg %p6769
      $region173: #{tpu_custom_call.1} parent=5 // pred_check_branch
        %6772 = sbr.rel (%p6770) target = $region175
      $region174: #{tpu_custom_call.1} parent=5 // pred_region
        %s6773 = ssub.s32 %s19, 2
        // Predicated region
        $region176: #{tpu_custom_call.1} parent=174 // pred_check
          %p6774 = pneg %p211
        $region177: #{tpu_custom_call.1} parent=174 // pred_check_branch
          %6776 = sbr.rel (%p6774) target = $region179
        $region178: #{tpu_custom_call.1} parent=174 // pred_region
          %s6777 = sand.u32 %s196, 1
          %s6778 = scalar_lea.sflag [#allocation7], %s6777
          %s6779 = sand.u32 %s196, 1
          %s6780 = smul.addr %s6779, 128
          %s6781 = scalar_lea.vmem [#allocation6], %s6780
          %6782 = dma.done %s6778, 2048
        $region179: #{tpu_custom_call.1} parent=174 // pred_fallthru
          _
        // Predicated region
        $region180: #{tpu_custom_call.1} parent=174 // pred_check
          %p6783 = pneg %p241
        $region181: #{tpu_custom_call.1} parent=174 // pred_check_branch
          %6785 = sbr.rel (%p6783) target = $region183
        $region182: #{tpu_custom_call.1} parent=174 // pred_region
          %s6786 = sand.u32 %s226, 1
          %s6787 = scalar_lea.sflag [#allocation9], %s6786
          %s6788 = sand.u32 %s226, 1
          %s6789 = smul.addr %s6788, 2
          %s6790 = scalar_lea.vmem [#allocation8], %s6789
          %6791 = dma.done %s6787, 32
        $region183: #{tpu_custom_call.1} parent=174 // pred_fallthru
          _
      $region175: #{tpu_custom_call.1} parent=5 // pred_fallthru
        _
    $region6: #{tpu_custom_call.1} parent=1 // loop_footer
      %s23 = sadd.s32 1, %s19
    $region7: #{tpu_custom_call.1} parent=1 // loop_footer_branch
      %18 = sbr.rel target = $region3
    $region8: #{tpu_custom_call.1} parent=1 // loop_exit
      _
    %6792 = vsyncpa [#allocation7], 1
    %s6793 = scalar_lea.sflag [#allocation7], 1
    %6794 = vsyncpa %s6793, 1
    %6795 = vsyncpa [#allocation9], 1
    %s6796 = scalar_lea.sflag [#allocation9], 1
    %6797 = vsyncpa %s6796, 1

</llo_original>
